<compile_context>
chip_gen: v7x
topology: tpu7x:2x2x1
jax: 0.10.0
libtpu: 0.0.40
codegen_flags: <defaults>
</compile_context>

<pallas_src>
import jax
import jax.numpy as jnp
from jax import lax
from jax.experimental import pallas as pl
from jax.experimental.pallas import tpu as pltpu

# ---------------- problem sizes (small, consistent with the module) ----------------
N = 2            # batch
CIN = 4          # in_channels
COUT = 8         # out_channels
H = W = 16       # spatial
KH = KW = 7      # conv kernel
STRIDE = 2
PAD = KH // 2                                  # 3
OH = (H + 2 * PAD - KH) // STRIDE + 1          # 8
OW = (W + 2 * PAD - KW) // STRIDE + 1          # 8
PH = (OH + 2 * 1 - 3) // 2 + 1                 # 4  (maxpool k=3, s=2, p=1)
PW = (OW + 2 * 1 - 3) // 2 + 1                 # 4
HW = H * W                                     # 256 lanes (dilated conv layout)
R = N * COUT                                   # 16 accumulator rows (n*COUT + co)
K_TAPS = KH * KW                               # 49
WBLK = 2 * CIN                                 # 8 weight columns per tap (block-diag over n)
GB_OFF = K_TAPS * WBLK                         # 392: gamma column, 393: beta column
BN_EPS = 1e-5
NEG_SLOPE = 0.01


# ---------------------------- fused Pallas kernel -----------------------------------
def fused_kernel(x_ref, w_ref, out_ref):
    # x_ref  : (N*CIN, H*W) f32, row = n*CIN + c, lane = h*W + w   (free reshape of NCHW)
    # w_ref  : (2*COUT, 49*8 + 2) f32, per-tap block-diag [[W_t,0],[0,W_t]] + gamma/beta cols
    # out_ref: (N*COUT, PH*PW) f32, row = n*COUT + co, lane = ph*PW + pw
    xr = x_ref[...]                                                    # (8, 256)

    lane = lax.broadcasted_iota(jnp.int32, (1, HW), 1)                 # (1, 256)
    hh = lane >> 4                                                     # input row h (0..15)
    ww = lane & (W - 1)                                                # input col w (0..15)

    # zero-padding validity masks per kernel-row / kernel-col offset (precomputed once)
    hmasks = [jnp.logical_and(hh + (kh - PAD) >= 0, hh + (kh - PAD) < H) for kh in range(KH)]
    wmasks = [jnp.logical_and(ww + (kw - PAD) >= 0, ww + (kw - PAD) < W) for kw in range(KW)]

    # ---- convolution: 49 taps; roll (XLU) + mask (VPU) + tiny block-diag MXU matmul ----
    # Valid conv outputs live at lanes with h, w both even: (h, w) = (2*oh, 2*ow).
    acc = jnp.zeros((R, HW), jnp.float32)
    for kh in range(KH):
        for kw in range(KW):
            t = kh * KW + kw
            s = (kh - PAD) * W + (kw - PAD)                            # lane shift (+h, +w)
            shifted = xr if s == 0 else pltpu.roll(xr, (-s) % HW, 1)   # value from lane l + s
            xt = jnp.where(jnp.logical_and(hmasks[kh], wmasks[kw]), shifted, 0.0)   # (8, 256)
            wt = w_ref[:, t * WBLK:(t + 1) * WBLK]                     # (16, 8)
            acc = acc + jnp.dot(wt, xt, preferred_element_type=jnp.float32)         # (16, 256)

    active = jnp.where(jnp.logical_and((hh & 1) == 0, (ww & 1) == 0), 1.0, 0.0)     # (1, 256)

    # ---- BatchNorm2d (training: batch mean, biased var, masked TWO-PASS) ----
    inv_m = jnp.float32(1.0 / (N * OH * OW))
    s1 = jnp.sum(acc * active, axis=-1, keepdims=True)                 # (16, 1)
    mean = (s1[0:COUT] + s1[COUT:R]) * inv_m                           # (8, 1)
    mean2 = jnp.concatenate([mean, mean], axis=0)                      # (16, 1)
    d = (acc - mean2) * active
    s2 = jnp.sum(d * d, axis=-1, keepdims=True)                        # (16, 1)
    var = (s2[0:COUT] + s2[COUT:R]) * inv_m                            # (8, 1)
    gamma = w_ref[0:COUT, GB_OFF:GB_OFF + 1]                           # (8, 1)
    beta = w_ref[0:COUT, GB_OFF + 1:GB_OFF + 2]                        # (8, 1)
    scale = gamma * lax.rsqrt(var + BN_EPS)                            # EUP rsqrt
    shift = beta - mean * scale
    scale2 = jnp.concatenate([scale, scale], axis=0)                   # (16, 1)
    shift2 = jnp.concatenate([shift, shift], axis=0)
    y = acc * scale2 + shift2                                          # (16, 256)

    # ---- LeakyReLU (negative_slope = 0.01) ----
    y = jnp.where(y >= 0, y, NEG_SLOPE * y)

    # ---- MaxPool2d k=3, s=2, p=1 over the 8x8 conv grid (lanes 32*oh + 2*ow), separable ----
    neg = jnp.float32(-3.0e38)
    oh_i = lane >> 5                                                   # = oh at active lanes
    ow_i = (lane >> 1) & (W - 1)                                       # = ow at active lanes
    left = jnp.where(ow_i == 0, neg, pltpu.roll(y, 2, 1))              # (oh, ow-1)
    right = jnp.where(ow_i == OW - 1, neg, pltpu.roll(y, HW - 2, 1))   # (oh, ow+1)
    rmax = jnp.maximum(jnp.maximum(left, y), right)
    up = jnp.where(oh_i == 0, neg, pltpu.roll(rmax, 2 * W, 1))         # (oh-1, ow)
    down = jnp.where(oh_i == OH - 1, neg, pltpu.roll(rmax, HW - 2 * W, 1))   # (oh+1, ow)
    pooled = jnp.maximum(jnp.maximum(up, rmax), down)                  # finite at every lane

    # ---- compact the valid pool centers (lanes 64*ph + 4*pw) to contiguous lanes 0..15 ----
    li = lax.broadcasted_iota(jnp.int32, (HW, PH * PW), 0)
    pi = lax.broadcasted_iota(jnp.int32, (HW, PH * PW), 1)
    sel = (li == (pi >> 2) * 64 + (pi & 3) * 4).astype(jnp.float32)    # constant 0/1 (256, 16)
    out_ref[...] = jnp.dot(pooled, sel, preferred_element_type=jnp.float32).astype(out_ref.dtype)


# ---------------------------- parameter preprocessing ---------------------------------
def spectral_normalize(weight, key, n_power_iterations=1, eps=1e-12):
    # weight: (COUT, CIN, KH, KW) — one power iteration from a deterministic random u
    # (matches the first training-mode forward of torch spectral_norm, n_power_iterations=1).
    w_mat = weight.reshape(weight.shape[0], -1)
    u = jax.random.normal(key, (weight.shape[0],), dtype=jnp.float32)
    u = u / (jnp.linalg.norm(u) + eps)
    v = None
    for _ in range(n_power_iterations):
        v = w_mat.T @ u
        v = v / (jnp.linalg.norm(v) + eps)
        u = w_mat @ v
        u = u / (jnp.linalg.norm(u) + eps)
    sigma = u @ (w_mat @ v)
    return weight / sigma


def prepare_params(weight_sn, gamma, beta):
    # Pack per-tap block-diagonal weights [[W_t, 0], [0, W_t]] (handles both batch rows in one
    # MXU matmul) plus gamma/beta as two extra columns -> single (16, 394) kernel input.
    w = weight_sn.astype(jnp.float32)                                  # (COUT, CIN, KH, KW)
    taps = jnp.transpose(w, (2, 3, 0, 1))                              # (KH, KW, COUT, CIN)
    zeros = jnp.zeros_like(taps)
    blk = jnp.concatenate(
        [jnp.concatenate([taps, zeros], axis=3),
         jnp.concatenate([zeros, taps], axis=3)], axis=2)              # (KH, KW, 2*COUT, 2*CIN)
    w_blk = jnp.transpose(blk, (2, 0, 1, 3)).reshape(2 * COUT, K_TAPS * WBLK)   # (16, 392)
    gcol = jnp.tile(gamma.astype(jnp.float32).reshape(-1), 2).reshape(2 * COUT, 1)
    bcol = jnp.tile(beta.astype(jnp.float32).reshape(-1), 2).reshape(2 * COUT, 1)
    return jnp.concatenate([w_blk, gcol, bcol], axis=1)                # (16, 394)


# ---------------------------------- forward -------------------------------------------
@jax.jit
def spectral_conv_start(x_nchw, w_aug):
    x_r = x_nchw.astype(jnp.float32).reshape(N * CIN, HW)              # free bitcast of NCHW
    pooled = pl.pallas_call(
        fused_kernel,
        out_shape=jax.ShapeDtypeStruct((R, PH * PW), jnp.float32),
        in_specs=[
            pl.BlockSpec(memory_space=pltpu.MemorySpace.VMEM),
            pl.BlockSpec(memory_space=pltpu.MemorySpace.VMEM),
        ],
        out_specs=pl.BlockSpec(memory_space=pltpu.MemorySpace.VMEM),
        cost_estimate=pl.CostEstimate(
            flops=2 * K_TAPS * R * WBLK * HW + 2 * R * HW * PH * PW,
            transcendentals=COUT,
            bytes_accessed=4 * (N * CIN * HW + R * (GB_OFF + 2) + R * PH * PW),
        ),
    )(x_r, w_aug)
    return pooled.reshape(N, COUT, PH, PW)                             # free bitcast


# ---------------------------- pure-JAX reference ---------------------------------------
def reference_forward(x_nchw, weight, gamma, beta):
    conv = lax.conv_general_dilated(
        x_nchw, weight, window_strides=(STRIDE, STRIDE),
        padding=((PAD, PAD), (PAD, PAD)),
        dimension_numbers=("NCHW", "OIHW", "NCHW"))
    mean = conv.mean(axis=(0, 2, 3), keepdims=True)
    var = ((conv - mean) ** 2).mean(axis=(0, 2, 3), keepdims=True)
    bn = (conv - mean) / jnp.sqrt(var + BN_EPS)
    bn = bn * gamma.reshape(1, COUT, 1, 1) + beta.reshape(1, COUT, 1, 1)
    y = jnp.where(bn >= 0, bn, NEG_SLOPE * bn)
    return lax.reduce_window(
        y, -jnp.inf, lax.max,
        window_dimensions=(1, 1, 3, 3), window_strides=(1, 1, 2, 2),
        padding=[(0, 0), (0, 0), (1, 1), (1, 1)])


if __name__ == "__main__":
    key = jax.random.PRNGKey(0)
    k_x, k_w, k_u = jax.random.split(key, 3)

    x = jax.random.normal(k_x, (N, CIN, H, W), dtype=jnp.float32)
    fan_in = CIN * KH * KW
    weight_orig = jax.random.normal(k_w, (COUT, CIN, KH, KW), dtype=jnp.float32) * (1.0 / fan_in) ** 0.5
    weight_sn = spectral_normalize(weight_orig, k_u, n_power_iterations=1)
    gamma = jnp.ones((COUT,), dtype=jnp.float32)   # BatchNorm2d default weight
    beta = jnp.zeros((COUT,), dtype=jnp.float32)   # BatchNorm2d default bias

    w_aug = prepare_params(weight_sn, gamma, beta)  # one-time parameter packing

    out = jax.block_until_ready(spectral_conv_start(x, w_aug))
    ref = jax.block_until_ready(reference_forward(x, weight_sn, gamma, beta))

    assert out.shape == (N, COUT, PH, PW), out.shape
    assert jnp.allclose(out, ref, atol=1e-3, rtol=1e-3), float(jnp.max(jnp.abs(out - ref)))

    print("KERNEL_OK")
</pallas_src>

<mosaic_0001>
module attributes {stable_mosaic.version = 11 : i64} {
  func.func @fused_kernel(%arg0: memref<8x256xf32, #tpu.memory_space<vmem>>, %arg1: memref<16x394xf32, #tpu.memory_space<vmem>>, %arg2: memref<16x16xf32, #tpu.memory_space<vmem>>) attributes {dimension_semantics = [], scalar_prefetch = 0 : i64, scratch_operands = 0 : i64, tpu.core_type = #tpu.core_type<tc>} {
    %c0 = arith.constant 0 : index
    %c0_0 = arith.constant 0 : index
    %0 = vector.load %arg0[%c0, %c0_0] : memref<8x256xf32, #tpu.memory_space<vmem>>, vector<8x256xf32>
    %1 = tpu.iota {dimensions = array<i32: 1>} : vector<1x256xi32>
    %c4_i32 = arith.constant 4 : i32
    %2 = vector.broadcast %c4_i32 : i32 to vector<1x256xi32>
    %3 = arith.shrsi %1, %2 : vector<1x256xi32>
    %c15_i32 = arith.constant 15 : i32
    %4 = vector.broadcast %c15_i32 : i32 to vector<1x256xi32>
    %5 = arith.andi %1, %4 : vector<1x256xi32>
    %c-3_i32 = arith.constant -3 : i32
    %6 = vector.broadcast %c-3_i32 : i32 to vector<1x256xi32>
    %7 = arith.addi %3, %6 : vector<1x256xi32>
    %c0_i32 = arith.constant 0 : i32
    %8 = vector.broadcast %c0_i32 : i32 to vector<1x256xi32>
    %9 = arith.cmpi sge, %7, %8 : vector<1x256xi32>
    %c-3_i32_1 = arith.constant -3 : i32
    %10 = vector.broadcast %c-3_i32_1 : i32 to vector<1x256xi32>
    %11 = arith.addi %3, %10 : vector<1x256xi32>
    %c16_i32 = arith.constant 16 : i32
    %12 = vector.broadcast %c16_i32 : i32 to vector<1x256xi32>
    %13 = arith.cmpi slt, %11, %12 : vector<1x256xi32>
    %14 = arith.andi %9, %13 : vector<1x256xi1>
    %c-2_i32 = arith.constant -2 : i32
    %15 = vector.broadcast %c-2_i32 : i32 to vector<1x256xi32>
    %16 = arith.addi %3, %15 : vector<1x256xi32>
    %c0_i32_2 = arith.constant 0 : i32
    %17 = vector.broadcast %c0_i32_2 : i32 to vector<1x256xi32>
    %18 = arith.cmpi sge, %16, %17 : vector<1x256xi32>
    %c-2_i32_3 = arith.constant -2 : i32
    %19 = vector.broadcast %c-2_i32_3 : i32 to vector<1x256xi32>
    %20 = arith.addi %3, %19 : vector<1x256xi32>
    %c16_i32_4 = arith.constant 16 : i32
    %21 = vector.broadcast %c16_i32_4 : i32 to vector<1x256xi32>
    %22 = arith.cmpi slt, %20, %21 : vector<1x256xi32>
    %23 = arith.andi %18, %22 : vector<1x256xi1>
    %c-1_i32 = arith.constant -1 : i32
    %24 = vector.broadcast %c-1_i32 : i32 to vector<1x256xi32>
    %25 = arith.addi %3, %24 : vector<1x256xi32>
    %c0_i32_5 = arith.constant 0 : i32
    %26 = vector.broadcast %c0_i32_5 : i32 to vector<1x256xi32>
    %27 = arith.cmpi sge, %25, %26 : vector<1x256xi32>
    %c-1_i32_6 = arith.constant -1 : i32
    %28 = vector.broadcast %c-1_i32_6 : i32 to vector<1x256xi32>
    %29 = arith.addi %3, %28 : vector<1x256xi32>
    %c16_i32_7 = arith.constant 16 : i32
    %30 = vector.broadcast %c16_i32_7 : i32 to vector<1x256xi32>
    %31 = arith.cmpi slt, %29, %30 : vector<1x256xi32>
    %32 = arith.andi %27, %31 : vector<1x256xi1>
    %c0_i32_8 = arith.constant 0 : i32
    %33 = vector.broadcast %c0_i32_8 : i32 to vector<1x256xi32>
    %34 = arith.addi %3, %33 : vector<1x256xi32>
    %c0_i32_9 = arith.constant 0 : i32
    %35 = vector.broadcast %c0_i32_9 : i32 to vector<1x256xi32>
    %36 = arith.cmpi sge, %34, %35 : vector<1x256xi32>
    %c0_i32_10 = arith.constant 0 : i32
    %37 = vector.broadcast %c0_i32_10 : i32 to vector<1x256xi32>
    %38 = arith.addi %3, %37 : vector<1x256xi32>
    %c16_i32_11 = arith.constant 16 : i32
    %39 = vector.broadcast %c16_i32_11 : i32 to vector<1x256xi32>
    %40 = arith.cmpi slt, %38, %39 : vector<1x256xi32>
    %41 = arith.andi %36, %40 : vector<1x256xi1>
    %c1_i32 = arith.constant 1 : i32
    %42 = vector.broadcast %c1_i32 : i32 to vector<1x256xi32>
    %43 = arith.addi %3, %42 : vector<1x256xi32>
    %c0_i32_12 = arith.constant 0 : i32
    %44 = vector.broadcast %c0_i32_12 : i32 to vector<1x256xi32>
    %45 = arith.cmpi sge, %43, %44 : vector<1x256xi32>
    %c1_i32_13 = arith.constant 1 : i32
    %46 = vector.broadcast %c1_i32_13 : i32 to vector<1x256xi32>
    %47 = arith.addi %3, %46 : vector<1x256xi32>
    %c16_i32_14 = arith.constant 16 : i32
    %48 = vector.broadcast %c16_i32_14 : i32 to vector<1x256xi32>
    %49 = arith.cmpi slt, %47, %48 : vector<1x256xi32>
    %50 = arith.andi %45, %49 : vector<1x256xi1>
    %c2_i32 = arith.constant 2 : i32
    %51 = vector.broadcast %c2_i32 : i32 to vector<1x256xi32>
    %52 = arith.addi %3, %51 : vector<1x256xi32>
    %c0_i32_15 = arith.constant 0 : i32
    %53 = vector.broadcast %c0_i32_15 : i32 to vector<1x256xi32>
    %54 = arith.cmpi sge, %52, %53 : vector<1x256xi32>
    %c2_i32_16 = arith.constant 2 : i32
    %55 = vector.broadcast %c2_i32_16 : i32 to vector<1x256xi32>
    %56 = arith.addi %3, %55 : vector<1x256xi32>
    %c16_i32_17 = arith.constant 16 : i32
    %57 = vector.broadcast %c16_i32_17 : i32 to vector<1x256xi32>
    %58 = arith.cmpi slt, %56, %57 : vector<1x256xi32>
    %59 = arith.andi %54, %58 : vector<1x256xi1>
    %c3_i32 = arith.constant 3 : i32
    %60 = vector.broadcast %c3_i32 : i32 to vector<1x256xi32>
    %61 = arith.addi %3, %60 : vector<1x256xi32>
    %c0_i32_18 = arith.constant 0 : i32
    %62 = vector.broadcast %c0_i32_18 : i32 to vector<1x256xi32>
    %63 = arith.cmpi sge, %61, %62 : vector<1x256xi32>
    %c3_i32_19 = arith.constant 3 : i32
    %64 = vector.broadcast %c3_i32_19 : i32 to vector<1x256xi32>
    %65 = arith.addi %3, %64 : vector<1x256xi32>
    %c16_i32_20 = arith.constant 16 : i32
    %66 = vector.broadcast %c16_i32_20 : i32 to vector<1x256xi32>
    %67 = arith.cmpi slt, %65, %66 : vector<1x256xi32>
    %68 = arith.andi %63, %67 : vector<1x256xi1>
    %c-3_i32_21 = arith.constant -3 : i32
    %69 = vector.broadcast %c-3_i32_21 : i32 to vector<1x256xi32>
    %70 = arith.addi %5, %69 : vector<1x256xi32>
    %c0_i32_22 = arith.constant 0 : i32
    %71 = vector.broadcast %c0_i32_22 : i32 to vector<1x256xi32>
    %72 = arith.cmpi sge, %70, %71 : vector<1x256xi32>
    %c-3_i32_23 = arith.constant -3 : i32
    %73 = vector.broadcast %c-3_i32_23 : i32 to vector<1x256xi32>
    %74 = arith.addi %5, %73 : vector<1x256xi32>
    %c16_i32_24 = arith.constant 16 : i32
    %75 = vector.broadcast %c16_i32_24 : i32 to vector<1x256xi32>
    %76 = arith.cmpi slt, %74, %75 : vector<1x256xi32>
    %77 = arith.andi %72, %76 : vector<1x256xi1>
    %c-2_i32_25 = arith.constant -2 : i32
    %78 = vector.broadcast %c-2_i32_25 : i32 to vector<1x256xi32>
    %79 = arith.addi %5, %78 : vector<1x256xi32>
    %c0_i32_26 = arith.constant 0 : i32
    %80 = vector.broadcast %c0_i32_26 : i32 to vector<1x256xi32>
    %81 = arith.cmpi sge, %79, %80 : vector<1x256xi32>
    %c-2_i32_27 = arith.constant -2 : i32
    %82 = vector.broadcast %c-2_i32_27 : i32 to vector<1x256xi32>
    %83 = arith.addi %5, %82 : vector<1x256xi32>
    %c16_i32_28 = arith.constant 16 : i32
    %84 = vector.broadcast %c16_i32_28 : i32 to vector<1x256xi32>
    %85 = arith.cmpi slt, %83, %84 : vector<1x256xi32>
    %86 = arith.andi %81, %85 : vector<1x256xi1>
    %c-1_i32_29 = arith.constant -1 : i32
    %87 = vector.broadcast %c-1_i32_29 : i32 to vector<1x256xi32>
    %88 = arith.addi %5, %87 : vector<1x256xi32>
    %c0_i32_30 = arith.constant 0 : i32
    %89 = vector.broadcast %c0_i32_30 : i32 to vector<1x256xi32>
    %90 = arith.cmpi sge, %88, %89 : vector<1x256xi32>
    %c-1_i32_31 = arith.constant -1 : i32
    %91 = vector.broadcast %c-1_i32_31 : i32 to vector<1x256xi32>
    %92 = arith.addi %5, %91 : vector<1x256xi32>
    %c16_i32_32 = arith.constant 16 : i32
    %93 = vector.broadcast %c16_i32_32 : i32 to vector<1x256xi32>
    %94 = arith.cmpi slt, %92, %93 : vector<1x256xi32>
    %95 = arith.andi %90, %94 : vector<1x256xi1>
    %c0_i32_33 = arith.constant 0 : i32
    %96 = vector.broadcast %c0_i32_33 : i32 to vector<1x256xi32>
    %97 = arith.addi %5, %96 : vector<1x256xi32>
    %c0_i32_34 = arith.constant 0 : i32
    %98 = vector.broadcast %c0_i32_34 : i32 to vector<1x256xi32>
    %99 = arith.cmpi sge, %97, %98 : vector<1x256xi32>
    %c0_i32_35 = arith.constant 0 : i32
    %100 = vector.broadcast %c0_i32_35 : i32 to vector<1x256xi32>
    %101 = arith.addi %5, %100 : vector<1x256xi32>
    %c16_i32_36 = arith.constant 16 : i32
    %102 = vector.broadcast %c16_i32_36 : i32 to vector<1x256xi32>
    %103 = arith.cmpi slt, %101, %102 : vector<1x256xi32>
    %104 = arith.andi %99, %103 : vector<1x256xi1>
    %c1_i32_37 = arith.constant 1 : i32
    %105 = vector.broadcast %c1_i32_37 : i32 to vector<1x256xi32>
    %106 = arith.addi %5, %105 : vector<1x256xi32>
    %c0_i32_38 = arith.constant 0 : i32
    %107 = vector.broadcast %c0_i32_38 : i32 to vector<1x256xi32>
    %108 = arith.cmpi sge, %106, %107 : vector<1x256xi32>
    %c1_i32_39 = arith.constant 1 : i32
    %109 = vector.broadcast %c1_i32_39 : i32 to vector<1x256xi32>
    %110 = arith.addi %5, %109 : vector<1x256xi32>
    %c16_i32_40 = arith.constant 16 : i32
    %111 = vector.broadcast %c16_i32_40 : i32 to vector<1x256xi32>
    %112 = arith.cmpi slt, %110, %111 : vector<1x256xi32>
    %113 = arith.andi %108, %112 : vector<1x256xi1>
    %c2_i32_41 = arith.constant 2 : i32
    %114 = vector.broadcast %c2_i32_41 : i32 to vector<1x256xi32>
    %115 = arith.addi %5, %114 : vector<1x256xi32>
    %c0_i32_42 = arith.constant 0 : i32
    %116 = vector.broadcast %c0_i32_42 : i32 to vector<1x256xi32>
    %117 = arith.cmpi sge, %115, %116 : vector<1x256xi32>
    %c2_i32_43 = arith.constant 2 : i32
    %118 = vector.broadcast %c2_i32_43 : i32 to vector<1x256xi32>
    %119 = arith.addi %5, %118 : vector<1x256xi32>
    %c16_i32_44 = arith.constant 16 : i32
    %120 = vector.broadcast %c16_i32_44 : i32 to vector<1x256xi32>
    %121 = arith.cmpi slt, %119, %120 : vector<1x256xi32>
    %122 = arith.andi %117, %121 : vector<1x256xi1>
    %c3_i32_45 = arith.constant 3 : i32
    %123 = vector.broadcast %c3_i32_45 : i32 to vector<1x256xi32>
    %124 = arith.addi %5, %123 : vector<1x256xi32>
    %c0_i32_46 = arith.constant 0 : i32
    %125 = vector.broadcast %c0_i32_46 : i32 to vector<1x256xi32>
    %126 = arith.cmpi sge, %124, %125 : vector<1x256xi32>
    %c3_i32_47 = arith.constant 3 : i32
    %127 = vector.broadcast %c3_i32_47 : i32 to vector<1x256xi32>
    %128 = arith.addi %5, %127 : vector<1x256xi32>
    %c16_i32_48 = arith.constant 16 : i32
    %129 = vector.broadcast %c16_i32_48 : i32 to vector<1x256xi32>
    %130 = arith.cmpi slt, %128, %129 : vector<1x256xi32>
    %131 = arith.andi %126, %130 : vector<1x256xi1>
    %cst = arith.constant 0.000000e+00 : f32
    %132 = vector.broadcast %cst : f32 to vector<16x256xf32>
    %c51_i32 = arith.constant 51 : i32
    %133 = tpu.dynamic_rotate %0 by %c51_i32 dim 1 : vector<8x256xf32>, i32 -> vector<8x256xf32>
    %134 = arith.andi %14, %77 : vector<1x256xi1>
    %cst_49 = arith.constant 0.000000e+00 : f32
    %135 = vector.shape_cast %134 : vector<1x256xi1> to vector<1x256xi1>
    %136 = vector.broadcast %135 : vector<1x256xi1> to vector<8x256xi1>
    %137 = vector.broadcast %cst_49 : f32 to vector<8x256xf32>
    %138 = arith.select %136, %133, %137 : vector<8x256xi1>, vector<8x256xf32>
    %c0_50 = arith.constant 0 : index
    %c0_51 = arith.constant 0 : index
    %139 = vector.load %arg1[%c0_50, %c0_51] : memref<16x394xf32, #tpu.memory_space<vmem>>, vector<16x8xf32>
    %cst_52 = arith.constant dense<0.000000e+00> : vector<16x256xf32>
    %140 = tpu.matmul %139, %138, %cst_52 {dimension_numbers = #tpu.dot_dimension_numbers<[1], [0], [0], [1], [0, 0, 1, 1], [], []>} : vector<16x8xf32>, vector<8x256xf32>, vector<16x256xf32> -> vector<16x256xf32>
    %141 = arith.addf %132, %140 : vector<16x256xf32>
    %c50_i32 = arith.constant 50 : i32
    %142 = tpu.dynamic_rotate %0 by %c50_i32 dim 1 : vector<8x256xf32>, i32 -> vector<8x256xf32>
    %143 = arith.andi %14, %86 : vector<1x256xi1>
    %cst_53 = arith.constant 0.000000e+00 : f32
    %144 = vector.shape_cast %143 : vector<1x256xi1> to vector<1x256xi1>
    %145 = vector.broadcast %144 : vector<1x256xi1> to vector<8x256xi1>
    %146 = vector.broadcast %cst_53 : f32 to vector<8x256xf32>
    %147 = arith.select %145, %142, %146 : vector<8x256xi1>, vector<8x256xf32>
    %c0_54 = arith.constant 0 : index
    %c8 = arith.constant 8 : index
    %148 = vector.load %arg1[%c0_54, %c8] : memref<16x394xf32, #tpu.memory_space<vmem>>, vector<16x8xf32>
    %cst_55 = arith.constant dense<0.000000e+00> : vector<16x256xf32>
    %149 = tpu.matmul %148, %147, %cst_55 {dimension_numbers = #tpu.dot_dimension_numbers<[1], [0], [0], [1], [0, 0, 1, 1], [], []>} : vector<16x8xf32>, vector<8x256xf32>, vector<16x256xf32> -> vector<16x256xf32>
    %150 = arith.addf %141, %149 : vector<16x256xf32>
    %c49_i32 = arith.constant 49 : i32
    %151 = tpu.dynamic_rotate %0 by %c49_i32 dim 1 : vector<8x256xf32>, i32 -> vector<8x256xf32>
    %152 = arith.andi %14, %95 : vector<1x256xi1>
    %cst_56 = arith.constant 0.000000e+00 : f32
    %153 = vector.shape_cast %152 : vector<1x256xi1> to vector<1x256xi1>
    %154 = vector.broadcast %153 : vector<1x256xi1> to vector<8x256xi1>
    %155 = vector.broadcast %cst_56 : f32 to vector<8x256xf32>
    %156 = arith.select %154, %151, %155 : vector<8x256xi1>, vector<8x256xf32>
    %c0_57 = arith.constant 0 : index
    %c16 = arith.constant 16 : index
    %157 = vector.load %arg1[%c0_57, %c16] : memref<16x394xf32, #tpu.memory_space<vmem>>, vector<16x8xf32>
    %cst_58 = arith.constant dense<0.000000e+00> : vector<16x256xf32>
    %158 = tpu.matmul %157, %156, %cst_58 {dimension_numbers = #tpu.dot_dimension_numbers<[1], [0], [0], [1], [0, 0, 1, 1], [], []>} : vector<16x8xf32>, vector<8x256xf32>, vector<16x256xf32> -> vector<16x256xf32>
    %159 = arith.addf %150, %158 : vector<16x256xf32>
    %c48_i32 = arith.constant 48 : i32
    %160 = tpu.dynamic_rotate %0 by %c48_i32 dim 1 : vector<8x256xf32>, i32 -> vector<8x256xf32>
    %161 = arith.andi %14, %104 : vector<1x256xi1>
    %cst_59 = arith.constant 0.000000e+00 : f32
    %162 = vector.shape_cast %161 : vector<1x256xi1> to vector<1x256xi1>
    %163 = vector.broadcast %162 : vector<1x256xi1> to vector<8x256xi1>
    %164 = vector.broadcast %cst_59 : f32 to vector<8x256xf32>
    %165 = arith.select %163, %160, %164 : vector<8x256xi1>, vector<8x256xf32>
    %c0_60 = arith.constant 0 : index
    %c24 = arith.constant 24 : index
    %166 = vector.load %arg1[%c0_60, %c24] : memref<16x394xf32, #tpu.memory_space<vmem>>, vector<16x8xf32>
    %cst_61 = arith.constant dense<0.000000e+00> : vector<16x256xf32>
    %167 = tpu.matmul %166, %165, %cst_61 {dimension_numbers = #tpu.dot_dimension_numbers<[1], [0], [0], [1], [0, 0, 1, 1], [], []>} : vector<16x8xf32>, vector<8x256xf32>, vector<16x256xf32> -> vector<16x256xf32>
    %168 = arith.addf %159, %167 : vector<16x256xf32>
    %c47_i32 = arith.constant 47 : i32
    %169 = tpu.dynamic_rotate %0 by %c47_i32 dim 1 : vector<8x256xf32>, i32 -> vector<8x256xf32>
    %170 = arith.andi %14, %113 : vector<1x256xi1>
    %cst_62 = arith.constant 0.000000e+00 : f32
    %171 = vector.shape_cast %170 : vector<1x256xi1> to vector<1x256xi1>
    %172 = vector.broadcast %171 : vector<1x256xi1> to vector<8x256xi1>
    %173 = vector.broadcast %cst_62 : f32 to vector<8x256xf32>
    %174 = arith.select %172, %169, %173 : vector<8x256xi1>, vector<8x256xf32>
    %c0_63 = arith.constant 0 : index
    %c32 = arith.constant 32 : index
    %175 = vector.load %arg1[%c0_63, %c32] : memref<16x394xf32, #tpu.memory_space<vmem>>, vector<16x8xf32>
    %cst_64 = arith.constant dense<0.000000e+00> : vector<16x256xf32>
    %176 = tpu.matmul %175, %174, %cst_64 {dimension_numbers = #tpu.dot_dimension_numbers<[1], [0], [0], [1], [0, 0, 1, 1], [], []>} : vector<16x8xf32>, vector<8x256xf32>, vector<16x256xf32> -> vector<16x256xf32>
    %177 = arith.addf %168, %176 : vector<16x256xf32>
    %c46_i32 = arith.constant 46 : i32
    %178 = tpu.dynamic_rotate %0 by %c46_i32 dim 1 : vector<8x256xf32>, i32 -> vector<8x256xf32>
    %179 = arith.andi %14, %122 : vector<1x256xi1>
    %cst_65 = arith.constant 0.000000e+00 : f32
    %180 = vector.shape_cast %179 : vector<1x256xi1> to vector<1x256xi1>
    %181 = vector.broadcast %180 : vector<1x256xi1> to vector<8x256xi1>
    %182 = vector.broadcast %cst_65 : f32 to vector<8x256xf32>
    %183 = arith.select %181, %178, %182 : vector<8x256xi1>, vector<8x256xf32>
    %c0_66 = arith.constant 0 : index
    %c40 = arith.constant 40 : index
    %184 = vector.load %arg1[%c0_66, %c40] : memref<16x394xf32, #tpu.memory_space<vmem>>, vector<16x8xf32>
    %cst_67 = arith.constant dense<0.000000e+00> : vector<16x256xf32>
    %185 = tpu.matmul %184, %183, %cst_67 {dimension_numbers = #tpu.dot_dimension_numbers<[1], [0], [0], [1], [0, 0, 1, 1], [], []>} : vector<16x8xf32>, vector<8x256xf32>, vector<16x256xf32> -> vector<16x256xf32>
    %186 = arith.addf %177, %185 : vector<16x256xf32>
    %c45_i32 = arith.constant 45 : i32
    %187 = tpu.dynamic_rotate %0 by %c45_i32 dim 1 : vector<8x256xf32>, i32 -> vector<8x256xf32>
    %188 = arith.andi %14, %131 : vector<1x256xi1>
    %cst_68 = arith.constant 0.000000e+00 : f32
    %189 = vector.shape_cast %188 : vector<1x256xi1> to vector<1x256xi1>
    %190 = vector.broadcast %189 : vector<1x256xi1> to vector<8x256xi1>
    %191 = vector.broadcast %cst_68 : f32 to vector<8x256xf32>
    %192 = arith.select %190, %187, %191 : vector<8x256xi1>, vector<8x256xf32>
    %c0_69 = arith.constant 0 : index
    %c48 = arith.constant 48 : index
    %193 = vector.load %arg1[%c0_69, %c48] : memref<16x394xf32, #tpu.memory_space<vmem>>, vector<16x8xf32>
    %cst_70 = arith.constant dense<0.000000e+00> : vector<16x256xf32>
    %194 = tpu.matmul %193, %192, %cst_70 {dimension_numbers = #tpu.dot_dimension_numbers<[1], [0], [0], [1], [0, 0, 1, 1], [], []>} : vector<16x8xf32>, vector<8x256xf32>, vector<16x256xf32> -> vector<16x256xf32>
    %195 = arith.addf %186, %194 : vector<16x256xf32>
    %c35_i32 = arith.constant 35 : i32
    %196 = tpu.dynamic_rotate %0 by %c35_i32 dim 1 : vector<8x256xf32>, i32 -> vector<8x256xf32>
    %197 = arith.andi %23, %77 : vector<1x256xi1>
    %cst_71 = arith.constant 0.000000e+00 : f32
    %198 = vector.shape_cast %197 : vector<1x256xi1> to vector<1x256xi1>
    %199 = vector.broadcast %198 : vector<1x256xi1> to vector<8x256xi1>
    %200 = vector.broadcast %cst_71 : f32 to vector<8x256xf32>
    %201 = arith.select %199, %196, %200 : vector<8x256xi1>, vector<8x256xf32>
    %c0_72 = arith.constant 0 : index
    %c56 = arith.constant 56 : index
    %202 = vector.load %arg1[%c0_72, %c56] : memref<16x394xf32, #tpu.memory_space<vmem>>, vector<16x8xf32>
    %cst_73 = arith.constant dense<0.000000e+00> : vector<16x256xf32>
    %203 = tpu.matmul %202, %201, %cst_73 {dimension_numbers = #tpu.dot_dimension_numbers<[1], [0], [0], [1], [0, 0, 1, 1], [], []>} : vector<16x8xf32>, vector<8x256xf32>, vector<16x256xf32> -> vector<16x256xf32>
    %204 = arith.addf %195, %203 : vector<16x256xf32>
    %c34_i32 = arith.constant 34 : i32
    %205 = tpu.dynamic_rotate %0 by %c34_i32 dim 1 : vector<8x256xf32>, i32 -> vector<8x256xf32>
    %206 = arith.andi %23, %86 : vector<1x256xi1>
    %cst_74 = arith.constant 0.000000e+00 : f32
    %207 = vector.shape_cast %206 : vector<1x256xi1> to vector<1x256xi1>
    %208 = vector.broadcast %207 : vector<1x256xi1> to vector<8x256xi1>
    %209 = vector.broadcast %cst_74 : f32 to vector<8x256xf32>
    %210 = arith.select %208, %205, %209 : vector<8x256xi1>, vector<8x256xf32>
    %c0_75 = arith.constant 0 : index
    %c64 = arith.constant 64 : index
    %211 = vector.load %arg1[%c0_75, %c64] : memref<16x394xf32, #tpu.memory_space<vmem>>, vector<16x8xf32>
    %cst_76 = arith.constant dense<0.000000e+00> : vector<16x256xf32>
    %212 = tpu.matmul %211, %210, %cst_76 {dimension_numbers = #tpu.dot_dimension_numbers<[1], [0], [0], [1], [0, 0, 1, 1], [], []>} : vector<16x8xf32>, vector<8x256xf32>, vector<16x256xf32> -> vector<16x256xf32>
    %213 = arith.addf %204, %212 : vector<16x256xf32>
    %c33_i32 = arith.constant 33 : i32
    %214 = tpu.dynamic_rotate %0 by %c33_i32 dim 1 : vector<8x256xf32>, i32 -> vector<8x256xf32>
    %215 = arith.andi %23, %95 : vector<1x256xi1>
    %cst_77 = arith.constant 0.000000e+00 : f32
    %216 = vector.shape_cast %215 : vector<1x256xi1> to vector<1x256xi1>
    %217 = vector.broadcast %216 : vector<1x256xi1> to vector<8x256xi1>
    %218 = vector.broadcast %cst_77 : f32 to vector<8x256xf32>
    %219 = arith.select %217, %214, %218 : vector<8x256xi1>, vector<8x256xf32>
    %c0_78 = arith.constant 0 : index
    %c72 = arith.constant 72 : index
    %220 = vector.load %arg1[%c0_78, %c72] : memref<16x394xf32, #tpu.memory_space<vmem>>, vector<16x8xf32>
    %cst_79 = arith.constant dense<0.000000e+00> : vector<16x256xf32>
    %221 = tpu.matmul %220, %219, %cst_79 {dimension_numbers = #tpu.dot_dimension_numbers<[1], [0], [0], [1], [0, 0, 1, 1], [], []>} : vector<16x8xf32>, vector<8x256xf32>, vector<16x256xf32> -> vector<16x256xf32>
    %222 = arith.addf %213, %221 : vector<16x256xf32>
    %c32_i32 = arith.constant 32 : i32
    %223 = tpu.dynamic_rotate %0 by %c32_i32 dim 1 : vector<8x256xf32>, i32 -> vector<8x256xf32>
    %224 = arith.andi %23, %104 : vector<1x256xi1>
    %cst_80 = arith.constant 0.000000e+00 : f32
    %225 = vector.shape_cast %224 : vector<1x256xi1> to vector<1x256xi1>
    %226 = vector.broadcast %225 : vector<1x256xi1> to vector<8x256xi1>
    %227 = vector.broadcast %cst_80 : f32 to vector<8x256xf32>
    %228 = arith.select %226, %223, %227 : vector<8x256xi1>, vector<8x256xf32>
    %c0_81 = arith.constant 0 : index
    %c80 = arith.constant 80 : index
    %229 = vector.load %arg1[%c0_81, %c80] : memref<16x394xf32, #tpu.memory_space<vmem>>, vector<16x8xf32>
    %cst_82 = arith.constant dense<0.000000e+00> : vector<16x256xf32>
    %230 = tpu.matmul %229, %228, %cst_82 {dimension_numbers = #tpu.dot_dimension_numbers<[1], [0], [0], [1], [0, 0, 1, 1], [], []>} : vector<16x8xf32>, vector<8x256xf32>, vector<16x256xf32> -> vector<16x256xf32>
    %231 = arith.addf %222, %230 : vector<16x256xf32>
    %c31_i32 = arith.constant 31 : i32
    %232 = tpu.dynamic_rotate %0 by %c31_i32 dim 1 : vector<8x256xf32>, i32 -> vector<8x256xf32>
    %233 = arith.andi %23, %113 : vector<1x256xi1>
    %cst_83 = arith.constant 0.000000e+00 : f32
    %234 = vector.shape_cast %233 : vector<1x256xi1> to vector<1x256xi1>
    %235 = vector.broadcast %234 : vector<1x256xi1> to vector<8x256xi1>
    %236 = vector.broadcast %cst_83 : f32 to vector<8x256xf32>
    %237 = arith.select %235, %232, %236 : vector<8x256xi1>, vector<8x256xf32>
    %c0_84 = arith.constant 0 : index
    %c88 = arith.constant 88 : index
    %238 = vector.load %arg1[%c0_84, %c88] : memref<16x394xf32, #tpu.memory_space<vmem>>, vector<16x8xf32>
    %cst_85 = arith.constant dense<0.000000e+00> : vector<16x256xf32>
    %239 = tpu.matmul %238, %237, %cst_85 {dimension_numbers = #tpu.dot_dimension_numbers<[1], [0], [0], [1], [0, 0, 1, 1], [], []>} : vector<16x8xf32>, vector<8x256xf32>, vector<16x256xf32> -> vector<16x256xf32>
    %240 = arith.addf %231, %239 : vector<16x256xf32>
    %c30_i32 = arith.constant 30 : i32
    %241 = tpu.dynamic_rotate %0 by %c30_i32 dim 1 : vector<8x256xf32>, i32 -> vector<8x256xf32>
    %242 = arith.andi %23, %122 : vector<1x256xi1>
    %cst_86 = arith.constant 0.000000e+00 : f32
    %243 = vector.shape_cast %242 : vector<1x256xi1> to vector<1x256xi1>
    %244 = vector.broadcast %243 : vector<1x256xi1> to vector<8x256xi1>
    %245 = vector.broadcast %cst_86 : f32 to vector<8x256xf32>
    %246 = arith.select %244, %241, %245 : vector<8x256xi1>, vector<8x256xf32>
    %c0_87 = arith.constant 0 : index
    %c96 = arith.constant 96 : index
    %247 = vector.load %arg1[%c0_87, %c96] : memref<16x394xf32, #tpu.memory_space<vmem>>, vector<16x8xf32>
    %cst_88 = arith.constant dense<0.000000e+00> : vector<16x256xf32>
    %248 = tpu.matmul %247, %246, %cst_88 {dimension_numbers = #tpu.dot_dimension_numbers<[1], [0], [0], [1], [0, 0, 1, 1], [], []>} : vector<16x8xf32>, vector<8x256xf32>, vector<16x256xf32> -> vector<16x256xf32>
    %249 = arith.addf %240, %248 : vector<16x256xf32>
    %c29_i32 = arith.constant 29 : i32
    %250 = tpu.dynamic_rotate %0 by %c29_i32 dim 1 : vector<8x256xf32>, i32 -> vector<8x256xf32>
    %251 = arith.andi %23, %131 : vector<1x256xi1>
    %cst_89 = arith.constant 0.000000e+00 : f32
    %252 = vector.shape_cast %251 : vector<1x256xi1> to vector<1x256xi1>
    %253 = vector.broadcast %252 : vector<1x256xi1> to vector<8x256xi1>
    %254 = vector.broadcast %cst_89 : f32 to vector<8x256xf32>
    %255 = arith.select %253, %250, %254 : vector<8x256xi1>, vector<8x256xf32>
    %c0_90 = arith.constant 0 : index
    %c104 = arith.constant 104 : index
    %256 = vector.load %arg1[%c0_90, %c104] : memref<16x394xf32, #tpu.memory_space<vmem>>, vector<16x8xf32>
    %cst_91 = arith.constant dense<0.000000e+00> : vector<16x256xf32>
    %257 = tpu.matmul %256, %255, %cst_91 {dimension_numbers = #tpu.dot_dimension_numbers<[1], [0], [0], [1], [0, 0, 1, 1], [], []>} : vector<16x8xf32>, vector<8x256xf32>, vector<16x256xf32> -> vector<16x256xf32>
    %258 = arith.addf %249, %257 : vector<16x256xf32>
    %c19_i32 = arith.constant 19 : i32
    %259 = tpu.dynamic_rotate %0 by %c19_i32 dim 1 : vector<8x256xf32>, i32 -> vector<8x256xf32>
    %260 = arith.andi %32, %77 : vector<1x256xi1>
    %cst_92 = arith.constant 0.000000e+00 : f32
    %261 = vector.shape_cast %260 : vector<1x256xi1> to vector<1x256xi1>
    %262 = vector.broadcast %261 : vector<1x256xi1> to vector<8x256xi1>
    %263 = vector.broadcast %cst_92 : f32 to vector<8x256xf32>
    %264 = arith.select %262, %259, %263 : vector<8x256xi1>, vector<8x256xf32>
    %c0_93 = arith.constant 0 : index
    %c112 = arith.constant 112 : index
    %265 = vector.load %arg1[%c0_93, %c112] : memref<16x394xf32, #tpu.memory_space<vmem>>, vector<16x8xf32>
    %cst_94 = arith.constant dense<0.000000e+00> : vector<16x256xf32>
    %266 = tpu.matmul %265, %264, %cst_94 {dimension_numbers = #tpu.dot_dimension_numbers<[1], [0], [0], [1], [0, 0, 1, 1], [], []>} : vector<16x8xf32>, vector<8x256xf32>, vector<16x256xf32> -> vector<16x256xf32>
    %267 = arith.addf %258, %266 : vector<16x256xf32>
    %c18_i32 = arith.constant 18 : i32
    %268 = tpu.dynamic_rotate %0 by %c18_i32 dim 1 : vector<8x256xf32>, i32 -> vector<8x256xf32>
    %269 = arith.andi %32, %86 : vector<1x256xi1>
    %cst_95 = arith.constant 0.000000e+00 : f32
    %270 = vector.shape_cast %269 : vector<1x256xi1> to vector<1x256xi1>
    %271 = vector.broadcast %270 : vector<1x256xi1> to vector<8x256xi1>
    %272 = vector.broadcast %cst_95 : f32 to vector<8x256xf32>
    %273 = arith.select %271, %268, %272 : vector<8x256xi1>, vector<8x256xf32>
    %c0_96 = arith.constant 0 : index
    %c120 = arith.constant 120 : index
    %274 = vector.load %arg1[%c0_96, %c120] : memref<16x394xf32, #tpu.memory_space<vmem>>, vector<16x8xf32>
    %cst_97 = arith.constant dense<0.000000e+00> : vector<16x256xf32>
    %275 = tpu.matmul %274, %273, %cst_97 {dimension_numbers = #tpu.dot_dimension_numbers<[1], [0], [0], [1], [0, 0, 1, 1], [], []>} : vector<16x8xf32>, vector<8x256xf32>, vector<16x256xf32> -> vector<16x256xf32>
    %276 = arith.addf %267, %275 : vector<16x256xf32>
    %c17_i32 = arith.constant 17 : i32
    %277 = tpu.dynamic_rotate %0 by %c17_i32 dim 1 : vector<8x256xf32>, i32 -> vector<8x256xf32>
    %278 = arith.andi %32, %95 : vector<1x256xi1>
    %cst_98 = arith.constant 0.000000e+00 : f32
    %279 = vector.shape_cast %278 : vector<1x256xi1> to vector<1x256xi1>
    %280 = vector.broadcast %279 : vector<1x256xi1> to vector<8x256xi1>
    %281 = vector.broadcast %cst_98 : f32 to vector<8x256xf32>
    %282 = arith.select %280, %277, %281 : vector<8x256xi1>, vector<8x256xf32>
    %c0_99 = arith.constant 0 : index
    %c128 = arith.constant 128 : index
    %283 = vector.load %arg1[%c0_99, %c128] : memref<16x394xf32, #tpu.memory_space<vmem>>, vector<16x8xf32>
    %cst_100 = arith.constant dense<0.000000e+00> : vector<16x256xf32>
    %284 = tpu.matmul %283, %282, %cst_100 {dimension_numbers = #tpu.dot_dimension_numbers<[1], [0], [0], [1], [0, 0, 1, 1], [], []>} : vector<16x8xf32>, vector<8x256xf32>, vector<16x256xf32> -> vector<16x256xf32>
    %285 = arith.addf %276, %284 : vector<16x256xf32>
    %c16_i32_101 = arith.constant 16 : i32
    %286 = tpu.dynamic_rotate %0 by %c16_i32_101 dim 1 : vector<8x256xf32>, i32 -> vector<8x256xf32>
    %287 = arith.andi %32, %104 : vector<1x256xi1>
    %cst_102 = arith.constant 0.000000e+00 : f32
    %288 = vector.shape_cast %287 : vector<1x256xi1> to vector<1x256xi1>
    %289 = vector.broadcast %288 : vector<1x256xi1> to vector<8x256xi1>
    %290 = vector.broadcast %cst_102 : f32 to vector<8x256xf32>
    %291 = arith.select %289, %286, %290 : vector<8x256xi1>, vector<8x256xf32>
    %c0_103 = arith.constant 0 : index
    %c136 = arith.constant 136 : index
    %292 = vector.load %arg1[%c0_103, %c136] : memref<16x394xf32, #tpu.memory_space<vmem>>, vector<16x8xf32>
    %cst_104 = arith.constant dense<0.000000e+00> : vector<16x256xf32>
    %293 = tpu.matmul %292, %291, %cst_104 {dimension_numbers = #tpu.dot_dimension_numbers<[1], [0], [0], [1], [0, 0, 1, 1], [], []>} : vector<16x8xf32>, vector<8x256xf32>, vector<16x256xf32> -> vector<16x256xf32>
    %294 = arith.addf %285, %293 : vector<16x256xf32>
    %c15_i32_105 = arith.constant 15 : i32
    %295 = tpu.dynamic_rotate %0 by %c15_i32_105 dim 1 : vector<8x256xf32>, i32 -> vector<8x256xf32>
    %296 = arith.andi %32, %113 : vector<1x256xi1>
    %cst_106 = arith.constant 0.000000e+00 : f32
    %297 = vector.shape_cast %296 : vector<1x256xi1> to vector<1x256xi1>
    %298 = vector.broadcast %297 : vector<1x256xi1> to vector<8x256xi1>
    %299 = vector.broadcast %cst_106 : f32 to vector<8x256xf32>
    %300 = arith.select %298, %295, %299 : vector<8x256xi1>, vector<8x256xf32>
    %c0_107 = arith.constant 0 : index
    %c144 = arith.constant 144 : index
    %301 = vector.load %arg1[%c0_107, %c144] : memref<16x394xf32, #tpu.memory_space<vmem>>, vector<16x8xf32>
    %cst_108 = arith.constant dense<0.000000e+00> : vector<16x256xf32>
    %302 = tpu.matmul %301, %300, %cst_108 {dimension_numbers = #tpu.dot_dimension_numbers<[1], [0], [0], [1], [0, 0, 1, 1], [], []>} : vector<16x8xf32>, vector<8x256xf32>, vector<16x256xf32> -> vector<16x256xf32>
    %303 = arith.addf %294, %302 : vector<16x256xf32>
    %c14_i32 = arith.constant 14 : i32
    %304 = tpu.dynamic_rotate %0 by %c14_i32 dim 1 : vector<8x256xf32>, i32 -> vector<8x256xf32>
    %305 = arith.andi %32, %122 : vector<1x256xi1>
    %cst_109 = arith.constant 0.000000e+00 : f32
    %306 = vector.shape_cast %305 : vector<1x256xi1> to vector<1x256xi1>
    %307 = vector.broadcast %306 : vector<1x256xi1> to vector<8x256xi1>
    %308 = vector.broadcast %cst_109 : f32 to vector<8x256xf32>
    %309 = arith.select %307, %304, %308 : vector<8x256xi1>, vector<8x256xf32>
    %c0_110 = arith.constant 0 : index
    %c152 = arith.constant 152 : index
    %310 = vector.load %arg1[%c0_110, %c152] : memref<16x394xf32, #tpu.memory_space<vmem>>, vector<16x8xf32>
    %cst_111 = arith.constant dense<0.000000e+00> : vector<16x256xf32>
    %311 = tpu.matmul %310, %309, %cst_111 {dimension_numbers = #tpu.dot_dimension_numbers<[1], [0], [0], [1], [0, 0, 1, 1], [], []>} : vector<16x8xf32>, vector<8x256xf32>, vector<16x256xf32> -> vector<16x256xf32>
    %312 = arith.addf %303, %311 : vector<16x256xf32>
    %c13_i32 = arith.constant 13 : i32
    %313 = tpu.dynamic_rotate %0 by %c13_i32 dim 1 : vector<8x256xf32>, i32 -> vector<8x256xf32>
    %314 = arith.andi %32, %131 : vector<1x256xi1>
    %cst_112 = arith.constant 0.000000e+00 : f32
    %315 = vector.shape_cast %314 : vector<1x256xi1> to vector<1x256xi1>
    %316 = vector.broadcast %315 : vector<1x256xi1> to vector<8x256xi1>
    %317 = vector.broadcast %cst_112 : f32 to vector<8x256xf32>
    %318 = arith.select %316, %313, %317 : vector<8x256xi1>, vector<8x256xf32>
    %c0_113 = arith.constant 0 : index
    %c160 = arith.constant 160 : index
    %319 = vector.load %arg1[%c0_113, %c160] : memref<16x394xf32, #tpu.memory_space<vmem>>, vector<16x8xf32>
    %cst_114 = arith.constant dense<0.000000e+00> : vector<16x256xf32>
    %320 = tpu.matmul %319, %318, %cst_114 {dimension_numbers = #tpu.dot_dimension_numbers<[1], [0], [0], [1], [0, 0, 1, 1], [], []>} : vector<16x8xf32>, vector<8x256xf32>, vector<16x256xf32> -> vector<16x256xf32>
    %321 = arith.addf %312, %320 : vector<16x256xf32>
    %c3_i32_115 = arith.constant 3 : i32
    %322 = tpu.dynamic_rotate %0 by %c3_i32_115 dim 1 : vector<8x256xf32>, i32 -> vector<8x256xf32>
    %323 = arith.andi %41, %77 : vector<1x256xi1>
    %cst_116 = arith.constant 0.000000e+00 : f32
    %324 = vector.shape_cast %323 : vector<1x256xi1> to vector<1x256xi1>
    %325 = vector.broadcast %324 : vector<1x256xi1> to vector<8x256xi1>
    %326 = vector.broadcast %cst_116 : f32 to vector<8x256xf32>
    %327 = arith.select %325, %322, %326 : vector<8x256xi1>, vector<8x256xf32>
    %c0_117 = arith.constant 0 : index
    %c168 = arith.constant 168 : index
    %328 = vector.load %arg1[%c0_117, %c168] : memref<16x394xf32, #tpu.memory_space<vmem>>, vector<16x8xf32>
    %cst_118 = arith.constant dense<0.000000e+00> : vector<16x256xf32>
    %329 = tpu.matmul %328, %327, %cst_118 {dimension_numbers = #tpu.dot_dimension_numbers<[1], [0], [0], [1], [0, 0, 1, 1], [], []>} : vector<16x8xf32>, vector<8x256xf32>, vector<16x256xf32> -> vector<16x256xf32>
    %330 = arith.addf %321, %329 : vector<16x256xf32>
    %c2_i32_119 = arith.constant 2 : i32
    %331 = tpu.dynamic_rotate %0 by %c2_i32_119 dim 1 : vector<8x256xf32>, i32 -> vector<8x256xf32>
    %332 = arith.andi %41, %86 : vector<1x256xi1>
    %cst_120 = arith.constant 0.000000e+00 : f32
    %333 = vector.shape_cast %332 : vector<1x256xi1> to vector<1x256xi1>
    %334 = vector.broadcast %333 : vector<1x256xi1> to vector<8x256xi1>
    %335 = vector.broadcast %cst_120 : f32 to vector<8x256xf32>
    %336 = arith.select %334, %331, %335 : vector<8x256xi1>, vector<8x256xf32>
    %c0_121 = arith.constant 0 : index
    %c176 = arith.constant 176 : index
    %337 = vector.load %arg1[%c0_121, %c176] : memref<16x394xf32, #tpu.memory_space<vmem>>, vector<16x8xf32>
    %cst_122 = arith.constant dense<0.000000e+00> : vector<16x256xf32>
    %338 = tpu.matmul %337, %336, %cst_122 {dimension_numbers = #tpu.dot_dimension_numbers<[1], [0], [0], [1], [0, 0, 1, 1], [], []>} : vector<16x8xf32>, vector<8x256xf32>, vector<16x256xf32> -> vector<16x256xf32>
    %339 = arith.addf %330, %338 : vector<16x256xf32>
    %c1_i32_123 = arith.constant 1 : i32
    %340 = tpu.dynamic_rotate %0 by %c1_i32_123 dim 1 : vector<8x256xf32>, i32 -> vector<8x256xf32>
    %341 = arith.andi %41, %95 : vector<1x256xi1>
    %cst_124 = arith.constant 0.000000e+00 : f32
    %342 = vector.shape_cast %341 : vector<1x256xi1> to vector<1x256xi1>
    %343 = vector.broadcast %342 : vector<1x256xi1> to vector<8x256xi1>
    %344 = vector.broadcast %cst_124 : f32 to vector<8x256xf32>
    %345 = arith.select %343, %340, %344 : vector<8x256xi1>, vector<8x256xf32>
    %c0_125 = arith.constant 0 : index
    %c184 = arith.constant 184 : index
    %346 = vector.load %arg1[%c0_125, %c184] : memref<16x394xf32, #tpu.memory_space<vmem>>, vector<16x8xf32>
    %cst_126 = arith.constant dense<0.000000e+00> : vector<16x256xf32>
    %347 = tpu.matmul %346, %345, %cst_126 {dimension_numbers = #tpu.dot_dimension_numbers<[1], [0], [0], [1], [0, 0, 1, 1], [], []>} : vector<16x8xf32>, vector<8x256xf32>, vector<16x256xf32> -> vector<16x256xf32>
    %348 = arith.addf %339, %347 : vector<16x256xf32>
    %349 = arith.andi %41, %104 : vector<1x256xi1>
    %cst_127 = arith.constant 0.000000e+00 : f32
    %350 = vector.shape_cast %349 : vector<1x256xi1> to vector<1x256xi1>
    %351 = vector.broadcast %350 : vector<1x256xi1> to vector<8x256xi1>
    %352 = vector.broadcast %cst_127 : f32 to vector<8x256xf32>
    %353 = arith.select %351, %0, %352 : vector<8x256xi1>, vector<8x256xf32>
    %c0_128 = arith.constant 0 : index
    %c192 = arith.constant 192 : index
    %354 = vector.load %arg1[%c0_128, %c192] : memref<16x394xf32, #tpu.memory_space<vmem>>, vector<16x8xf32>
    %cst_129 = arith.constant dense<0.000000e+00> : vector<16x256xf32>
    %355 = tpu.matmul %354, %353, %cst_129 {dimension_numbers = #tpu.dot_dimension_numbers<[1], [0], [0], [1], [0, 0, 1, 1], [], []>} : vector<16x8xf32>, vector<8x256xf32>, vector<16x256xf32> -> vector<16x256xf32>
    %356 = arith.addf %348, %355 : vector<16x256xf32>
    %c255_i32 = arith.constant 255 : i32
    %357 = tpu.dynamic_rotate %0 by %c255_i32 dim 1 : vector<8x256xf32>, i32 -> vector<8x256xf32>
    %358 = arith.andi %41, %113 : vector<1x256xi1>
    %cst_130 = arith.constant 0.000000e+00 : f32
    %359 = vector.shape_cast %358 : vector<1x256xi1> to vector<1x256xi1>
    %360 = vector.broadcast %359 : vector<1x256xi1> to vector<8x256xi1>
    %361 = vector.broadcast %cst_130 : f32 to vector<8x256xf32>
    %362 = arith.select %360, %357, %361 : vector<8x256xi1>, vector<8x256xf32>
    %c0_131 = arith.constant 0 : index
    %c200 = arith.constant 200 : index
    %363 = vector.load %arg1[%c0_131, %c200] : memref<16x394xf32, #tpu.memory_space<vmem>>, vector<16x8xf32>
    %cst_132 = arith.constant dense<0.000000e+00> : vector<16x256xf32>
    %364 = tpu.matmul %363, %362, %cst_132 {dimension_numbers = #tpu.dot_dimension_numbers<[1], [0], [0], [1], [0, 0, 1, 1], [], []>} : vector<16x8xf32>, vector<8x256xf32>, vector<16x256xf32> -> vector<16x256xf32>
    %365 = arith.addf %356, %364 : vector<16x256xf32>
    %c254_i32 = arith.constant 254 : i32
    %366 = tpu.dynamic_rotate %0 by %c254_i32 dim 1 : vector<8x256xf32>, i32 -> vector<8x256xf32>
    %367 = arith.andi %41, %122 : vector<1x256xi1>
    %cst_133 = arith.constant 0.000000e+00 : f32
    %368 = vector.shape_cast %367 : vector<1x256xi1> to vector<1x256xi1>
    %369 = vector.broadcast %368 : vector<1x256xi1> to vector<8x256xi1>
    %370 = vector.broadcast %cst_133 : f32 to vector<8x256xf32>
    %371 = arith.select %369, %366, %370 : vector<8x256xi1>, vector<8x256xf32>
    %c0_134 = arith.constant 0 : index
    %c208 = arith.constant 208 : index
    %372 = vector.load %arg1[%c0_134, %c208] : memref<16x394xf32, #tpu.memory_space<vmem>>, vector<16x8xf32>
    %cst_135 = arith.constant dense<0.000000e+00> : vector<16x256xf32>
    %373 = tpu.matmul %372, %371, %cst_135 {dimension_numbers = #tpu.dot_dimension_numbers<[1], [0], [0], [1], [0, 0, 1, 1], [], []>} : vector<16x8xf32>, vector<8x256xf32>, vector<16x256xf32> -> vector<16x256xf32>
    %374 = arith.addf %365, %373 : vector<16x256xf32>
    %c253_i32 = arith.constant 253 : i32
    %375 = tpu.dynamic_rotate %0 by %c253_i32 dim 1 : vector<8x256xf32>, i32 -> vector<8x256xf32>
    %376 = arith.andi %41, %131 : vector<1x256xi1>
    %cst_136 = arith.constant 0.000000e+00 : f32
    %377 = vector.shape_cast %376 : vector<1x256xi1> to vector<1x256xi1>
    %378 = vector.broadcast %377 : vector<1x256xi1> to vector<8x256xi1>
    %379 = vector.broadcast %cst_136 : f32 to vector<8x256xf32>
    %380 = arith.select %378, %375, %379 : vector<8x256xi1>, vector<8x256xf32>
    %c0_137 = arith.constant 0 : index
    %c216 = arith.constant 216 : index
    %381 = vector.load %arg1[%c0_137, %c216] : memref<16x394xf32, #tpu.memory_space<vmem>>, vector<16x8xf32>
    %cst_138 = arith.constant dense<0.000000e+00> : vector<16x256xf32>
    %382 = tpu.matmul %381, %380, %cst_138 {dimension_numbers = #tpu.dot_dimension_numbers<[1], [0], [0], [1], [0, 0, 1, 1], [], []>} : vector<16x8xf32>, vector<8x256xf32>, vector<16x256xf32> -> vector<16x256xf32>
    %383 = arith.addf %374, %382 : vector<16x256xf32>
    %c243_i32 = arith.constant 243 : i32
    %384 = tpu.dynamic_rotate %0 by %c243_i32 dim 1 : vector<8x256xf32>, i32 -> vector<8x256xf32>
    %385 = arith.andi %50, %77 : vector<1x256xi1>
    %cst_139 = arith.constant 0.000000e+00 : f32
    %386 = vector.shape_cast %385 : vector<1x256xi1> to vector<1x256xi1>
    %387 = vector.broadcast %386 : vector<1x256xi1> to vector<8x256xi1>
    %388 = vector.broadcast %cst_139 : f32 to vector<8x256xf32>
    %389 = arith.select %387, %384, %388 : vector<8x256xi1>, vector<8x256xf32>
    %c0_140 = arith.constant 0 : index
    %c224 = arith.constant 224 : index
    %390 = vector.load %arg1[%c0_140, %c224] : memref<16x394xf32, #tpu.memory_space<vmem>>, vector<16x8xf32>
    %cst_141 = arith.constant dense<0.000000e+00> : vector<16x256xf32>
    %391 = tpu.matmul %390, %389, %cst_141 {dimension_numbers = #tpu.dot_dimension_numbers<[1], [0], [0], [1], [0, 0, 1, 1], [], []>} : vector<16x8xf32>, vector<8x256xf32>, vector<16x256xf32> -> vector<16x256xf32>
    %392 = arith.addf %383, %391 : vector<16x256xf32>
    %c242_i32 = arith.constant 242 : i32
    %393 = tpu.dynamic_rotate %0 by %c242_i32 dim 1 : vector<8x256xf32>, i32 -> vector<8x256xf32>
    %394 = arith.andi %50, %86 : vector<1x256xi1>
    %cst_142 = arith.constant 0.000000e+00 : f32
    %395 = vector.shape_cast %394 : vector<1x256xi1> to vector<1x256xi1>
    %396 = vector.broadcast %395 : vector<1x256xi1> to vector<8x256xi1>
    %397 = vector.broadcast %cst_142 : f32 to vector<8x256xf32>
    %398 = arith.select %396, %393, %397 : vector<8x256xi1>, vector<8x256xf32>
    %c0_143 = arith.constant 0 : index
    %c232 = arith.constant 232 : index
    %399 = vector.load %arg1[%c0_143, %c232] : memref<16x394xf32, #tpu.memory_space<vmem>>, vector<16x8xf32>
    %cst_144 = arith.constant dense<0.000000e+00> : vector<16x256xf32>
    %400 = tpu.matmul %399, %398, %cst_144 {dimension_numbers = #tpu.dot_dimension_numbers<[1], [0], [0], [1], [0, 0, 1, 1], [], []>} : vector<16x8xf32>, vector<8x256xf32>, vector<16x256xf32> -> vector<16x256xf32>
    %401 = arith.addf %392, %400 : vector<16x256xf32>
    %c241_i32 = arith.constant 241 : i32
    %402 = tpu.dynamic_rotate %0 by %c241_i32 dim 1 : vector<8x256xf32>, i32 -> vector<8x256xf32>
    %403 = arith.andi %50, %95 : vector<1x256xi1>
    %cst_145 = arith.constant 0.000000e+00 : f32
    %404 = vector.shape_cast %403 : vector<1x256xi1> to vector<1x256xi1>
    %405 = vector.broadcast %404 : vector<1x256xi1> to vector<8x256xi1>
    %406 = vector.broadcast %cst_145 : f32 to vector<8x256xf32>
    %407 = arith.select %405, %402, %406 : vector<8x256xi1>, vector<8x256xf32>
    %c0_146 = arith.constant 0 : index
    %c240 = arith.constant 240 : index
    %408 = vector.load %arg1[%c0_146, %c240] : memref<16x394xf32, #tpu.memory_space<vmem>>, vector<16x8xf32>
    %cst_147 = arith.constant dense<0.000000e+00> : vector<16x256xf32>
    %409 = tpu.matmul %408, %407, %cst_147 {dimension_numbers = #tpu.dot_dimension_numbers<[1], [0], [0], [1], [0, 0, 1, 1], [], []>} : vector<16x8xf32>, vector<8x256xf32>, vector<16x256xf32> -> vector<16x256xf32>
    %410 = arith.addf %401, %409 : vector<16x256xf32>
    %c240_i32 = arith.constant 240 : i32
    %411 = tpu.dynamic_rotate %0 by %c240_i32 dim 1 : vector<8x256xf32>, i32 -> vector<8x256xf32>
    %412 = arith.andi %50, %104 : vector<1x256xi1>
    %cst_148 = arith.constant 0.000000e+00 : f32
    %413 = vector.shape_cast %412 : vector<1x256xi1> to vector<1x256xi1>
    %414 = vector.broadcast %413 : vector<1x256xi1> to vector<8x256xi1>
    %415 = vector.broadcast %cst_148 : f32 to vector<8x256xf32>
    %416 = arith.select %414, %411, %415 : vector<8x256xi1>, vector<8x256xf32>
    %c0_149 = arith.constant 0 : index
    %c248 = arith.constant 248 : index
    %417 = vector.load %arg1[%c0_149, %c248] : memref<16x394xf32, #tpu.memory_space<vmem>>, vector<16x8xf32>
    %cst_150 = arith.constant dense<0.000000e+00> : vector<16x256xf32>
    %418 = tpu.matmul %417, %416, %cst_150 {dimension_numbers = #tpu.dot_dimension_numbers<[1], [0], [0], [1], [0, 0, 1, 1], [], []>} : vector<16x8xf32>, vector<8x256xf32>, vector<16x256xf32> -> vector<16x256xf32>
    %419 = arith.addf %410, %418 : vector<16x256xf32>
    %c239_i32 = arith.constant 239 : i32
    %420 = tpu.dynamic_rotate %0 by %c239_i32 dim 1 : vector<8x256xf32>, i32 -> vector<8x256xf32>
    %421 = arith.andi %50, %113 : vector<1x256xi1>
    %cst_151 = arith.constant 0.000000e+00 : f32
    %422 = vector.shape_cast %421 : vector<1x256xi1> to vector<1x256xi1>
    %423 = vector.broadcast %422 : vector<1x256xi1> to vector<8x256xi1>
    %424 = vector.broadcast %cst_151 : f32 to vector<8x256xf32>
    %425 = arith.select %423, %420, %424 : vector<8x256xi1>, vector<8x256xf32>
    %c0_152 = arith.constant 0 : index
    %c256 = arith.constant 256 : index
    %426 = vector.load %arg1[%c0_152, %c256] : memref<16x394xf32, #tpu.memory_space<vmem>>, vector<16x8xf32>
    %cst_153 = arith.constant dense<0.000000e+00> : vector<16x256xf32>
    %427 = tpu.matmul %426, %425, %cst_153 {dimension_numbers = #tpu.dot_dimension_numbers<[1], [0], [0], [1], [0, 0, 1, 1], [], []>} : vector<16x8xf32>, vector<8x256xf32>, vector<16x256xf32> -> vector<16x256xf32>
    %428 = arith.addf %419, %427 : vector<16x256xf32>
    %c238_i32 = arith.constant 238 : i32
    %429 = tpu.dynamic_rotate %0 by %c238_i32 dim 1 : vector<8x256xf32>, i32 -> vector<8x256xf32>
    %430 = arith.andi %50, %122 : vector<1x256xi1>
    %cst_154 = arith.constant 0.000000e+00 : f32
    %431 = vector.shape_cast %430 : vector<1x256xi1> to vector<1x256xi1>
    %432 = vector.broadcast %431 : vector<1x256xi1> to vector<8x256xi1>
    %433 = vector.broadcast %cst_154 : f32 to vector<8x256xf32>
    %434 = arith.select %432, %429, %433 : vector<8x256xi1>, vector<8x256xf32>
    %c0_155 = arith.constant 0 : index
    %c264 = arith.constant 264 : index
    %435 = vector.load %arg1[%c0_155, %c264] : memref<16x394xf32, #tpu.memory_space<vmem>>, vector<16x8xf32>
    %cst_156 = arith.constant dense<0.000000e+00> : vector<16x256xf32>
    %436 = tpu.matmul %435, %434, %cst_156 {dimension_numbers = #tpu.dot_dimension_numbers<[1], [0], [0], [1], [0, 0, 1, 1], [], []>} : vector<16x8xf32>, vector<8x256xf32>, vector<16x256xf32> -> vector<16x256xf32>
    %437 = arith.addf %428, %436 : vector<16x256xf32>
    %c237_i32 = arith.constant 237 : i32
    %438 = tpu.dynamic_rotate %0 by %c237_i32 dim 1 : vector<8x256xf32>, i32 -> vector<8x256xf32>
    %439 = arith.andi %50, %131 : vector<1x256xi1>
    %cst_157 = arith.constant 0.000000e+00 : f32
    %440 = vector.shape_cast %439 : vector<1x256xi1> to vector<1x256xi1>
    %441 = vector.broadcast %440 : vector<1x256xi1> to vector<8x256xi1>
    %442 = vector.broadcast %cst_157 : f32 to vector<8x256xf32>
    %443 = arith.select %441, %438, %442 : vector<8x256xi1>, vector<8x256xf32>
    %c0_158 = arith.constant 0 : index
    %c272 = arith.constant 272 : index
    %444 = vector.load %arg1[%c0_158, %c272] : memref<16x394xf32, #tpu.memory_space<vmem>>, vector<16x8xf32>
    %cst_159 = arith.constant dense<0.000000e+00> : vector<16x256xf32>
    %445 = tpu.matmul %444, %443, %cst_159 {dimension_numbers = #tpu.dot_dimension_numbers<[1], [0], [0], [1], [0, 0, 1, 1], [], []>} : vector<16x8xf32>, vector<8x256xf32>, vector<16x256xf32> -> vector<16x256xf32>
    %446 = arith.addf %437, %445 : vector<16x256xf32>
    %c227_i32 = arith.constant 227 : i32
    %447 = tpu.dynamic_rotate %0 by %c227_i32 dim 1 : vector<8x256xf32>, i32 -> vector<8x256xf32>
    %448 = arith.andi %59, %77 : vector<1x256xi1>
    %cst_160 = arith.constant 0.000000e+00 : f32
    %449 = vector.shape_cast %448 : vector<1x256xi1> to vector<1x256xi1>
    %450 = vector.broadcast %449 : vector<1x256xi1> to vector<8x256xi1>
    %451 = vector.broadcast %cst_160 : f32 to vector<8x256xf32>
    %452 = arith.select %450, %447, %451 : vector<8x256xi1>, vector<8x256xf32>
    %c0_161 = arith.constant 0 : index
    %c280 = arith.constant 280 : index
    %453 = vector.load %arg1[%c0_161, %c280] : memref<16x394xf32, #tpu.memory_space<vmem>>, vector<16x8xf32>
    %cst_162 = arith.constant dense<0.000000e+00> : vector<16x256xf32>
    %454 = tpu.matmul %453, %452, %cst_162 {dimension_numbers = #tpu.dot_dimension_numbers<[1], [0], [0], [1], [0, 0, 1, 1], [], []>} : vector<16x8xf32>, vector<8x256xf32>, vector<16x256xf32> -> vector<16x256xf32>
    %455 = arith.addf %446, %454 : vector<16x256xf32>
    %c226_i32 = arith.constant 226 : i32
    %456 = tpu.dynamic_rotate %0 by %c226_i32 dim 1 : vector<8x256xf32>, i32 -> vector<8x256xf32>
    %457 = arith.andi %59, %86 : vector<1x256xi1>
    %cst_163 = arith.constant 0.000000e+00 : f32
    %458 = vector.shape_cast %457 : vector<1x256xi1> to vector<1x256xi1>
    %459 = vector.broadcast %458 : vector<1x256xi1> to vector<8x256xi1>
    %460 = vector.broadcast %cst_163 : f32 to vector<8x256xf32>
    %461 = arith.select %459, %456, %460 : vector<8x256xi1>, vector<8x256xf32>
    %c0_164 = arith.constant 0 : index
    %c288 = arith.constant 288 : index
    %462 = vector.load %arg1[%c0_164, %c288] : memref<16x394xf32, #tpu.memory_space<vmem>>, vector<16x8xf32>
    %cst_165 = arith.constant dense<0.000000e+00> : vector<16x256xf32>
    %463 = tpu.matmul %462, %461, %cst_165 {dimension_numbers = #tpu.dot_dimension_numbers<[1], [0], [0], [1], [0, 0, 1, 1], [], []>} : vector<16x8xf32>, vector<8x256xf32>, vector<16x256xf32> -> vector<16x256xf32>
    %464 = arith.addf %455, %463 : vector<16x256xf32>
    %c225_i32 = arith.constant 225 : i32
    %465 = tpu.dynamic_rotate %0 by %c225_i32 dim 1 : vector<8x256xf32>, i32 -> vector<8x256xf32>
    %466 = arith.andi %59, %95 : vector<1x256xi1>
    %cst_166 = arith.constant 0.000000e+00 : f32
    %467 = vector.shape_cast %466 : vector<1x256xi1> to vector<1x256xi1>
    %468 = vector.broadcast %467 : vector<1x256xi1> to vector<8x256xi1>
    %469 = vector.broadcast %cst_166 : f32 to vector<8x256xf32>
    %470 = arith.select %468, %465, %469 : vector<8x256xi1>, vector<8x256xf32>
    %c0_167 = arith.constant 0 : index
    %c296 = arith.constant 296 : index
    %471 = vector.load %arg1[%c0_167, %c296] : memref<16x394xf32, #tpu.memory_space<vmem>>, vector<16x8xf32>
    %cst_168 = arith.constant dense<0.000000e+00> : vector<16x256xf32>
    %472 = tpu.matmul %471, %470, %cst_168 {dimension_numbers = #tpu.dot_dimension_numbers<[1], [0], [0], [1], [0, 0, 1, 1], [], []>} : vector<16x8xf32>, vector<8x256xf32>, vector<16x256xf32> -> vector<16x256xf32>
    %473 = arith.addf %464, %472 : vector<16x256xf32>
    %c224_i32 = arith.constant 224 : i32
    %474 = tpu.dynamic_rotate %0 by %c224_i32 dim 1 : vector<8x256xf32>, i32 -> vector<8x256xf32>
    %475 = arith.andi %59, %104 : vector<1x256xi1>
    %cst_169 = arith.constant 0.000000e+00 : f32
    %476 = vector.shape_cast %475 : vector<1x256xi1> to vector<1x256xi1>
    %477 = vector.broadcast %476 : vector<1x256xi1> to vector<8x256xi1>
    %478 = vector.broadcast %cst_169 : f32 to vector<8x256xf32>
    %479 = arith.select %477, %474, %478 : vector<8x256xi1>, vector<8x256xf32>
    %c0_170 = arith.constant 0 : index
    %c304 = arith.constant 304 : index
    %480 = vector.load %arg1[%c0_170, %c304] : memref<16x394xf32, #tpu.memory_space<vmem>>, vector<16x8xf32>
    %cst_171 = arith.constant dense<0.000000e+00> : vector<16x256xf32>
    %481 = tpu.matmul %480, %479, %cst_171 {dimension_numbers = #tpu.dot_dimension_numbers<[1], [0], [0], [1], [0, 0, 1, 1], [], []>} : vector<16x8xf32>, vector<8x256xf32>, vector<16x256xf32> -> vector<16x256xf32>
    %482 = arith.addf %473, %481 : vector<16x256xf32>
    %c223_i32 = arith.constant 223 : i32
    %483 = tpu.dynamic_rotate %0 by %c223_i32 dim 1 : vector<8x256xf32>, i32 -> vector<8x256xf32>
    %484 = arith.andi %59, %113 : vector<1x256xi1>
    %cst_172 = arith.constant 0.000000e+00 : f32
    %485 = vector.shape_cast %484 : vector<1x256xi1> to vector<1x256xi1>
    %486 = vector.broadcast %485 : vector<1x256xi1> to vector<8x256xi1>
    %487 = vector.broadcast %cst_172 : f32 to vector<8x256xf32>
    %488 = arith.select %486, %483, %487 : vector<8x256xi1>, vector<8x256xf32>
    %c0_173 = arith.constant 0 : index
    %c312 = arith.constant 312 : index
    %489 = vector.load %arg1[%c0_173, %c312] : memref<16x394xf32, #tpu.memory_space<vmem>>, vector<16x8xf32>
    %cst_174 = arith.constant dense<0.000000e+00> : vector<16x256xf32>
    %490 = tpu.matmul %489, %488, %cst_174 {dimension_numbers = #tpu.dot_dimension_numbers<[1], [0], [0], [1], [0, 0, 1, 1], [], []>} : vector<16x8xf32>, vector<8x256xf32>, vector<16x256xf32> -> vector<16x256xf32>
    %491 = arith.addf %482, %490 : vector<16x256xf32>
    %c222_i32 = arith.constant 222 : i32
    %492 = tpu.dynamic_rotate %0 by %c222_i32 dim 1 : vector<8x256xf32>, i32 -> vector<8x256xf32>
    %493 = arith.andi %59, %122 : vector<1x256xi1>
    %cst_175 = arith.constant 0.000000e+00 : f32
    %494 = vector.shape_cast %493 : vector<1x256xi1> to vector<1x256xi1>
    %495 = vector.broadcast %494 : vector<1x256xi1> to vector<8x256xi1>
    %496 = vector.broadcast %cst_175 : f32 to vector<8x256xf32>
    %497 = arith.select %495, %492, %496 : vector<8x256xi1>, vector<8x256xf32>
    %c0_176 = arith.constant 0 : index
    %c320 = arith.constant 320 : index
    %498 = vector.load %arg1[%c0_176, %c320] : memref<16x394xf32, #tpu.memory_space<vmem>>, vector<16x8xf32>
    %cst_177 = arith.constant dense<0.000000e+00> : vector<16x256xf32>
    %499 = tpu.matmul %498, %497, %cst_177 {dimension_numbers = #tpu.dot_dimension_numbers<[1], [0], [0], [1], [0, 0, 1, 1], [], []>} : vector<16x8xf32>, vector<8x256xf32>, vector<16x256xf32> -> vector<16x256xf32>
    %500 = arith.addf %491, %499 : vector<16x256xf32>
    %c221_i32 = arith.constant 221 : i32
    %501 = tpu.dynamic_rotate %0 by %c221_i32 dim 1 : vector<8x256xf32>, i32 -> vector<8x256xf32>
    %502 = arith.andi %59, %131 : vector<1x256xi1>
    %cst_178 = arith.constant 0.000000e+00 : f32
    %503 = vector.shape_cast %502 : vector<1x256xi1> to vector<1x256xi1>
    %504 = vector.broadcast %503 : vector<1x256xi1> to vector<8x256xi1>
    %505 = vector.broadcast %cst_178 : f32 to vector<8x256xf32>
    %506 = arith.select %504, %501, %505 : vector<8x256xi1>, vector<8x256xf32>
    %c0_179 = arith.constant 0 : index
    %c328 = arith.constant 328 : index
    %507 = vector.load %arg1[%c0_179, %c328] : memref<16x394xf32, #tpu.memory_space<vmem>>, vector<16x8xf32>
    %cst_180 = arith.constant dense<0.000000e+00> : vector<16x256xf32>
    %508 = tpu.matmul %507, %506, %cst_180 {dimension_numbers = #tpu.dot_dimension_numbers<[1], [0], [0], [1], [0, 0, 1, 1], [], []>} : vector<16x8xf32>, vector<8x256xf32>, vector<16x256xf32> -> vector<16x256xf32>
    %509 = arith.addf %500, %508 : vector<16x256xf32>
    %c211_i32 = arith.constant 211 : i32
    %510 = tpu.dynamic_rotate %0 by %c211_i32 dim 1 : vector<8x256xf32>, i32 -> vector<8x256xf32>
    %511 = arith.andi %68, %77 : vector<1x256xi1>
    %cst_181 = arith.constant 0.000000e+00 : f32
    %512 = vector.shape_cast %511 : vector<1x256xi1> to vector<1x256xi1>
    %513 = vector.broadcast %512 : vector<1x256xi1> to vector<8x256xi1>
    %514 = vector.broadcast %cst_181 : f32 to vector<8x256xf32>
    %515 = arith.select %513, %510, %514 : vector<8x256xi1>, vector<8x256xf32>
    %c0_182 = arith.constant 0 : index
    %c336 = arith.constant 336 : index
    %516 = vector.load %arg1[%c0_182, %c336] : memref<16x394xf32, #tpu.memory_space<vmem>>, vector<16x8xf32>
    %cst_183 = arith.constant dense<0.000000e+00> : vector<16x256xf32>
    %517 = tpu.matmul %516, %515, %cst_183 {dimension_numbers = #tpu.dot_dimension_numbers<[1], [0], [0], [1], [0, 0, 1, 1], [], []>} : vector<16x8xf32>, vector<8x256xf32>, vector<16x256xf32> -> vector<16x256xf32>
    %518 = arith.addf %509, %517 : vector<16x256xf32>
    %c210_i32 = arith.constant 210 : i32
    %519 = tpu.dynamic_rotate %0 by %c210_i32 dim 1 : vector<8x256xf32>, i32 -> vector<8x256xf32>
    %520 = arith.andi %68, %86 : vector<1x256xi1>
    %cst_184 = arith.constant 0.000000e+00 : f32
    %521 = vector.shape_cast %520 : vector<1x256xi1> to vector<1x256xi1>
    %522 = vector.broadcast %521 : vector<1x256xi1> to vector<8x256xi1>
    %523 = vector.broadcast %cst_184 : f32 to vector<8x256xf32>
    %524 = arith.select %522, %519, %523 : vector<8x256xi1>, vector<8x256xf32>
    %c0_185 = arith.constant 0 : index
    %c344 = arith.constant 344 : index
    %525 = vector.load %arg1[%c0_185, %c344] : memref<16x394xf32, #tpu.memory_space<vmem>>, vector<16x8xf32>
    %cst_186 = arith.constant dense<0.000000e+00> : vector<16x256xf32>
    %526 = tpu.matmul %525, %524, %cst_186 {dimension_numbers = #tpu.dot_dimension_numbers<[1], [0], [0], [1], [0, 0, 1, 1], [], []>} : vector<16x8xf32>, vector<8x256xf32>, vector<16x256xf32> -> vector<16x256xf32>
    %527 = arith.addf %518, %526 : vector<16x256xf32>
    %c209_i32 = arith.constant 209 : i32
    %528 = tpu.dynamic_rotate %0 by %c209_i32 dim 1 : vector<8x256xf32>, i32 -> vector<8x256xf32>
    %529 = arith.andi %68, %95 : vector<1x256xi1>
    %cst_187 = arith.constant 0.000000e+00 : f32
    %530 = vector.shape_cast %529 : vector<1x256xi1> to vector<1x256xi1>
    %531 = vector.broadcast %530 : vector<1x256xi1> to vector<8x256xi1>
    %532 = vector.broadcast %cst_187 : f32 to vector<8x256xf32>
    %533 = arith.select %531, %528, %532 : vector<8x256xi1>, vector<8x256xf32>
    %c0_188 = arith.constant 0 : index
    %c352 = arith.constant 352 : index
    %534 = vector.load %arg1[%c0_188, %c352] : memref<16x394xf32, #tpu.memory_space<vmem>>, vector<16x8xf32>
    %cst_189 = arith.constant dense<0.000000e+00> : vector<16x256xf32>
    %535 = tpu.matmul %534, %533, %cst_189 {dimension_numbers = #tpu.dot_dimension_numbers<[1], [0], [0], [1], [0, 0, 1, 1], [], []>} : vector<16x8xf32>, vector<8x256xf32>, vector<16x256xf32> -> vector<16x256xf32>
    %536 = arith.addf %527, %535 : vector<16x256xf32>
    %c208_i32 = arith.constant 208 : i32
    %537 = tpu.dynamic_rotate %0 by %c208_i32 dim 1 : vector<8x256xf32>, i32 -> vector<8x256xf32>
    %538 = arith.andi %68, %104 : vector<1x256xi1>
    %cst_190 = arith.constant 0.000000e+00 : f32
    %539 = vector.shape_cast %538 : vector<1x256xi1> to vector<1x256xi1>
    %540 = vector.broadcast %539 : vector<1x256xi1> to vector<8x256xi1>
    %541 = vector.broadcast %cst_190 : f32 to vector<8x256xf32>
    %542 = arith.select %540, %537, %541 : vector<8x256xi1>, vector<8x256xf32>
    %c0_191 = arith.constant 0 : index
    %c360 = arith.constant 360 : index
    %543 = vector.load %arg1[%c0_191, %c360] : memref<16x394xf32, #tpu.memory_space<vmem>>, vector<16x8xf32>
    %cst_192 = arith.constant dense<0.000000e+00> : vector<16x256xf32>
    %544 = tpu.matmul %543, %542, %cst_192 {dimension_numbers = #tpu.dot_dimension_numbers<[1], [0], [0], [1], [0, 0, 1, 1], [], []>} : vector<16x8xf32>, vector<8x256xf32>, vector<16x256xf32> -> vector<16x256xf32>
    %545 = arith.addf %536, %544 : vector<16x256xf32>
    %c207_i32 = arith.constant 207 : i32
    %546 = tpu.dynamic_rotate %0 by %c207_i32 dim 1 : vector<8x256xf32>, i32 -> vector<8x256xf32>
    %547 = arith.andi %68, %113 : vector<1x256xi1>
    %cst_193 = arith.constant 0.000000e+00 : f32
    %548 = vector.shape_cast %547 : vector<1x256xi1> to vector<1x256xi1>
    %549 = vector.broadcast %548 : vector<1x256xi1> to vector<8x256xi1>
    %550 = vector.broadcast %cst_193 : f32 to vector<8x256xf32>
    %551 = arith.select %549, %546, %550 : vector<8x256xi1>, vector<8x256xf32>
    %c0_194 = arith.constant 0 : index
    %c368 = arith.constant 368 : index
    %552 = vector.load %arg1[%c0_194, %c368] : memref<16x394xf32, #tpu.memory_space<vmem>>, vector<16x8xf32>
    %cst_195 = arith.constant dense<0.000000e+00> : vector<16x256xf32>
    %553 = tpu.matmul %552, %551, %cst_195 {dimension_numbers = #tpu.dot_dimension_numbers<[1], [0], [0], [1], [0, 0, 1, 1], [], []>} : vector<16x8xf32>, vector<8x256xf32>, vector<16x256xf32> -> vector<16x256xf32>
    %554 = arith.addf %545, %553 : vector<16x256xf32>
    %c206_i32 = arith.constant 206 : i32
    %555 = tpu.dynamic_rotate %0 by %c206_i32 dim 1 : vector<8x256xf32>, i32 -> vector<8x256xf32>
    %556 = arith.andi %68, %122 : vector<1x256xi1>
    %cst_196 = arith.constant 0.000000e+00 : f32
    %557 = vector.shape_cast %556 : vector<1x256xi1> to vector<1x256xi1>
    %558 = vector.broadcast %557 : vector<1x256xi1> to vector<8x256xi1>
    %559 = vector.broadcast %cst_196 : f32 to vector<8x256xf32>
    %560 = arith.select %558, %555, %559 : vector<8x256xi1>, vector<8x256xf32>
    %c0_197 = arith.constant 0 : index
    %c376 = arith.constant 376 : index
    %561 = vector.load %arg1[%c0_197, %c376] : memref<16x394xf32, #tpu.memory_space<vmem>>, vector<16x8xf32>
    %cst_198 = arith.constant dense<0.000000e+00> : vector<16x256xf32>
    %562 = tpu.matmul %561, %560, %cst_198 {dimension_numbers = #tpu.dot_dimension_numbers<[1], [0], [0], [1], [0, 0, 1, 1], [], []>} : vector<16x8xf32>, vector<8x256xf32>, vector<16x256xf32> -> vector<16x256xf32>
    %563 = arith.addf %554, %562 : vector<16x256xf32>
    %c205_i32 = arith.constant 205 : i32
    %564 = tpu.dynamic_rotate %0 by %c205_i32 dim 1 : vector<8x256xf32>, i32 -> vector<8x256xf32>
    %565 = arith.andi %68, %131 : vector<1x256xi1>
    %cst_199 = arith.constant 0.000000e+00 : f32
    %566 = vector.shape_cast %565 : vector<1x256xi1> to vector<1x256xi1>
    %567 = vector.broadcast %566 : vector<1x256xi1> to vector<8x256xi1>
    %568 = vector.broadcast %cst_199 : f32 to vector<8x256xf32>
    %569 = arith.select %567, %564, %568 : vector<8x256xi1>, vector<8x256xf32>
    %c0_200 = arith.constant 0 : index
    %c384 = arith.constant 384 : index
    %570 = vector.load %arg1[%c0_200, %c384] : memref<16x394xf32, #tpu.memory_space<vmem>>, vector<16x8xf32>
    %cst_201 = arith.constant dense<0.000000e+00> : vector<16x256xf32>
    %571 = tpu.matmul %570, %569, %cst_201 {dimension_numbers = #tpu.dot_dimension_numbers<[1], [0], [0], [1], [0, 0, 1, 1], [], []>} : vector<16x8xf32>, vector<8x256xf32>, vector<16x256xf32> -> vector<16x256xf32>
    %572 = arith.addf %563, %571 : vector<16x256xf32>
    %c1_i32_202 = arith.constant 1 : i32
    %573 = vector.broadcast %c1_i32_202 : i32 to vector<1x256xi32>
    %574 = arith.andi %3, %573 : vector<1x256xi32>
    %c0_i32_203 = arith.constant 0 : i32
    %575 = vector.broadcast %c0_i32_203 : i32 to vector<1x256xi32>
    %576 = arith.cmpi eq, %574, %575 : vector<1x256xi32>
    %c1_i32_204 = arith.constant 1 : i32
    %577 = vector.broadcast %c1_i32_204 : i32 to vector<1x256xi32>
    %578 = arith.andi %5, %577 : vector<1x256xi32>
    %c0_i32_205 = arith.constant 0 : i32
    %579 = vector.broadcast %c0_i32_205 : i32 to vector<1x256xi32>
    %580 = arith.cmpi eq, %578, %579 : vector<1x256xi32>
    %581 = arith.andi %576, %580 : vector<1x256xi1>
    %cst_206 = arith.constant 1.000000e+00 : f32
    %cst_207 = arith.constant 0.000000e+00 : f32
    %582 = vector.broadcast %cst_206 : f32 to vector<1x256xf32>
    %583 = vector.broadcast %cst_207 : f32 to vector<1x256xf32>
    %584 = arith.select %581, %582, %583 : vector<1x256xi1>, vector<1x256xf32>
    %585 = vector.broadcast %584 : vector<1x256xf32> to vector<16x256xf32>
    %586 = arith.mulf %572, %585 : vector<16x256xf32>
    %cst_208 = arith.constant dense<0.000000e+00> : vector<16xf32>
    %587 = vector.multi_reduction <add>, %586, %cst_208 [1] : vector<16x256xf32> to vector<16xf32>
    %588 = vector.shape_cast %587 : vector<16xf32> to vector<16x1xf32>
    %589 = vector.extract_strided_slice %588 {offsets = [0, 0], sizes = [8, 1], strides = [1, 1]} : vector<16x1xf32> to vector<8x1xf32>
    %590 = vector.extract_strided_slice %588 {offsets = [8, 0], sizes = [8, 1], strides = [1, 1]} : vector<16x1xf32> to vector<8x1xf32>
    %591 = arith.addf %589, %590 : vector<8x1xf32>
    %cst_209 = arith.constant 7.812500e-03 : f32
    %592 = vector.broadcast %cst_209 : f32 to vector<8x1xf32>
    %593 = arith.mulf %591, %592 : vector<8x1xf32>
    %594 = tpu.concatenate %593, %593 in 0 : vector<8x1xf32>, vector<8x1xf32> -> vector<16x1xf32>
    %595 = vector.broadcast %594 : vector<16x1xf32> to vector<16x256xf32>
    %596 = arith.subf %572, %595 : vector<16x256xf32>
    %597 = vector.broadcast %584 : vector<1x256xf32> to vector<16x256xf32>
    %598 = arith.mulf %596, %597 : vector<16x256xf32>
    %599 = arith.mulf %598, %598 : vector<16x256xf32>
    %cst_210 = arith.constant dense<0.000000e+00> : vector<16xf32>
    %600 = vector.multi_reduction <add>, %599, %cst_210 [1] : vector<16x256xf32> to vector<16xf32>
    %601 = vector.shape_cast %600 : vector<16xf32> to vector<16x1xf32>
    %602 = vector.extract_strided_slice %601 {offsets = [0, 0], sizes = [8, 1], strides = [1, 1]} : vector<16x1xf32> to vector<8x1xf32>
    %603 = vector.extract_strided_slice %601 {offsets = [8, 0], sizes = [8, 1], strides = [1, 1]} : vector<16x1xf32> to vector<8x1xf32>
    %604 = arith.addf %602, %603 : vector<8x1xf32>
    %cst_211 = arith.constant 7.812500e-03 : f32
    %605 = vector.broadcast %cst_211 : f32 to vector<8x1xf32>
    %606 = arith.mulf %604, %605 : vector<8x1xf32>
    %c0_212 = arith.constant 0 : index
    %c392 = arith.constant 392 : index
    %607 = vector.load %arg1[%c0_212, %c392] : memref<16x394xf32, #tpu.memory_space<vmem>>, vector<8x1xf32>
    %c0_213 = arith.constant 0 : index
    %c393 = arith.constant 393 : index
    %608 = vector.load %arg1[%c0_213, %c393] : memref<16x394xf32, #tpu.memory_space<vmem>>, vector<8x1xf32>
    %cst_214 = arith.constant 9.99999974E-6 : f32
    %609 = vector.broadcast %cst_214 : f32 to vector<8x1xf32>
    %610 = arith.addf %606, %609 : vector<8x1xf32>
    %611 = math.rsqrt %610 : vector<8x1xf32>
    %612 = arith.mulf %607, %611 : vector<8x1xf32>
    %613 = arith.mulf %593, %612 : vector<8x1xf32>
    %614 = arith.subf %608, %613 : vector<8x1xf32>
    %615 = tpu.concatenate %612, %612 in 0 : vector<8x1xf32>, vector<8x1xf32> -> vector<16x1xf32>
    %616 = tpu.concatenate %614, %614 in 0 : vector<8x1xf32>, vector<8x1xf32> -> vector<16x1xf32>
    %617 = vector.broadcast %615 : vector<16x1xf32> to vector<16x256xf32>
    %618 = arith.mulf %572, %617 : vector<16x256xf32>
    %619 = vector.broadcast %616 : vector<16x1xf32> to vector<16x256xf32>
    %620 = arith.addf %618, %619 : vector<16x256xf32>
    %cst_215 = arith.constant 0.000000e+00 : f32
    %621 = vector.broadcast %cst_215 : f32 to vector<16x256xf32>
    %622 = arith.cmpf oge, %620, %621 : vector<16x256xf32>
    %cst_216 = arith.constant 0.00999999977 : f32
    %623 = vector.broadcast %cst_216 : f32 to vector<16x256xf32>
    %624 = arith.mulf %623, %620 : vector<16x256xf32>
    %625 = arith.select %622, %620, %624 : vector<16x256xi1>, vector<16x256xf32>
    %c5_i32 = arith.constant 5 : i32
    %626 = vector.broadcast %c5_i32 : i32 to vector<1x256xi32>
    %627 = arith.shrsi %1, %626 : vector<1x256xi32>
    %c1_i32_217 = arith.constant 1 : i32
    %628 = vector.broadcast %c1_i32_217 : i32 to vector<1x256xi32>
    %629 = arith.shrsi %1, %628 : vector<1x256xi32>
    %c15_i32_218 = arith.constant 15 : i32
    %630 = vector.broadcast %c15_i32_218 : i32 to vector<1x256xi32>
    %631 = arith.andi %629, %630 : vector<1x256xi32>
    %c0_i32_219 = arith.constant 0 : i32
    %632 = vector.broadcast %c0_i32_219 : i32 to vector<1x256xi32>
    %633 = arith.cmpi eq, %631, %632 : vector<1x256xi32>
    %c2_i32_220 = arith.constant 2 : i32
    %634 = tpu.dynamic_rotate %625 by %c2_i32_220 dim 1 : vector<16x256xf32>, i32 -> vector<16x256xf32>
    %cst_221 = arith.constant -3.000000e+38 : f32
    %635 = vector.shape_cast %633 : vector<1x256xi1> to vector<1x256xi1>
    %636 = vector.broadcast %635 : vector<1x256xi1> to vector<16x256xi1>
    %637 = vector.broadcast %cst_221 : f32 to vector<16x256xf32>
    %638 = arith.select %636, %637, %634 : vector<16x256xi1>, vector<16x256xf32>
    %c7_i32 = arith.constant 7 : i32
    %639 = vector.broadcast %c7_i32 : i32 to vector<1x256xi32>
    %640 = arith.cmpi eq, %631, %639 : vector<1x256xi32>
    %c254_i32_222 = arith.constant 254 : i32
    %641 = tpu.dynamic_rotate %625 by %c254_i32_222 dim 1 : vector<16x256xf32>, i32 -> vector<16x256xf32>
    %cst_223 = arith.constant -3.000000e+38 : f32
    %642 = vector.shape_cast %640 : vector<1x256xi1> to vector<1x256xi1>
    %643 = vector.broadcast %642 : vector<1x256xi1> to vector<16x256xi1>
    %644 = vector.broadcast %cst_223 : f32 to vector<16x256xf32>
    %645 = arith.select %643, %644, %641 : vector<16x256xi1>, vector<16x256xf32>
    %646 = arith.maximumf %638, %625 : vector<16x256xf32>
    %647 = arith.maximumf %646, %645 : vector<16x256xf32>
    %c0_i32_224 = arith.constant 0 : i32
    %648 = vector.broadcast %c0_i32_224 : i32 to vector<1x256xi32>
    %649 = arith.cmpi eq, %627, %648 : vector<1x256xi32>
    %c32_i32_225 = arith.constant 32 : i32
    %650 = tpu.dynamic_rotate %647 by %c32_i32_225 dim 1 : vector<16x256xf32>, i32 -> vector<16x256xf32>
    %cst_226 = arith.constant -3.000000e+38 : f32
    %651 = vector.shape_cast %649 : vector<1x256xi1> to vector<1x256xi1>
    %652 = vector.broadcast %651 : vector<1x256xi1> to vector<16x256xi1>
    %653 = vector.broadcast %cst_226 : f32 to vector<16x256xf32>
    %654 = arith.select %652, %653, %650 : vector<16x256xi1>, vector<16x256xf32>
    %c7_i32_227 = arith.constant 7 : i32
    %655 = vector.broadcast %c7_i32_227 : i32 to vector<1x256xi32>
    %656 = arith.cmpi eq, %627, %655 : vector<1x256xi32>
    %c224_i32_228 = arith.constant 224 : i32
    %657 = tpu.dynamic_rotate %647 by %c224_i32_228 dim 1 : vector<16x256xf32>, i32 -> vector<16x256xf32>
    %cst_229 = arith.constant -3.000000e+38 : f32
    %658 = vector.shape_cast %656 : vector<1x256xi1> to vector<1x256xi1>
    %659 = vector.broadcast %658 : vector<1x256xi1> to vector<16x256xi1>
    %660 = vector.broadcast %cst_229 : f32 to vector<16x256xf32>
    %661 = arith.select %659, %660, %657 : vector<16x256xi1>, vector<16x256xf32>
    %662 = arith.maximumf %654, %647 : vector<16x256xf32>
    %663 = arith.maximumf %662, %661 : vector<16x256xf32>
    %664 = tpu.iota {dimensions = array<i32: 0>} : vector<256x16xi32>
    %665 = tpu.iota {dimensions = array<i32: 1>} : vector<256x16xi32>
    %c2_i32_230 = arith.constant 2 : i32
    %666 = vector.broadcast %c2_i32_230 : i32 to vector<256x16xi32>
    %667 = arith.shrsi %665, %666 : vector<256x16xi32>
    %c64_i32 = arith.constant 64 : i32
    %668 = vector.broadcast %c64_i32 : i32 to vector<256x16xi32>
    %669 = arith.muli %667, %668 : vector<256x16xi32>
    %c3_i32_231 = arith.constant 3 : i32
    %670 = vector.broadcast %c3_i32_231 : i32 to vector<256x16xi32>
    %671 = arith.andi %665, %670 : vector<256x16xi32>
    %c4_i32_232 = arith.constant 4 : i32
    %672 = vector.broadcast %c4_i32_232 : i32 to vector<256x16xi32>
    %673 = arith.muli %671, %672 : vector<256x16xi32>
    %674 = arith.addi %669, %673 : vector<256x16xi32>
    %675 = arith.cmpi eq, %664, %674 : vector<256x16xi32>
    %676 = arith.extui %675 : vector<256x16xi1> to vector<256x16xi32>
    %677 = arith.sitofp %676 : vector<256x16xi32> to vector<256x16xf32>
    %cst_233 = arith.constant dense<0.000000e+00> : vector<16x16xf32>
    %678 = tpu.matmul %663, %677, %cst_233 {dimension_numbers = #tpu.dot_dimension_numbers<[1], [0], [0], [1], [0, 0, 1, 1], [], []>} : vector<16x256xf32>, vector<256x16xf32>, vector<16x16xf32> -> vector<16x16xf32>
    %c0_234 = arith.constant 0 : index
    %c0_235 = arith.constant 0 : index
    %679 = vector.load %arg2[%c0_234, %c0_235] : memref<16x16xf32, #tpu.memory_space<vmem>>, vector<16x16xf32>
    tpu.vector_store %arg2[%c0_234, %c0_235], %678 {strides = array<i32>} : memref<16x16xf32, #tpu.memory_space<vmem>>, vector<16x16xf32>,
    return
  }
}

</mosaic_0001>

<llo_original>
// kernel: spectral_conv_start.1
$region0: #{spectral_conv_start.1}
  #allocation0 [shape = 'u32[]', space=smem, size = 0x4, offset = 0x4, fixed_abs, tag = 'smem constant byte address 0x4 - core index']
  #allocation1 [shape = 'u32[144,128]{1,0:T(1,128)}', space=vmem, size = 0x12000, scoped, tag = 'internal scratch']
  %s0 = inlined_call_operand.vmem [shape: f32[8,256], index: 0, kind: input, shape index: {}]
  %s1 = inlined_call_operand.vmem [shape: f32[16,394], index: 1, kind: input, shape index: {}]
  %s2 = inlined_call_operand.vmem [shape: f32[16,16], index: 2, kind: output, shape index: {}]
  %s3 = sld [smem:[#allocation0]]
  $region18: #{spectral_conv_start.1} parent=0
    _
  %s5 = ssub.s32 1, %s3
  %s6 = scalar_select 0, %s5, %s3
  // Predicated region
  $region2: #{spectral_conv_start.1} parent=0 // pred_check
    _
  $region3: #{spectral_conv_start.1} parent=0 // pred_check_branch
    %8 = sbr.rel (0) target = $region5
  $region4: #{spectral_conv_start.1} parent=0 // pred_region
    _
  $region5: #{spectral_conv_start.1} parent=0 // pred_fallthru
    _
  // Predicated region
  $region6: #{spectral_conv_start.1} parent=0 // pred_check
    _
  $region7: #{spectral_conv_start.1} parent=0 // pred_check_branch
    %10 = sbr.rel (0) target = $region9
  $region8: #{spectral_conv_start.1} parent=0 // pred_region
    _
  $region9: #{spectral_conv_start.1} parent=0 // pred_fallthru
    _
  %v11 = vld [vmem:[%s0] sm:$0xff]
  %v12 = vld [vmem:[%s0 + $0x8] sm:$0xff]
  %v13 = vlaneseq
  %v14 = vand.u32 %v13, 127
  %v15 = vadd.s32 %v14, 128
  %v16 = vshra.s32 %v14, 4
  %v17 = vshra.s32 %v15, 4
  %v18 = vand.u32 %v14, 15
  %v19 = vand.u32 %v15, 15
  %v20 = vadd.s32 %v16, 4294967293
  %v21 = vadd.s32 %v17, 4294967293
  %vm22 = vcmp.ge.s32.totalorder %v20, 0
  %vm23 = vcmp.ge.s32.totalorder %v21, 0
  %vm24 = vcmp.lt.s32.totalorder %v20, 16
  %vm25 = vcmp.lt.s32.totalorder %v21, 16
  %vm26 = vmand %vm22, %vm24
  %vm27 = vmand %vm23, %vm25
  %v28 = vadd.s32 %v16, 4294967294
  %v29 = vadd.s32 %v17, 4294967294
  %vm30 = vcmp.ge.s32.totalorder %v28, 0
  %vm31 = vcmp.ge.s32.totalorder %v29, 0
  %vm32 = vcmp.lt.s32.totalorder %v28, 16
  %vm33 = vcmp.lt.s32.totalorder %v29, 16
  %vm34 = vmand %vm30, %vm32
  %vm35 = vmand %vm31, %vm33
  %v36 = vadd.s32 %v16, 4294967295
  %v37 = vadd.s32 %v17, 4294967295
  %vm38 = vcmp.ge.s32.totalorder %v36, 0
  %vm39 = vcmp.ge.s32.totalorder %v37, 0
  %vm40 = vcmp.lt.s32.totalorder %v36, 16
  %vm41 = vcmp.lt.s32.totalorder %v37, 16
  %vm42 = vmand %vm38, %vm40
  %vm43 = vmand %vm39, %vm41
  %vm44 = vcmp.ge.s32.totalorder %v16, 0
  %vm45 = vcmp.ge.s32.totalorder %v17, 0
  %vm46 = vcmp.lt.s32.totalorder %v16, 16
  %vm47 = vcmp.lt.s32.totalorder %v17, 16
  %vm48 = vmand %vm44, %vm46
  %vm49 = vmand %vm45, %vm47
  %v50 = vadd.s32 %v16, 1
  %v51 = vadd.s32 %v17, 1
  %vm52 = vcmp.ge.s32.totalorder %v50, 0
  %vm53 = vcmp.ge.s32.totalorder %v51, 0
  %vm54 = vcmp.lt.s32.totalorder %v50, 16
  %vm55 = vcmp.lt.s32.totalorder %v51, 16
  %vm56 = vmand %vm52, %vm54
  %vm57 = vmand %vm53, %vm55
  %v58 = vadd.s32 %v16, 2
  %v59 = vadd.s32 %v17, 2
  %vm60 = vcmp.ge.s32.totalorder %v58, 0
  %vm61 = vcmp.ge.s32.totalorder %v59, 0
  %vm62 = vcmp.lt.s32.totalorder %v58, 16
  %vm63 = vcmp.lt.s32.totalorder %v59, 16
  %vm64 = vmand %vm60, %vm62
  %vm65 = vmand %vm61, %vm63
  %v66 = vadd.s32 %v16, 3
  %v67 = vadd.s32 %v17, 3
  %vm68 = vcmp.ge.s32.totalorder %v66, 0
  %vm69 = vcmp.ge.s32.totalorder %v67, 0
  %vm70 = vcmp.lt.s32.totalorder %v66, 16
  %vm71 = vcmp.lt.s32.totalorder %v67, 16
  %vm72 = vmand %vm68, %vm70
  %vm73 = vmand %vm69, %vm71
  %v74 = vadd.s32 %v18, 4294967293
  %v75 = vadd.s32 %v19, 4294967293
  %vm76 = vcmp.ge.s32.totalorder %v74, 0
  %vm77 = vcmp.ge.s32.totalorder %v75, 0
  %vm78 = vcmp.lt.s32.totalorder %v74, 16
  %vm79 = vcmp.lt.s32.totalorder %v75, 16
  %vm80 = vmand %vm76, %vm78
  %vm81 = vmand %vm77, %vm79
  %v82 = vadd.s32 %v18, 4294967294
  %v83 = vadd.s32 %v19, 4294967294
  %vm84 = vcmp.ge.s32.totalorder %v82, 0
  %vm85 = vcmp.ge.s32.totalorder %v83, 0
  %vm86 = vcmp.lt.s32.totalorder %v82, 16
  %vm87 = vcmp.lt.s32.totalorder %v83, 16
  %vm88 = vmand %vm84, %vm86
  %vm89 = vmand %vm85, %vm87
  %v90 = vadd.s32 %v18, 4294967295
  %v91 = vadd.s32 %v19, 4294967295
  %vm92 = vcmp.ge.s32.totalorder %v90, 0
  %vm93 = vcmp.ge.s32.totalorder %v91, 0
  %vm94 = vcmp.lt.s32.totalorder %v90, 16
  %vm95 = vcmp.lt.s32.totalorder %v91, 16
  %vm96 = vmand %vm92, %vm94
  %vm97 = vmand %vm93, %vm95
  %vm98 = vcmp.ge.s32.totalorder %v18, 0
  %vm99 = vcmp.ge.s32.totalorder %v19, 0
  %vm100 = vcmp.lt.s32.totalorder %v18, 16
  %vm101 = vcmp.lt.s32.totalorder %v19, 16
  %vm102 = vmand %vm98, %vm100
  %vm103 = vmand %vm99, %vm101
  %v104 = vadd.s32 %v18, 1
  %v105 = vadd.s32 %v19, 1
  %vm106 = vcmp.ge.s32.totalorder %v104, 0
  %vm107 = vcmp.ge.s32.totalorder %v105, 0
  %vm108 = vcmp.lt.s32.totalorder %v104, 16
  %vm109 = vcmp.lt.s32.totalorder %v105, 16
  %vm110 = vmand %vm106, %vm108
  %vm111 = vmand %vm107, %vm109
  %v112 = vadd.s32 %v18, 2
  %v113 = vadd.s32 %v19, 2
  %vm114 = vcmp.ge.s32.totalorder %v112, 0
  %vm115 = vcmp.ge.s32.totalorder %v113, 0
  %vm116 = vcmp.lt.s32.totalorder %v112, 16
  %vm117 = vcmp.lt.s32.totalorder %v113, 16
  %vm118 = vmand %vm114, %vm116
  %vm119 = vmand %vm115, %vm117
  %v120 = vadd.s32 %v18, 3
  %v121 = vadd.s32 %v19, 3
  %vm122 = vcmp.ge.s32.totalorder %v120, 0
  %vm123 = vcmp.ge.s32.totalorder %v121, 0
  %vm124 = vcmp.lt.s32.totalorder %v120, 16
  %vm125 = vcmp.lt.s32.totalorder %v121, 16
  %vm126 = vmand %vm122, %vm124
  %vm127 = vmand %vm123, %vm125
  %128 = vrot.lane.b32.xlu0 %v11, 51
  %v129 = vpop.permute.xlu0 %128
  %130 = vrot.lane.b32.xlu0 %v12, 51
  %v131 = vpop.permute.xlu0 %130
  %vm132 = vcmp.lt.s32.totalorder %v14, 51
  %v133 = vsel %vm132, %v129, %v131
  %v134 = vsel %vm132, %v131, %v129
  %vm135 = vmand %vm26, %vm80
  %vm136 = vmand %vm27, %vm81
  %v137 = vsel %vm135, 1, 0
  %v138 = vsel %vm136, 1, 0
  %vm139 = vcmp.eq.s32.totalorder %v137, 1
  %vm140 = vcmp.eq.s32.totalorder %v138, 1
  %v141 = vsel %vm139, %v134, 0.0
  %v142 = vsel %vm140, %v133, 0.0
  %v143 = vld [vmem:[%s1] sm:$0xff]
  %v144 = vld [vmem:[%s1 + $0x20] sm:$0xff]
  %145 = vrot.lane.b32.xlu0 %v11, 50
  %v146 = vpop.permute.xlu0 %145
  %147 = vrot.lane.b32.xlu0 %v12, 50
  %v148 = vpop.permute.xlu0 %147
  %vm149 = vcmp.lt.s32.totalorder %v14, 50
  %v150 = vsel %vm149, %v146, %v148
  %v151 = vsel %vm149, %v148, %v146
  %vm152 = vmand %vm26, %vm88
  %vm153 = vmand %vm27, %vm89
  %v154 = vsel %vm152, 1, 0
  %v155 = vsel %vm153, 1, 0
  %vm156 = vcmp.eq.s32.totalorder %v154, 1
  %vm157 = vcmp.eq.s32.totalorder %v155, 1
  %v158 = vsel %vm156, %v151, 0.0
  %v159 = vsel %vm157, %v150, 0.0
  %162 = vrot.lane.b32.xlu0 %v143, 120
  %v163 = vpop.permute.xlu0 %162
  %164 = vrot.lane.b32.xlu0 %v144, 120
  %v165 = vpop.permute.xlu0 %164
  %vm166 = vcmask 64512
  %v167 = vsel %vm166, %v163, 0
  %v169 = vsel %vm166, %v165, 0
  %171 = vmatprep.subr.mxu0 %v159
  %172 = vmatpush1.msra.mxu0 %v158
  %173 = vmatprep.subr.mxu0 0.0
  %174 = vmatpush1.msra.mxu0 0.0
  %175 = vmatprep.subr.mxu0 0.0
  %176 = vmatpush1.msra.mxu0 0.0
  %177 = vmatprep.subr.mxu0 0.0
  %178 = vmatpush1.msra.mxu0 0.0
  %179 = vmatprep.subr.mxu0 0.0
  %180 = vmatpush1.msra.mxu0 0.0
  %181 = vmatprep.subr.mxu0 0.0
  %182 = vmatpush1.msra.mxu0 0.0
  %183 = vmatprep.subr.mxu0 0.0
  %184 = vmatpush1.msra.mxu0 0.0
  %185 = vmatprep.subr.mxu0 0.0
  %186 = vmatpush1.msra.mxu0 0.0
  %187 = vmatprep.subr.mxu0 0.0
  %188 = vmatpush1.msra.mxu0 0.0
  %189 = vmatprep.subr.mxu0 0.0
  %190 = vmatpush1.msra.mxu0 0.0
  %191 = vmatprep.subr.mxu0 0.0
  %192 = vmatpush1.msra.mxu0 0.0
  %193 = vmatprep.subr.mxu0 0.0
  %194 = vmatpush1.msra.mxu0 0.0
  %195 = vmatprep.subr.mxu0 0.0
  %196 = vmatpush1.msra.mxu0 0.0
  %197 = vmatprep.subr.mxu0 0.0
  %198 = vmatpush1.msra.mxu0 0.0
  %199 = vmatprep.subr.mxu0 0.0
  %200 = vmatpush1.msra.mxu0 0.0
  %201 = vmatprep.subr.mxu0 0.0
  %202 = vmatpush1.msra.mxu0 0.0
  %203 = vmatprep.subr.mxu0 0.0
  %204 = vmatpush1.msra.mxu0 0.0
  %205 = vmatprep.subr.mxu0 0.0
  %206 = vmatpush1.msra.mxu0 0.0
  %207 = vmatprep.subr.mxu0 0.0
  %208 = vmatpush1.msra.mxu0 0.0
  %209 = vmatprep.subr.mxu0 0.0
  %210 = vmatpush1.msra.mxu0 0.0
  %211 = vmatprep.subr.mxu0 0.0
  %212 = vmatpush1.msra.mxu0 0.0
  %213 = vmatprep.subr.mxu0 0.0
  %214 = vmatpush1.msra.mxu0 0.0
  %215 = vmatprep.subr.mxu0 0.0
  %216 = vmatpush1.msra.mxu0 0.0
  %217 = vmatprep.subr.mxu0 0.0
  %218 = vmatpush1.msra.mxu0 0.0
  %219 = vmatprep.subr.mxu0 0.0
  %220 = vmatpush1.msra.mxu0 0.0
  %221 = vmatprep.subr.mxu0 0.0
  %222 = vmatpush1.msra.mxu0 0.0
  %223 = vmatprep.subr.mxu0 0.0
  %224 = vmatpush1.msra.mxu0 0.0
  %225 = vmatprep.subr.mxu0 0.0
  %226 = vmatpush1.msra.mxu0 0.0
  %227 = vmatprep.subr.mxu0 0.0
  %228 = vmatpush1.msra.mxu0 0.0
  %229 = vmatprep.subr.mxu0 0.0
  %230 = vmatpush1.msra.mxu0 0.0
  %231 = vmatprep.subr.mxu0 0.0
  %232 = vmatpush1.msra.mxu0 0.0
  %233 = vmatprep.subr.mxu0 0.0
  %234 = vmatpush1.msra.mxu0 0.0
  %235 = vmatprep.mubr.f32.mxu0 0.0
  %236 = vmatmul.mubr.f32.gmra.mrb[0].mxu0 %v167
  %v237 = vpop.f32.mrb[0].mxu0
  %v238 = vadd.f32 0.0, %v237
  %v239 = vpop.f32.mrb[0].mxu0
  %v240 = vadd.f32 0.0, %v239
  %241 = vmatprep.mubr.f32.mxu0 0.0
  %242 = vmatmul.mubr.f32.gmra.mrb[0].mxu0 %v169
  %v243 = vpop.f32.mrb[0].mxu0
  %v244 = vadd.f32 0.0, %v243
  %v245 = vpop.f32.mrb[0].mxu0
  %v246 = vadd.f32 0.0, %v245
  %247 = vdwg.mxu0
  %v248 = vsel %vm166, %v143, 0
  %v250 = vsel %vm166, %v144, 0
  %252 = vmatprep.subr.mxu0 %v142
  %253 = vmatpush1.msra.mxu0 %v141
  %254 = vmatprep.subr.mxu0 0.0
  %255 = vmatpush1.msra.mxu0 0.0
  %256 = vmatprep.subr.mxu0 0.0
  %257 = vmatpush1.msra.mxu0 0.0
  %258 = vmatprep.subr.mxu0 0.0
  %259 = vmatpush1.msra.mxu0 0.0
  %260 = vmatprep.subr.mxu0 0.0
  %261 = vmatpush1.msra.mxu0 0.0
  %262 = vmatprep.subr.mxu0 0.0
  %263 = vmatpush1.msra.mxu0 0.0
  %264 = vmatprep.subr.mxu0 0.0
  %265 = vmatpush1.msra.mxu0 0.0
  %266 = vmatprep.subr.mxu0 0.0
  %267 = vmatpush1.msra.mxu0 0.0
  %268 = vmatprep.subr.mxu0 0.0
  %269 = vmatpush1.msra.mxu0 0.0
  %270 = vmatprep.subr.mxu0 0.0
  %271 = vmatpush1.msra.mxu0 0.0
  %272 = vmatprep.subr.mxu0 0.0
  %273 = vmatpush1.msra.mxu0 0.0
  %274 = vmatprep.subr.mxu0 0.0
  %275 = vmatpush1.msra.mxu0 0.0
  %276 = vmatprep.subr.mxu0 0.0
  %277 = vmatpush1.msra.mxu0 0.0
  %278 = vmatprep.subr.mxu0 0.0
  %279 = vmatpush1.msra.mxu0 0.0
  %280 = vmatprep.subr.mxu0 0.0
  %281 = vmatpush1.msra.mxu0 0.0
  %282 = vmatprep.subr.mxu0 0.0
  %283 = vmatpush1.msra.mxu0 0.0
  %284 = vmatprep.subr.mxu0 0.0
  %285 = vmatpush1.msra.mxu0 0.0
  %286 = vmatprep.subr.mxu0 0.0
  %287 = vmatpush1.msra.mxu0 0.0
  %288 = vmatprep.subr.mxu0 0.0
  %289 = vmatpush1.msra.mxu0 0.0
  %290 = vmatprep.subr.mxu0 0.0
  %291 = vmatpush1.msra.mxu0 0.0
  %292 = vmatprep.subr.mxu0 0.0
  %293 = vmatpush1.msra.mxu0 0.0
  %294 = vmatprep.subr.mxu0 0.0
  %295 = vmatpush1.msra.mxu0 0.0
  %296 = vmatprep.subr.mxu0 0.0
  %297 = vmatpush1.msra.mxu0 0.0
  %298 = vmatprep.subr.mxu0 0.0
  %299 = vmatpush1.msra.mxu0 0.0
  %300 = vmatprep.subr.mxu0 0.0
  %301 = vmatpush1.msra.mxu0 0.0
  %302 = vmatprep.subr.mxu0 0.0
  %303 = vmatpush1.msra.mxu0 0.0
  %304 = vmatprep.subr.mxu0 0.0
  %305 = vmatpush1.msra.mxu0 0.0
  %306 = vmatprep.subr.mxu0 0.0
  %307 = vmatpush1.msra.mxu0 0.0
  %308 = vmatprep.subr.mxu0 0.0
  %309 = vmatpush1.msra.mxu0 0.0
  %310 = vmatprep.subr.mxu0 0.0
  %311 = vmatpush1.msra.mxu0 0.0
  %312 = vmatprep.subr.mxu0 0.0
  %313 = vmatpush1.msra.mxu0 0.0
  %314 = vmatprep.subr.mxu0 0.0
  %315 = vmatpush1.msra.mxu0 0.0
  %316 = vmatprep.mubr.f32.mxu0 0.0
  %317 = vmatmul.mubr.f32.gmra.mrb[0].mxu0 %v248
  %v318 = vpop.f32.mrb[0].mxu0
  %v319 = vadd.f32 %v238, %v318
  %v320 = vpop.f32.mrb[0].mxu0
  %v321 = vadd.f32 %v240, %v320
  %322 = vmatprep.mubr.f32.mxu0 0.0
  %323 = vmatmul.mubr.f32.gmra.mrb[0].mxu0 %v250
  %v324 = vpop.f32.mrb[0].mxu0
  %v325 = vadd.f32 %v244, %v324
  %v326 = vpop.f32.mrb[0].mxu0
  %v327 = vadd.f32 %v246, %v326
  %328 = vdwg.mxu0
  %329 = vrot.lane.b32.xlu0 %v11, 49
  %v330 = vpop.permute.xlu0 %329
  %331 = vrot.lane.b32.xlu0 %v12, 49
  %v332 = vpop.permute.xlu0 %331
  %vm333 = vcmp.lt.s32.totalorder %v14, 49
  %v334 = vsel %vm333, %v330, %v332
  %v335 = vsel %vm333, %v332, %v330
  %vm336 = vmand %vm26, %vm96
  %vm337 = vmand %vm27, %vm97
  %v338 = vsel %vm336, 1, 0
  %v339 = vsel %vm337, 1, 0
  %vm340 = vcmp.eq.s32.totalorder %v338, 1
  %vm341 = vcmp.eq.s32.totalorder %v339, 1
  %v342 = vsel %vm340, %v335, 0.0
  %v343 = vsel %vm341, %v334, 0.0
  %344 = vrot.lane.b32.xlu0 %v143, 112
  %v345 = vpop.permute.xlu0 %344
  %346 = vrot.lane.b32.xlu0 %v144, 112
  %v347 = vpop.permute.xlu0 %346
  %v348 = vsel %vm166, %v345, 0
  %v350 = vsel %vm166, %v347, 0
  %352 = vmatprep.subr.mxu0 %v343
  %353 = vmatpush1.msra.mxu0 %v342
  %354 = vmatprep.subr.mxu0 0.0
  %355 = vmatpush1.msra.mxu0 0.0
  %356 = vmatprep.subr.mxu0 0.0
  %357 = vmatpush1.msra.mxu0 0.0
  %358 = vmatprep.subr.mxu0 0.0
  %359 = vmatpush1.msra.mxu0 0.0
  %360 = vmatprep.subr.mxu0 0.0
  %361 = vmatpush1.msra.mxu0 0.0
  %362 = vmatprep.subr.mxu0 0.0
  %363 = vmatpush1.msra.mxu0 0.0
  %364 = vmatprep.subr.mxu0 0.0
  %365 = vmatpush1.msra.mxu0 0.0
  %366 = vmatprep.subr.mxu0 0.0
  %367 = vmatpush1.msra.mxu0 0.0
  %368 = vmatprep.subr.mxu0 0.0
  %369 = vmatpush1.msra.mxu0 0.0
  %370 = vmatprep.subr.mxu0 0.0
  %371 = vmatpush1.msra.mxu0 0.0
  %372 = vmatprep.subr.mxu0 0.0
  %373 = vmatpush1.msra.mxu0 0.0
  %374 = vmatprep.subr.mxu0 0.0
  %375 = vmatpush1.msra.mxu0 0.0
  %376 = vmatprep.subr.mxu0 0.0
  %377 = vmatpush1.msra.mxu0 0.0
  %378 = vmatprep.subr.mxu0 0.0
  %379 = vmatpush1.msra.mxu0 0.0
  %380 = vmatprep.subr.mxu0 0.0
  %381 = vmatpush1.msra.mxu0 0.0
  %382 = vmatprep.subr.mxu0 0.0
  %383 = vmatpush1.msra.mxu0 0.0
  %384 = vmatprep.subr.mxu0 0.0
  %385 = vmatpush1.msra.mxu0 0.0
  %386 = vmatprep.subr.mxu0 0.0
  %387 = vmatpush1.msra.mxu0 0.0
  %388 = vmatprep.subr.mxu0 0.0
  %389 = vmatpush1.msra.mxu0 0.0
  %390 = vmatprep.subr.mxu0 0.0
  %391 = vmatpush1.msra.mxu0 0.0
  %392 = vmatprep.subr.mxu0 0.0
  %393 = vmatpush1.msra.mxu0 0.0
  %394 = vmatprep.subr.mxu0 0.0
  %395 = vmatpush1.msra.mxu0 0.0
  %396 = vmatprep.subr.mxu0 0.0
  %397 = vmatpush1.msra.mxu0 0.0
  %398 = vmatprep.subr.mxu0 0.0
  %399 = vmatpush1.msra.mxu0 0.0
  %400 = vmatprep.subr.mxu0 0.0
  %401 = vmatpush1.msra.mxu0 0.0
  %402 = vmatprep.subr.mxu0 0.0
  %403 = vmatpush1.msra.mxu0 0.0
  %404 = vmatprep.subr.mxu0 0.0
  %405 = vmatpush1.msra.mxu0 0.0
  %406 = vmatprep.subr.mxu0 0.0
  %407 = vmatpush1.msra.mxu0 0.0
  %408 = vmatprep.subr.mxu0 0.0
  %409 = vmatpush1.msra.mxu0 0.0
  %410 = vmatprep.subr.mxu0 0.0
  %411 = vmatpush1.msra.mxu0 0.0
  %412 = vmatprep.subr.mxu0 0.0
  %413 = vmatpush1.msra.mxu0 0.0
  %414 = vmatprep.subr.mxu0 0.0
  %415 = vmatpush1.msra.mxu0 0.0
  %416 = vmatprep.mubr.f32.mxu0 0.0
  %417 = vmatmul.mubr.f32.gmra.mrb[0].mxu0 %v348
  %v418 = vpop.f32.mrb[0].mxu0
  %v419 = vadd.f32 0.0, %v418
  %v420 = vpop.f32.mrb[0].mxu0
  %v421 = vadd.f32 0.0, %v420
  %422 = vmatprep.mubr.f32.mxu0 0.0
  %423 = vmatmul.mubr.f32.gmra.mrb[0].mxu0 %v350
  %v424 = vpop.f32.mrb[0].mxu0
  %v425 = vadd.f32 0.0, %v424
  %v426 = vpop.f32.mrb[0].mxu0
  %v427 = vadd.f32 0.0, %v426
  %428 = vdwg.mxu0
  %v429 = vadd.f32 %v319, %v419
  %v430 = vadd.f32 %v321, %v421
  %v431 = vadd.f32 %v325, %v425
  %v432 = vadd.f32 %v327, %v427
  %433 = vrot.lane.b32.xlu0 %v11, 48
  %v434 = vpop.permute.xlu0 %433
  %435 = vrot.lane.b32.xlu0 %v12, 48
  %v436 = vpop.permute.xlu0 %435
  %vm437 = vcmp.lt.s32.totalorder %v14, 48
  %v438 = vsel %vm437, %v434, %v436
  %v439 = vsel %vm437, %v436, %v434
  %vm440 = vmand %vm26, %vm102
  %vm441 = vmand %vm27, %vm103
  %v442 = vsel %vm440, 1, 0
  %v443 = vsel %vm441, 1, 0
  %vm444 = vcmp.eq.s32.totalorder %v442, 1
  %vm445 = vcmp.eq.s32.totalorder %v443, 1
  %v446 = vsel %vm444, %v439, 0.0
  %v447 = vsel %vm445, %v438, 0.0
  %448 = vrot.lane.b32.xlu0 %v143, 104
  %v449 = vpop.permute.xlu0 %448
  %450 = vrot.lane.b32.xlu0 %v144, 104
  %v451 = vpop.permute.xlu0 %450
  %v452 = vsel %vm166, %v449, 0
  %v454 = vsel %vm166, %v451, 0
  %456 = vmatprep.subr.mxu0 %v447
  %457 = vmatpush1.msra.mxu0 %v446
  %458 = vmatprep.subr.mxu0 0.0
  %459 = vmatpush1.msra.mxu0 0.0
  %460 = vmatprep.subr.mxu0 0.0
  %461 = vmatpush1.msra.mxu0 0.0
  %462 = vmatprep.subr.mxu0 0.0
  %463 = vmatpush1.msra.mxu0 0.0
  %464 = vmatprep.subr.mxu0 0.0
  %465 = vmatpush1.msra.mxu0 0.0
  %466 = vmatprep.subr.mxu0 0.0
  %467 = vmatpush1.msra.mxu0 0.0
  %468 = vmatprep.subr.mxu0 0.0
  %469 = vmatpush1.msra.mxu0 0.0
  %470 = vmatprep.subr.mxu0 0.0
  %471 = vmatpush1.msra.mxu0 0.0
  %472 = vmatprep.subr.mxu0 0.0
  %473 = vmatpush1.msra.mxu0 0.0
  %474 = vmatprep.subr.mxu0 0.0
  %475 = vmatpush1.msra.mxu0 0.0
  %476 = vmatprep.subr.mxu0 0.0
  %477 = vmatpush1.msra.mxu0 0.0
  %478 = vmatprep.subr.mxu0 0.0
  %479 = vmatpush1.msra.mxu0 0.0
  %480 = vmatprep.subr.mxu0 0.0
  %481 = vmatpush1.msra.mxu0 0.0
  %482 = vmatprep.subr.mxu0 0.0
  %483 = vmatpush1.msra.mxu0 0.0
  %484 = vmatprep.subr.mxu0 0.0
  %485 = vmatpush1.msra.mxu0 0.0
  %486 = vmatprep.subr.mxu0 0.0
  %487 = vmatpush1.msra.mxu0 0.0
  %488 = vmatprep.subr.mxu0 0.0
  %489 = vmatpush1.msra.mxu0 0.0
  %490 = vmatprep.subr.mxu0 0.0
  %491 = vmatpush1.msra.mxu0 0.0
  %492 = vmatprep.subr.mxu0 0.0
  %493 = vmatpush1.msra.mxu0 0.0
  %494 = vmatprep.subr.mxu0 0.0
  %495 = vmatpush1.msra.mxu0 0.0
  %496 = vmatprep.subr.mxu0 0.0
  %497 = vmatpush1.msra.mxu0 0.0
  %498 = vmatprep.subr.mxu0 0.0
  %499 = vmatpush1.msra.mxu0 0.0
  %500 = vmatprep.subr.mxu0 0.0
  %501 = vmatpush1.msra.mxu0 0.0
  %502 = vmatprep.subr.mxu0 0.0
  %503 = vmatpush1.msra.mxu0 0.0
  %504 = vmatprep.subr.mxu0 0.0
  %505 = vmatpush1.msra.mxu0 0.0
  %506 = vmatprep.subr.mxu0 0.0
  %507 = vmatpush1.msra.mxu0 0.0
  %508 = vmatprep.subr.mxu0 0.0
  %509 = vmatpush1.msra.mxu0 0.0
  %510 = vmatprep.subr.mxu0 0.0
  %511 = vmatpush1.msra.mxu0 0.0
  %512 = vmatprep.subr.mxu0 0.0
  %513 = vmatpush1.msra.mxu0 0.0
  %514 = vmatprep.subr.mxu0 0.0
  %515 = vmatpush1.msra.mxu0 0.0
  %516 = vmatprep.subr.mxu0 0.0
  %517 = vmatpush1.msra.mxu0 0.0
  %518 = vmatprep.subr.mxu0 0.0
  %519 = vmatpush1.msra.mxu0 0.0
  %520 = vmatprep.mubr.f32.mxu0 0.0
  %521 = vmatmul.mubr.f32.gmra.mrb[0].mxu0 %v452
  %v522 = vpop.f32.mrb[0].mxu0
  %v523 = vadd.f32 0.0, %v522
  %v524 = vpop.f32.mrb[0].mxu0
  %v525 = vadd.f32 0.0, %v524
  %526 = vmatprep.mubr.f32.mxu0 0.0
  %527 = vmatmul.mubr.f32.gmra.mrb[0].mxu0 %v454
  %v528 = vpop.f32.mrb[0].mxu0
  %v529 = vadd.f32 0.0, %v528
  %v530 = vpop.f32.mrb[0].mxu0
  %v531 = vadd.f32 0.0, %v530
  %532 = vdwg.mxu0
  %v533 = vadd.f32 %v429, %v523
  %v534 = vadd.f32 %v430, %v525
  %v535 = vadd.f32 %v431, %v529
  %v536 = vadd.f32 %v432, %v531
  %537 = vrot.lane.b32.xlu0 %v11, 47
  %v538 = vpop.permute.xlu0 %537
  %539 = vrot.lane.b32.xlu0 %v12, 47
  %v540 = vpop.permute.xlu0 %539
  %vm541 = vcmp.lt.s32.totalorder %v14, 47
  %v542 = vsel %vm541, %v538, %v540
  %v543 = vsel %vm541, %v540, %v538
  %vm544 = vmand %vm26, %vm110
  %vm545 = vmand %vm27, %vm111
  %v546 = vsel %vm544, 1, 0
  %v547 = vsel %vm545, 1, 0
  %vm548 = vcmp.eq.s32.totalorder %v546, 1
  %vm549 = vcmp.eq.s32.totalorder %v547, 1
  %v550 = vsel %vm548, %v543, 0.0
  %v551 = vsel %vm549, %v542, 0.0
  %552 = vrot.lane.b32.xlu0 %v143, 96
  %v553 = vpop.permute.xlu0 %552
  %554 = vrot.lane.b32.xlu0 %v144, 96
  %v555 = vpop.permute.xlu0 %554
  %v556 = vsel %vm166, %v553, 0
  %v558 = vsel %vm166, %v555, 0
  %560 = vmatprep.subr.mxu0 %v551
  %561 = vmatpush1.msra.mxu0 %v550
  %562 = vmatprep.subr.mxu0 0.0
  %563 = vmatpush1.msra.mxu0 0.0
  %564 = vmatprep.subr.mxu0 0.0
  %565 = vmatpush1.msra.mxu0 0.0
  %566 = vmatprep.subr.mxu0 0.0
  %567 = vmatpush1.msra.mxu0 0.0
  %568 = vmatprep.subr.mxu0 0.0
  %569 = vmatpush1.msra.mxu0 0.0
  %570 = vmatprep.subr.mxu0 0.0
  %571 = vmatpush1.msra.mxu0 0.0
  %572 = vmatprep.subr.mxu0 0.0
  %573 = vmatpush1.msra.mxu0 0.0
  %574 = vmatprep.subr.mxu0 0.0
  %575 = vmatpush1.msra.mxu0 0.0
  %576 = vmatprep.subr.mxu0 0.0
  %577 = vmatpush1.msra.mxu0 0.0
  %578 = vmatprep.subr.mxu0 0.0
  %579 = vmatpush1.msra.mxu0 0.0
  %580 = vmatprep.subr.mxu0 0.0
  %581 = vmatpush1.msra.mxu0 0.0
  %582 = vmatprep.subr.mxu0 0.0
  %583 = vmatpush1.msra.mxu0 0.0
  %584 = vmatprep.subr.mxu0 0.0
  %585 = vmatpush1.msra.mxu0 0.0
  %586 = vmatprep.subr.mxu0 0.0
  %587 = vmatpush1.msra.mxu0 0.0
  %588 = vmatprep.subr.mxu0 0.0
  %589 = vmatpush1.msra.mxu0 0.0
  %590 = vmatprep.subr.mxu0 0.0
  %591 = vmatpush1.msra.mxu0 0.0
  %592 = vmatprep.subr.mxu0 0.0
  %593 = vmatpush1.msra.mxu0 0.0
  %594 = vmatprep.subr.mxu0 0.0
  %595 = vmatpush1.msra.mxu0 0.0
  %596 = vmatprep.subr.mxu0 0.0
  %597 = vmatpush1.msra.mxu0 0.0
  %598 = vmatprep.subr.mxu0 0.0
  %599 = vmatpush1.msra.mxu0 0.0
  %600 = vmatprep.subr.mxu0 0.0
  %601 = vmatpush1.msra.mxu0 0.0
  %602 = vmatprep.subr.mxu0 0.0
  %603 = vmatpush1.msra.mxu0 0.0
  %604 = vmatprep.subr.mxu0 0.0
  %605 = vmatpush1.msra.mxu0 0.0
  %606 = vmatprep.subr.mxu0 0.0
  %607 = vmatpush1.msra.mxu0 0.0
  %608 = vmatprep.subr.mxu0 0.0
  %609 = vmatpush1.msra.mxu0 0.0
  %610 = vmatprep.subr.mxu0 0.0
  %611 = vmatpush1.msra.mxu0 0.0
  %612 = vmatprep.subr.mxu0 0.0
  %613 = vmatpush1.msra.mxu0 0.0
  %614 = vmatprep.subr.mxu0 0.0
  %615 = vmatpush1.msra.mxu0 0.0
  %616 = vmatprep.subr.mxu0 0.0
  %617 = vmatpush1.msra.mxu0 0.0
  %618 = vmatprep.subr.mxu0 0.0
  %619 = vmatpush1.msra.mxu0 0.0
  %620 = vmatprep.subr.mxu0 0.0
  %621 = vmatpush1.msra.mxu0 0.0
  %622 = vmatprep.subr.mxu0 0.0
  %623 = vmatpush1.msra.mxu0 0.0
  %624 = vmatprep.mubr.f32.mxu0 0.0
  %625 = vmatmul.mubr.f32.gmra.mrb[0].mxu0 %v556
  %v626 = vpop.f32.mrb[0].mxu0
  %v627 = vadd.f32 0.0, %v626
  %v628 = vpop.f32.mrb[0].mxu0
  %v629 = vadd.f32 0.0, %v628
  %630 = vmatprep.mubr.f32.mxu0 0.0
  %631 = vmatmul.mubr.f32.gmra.mrb[0].mxu0 %v558
  %v632 = vpop.f32.mrb[0].mxu0
  %v633 = vadd.f32 0.0, %v632
  %v634 = vpop.f32.mrb[0].mxu0
  %v635 = vadd.f32 0.0, %v634
  %636 = vdwg.mxu0
  %v637 = vadd.f32 %v533, %v627
  %v638 = vadd.f32 %v534, %v629
  %v639 = vadd.f32 %v535, %v633
  %v640 = vadd.f32 %v536, %v635
  %641 = vrot.lane.b32.xlu0 %v11, 46
  %v642 = vpop.permute.xlu0 %641
  %643 = vrot.lane.b32.xlu0 %v12, 46
  %v644 = vpop.permute.xlu0 %643
  %vm645 = vcmp.lt.s32.totalorder %v14, 46
  %v646 = vsel %vm645, %v642, %v644
  %v647 = vsel %vm645, %v644, %v642
  %vm648 = vmand %vm26, %vm118
  %vm649 = vmand %vm27, %vm119
  %v650 = vsel %vm648, 1, 0
  %v651 = vsel %vm649, 1, 0
  %vm652 = vcmp.eq.s32.totalorder %v650, 1
  %vm653 = vcmp.eq.s32.totalorder %v651, 1
  %v654 = vsel %vm652, %v647, 0.0
  %v655 = vsel %vm653, %v646, 0.0
  %656 = vrot.lane.b32.xlu0 %v143, 88
  %v657 = vpop.permute.xlu0 %656
  %658 = vrot.lane.b32.xlu0 %v144, 88
  %v659 = vpop.permute.xlu0 %658
  %v660 = vsel %vm166, %v657, 0
  %v662 = vsel %vm166, %v659, 0
  %664 = vmatprep.subr.mxu0 %v655
  %665 = vmatpush1.msra.mxu0 %v654
  %666 = vmatprep.subr.mxu0 0.0
  %667 = vmatpush1.msra.mxu0 0.0
  %668 = vmatprep.subr.mxu0 0.0
  %669 = vmatpush1.msra.mxu0 0.0
  %670 = vmatprep.subr.mxu0 0.0
  %671 = vmatpush1.msra.mxu0 0.0
  %672 = vmatprep.subr.mxu0 0.0
  %673 = vmatpush1.msra.mxu0 0.0
  %674 = vmatprep.subr.mxu0 0.0
  %675 = vmatpush1.msra.mxu0 0.0
  %676 = vmatprep.subr.mxu0 0.0
  %677 = vmatpush1.msra.mxu0 0.0
  %678 = vmatprep.subr.mxu0 0.0
  %679 = vmatpush1.msra.mxu0 0.0
  %680 = vmatprep.subr.mxu0 0.0
  %681 = vmatpush1.msra.mxu0 0.0
  %682 = vmatprep.subr.mxu0 0.0
  %683 = vmatpush1.msra.mxu0 0.0
  %684 = vmatprep.subr.mxu0 0.0
  %685 = vmatpush1.msra.mxu0 0.0
  %686 = vmatprep.subr.mxu0 0.0
  %687 = vmatpush1.msra.mxu0 0.0
  %688 = vmatprep.subr.mxu0 0.0
  %689 = vmatpush1.msra.mxu0 0.0
  %690 = vmatprep.subr.mxu0 0.0
  %691 = vmatpush1.msra.mxu0 0.0
  %692 = vmatprep.subr.mxu0 0.0
  %693 = vmatpush1.msra.mxu0 0.0
  %694 = vmatprep.subr.mxu0 0.0
  %695 = vmatpush1.msra.mxu0 0.0
  %696 = vmatprep.subr.mxu0 0.0
  %697 = vmatpush1.msra.mxu0 0.0
  %698 = vmatprep.subr.mxu0 0.0
  %699 = vmatpush1.msra.mxu0 0.0
  %700 = vmatprep.subr.mxu0 0.0
  %701 = vmatpush1.msra.mxu0 0.0
  %702 = vmatprep.subr.mxu0 0.0
  %703 = vmatpush1.msra.mxu0 0.0
  %704 = vmatprep.subr.mxu0 0.0
  %705 = vmatpush1.msra.mxu0 0.0
  %706 = vmatprep.subr.mxu0 0.0
  %707 = vmatpush1.msra.mxu0 0.0
  %708 = vmatprep.subr.mxu0 0.0
  %709 = vmatpush1.msra.mxu0 0.0
  %710 = vmatprep.subr.mxu0 0.0
  %711 = vmatpush1.msra.mxu0 0.0
  %712 = vmatprep.subr.mxu0 0.0
  %713 = vmatpush1.msra.mxu0 0.0
  %714 = vmatprep.subr.mxu0 0.0
  %715 = vmatpush1.msra.mxu0 0.0
  %716 = vmatprep.subr.mxu0 0.0
  %717 = vmatpush1.msra.mxu0 0.0
  %718 = vmatprep.subr.mxu0 0.0
  %719 = vmatpush1.msra.mxu0 0.0
  %720 = vmatprep.subr.mxu0 0.0
  %721 = vmatpush1.msra.mxu0 0.0
  %722 = vmatprep.subr.mxu0 0.0
  %723 = vmatpush1.msra.mxu0 0.0
  %724 = vmatprep.subr.mxu0 0.0
  %725 = vmatpush1.msra.mxu0 0.0
  %726 = vmatprep.subr.mxu0 0.0
  %727 = vmatpush1.msra.mxu0 0.0
  %728 = vmatprep.mubr.f32.mxu0 0.0
  %729 = vmatmul.mubr.f32.gmra.mrb[0].mxu0 %v660
  %v730 = vpop.f32.mrb[0].mxu0
  %v731 = vadd.f32 0.0, %v730
  %v732 = vpop.f32.mrb[0].mxu0
  %v733 = vadd.f32 0.0, %v732
  %734 = vmatprep.mubr.f32.mxu0 0.0
  %735 = vmatmul.mubr.f32.gmra.mrb[0].mxu0 %v662
  %v736 = vpop.f32.mrb[0].mxu0
  %v737 = vadd.f32 0.0, %v736
  %v738 = vpop.f32.mrb[0].mxu0
  %v739 = vadd.f32 0.0, %v738
  %740 = vdwg.mxu0
  %v741 = vadd.f32 %v637, %v731
  %v742 = vadd.f32 %v638, %v733
  %v743 = vadd.f32 %v639, %v737
  %v744 = vadd.f32 %v640, %v739
  %745 = vrot.lane.b32.xlu0 %v11, 45
  %v746 = vpop.permute.xlu0 %745
  %747 = vrot.lane.b32.xlu0 %v12, 45
  %v748 = vpop.permute.xlu0 %747
  %vm749 = vcmp.lt.s32.totalorder %v14, 45
  %v750 = vsel %vm749, %v746, %v748
  %v751 = vsel %vm749, %v748, %v746
  %vm752 = vmand %vm26, %vm126
  %vm753 = vmand %vm27, %vm127
  %v754 = vsel %vm752, 1, 0
  %v755 = vsel %vm753, 1, 0
  %vm756 = vcmp.eq.s32.totalorder %v754, 1
  %vm757 = vcmp.eq.s32.totalorder %v755, 1
  %v758 = vsel %vm756, %v751, 0.0
  %v759 = vsel %vm757, %v750, 0.0
  %760 = vrot.lane.b32.xlu0 %v143, 80
  %v761 = vpop.permute.xlu0 %760
  %762 = vrot.lane.b32.xlu0 %v144, 80
  %v763 = vpop.permute.xlu0 %762
  %v764 = vsel %vm166, %v761, 0
  %v766 = vsel %vm166, %v763, 0
  %768 = vmatprep.subr.mxu0 %v759
  %769 = vmatpush1.msra.mxu0 %v758
  %770 = vmatprep.subr.mxu0 0.0
  %771 = vmatpush1.msra.mxu0 0.0
  %772 = vmatprep.subr.mxu0 0.0
  %773 = vmatpush1.msra.mxu0 0.0
  %774 = vmatprep.subr.mxu0 0.0
  %775 = vmatpush1.msra.mxu0 0.0
  %776 = vmatprep.subr.mxu0 0.0
  %777 = vmatpush1.msra.mxu0 0.0
  %778 = vmatprep.subr.mxu0 0.0
  %779 = vmatpush1.msra.mxu0 0.0
  %780 = vmatprep.subr.mxu0 0.0
  %781 = vmatpush1.msra.mxu0 0.0
  %782 = vmatprep.subr.mxu0 0.0
  %783 = vmatpush1.msra.mxu0 0.0
  %784 = vmatprep.subr.mxu0 0.0
  %785 = vmatpush1.msra.mxu0 0.0
  %786 = vmatprep.subr.mxu0 0.0
  %787 = vmatpush1.msra.mxu0 0.0
  %788 = vmatprep.subr.mxu0 0.0
  %789 = vmatpush1.msra.mxu0 0.0
  %790 = vmatprep.subr.mxu0 0.0
  %791 = vmatpush1.msra.mxu0 0.0
  %792 = vmatprep.subr.mxu0 0.0
  %793 = vmatpush1.msra.mxu0 0.0
  %794 = vmatprep.subr.mxu0 0.0
  %795 = vmatpush1.msra.mxu0 0.0
  %796 = vmatprep.subr.mxu0 0.0
  %797 = vmatpush1.msra.mxu0 0.0
  %798 = vmatprep.subr.mxu0 0.0
  %799 = vmatpush1.msra.mxu0 0.0
  %800 = vmatprep.subr.mxu0 0.0
  %801 = vmatpush1.msra.mxu0 0.0
  %802 = vmatprep.subr.mxu0 0.0
  %803 = vmatpush1.msra.mxu0 0.0
  %804 = vmatprep.subr.mxu0 0.0
  %805 = vmatpush1.msra.mxu0 0.0
  %806 = vmatprep.subr.mxu0 0.0
  %807 = vmatpush1.msra.mxu0 0.0
  %808 = vmatprep.subr.mxu0 0.0
  %809 = vmatpush1.msra.mxu0 0.0
  %810 = vmatprep.subr.mxu0 0.0
  %811 = vmatpush1.msra.mxu0 0.0
  %812 = vmatprep.subr.mxu0 0.0
  %813 = vmatpush1.msra.mxu0 0.0
  %814 = vmatprep.subr.mxu0 0.0
  %815 = vmatpush1.msra.mxu0 0.0
  %816 = vmatprep.subr.mxu0 0.0
  %817 = vmatpush1.msra.mxu0 0.0
  %818 = vmatprep.subr.mxu0 0.0
  %819 = vmatpush1.msra.mxu0 0.0
  %820 = vmatprep.subr.mxu0 0.0
  %821 = vmatpush1.msra.mxu0 0.0
  %822 = vmatprep.subr.mxu0 0.0
  %823 = vmatpush1.msra.mxu0 0.0
  %824 = vmatprep.subr.mxu0 0.0
  %825 = vmatpush1.msra.mxu0 0.0
  %826 = vmatprep.subr.mxu0 0.0
  %827 = vmatpush1.msra.mxu0 0.0
  %828 = vmatprep.subr.mxu0 0.0
  %829 = vmatpush1.msra.mxu0 0.0
  %830 = vmatprep.subr.mxu0 0.0
  %831 = vmatpush1.msra.mxu0 0.0
  %832 = vmatprep.mubr.f32.mxu0 0.0
  %833 = vmatmul.mubr.f32.gmra.mrb[0].mxu0 %v764
  %v834 = vpop.f32.mrb[0].mxu0
  %v835 = vadd.f32 0.0, %v834
  %v836 = vpop.f32.mrb[0].mxu0
  %v837 = vadd.f32 0.0, %v836
  %838 = vmatprep.mubr.f32.mxu0 0.0
  %839 = vmatmul.mubr.f32.gmra.mrb[0].mxu0 %v766
  %v840 = vpop.f32.mrb[0].mxu0
  %v841 = vadd.f32 0.0, %v840
  %v842 = vpop.f32.mrb[0].mxu0
  %v843 = vadd.f32 0.0, %v842
  %844 = vdwg.mxu0
  %v845 = vadd.f32 %v741, %v835
  %v846 = vadd.f32 %v742, %v837
  %v847 = vadd.f32 %v743, %v841
  %v848 = vadd.f32 %v744, %v843
  %849 = vrot.lane.b32.xlu0 %v11, 35
  %v850 = vpop.permute.xlu0 %849
  %851 = vrot.lane.b32.xlu0 %v12, 35
  %v852 = vpop.permute.xlu0 %851
  %vm853 = vcmp.lt.s32.totalorder %v14, 35
  %v854 = vsel %vm853, %v850, %v852
  %v855 = vsel %vm853, %v852, %v850
  %vm856 = vmand %vm34, %vm80
  %vm857 = vmand %vm35, %vm81
  %v858 = vsel %vm856, 1, 0
  %v859 = vsel %vm857, 1, 0
  %vm860 = vcmp.eq.s32.totalorder %v858, 1
  %vm861 = vcmp.eq.s32.totalorder %v859, 1
  %v862 = vsel %vm860, %v855, 0.0
  %v863 = vsel %vm861, %v854, 0.0
  %864 = vrot.lane.b32.xlu0 %v143, 72
  %v865 = vpop.permute.xlu0 %864
  %866 = vrot.lane.b32.xlu0 %v144, 72
  %v867 = vpop.permute.xlu0 %866
  %v868 = vsel %vm166, %v865, 0
  %v870 = vsel %vm166, %v867, 0
  %872 = vmatprep.subr.mxu0 %v863
  %873 = vmatpush1.msra.mxu0 %v862
  %874 = vmatprep.subr.mxu0 0.0
  %875 = vmatpush1.msra.mxu0 0.0
  %876 = vmatprep.subr.mxu0 0.0
  %877 = vmatpush1.msra.mxu0 0.0
  %878 = vmatprep.subr.mxu0 0.0
  %879 = vmatpush1.msra.mxu0 0.0
  %880 = vmatprep.subr.mxu0 0.0
  %881 = vmatpush1.msra.mxu0 0.0
  %882 = vmatprep.subr.mxu0 0.0
  %883 = vmatpush1.msra.mxu0 0.0
  %884 = vmatprep.subr.mxu0 0.0
  %885 = vmatpush1.msra.mxu0 0.0
  %886 = vmatprep.subr.mxu0 0.0
  %887 = vmatpush1.msra.mxu0 0.0
  %888 = vmatprep.subr.mxu0 0.0
  %889 = vmatpush1.msra.mxu0 0.0
  %890 = vmatprep.subr.mxu0 0.0
  %891 = vmatpush1.msra.mxu0 0.0
  %892 = vmatprep.subr.mxu0 0.0
  %893 = vmatpush1.msra.mxu0 0.0
  %894 = vmatprep.subr.mxu0 0.0
  %895 = vmatpush1.msra.mxu0 0.0
  %896 = vmatprep.subr.mxu0 0.0
  %897 = vmatpush1.msra.mxu0 0.0
  %898 = vmatprep.subr.mxu0 0.0
  %899 = vmatpush1.msra.mxu0 0.0
  %900 = vmatprep.subr.mxu0 0.0
  %901 = vmatpush1.msra.mxu0 0.0
  %902 = vmatprep.subr.mxu0 0.0
  %903 = vmatpush1.msra.mxu0 0.0
  %904 = vmatprep.subr.mxu0 0.0
  %905 = vmatpush1.msra.mxu0 0.0
  %906 = vmatprep.subr.mxu0 0.0
  %907 = vmatpush1.msra.mxu0 0.0
  %908 = vmatprep.subr.mxu0 0.0
  %909 = vmatpush1.msra.mxu0 0.0
  %910 = vmatprep.subr.mxu0 0.0
  %911 = vmatpush1.msra.mxu0 0.0
  %912 = vmatprep.subr.mxu0 0.0
  %913 = vmatpush1.msra.mxu0 0.0
  %914 = vmatprep.subr.mxu0 0.0
  %915 = vmatpush1.msra.mxu0 0.0
  %916 = vmatprep.subr.mxu0 0.0
  %917 = vmatpush1.msra.mxu0 0.0
  %918 = vmatprep.subr.mxu0 0.0
  %919 = vmatpush1.msra.mxu0 0.0
  %920 = vmatprep.subr.mxu0 0.0
  %921 = vmatpush1.msra.mxu0 0.0
  %922 = vmatprep.subr.mxu0 0.0
  %923 = vmatpush1.msra.mxu0 0.0
  %924 = vmatprep.subr.mxu0 0.0
  %925 = vmatpush1.msra.mxu0 0.0
  %926 = vmatprep.subr.mxu0 0.0
  %927 = vmatpush1.msra.mxu0 0.0
  %928 = vmatprep.subr.mxu0 0.0
  %929 = vmatpush1.msra.mxu0 0.0
  %930 = vmatprep.subr.mxu0 0.0
  %931 = vmatpush1.msra.mxu0 0.0
  %932 = vmatprep.subr.mxu0 0.0
  %933 = vmatpush1.msra.mxu0 0.0
  %934 = vmatprep.subr.mxu0 0.0
  %935 = vmatpush1.msra.mxu0 0.0
  %936 = vmatprep.mubr.f32.mxu0 0.0
  %937 = vmatmul.mubr.f32.gmra.mrb[0].mxu0 %v868
  %v938 = vpop.f32.mrb[0].mxu0
  %v939 = vadd.f32 0.0, %v938
  %v940 = vpop.f32.mrb[0].mxu0
  %v941 = vadd.f32 0.0, %v940
  %942 = vmatprep.mubr.f32.mxu0 0.0
  %943 = vmatmul.mubr.f32.gmra.mrb[0].mxu0 %v870
  %v944 = vpop.f32.mrb[0].mxu0
  %v945 = vadd.f32 0.0, %v944
  %v946 = vpop.f32.mrb[0].mxu0
  %v947 = vadd.f32 0.0, %v946
  %948 = vdwg.mxu0
  %v949 = vadd.f32 %v845, %v939
  %v950 = vadd.f32 %v846, %v941
  %v951 = vadd.f32 %v847, %v945
  %v952 = vadd.f32 %v848, %v947
  %953 = vrot.lane.b32.xlu0 %v11, 34
  %v954 = vpop.permute.xlu0 %953
  %955 = vrot.lane.b32.xlu0 %v12, 34
  %v956 = vpop.permute.xlu0 %955
  %vm957 = vcmp.lt.s32.totalorder %v14, 34
  %v958 = vsel %vm957, %v954, %v956
  %v959 = vsel %vm957, %v956, %v954
  %vm960 = vmand %vm34, %vm88
  %vm961 = vmand %vm35, %vm89
  %v962 = vsel %vm960, 1, 0
  %v963 = vsel %vm961, 1, 0
  %vm964 = vcmp.eq.s32.totalorder %v962, 1
  %vm965 = vcmp.eq.s32.totalorder %v963, 1
  %v966 = vsel %vm964, %v959, 0.0
  %v967 = vsel %vm965, %v958, 0.0
  %968 = vrot.lane.b32.xlu0 %v143, 64
  %v969 = vpop.permute.xlu0 %968
  %970 = vrot.lane.b32.xlu0 %v144, 64
  %v971 = vpop.permute.xlu0 %970
  %v972 = vsel %vm166, %v969, 0
  %v974 = vsel %vm166, %v971, 0
  %976 = vmatprep.subr.mxu0 %v967
  %977 = vmatpush1.msra.mxu0 %v966
  %978 = vmatprep.subr.mxu0 0.0
  %979 = vmatpush1.msra.mxu0 0.0
  %980 = vmatprep.subr.mxu0 0.0
  %981 = vmatpush1.msra.mxu0 0.0
  %982 = vmatprep.subr.mxu0 0.0
  %983 = vmatpush1.msra.mxu0 0.0
  %984 = vmatprep.subr.mxu0 0.0
  %985 = vmatpush1.msra.mxu0 0.0
  %986 = vmatprep.subr.mxu0 0.0
  %987 = vmatpush1.msra.mxu0 0.0
  %988 = vmatprep.subr.mxu0 0.0
  %989 = vmatpush1.msra.mxu0 0.0
  %990 = vmatprep.subr.mxu0 0.0
  %991 = vmatpush1.msra.mxu0 0.0
  %992 = vmatprep.subr.mxu0 0.0
  %993 = vmatpush1.msra.mxu0 0.0
  %994 = vmatprep.subr.mxu0 0.0
  %995 = vmatpush1.msra.mxu0 0.0
  %996 = vmatprep.subr.mxu0 0.0
  %997 = vmatpush1.msra.mxu0 0.0
  %998 = vmatprep.subr.mxu0 0.0
  %999 = vmatpush1.msra.mxu0 0.0
  %1000 = vmatprep.subr.mxu0 0.0
  %1001 = vmatpush1.msra.mxu0 0.0
  %1002 = vmatprep.subr.mxu0 0.0
  %1003 = vmatpush1.msra.mxu0 0.0
  %1004 = vmatprep.subr.mxu0 0.0
  %1005 = vmatpush1.msra.mxu0 0.0
  %1006 = vmatprep.subr.mxu0 0.0
  %1007 = vmatpush1.msra.mxu0 0.0
  %1008 = vmatprep.subr.mxu0 0.0
  %1009 = vmatpush1.msra.mxu0 0.0
  %1010 = vmatprep.subr.mxu0 0.0
  %1011 = vmatpush1.msra.mxu0 0.0
  %1012 = vmatprep.subr.mxu0 0.0
  %1013 = vmatpush1.msra.mxu0 0.0
  %1014 = vmatprep.subr.mxu0 0.0
  %1015 = vmatpush1.msra.mxu0 0.0
  %1016 = vmatprep.subr.mxu0 0.0
  %1017 = vmatpush1.msra.mxu0 0.0
  %1018 = vmatprep.subr.mxu0 0.0
  %1019 = vmatpush1.msra.mxu0 0.0
  %1020 = vmatprep.subr.mxu0 0.0
  %1021 = vmatpush1.msra.mxu0 0.0
  %1022 = vmatprep.subr.mxu0 0.0
  %1023 = vmatpush1.msra.mxu0 0.0
  %1024 = vmatprep.subr.mxu0 0.0
  %1025 = vmatpush1.msra.mxu0 0.0
  %1026 = vmatprep.subr.mxu0 0.0
  %1027 = vmatpush1.msra.mxu0 0.0
  %1028 = vmatprep.subr.mxu0 0.0
  %1029 = vmatpush1.msra.mxu0 0.0
  %1030 = vmatprep.subr.mxu0 0.0
  %1031 = vmatpush1.msra.mxu0 0.0
  %1032 = vmatprep.subr.mxu0 0.0
  %1033 = vmatpush1.msra.mxu0 0.0
  %1034 = vmatprep.subr.mxu0 0.0
  %1035 = vmatpush1.msra.mxu0 0.0
  %1036 = vmatprep.subr.mxu0 0.0
  %1037 = vmatpush1.msra.mxu0 0.0
  %1038 = vmatprep.subr.mxu0 0.0
  %1039 = vmatpush1.msra.mxu0 0.0
  %1040 = vmatprep.mubr.f32.mxu0 0.0
  %1041 = vmatmul.mubr.f32.gmra.mrb[0].mxu0 %v972
  %v1042 = vpop.f32.mrb[0].mxu0
  %v1043 = vadd.f32 0.0, %v1042
  %v1044 = vpop.f32.mrb[0].mxu0
  %v1045 = vadd.f32 0.0, %v1044
  %1046 = vmatprep.mubr.f32.mxu0 0.0
  %1047 = vmatmul.mubr.f32.gmra.mrb[0].mxu0 %v974
  %v1048 = vpop.f32.mrb[0].mxu0
  %v1049 = vadd.f32 0.0, %v1048
  %v1050 = vpop.f32.mrb[0].mxu0
  %v1051 = vadd.f32 0.0, %v1050
  %1052 = vdwg.mxu0
  %v1053 = vadd.f32 %v949, %v1043
  %v1054 = vadd.f32 %v950, %v1045
  %v1055 = vadd.f32 %v951, %v1049
  %v1056 = vadd.f32 %v952, %v1051
  %1057 = vrot.lane.b32.xlu0 %v11, 33
  %v1058 = vpop.permute.xlu0 %1057
  %1059 = vrot.lane.b32.xlu0 %v12, 33
  %v1060 = vpop.permute.xlu0 %1059
  %vm1061 = vcmp.lt.s32.totalorder %v14, 33
  %v1062 = vsel %vm1061, %v1058, %v1060
  %v1063 = vsel %vm1061, %v1060, %v1058
  %vm1064 = vmand %vm34, %vm96
  %vm1065 = vmand %vm35, %vm97
  %v1066 = vsel %vm1064, 1, 0
  %v1067 = vsel %vm1065, 1, 0
  %vm1068 = vcmp.eq.s32.totalorder %v1066, 1
  %vm1069 = vcmp.eq.s32.totalorder %v1067, 1
  %v1070 = vsel %vm1068, %v1063, 0.0
  %v1071 = vsel %vm1069, %v1062, 0.0
  %1072 = vrot.lane.b32.xlu0 %v143, 56
  %v1073 = vpop.permute.xlu0 %1072
  %1074 = vrot.lane.b32.xlu0 %v144, 56
  %v1075 = vpop.permute.xlu0 %1074
  %v1076 = vsel %vm166, %v1073, 0
  %v1078 = vsel %vm166, %v1075, 0
  %1080 = vmatprep.subr.mxu0 %v1071
  %1081 = vmatpush1.msra.mxu0 %v1070
  %1082 = vmatprep.subr.mxu0 0.0
  %1083 = vmatpush1.msra.mxu0 0.0
  %1084 = vmatprep.subr.mxu0 0.0
  %1085 = vmatpush1.msra.mxu0 0.0
  %1086 = vmatprep.subr.mxu0 0.0
  %1087 = vmatpush1.msra.mxu0 0.0
  %1088 = vmatprep.subr.mxu0 0.0
  %1089 = vmatpush1.msra.mxu0 0.0
  %1090 = vmatprep.subr.mxu0 0.0
  %1091 = vmatpush1.msra.mxu0 0.0
  %1092 = vmatprep.subr.mxu0 0.0
  %1093 = vmatpush1.msra.mxu0 0.0
  %1094 = vmatprep.subr.mxu0 0.0
  %1095 = vmatpush1.msra.mxu0 0.0
  %1096 = vmatprep.subr.mxu0 0.0
  %1097 = vmatpush1.msra.mxu0 0.0
  %1098 = vmatprep.subr.mxu0 0.0
  %1099 = vmatpush1.msra.mxu0 0.0
  %1100 = vmatprep.subr.mxu0 0.0
  %1101 = vmatpush1.msra.mxu0 0.0
  %1102 = vmatprep.subr.mxu0 0.0
  %1103 = vmatpush1.msra.mxu0 0.0
  %1104 = vmatprep.subr.mxu0 0.0
  %1105 = vmatpush1.msra.mxu0 0.0
  %1106 = vmatprep.subr.mxu0 0.0
  %1107 = vmatpush1.msra.mxu0 0.0
  %1108 = vmatprep.subr.mxu0 0.0
  %1109 = vmatpush1.msra.mxu0 0.0
  %1110 = vmatprep.subr.mxu0 0.0
  %1111 = vmatpush1.msra.mxu0 0.0
  %1112 = vmatprep.subr.mxu0 0.0
  %1113 = vmatpush1.msra.mxu0 0.0
  %1114 = vmatprep.subr.mxu0 0.0
  %1115 = vmatpush1.msra.mxu0 0.0
  %1116 = vmatprep.subr.mxu0 0.0
  %1117 = vmatpush1.msra.mxu0 0.0
  %1118 = vmatprep.subr.mxu0 0.0
  %1119 = vmatpush1.msra.mxu0 0.0
  %1120 = vmatprep.subr.mxu0 0.0
  %1121 = vmatpush1.msra.mxu0 0.0
  %1122 = vmatprep.subr.mxu0 0.0
  %1123 = vmatpush1.msra.mxu0 0.0
  %1124 = vmatprep.subr.mxu0 0.0
  %1125 = vmatpush1.msra.mxu0 0.0
  %1126 = vmatprep.subr.mxu0 0.0
  %1127 = vmatpush1.msra.mxu0 0.0
  %1128 = vmatprep.subr.mxu0 0.0
  %1129 = vmatpush1.msra.mxu0 0.0
  %1130 = vmatprep.subr.mxu0 0.0
  %1131 = vmatpush1.msra.mxu0 0.0
  %1132 = vmatprep.subr.mxu0 0.0
  %1133 = vmatpush1.msra.mxu0 0.0
  %1134 = vmatprep.subr.mxu0 0.0
  %1135 = vmatpush1.msra.mxu0 0.0
  %1136 = vmatprep.subr.mxu0 0.0
  %1137 = vmatpush1.msra.mxu0 0.0
  %1138 = vmatprep.subr.mxu0 0.0
  %1139 = vmatpush1.msra.mxu0 0.0
  %1140 = vmatprep.subr.mxu0 0.0
  %1141 = vmatpush1.msra.mxu0 0.0
  %1142 = vmatprep.subr.mxu0 0.0
  %1143 = vmatpush1.msra.mxu0 0.0
  %1144 = vmatprep.mubr.f32.mxu0 0.0
  %1145 = vmatmul.mubr.f32.gmra.mrb[0].mxu0 %v1076
  %v1146 = vpop.f32.mrb[0].mxu0
  %v1147 = vadd.f32 0.0, %v1146
  %v1148 = vpop.f32.mrb[0].mxu0
  %v1149 = vadd.f32 0.0, %v1148
  %1150 = vmatprep.mubr.f32.mxu0 0.0
  %1151 = vmatmul.mubr.f32.gmra.mrb[0].mxu0 %v1078
  %v1152 = vpop.f32.mrb[0].mxu0
  %v1153 = vadd.f32 0.0, %v1152
  %v1154 = vpop.f32.mrb[0].mxu0
  %v1155 = vadd.f32 0.0, %v1154
  %1156 = vdwg.mxu0
  %v1157 = vadd.f32 %v1053, %v1147
  %v1158 = vadd.f32 %v1054, %v1149
  %v1159 = vadd.f32 %v1055, %v1153
  %v1160 = vadd.f32 %v1056, %v1155
  %1161 = vrot.lane.b32.xlu0 %v11, 32
  %v1162 = vpop.permute.xlu0 %1161
  %1163 = vrot.lane.b32.xlu0 %v12, 32
  %v1164 = vpop.permute.xlu0 %1163
  %vm1165 = vcmp.lt.s32.totalorder %v14, 32
  %v1166 = vsel %vm1165, %v1162, %v1164
  %v1167 = vsel %vm1165, %v1164, %v1162
  %vm1168 = vmand %vm34, %vm102
  %vm1169 = vmand %vm35, %vm103
  %v1170 = vsel %vm1168, 1, 0
  %v1171 = vsel %vm1169, 1, 0
  %vm1172 = vcmp.eq.s32.totalorder %v1170, 1
  %vm1173 = vcmp.eq.s32.totalorder %v1171, 1
  %v1174 = vsel %vm1172, %v1167, 0.0
  %v1175 = vsel %vm1173, %v1166, 0.0
  %1176 = vrot.lane.b32.xlu0 %v143, 48
  %v1177 = vpop.permute.xlu0 %1176
  %1178 = vrot.lane.b32.xlu0 %v144, 48
  %v1179 = vpop.permute.xlu0 %1178
  %v1180 = vsel %vm166, %v1177, 0
  %v1182 = vsel %vm166, %v1179, 0
  %1184 = vmatprep.subr.mxu0 %v1175
  %1185 = vmatpush1.msra.mxu0 %v1174
  %1186 = vmatprep.subr.mxu0 0.0
  %1187 = vmatpush1.msra.mxu0 0.0
  %1188 = vmatprep.subr.mxu0 0.0
  %1189 = vmatpush1.msra.mxu0 0.0
  %1190 = vmatprep.subr.mxu0 0.0
  %1191 = vmatpush1.msra.mxu0 0.0
  %1192 = vmatprep.subr.mxu0 0.0
  %1193 = vmatpush1.msra.mxu0 0.0
  %1194 = vmatprep.subr.mxu0 0.0
  %1195 = vmatpush1.msra.mxu0 0.0
  %1196 = vmatprep.subr.mxu0 0.0
  %1197 = vmatpush1.msra.mxu0 0.0
  %1198 = vmatprep.subr.mxu0 0.0
  %1199 = vmatpush1.msra.mxu0 0.0
  %1200 = vmatprep.subr.mxu0 0.0
  %1201 = vmatpush1.msra.mxu0 0.0
  %1202 = vmatprep.subr.mxu0 0.0
  %1203 = vmatpush1.msra.mxu0 0.0
  %1204 = vmatprep.subr.mxu0 0.0
  %1205 = vmatpush1.msra.mxu0 0.0
  %1206 = vmatprep.subr.mxu0 0.0
  %1207 = vmatpush1.msra.mxu0 0.0
  %1208 = vmatprep.subr.mxu0 0.0
  %1209 = vmatpush1.msra.mxu0 0.0
  %1210 = vmatprep.subr.mxu0 0.0
  %1211 = vmatpush1.msra.mxu0 0.0
  %1212 = vmatprep.subr.mxu0 0.0
  %1213 = vmatpush1.msra.mxu0 0.0
  %1214 = vmatprep.subr.mxu0 0.0
  %1215 = vmatpush1.msra.mxu0 0.0
  %1216 = vmatprep.subr.mxu0 0.0
  %1217 = vmatpush1.msra.mxu0 0.0
  %1218 = vmatprep.subr.mxu0 0.0
  %1219 = vmatpush1.msra.mxu0 0.0
  %1220 = vmatprep.subr.mxu0 0.0
  %1221 = vmatpush1.msra.mxu0 0.0
  %1222 = vmatprep.subr.mxu0 0.0
  %1223 = vmatpush1.msra.mxu0 0.0
  %1224 = vmatprep.subr.mxu0 0.0
  %1225 = vmatpush1.msra.mxu0 0.0
  %1226 = vmatprep.subr.mxu0 0.0
  %1227 = vmatpush1.msra.mxu0 0.0
  %1228 = vmatprep.subr.mxu0 0.0
  %1229 = vmatpush1.msra.mxu0 0.0
  %1230 = vmatprep.subr.mxu0 0.0
  %1231 = vmatpush1.msra.mxu0 0.0
  %1232 = vmatprep.subr.mxu0 0.0
  %1233 = vmatpush1.msra.mxu0 0.0
  %1234 = vmatprep.subr.mxu0 0.0
  %1235 = vmatpush1.msra.mxu0 0.0
  %1236 = vmatprep.subr.mxu0 0.0
  %1237 = vmatpush1.msra.mxu0 0.0
  %1238 = vmatprep.subr.mxu0 0.0
  %1239 = vmatpush1.msra.mxu0 0.0
  %1240 = vmatprep.subr.mxu0 0.0
  %1241 = vmatpush1.msra.mxu0 0.0
  %1242 = vmatprep.subr.mxu0 0.0
  %1243 = vmatpush1.msra.mxu0 0.0
  %1244 = vmatprep.subr.mxu0 0.0
  %1245 = vmatpush1.msra.mxu0 0.0
  %1246 = vmatprep.subr.mxu0 0.0
  %1247 = vmatpush1.msra.mxu0 0.0
  %1248 = vmatprep.mubr.f32.mxu0 0.0
  %1249 = vmatmul.mubr.f32.gmra.mrb[0].mxu0 %v1180
  %v1250 = vpop.f32.mrb[0].mxu0
  %v1251 = vadd.f32 0.0, %v1250
  %v1252 = vpop.f32.mrb[0].mxu0
  %v1253 = vadd.f32 0.0, %v1252
  %1254 = vmatprep.mubr.f32.mxu0 0.0
  %1255 = vmatmul.mubr.f32.gmra.mrb[0].mxu0 %v1182
  %v1256 = vpop.f32.mrb[0].mxu0
  %v1257 = vadd.f32 0.0, %v1256
  %v1258 = vpop.f32.mrb[0].mxu0
  %v1259 = vadd.f32 0.0, %v1258
  %1260 = vdwg.mxu0
  %v1261 = vadd.f32 %v1157, %v1251
  %v1262 = vadd.f32 %v1158, %v1253
  %v1263 = vadd.f32 %v1159, %v1257
  %v1264 = vadd.f32 %v1160, %v1259
  %1265 = vrot.lane.b32.xlu0 %v11, 31
  %v1266 = vpop.permute.xlu0 %1265
  %1267 = vrot.lane.b32.xlu0 %v12, 31
  %v1268 = vpop.permute.xlu0 %1267
  %vm1269 = vcmp.lt.s32.totalorder %v14, 31
  %v1270 = vsel %vm1269, %v1266, %v1268
  %v1271 = vsel %vm1269, %v1268, %v1266
  %vm1272 = vmand %vm34, %vm110
  %vm1273 = vmand %vm35, %vm111
  %v1274 = vsel %vm1272, 1, 0
  %v1275 = vsel %vm1273, 1, 0
  %vm1276 = vcmp.eq.s32.totalorder %v1274, 1
  %vm1277 = vcmp.eq.s32.totalorder %v1275, 1
  %v1278 = vsel %vm1276, %v1271, 0.0
  %v1279 = vsel %vm1277, %v1270, 0.0
  %1280 = vrot.lane.b32.xlu0 %v143, 40
  %v1281 = vpop.permute.xlu0 %1280
  %1282 = vrot.lane.b32.xlu0 %v144, 40
  %v1283 = vpop.permute.xlu0 %1282
  %v1284 = vsel %vm166, %v1281, 0
  %v1286 = vsel %vm166, %v1283, 0
  %1288 = vmatprep.subr.mxu0 %v1279
  %1289 = vmatpush1.msra.mxu0 %v1278
  %1290 = vmatprep.subr.mxu0 0.0
  %1291 = vmatpush1.msra.mxu0 0.0
  %1292 = vmatprep.subr.mxu0 0.0
  %1293 = vmatpush1.msra.mxu0 0.0
  %1294 = vmatprep.subr.mxu0 0.0
  %1295 = vmatpush1.msra.mxu0 0.0
  %1296 = vmatprep.subr.mxu0 0.0
  %1297 = vmatpush1.msra.mxu0 0.0
  %1298 = vmatprep.subr.mxu0 0.0
  %1299 = vmatpush1.msra.mxu0 0.0
  %1300 = vmatprep.subr.mxu0 0.0
  %1301 = vmatpush1.msra.mxu0 0.0
  %1302 = vmatprep.subr.mxu0 0.0
  %1303 = vmatpush1.msra.mxu0 0.0
  %1304 = vmatprep.subr.mxu0 0.0
  %1305 = vmatpush1.msra.mxu0 0.0
  %1306 = vmatprep.subr.mxu0 0.0
  %1307 = vmatpush1.msra.mxu0 0.0
  %1308 = vmatprep.subr.mxu0 0.0
  %1309 = vmatpush1.msra.mxu0 0.0
  %1310 = vmatprep.subr.mxu0 0.0
  %1311 = vmatpush1.msra.mxu0 0.0
  %1312 = vmatprep.subr.mxu0 0.0
  %1313 = vmatpush1.msra.mxu0 0.0
  %1314 = vmatprep.subr.mxu0 0.0
  %1315 = vmatpush1.msra.mxu0 0.0
  %1316 = vmatprep.subr.mxu0 0.0
  %1317 = vmatpush1.msra.mxu0 0.0
  %1318 = vmatprep.subr.mxu0 0.0
  %1319 = vmatpush1.msra.mxu0 0.0
  %1320 = vmatprep.subr.mxu0 0.0
  %1321 = vmatpush1.msra.mxu0 0.0
  %1322 = vmatprep.subr.mxu0 0.0
  %1323 = vmatpush1.msra.mxu0 0.0
  %1324 = vmatprep.subr.mxu0 0.0
  %1325 = vmatpush1.msra.mxu0 0.0
  %1326 = vmatprep.subr.mxu0 0.0
  %1327 = vmatpush1.msra.mxu0 0.0
  %1328 = vmatprep.subr.mxu0 0.0
  %1329 = vmatpush1.msra.mxu0 0.0
  %1330 = vmatprep.subr.mxu0 0.0
  %1331 = vmatpush1.msra.mxu0 0.0
  %1332 = vmatprep.subr.mxu0 0.0
  %1333 = vmatpush1.msra.mxu0 0.0
  %1334 = vmatprep.subr.mxu0 0.0
  %1335 = vmatpush1.msra.mxu0 0.0
  %1336 = vmatprep.subr.mxu0 0.0
  %1337 = vmatpush1.msra.mxu0 0.0
  %1338 = vmatprep.subr.mxu0 0.0
  %1339 = vmatpush1.msra.mxu0 0.0
  %1340 = vmatprep.subr.mxu0 0.0
  %1341 = vmatpush1.msra.mxu0 0.0
  %1342 = vmatprep.subr.mxu0 0.0
  %1343 = vmatpush1.msra.mxu0 0.0
  %1344 = vmatprep.subr.mxu0 0.0
  %1345 = vmatpush1.msra.mxu0 0.0
  %1346 = vmatprep.subr.mxu0 0.0
  %1347 = vmatpush1.msra.mxu0 0.0
  %1348 = vmatprep.subr.mxu0 0.0
  %1349 = vmatpush1.msra.mxu0 0.0
  %1350 = vmatprep.subr.mxu0 0.0
  %1351 = vmatpush1.msra.mxu0 0.0
  %1352 = vmatprep.mubr.f32.mxu0 0.0
  %1353 = vmatmul.mubr.f32.gmra.mrb[0].mxu0 %v1284
  %v1354 = vpop.f32.mrb[0].mxu0
  %v1355 = vadd.f32 0.0, %v1354
  %v1356 = vpop.f32.mrb[0].mxu0
  %v1357 = vadd.f32 0.0, %v1356
  %1358 = vmatprep.mubr.f32.mxu0 0.0
  %1359 = vmatmul.mubr.f32.gmra.mrb[0].mxu0 %v1286
  %v1360 = vpop.f32.mrb[0].mxu0
  %v1361 = vadd.f32 0.0, %v1360
  %v1362 = vpop.f32.mrb[0].mxu0
  %v1363 = vadd.f32 0.0, %v1362
  %1364 = vdwg.mxu0
  %v1365 = vadd.f32 %v1261, %v1355
  %v1366 = vadd.f32 %v1262, %v1357
  %v1367 = vadd.f32 %v1263, %v1361
  %v1368 = vadd.f32 %v1264, %v1363
  %1369 = vrot.lane.b32.xlu0 %v11, 30
  %v1370 = vpop.permute.xlu0 %1369
  %1371 = vrot.lane.b32.xlu0 %v12, 30
  %v1372 = vpop.permute.xlu0 %1371
  %vm1373 = vcmp.lt.s32.totalorder %v14, 30
  %v1374 = vsel %vm1373, %v1370, %v1372
  %v1375 = vsel %vm1373, %v1372, %v1370
  %vm1376 = vmand %vm34, %vm118
  %vm1377 = vmand %vm35, %vm119
  %v1378 = vsel %vm1376, 1, 0
  %v1379 = vsel %vm1377, 1, 0
  %vm1380 = vcmp.eq.s32.totalorder %v1378, 1
  %vm1381 = vcmp.eq.s32.totalorder %v1379, 1
  %v1382 = vsel %vm1380, %v1375, 0.0
  %v1383 = vsel %vm1381, %v1374, 0.0
  %1384 = vrot.lane.b32.xlu0 %v143, 32
  %v1385 = vpop.permute.xlu0 %1384
  %1386 = vrot.lane.b32.xlu0 %v144, 32
  %v1387 = vpop.permute.xlu0 %1386
  %v1388 = vsel %vm166, %v1385, 0
  %v1390 = vsel %vm166, %v1387, 0
  %1392 = vmatprep.subr.mxu0 %v1383
  %1393 = vmatpush1.msra.mxu0 %v1382
  %1394 = vmatprep.subr.mxu0 0.0
  %1395 = vmatpush1.msra.mxu0 0.0
  %1396 = vmatprep.subr.mxu0 0.0
  %1397 = vmatpush1.msra.mxu0 0.0
  %1398 = vmatprep.subr.mxu0 0.0
  %1399 = vmatpush1.msra.mxu0 0.0
  %1400 = vmatprep.subr.mxu0 0.0
  %1401 = vmatpush1.msra.mxu0 0.0
  %1402 = vmatprep.subr.mxu0 0.0
  %1403 = vmatpush1.msra.mxu0 0.0
  %1404 = vmatprep.subr.mxu0 0.0
  %1405 = vmatpush1.msra.mxu0 0.0
  %1406 = vmatprep.subr.mxu0 0.0
  %1407 = vmatpush1.msra.mxu0 0.0
  %1408 = vmatprep.subr.mxu0 0.0
  %1409 = vmatpush1.msra.mxu0 0.0
  %1410 = vmatprep.subr.mxu0 0.0
  %1411 = vmatpush1.msra.mxu0 0.0
  %1412 = vmatprep.subr.mxu0 0.0
  %1413 = vmatpush1.msra.mxu0 0.0
  %1414 = vmatprep.subr.mxu0 0.0
  %1415 = vmatpush1.msra.mxu0 0.0
  %1416 = vmatprep.subr.mxu0 0.0
  %1417 = vmatpush1.msra.mxu0 0.0
  %1418 = vmatprep.subr.mxu0 0.0
  %1419 = vmatpush1.msra.mxu0 0.0
  %1420 = vmatprep.subr.mxu0 0.0
  %1421 = vmatpush1.msra.mxu0 0.0
  %1422 = vmatprep.subr.mxu0 0.0
  %1423 = vmatpush1.msra.mxu0 0.0
  %1424 = vmatprep.subr.mxu0 0.0
  %1425 = vmatpush1.msra.mxu0 0.0
  %1426 = vmatprep.subr.mxu0 0.0
  %1427 = vmatpush1.msra.mxu0 0.0
  %1428 = vmatprep.subr.mxu0 0.0
  %1429 = vmatpush1.msra.mxu0 0.0
  %1430 = vmatprep.subr.mxu0 0.0
  %1431 = vmatpush1.msra.mxu0 0.0
  %1432 = vmatprep.subr.mxu0 0.0
  %1433 = vmatpush1.msra.mxu0 0.0
  %1434 = vmatprep.subr.mxu0 0.0
  %1435 = vmatpush1.msra.mxu0 0.0
  %1436 = vmatprep.subr.mxu0 0.0
  %1437 = vmatpush1.msra.mxu0 0.0
  %1438 = vmatprep.subr.mxu0 0.0
  %1439 = vmatpush1.msra.mxu0 0.0
  %1440 = vmatprep.subr.mxu0 0.0
  %1441 = vmatpush1.msra.mxu0 0.0
  %1442 = vmatprep.subr.mxu0 0.0
  %1443 = vmatpush1.msra.mxu0 0.0
  %1444 = vmatprep.subr.mxu0 0.0
  %1445 = vmatpush1.msra.mxu0 0.0
  %1446 = vmatprep.subr.mxu0 0.0
  %1447 = vmatpush1.msra.mxu0 0.0
  %1448 = vmatprep.subr.mxu0 0.0
  %1449 = vmatpush1.msra.mxu0 0.0
  %1450 = vmatprep.subr.mxu0 0.0
  %1451 = vmatpush1.msra.mxu0 0.0
  %1452 = vmatprep.subr.mxu0 0.0
  %1453 = vmatpush1.msra.mxu0 0.0
  %1454 = vmatprep.subr.mxu0 0.0
  %1455 = vmatpush1.msra.mxu0 0.0
  %1456 = vmatprep.mubr.f32.mxu0 0.0
  %1457 = vmatmul.mubr.f32.gmra.mrb[0].mxu0 %v1388
  %v1458 = vpop.f32.mrb[0].mxu0
  %v1459 = vadd.f32 0.0, %v1458
  %v1460 = vpop.f32.mrb[0].mxu0
  %v1461 = vadd.f32 0.0, %v1460
  %1462 = vmatprep.mubr.f32.mxu0 0.0
  %1463 = vmatmul.mubr.f32.gmra.mrb[0].mxu0 %v1390
  %v1464 = vpop.f32.mrb[0].mxu0
  %v1465 = vadd.f32 0.0, %v1464
  %v1466 = vpop.f32.mrb[0].mxu0
  %v1467 = vadd.f32 0.0, %v1466
  %1468 = vdwg.mxu0
  %v1469 = vadd.f32 %v1365, %v1459
  %v1470 = vadd.f32 %v1366, %v1461
  %v1471 = vadd.f32 %v1367, %v1465
  %v1472 = vadd.f32 %v1368, %v1467
  %1473 = vrot.lane.b32.xlu0 %v11, 29
  %v1474 = vpop.permute.xlu0 %1473
  %1475 = vrot.lane.b32.xlu0 %v12, 29
  %v1476 = vpop.permute.xlu0 %1475
  %vm1477 = vcmp.lt.s32.totalorder %v14, 29
  %v1478 = vsel %vm1477, %v1474, %v1476
  %v1479 = vsel %vm1477, %v1476, %v1474
  %vm1480 = vmand %vm34, %vm126
  %vm1481 = vmand %vm35, %vm127
  %v1482 = vsel %vm1480, 1, 0
  %v1483 = vsel %vm1481, 1, 0
  %vm1484 = vcmp.eq.s32.totalorder %v1482, 1
  %vm1485 = vcmp.eq.s32.totalorder %v1483, 1
  %v1486 = vsel %vm1484, %v1479, 0.0
  %v1487 = vsel %vm1485, %v1478, 0.0
  %1488 = vrot.lane.b32.xlu0 %v143, 24
  %v1489 = vpop.permute.xlu0 %1488
  %1490 = vrot.lane.b32.xlu0 %v144, 24
  %v1491 = vpop.permute.xlu0 %1490
  %v1492 = vsel %vm166, %v1489, 0
  %v1494 = vsel %vm166, %v1491, 0
  %1496 = vmatprep.subr.mxu0 %v1487
  %1497 = vmatpush1.msra.mxu0 %v1486
  %1498 = vmatprep.subr.mxu0 0.0
  %1499 = vmatpush1.msra.mxu0 0.0
  %1500 = vmatprep.subr.mxu0 0.0
  %1501 = vmatpush1.msra.mxu0 0.0
  %1502 = vmatprep.subr.mxu0 0.0
  %1503 = vmatpush1.msra.mxu0 0.0
  %1504 = vmatprep.subr.mxu0 0.0
  %1505 = vmatpush1.msra.mxu0 0.0
  %1506 = vmatprep.subr.mxu0 0.0
  %1507 = vmatpush1.msra.mxu0 0.0
  %1508 = vmatprep.subr.mxu0 0.0
  %1509 = vmatpush1.msra.mxu0 0.0
  %1510 = vmatprep.subr.mxu0 0.0
  %1511 = vmatpush1.msra.mxu0 0.0
  %1512 = vmatprep.subr.mxu0 0.0
  %1513 = vmatpush1.msra.mxu0 0.0
  %1514 = vmatprep.subr.mxu0 0.0
  %1515 = vmatpush1.msra.mxu0 0.0
  %1516 = vmatprep.subr.mxu0 0.0
  %1517 = vmatpush1.msra.mxu0 0.0
  %1518 = vmatprep.subr.mxu0 0.0
  %1519 = vmatpush1.msra.mxu0 0.0
  %1520 = vmatprep.subr.mxu0 0.0
  %1521 = vmatpush1.msra.mxu0 0.0
  %1522 = vmatprep.subr.mxu0 0.0
  %1523 = vmatpush1.msra.mxu0 0.0
  %1524 = vmatprep.subr.mxu0 0.0
  %1525 = vmatpush1.msra.mxu0 0.0
  %1526 = vmatprep.subr.mxu0 0.0
  %1527 = vmatpush1.msra.mxu0 0.0
  %1528 = vmatprep.subr.mxu0 0.0
  %1529 = vmatpush1.msra.mxu0 0.0
  %1530 = vmatprep.subr.mxu0 0.0
  %1531 = vmatpush1.msra.mxu0 0.0
  %1532 = vmatprep.subr.mxu0 0.0
  %1533 = vmatpush1.msra.mxu0 0.0
  %1534 = vmatprep.subr.mxu0 0.0
  %1535 = vmatpush1.msra.mxu0 0.0
  %1536 = vmatprep.subr.mxu0 0.0
  %1537 = vmatpush1.msra.mxu0 0.0
  %1538 = vmatprep.subr.mxu0 0.0
  %1539 = vmatpush1.msra.mxu0 0.0
  %1540 = vmatprep.subr.mxu0 0.0
  %1541 = vmatpush1.msra.mxu0 0.0
  %1542 = vmatprep.subr.mxu0 0.0
  %1543 = vmatpush1.msra.mxu0 0.0
  %1544 = vmatprep.subr.mxu0 0.0
  %1545 = vmatpush1.msra.mxu0 0.0
  %1546 = vmatprep.subr.mxu0 0.0
  %1547 = vmatpush1.msra.mxu0 0.0
  %1548 = vmatprep.subr.mxu0 0.0
  %1549 = vmatpush1.msra.mxu0 0.0
  %1550 = vmatprep.subr.mxu0 0.0
  %1551 = vmatpush1.msra.mxu0 0.0
  %1552 = vmatprep.subr.mxu0 0.0
  %1553 = vmatpush1.msra.mxu0 0.0
  %1554 = vmatprep.subr.mxu0 0.0
  %1555 = vmatpush1.msra.mxu0 0.0
  %1556 = vmatprep.subr.mxu0 0.0
  %1557 = vmatpush1.msra.mxu0 0.0
  %1558 = vmatprep.subr.mxu0 0.0
  %1559 = vmatpush1.msra.mxu0 0.0
  %1560 = vmatprep.mubr.f32.mxu0 0.0
  %1561 = vmatmul.mubr.f32.gmra.mrb[0].mxu0 %v1492
  %v1562 = vpop.f32.mrb[0].mxu0
  %v1563 = vadd.f32 0.0, %v1562
  %v1564 = vpop.f32.mrb[0].mxu0
  %v1565 = vadd.f32 0.0, %v1564
  %1566 = vmatprep.mubr.f32.mxu0 0.0
  %1567 = vmatmul.mubr.f32.gmra.mrb[0].mxu0 %v1494
  %v1568 = vpop.f32.mrb[0].mxu0
  %v1569 = vadd.f32 0.0, %v1568
  %v1570 = vpop.f32.mrb[0].mxu0
  %v1571 = vadd.f32 0.0, %v1570
  %1572 = vdwg.mxu0
  %v1573 = vadd.f32 %v1469, %v1563
  %v1574 = vadd.f32 %v1470, %v1565
  %v1575 = vadd.f32 %v1471, %v1569
  %v1576 = vadd.f32 %v1472, %v1571
  %1577 = vrot.lane.b32.xlu0 %v11, 19
  %v1578 = vpop.permute.xlu0 %1577
  %1579 = vrot.lane.b32.xlu0 %v12, 19
  %v1580 = vpop.permute.xlu0 %1579
  %vm1581 = vcmp.lt.s32.totalorder %v14, 19
  %v1582 = vsel %vm1581, %v1578, %v1580
  %v1583 = vsel %vm1581, %v1580, %v1578
  %vm1584 = vmand %vm42, %vm80
  %vm1585 = vmand %vm43, %vm81
  %v1586 = vsel %vm1584, 1, 0
  %v1587 = vsel %vm1585, 1, 0
  %vm1588 = vcmp.eq.s32.totalorder %v1586, 1
  %vm1589 = vcmp.eq.s32.totalorder %v1587, 1
  %v1590 = vsel %vm1588, %v1583, 0.0
  %v1591 = vsel %vm1589, %v1582, 0.0
  %1592 = vrot.lane.b32.xlu0 %v143, 16
  %v1593 = vpop.permute.xlu0 %1592
  %1594 = vrot.lane.b32.xlu0 %v144, 16
  %v1595 = vpop.permute.xlu0 %1594
  %v1596 = vsel %vm166, %v1593, 0
  %v1598 = vsel %vm166, %v1595, 0
  %1600 = vmatprep.subr.mxu0 %v1591
  %1601 = vmatpush1.msra.mxu0 %v1590
  %1602 = vmatprep.subr.mxu0 0.0
  %1603 = vmatpush1.msra.mxu0 0.0
  %1604 = vmatprep.subr.mxu0 0.0
  %1605 = vmatpush1.msra.mxu0 0.0
  %1606 = vmatprep.subr.mxu0 0.0
  %1607 = vmatpush1.msra.mxu0 0.0
  %1608 = vmatprep.subr.mxu0 0.0
  %1609 = vmatpush1.msra.mxu0 0.0
  %1610 = vmatprep.subr.mxu0 0.0
  %1611 = vmatpush1.msra.mxu0 0.0
  %1612 = vmatprep.subr.mxu0 0.0
  %1613 = vmatpush1.msra.mxu0 0.0
  %1614 = vmatprep.subr.mxu0 0.0
  %1615 = vmatpush1.msra.mxu0 0.0
  %1616 = vmatprep.subr.mxu0 0.0
  %1617 = vmatpush1.msra.mxu0 0.0
  %1618 = vmatprep.subr.mxu0 0.0
  %1619 = vmatpush1.msra.mxu0 0.0
  %1620 = vmatprep.subr.mxu0 0.0
  %1621 = vmatpush1.msra.mxu0 0.0
  %1622 = vmatprep.subr.mxu0 0.0
  %1623 = vmatpush1.msra.mxu0 0.0
  %1624 = vmatprep.subr.mxu0 0.0
  %1625 = vmatpush1.msra.mxu0 0.0
  %1626 = vmatprep.subr.mxu0 0.0
  %1627 = vmatpush1.msra.mxu0 0.0
  %1628 = vmatprep.subr.mxu0 0.0
  %1629 = vmatpush1.msra.mxu0 0.0
  %1630 = vmatprep.subr.mxu0 0.0
  %1631 = vmatpush1.msra.mxu0 0.0
  %1632 = vmatprep.subr.mxu0 0.0
  %1633 = vmatpush1.msra.mxu0 0.0
  %1634 = vmatprep.subr.mxu0 0.0
  %1635 = vmatpush1.msra.mxu0 0.0
  %1636 = vmatprep.subr.mxu0 0.0
  %1637 = vmatpush1.msra.mxu0 0.0
  %1638 = vmatprep.subr.mxu0 0.0
  %1639 = vmatpush1.msra.mxu0 0.0
  %1640 = vmatprep.subr.mxu0 0.0
  %1641 = vmatpush1.msra.mxu0 0.0
  %1642 = vmatprep.subr.mxu0 0.0
  %1643 = vmatpush1.msra.mxu0 0.0
  %1644 = vmatprep.subr.mxu0 0.0
  %1645 = vmatpush1.msra.mxu0 0.0
  %1646 = vmatprep.subr.mxu0 0.0
  %1647 = vmatpush1.msra.mxu0 0.0
  %1648 = vmatprep.subr.mxu0 0.0
  %1649 = vmatpush1.msra.mxu0 0.0
  %1650 = vmatprep.subr.mxu0 0.0
  %1651 = vmatpush1.msra.mxu0 0.0
  %1652 = vmatprep.subr.mxu0 0.0
  %1653 = vmatpush1.msra.mxu0 0.0
  %1654 = vmatprep.subr.mxu0 0.0
  %1655 = vmatpush1.msra.mxu0 0.0
  %1656 = vmatprep.subr.mxu0 0.0
  %1657 = vmatpush1.msra.mxu0 0.0
  %1658 = vmatprep.subr.mxu0 0.0
  %1659 = vmatpush1.msra.mxu0 0.0
  %1660 = vmatprep.subr.mxu0 0.0
  %1661 = vmatpush1.msra.mxu0 0.0
  %1662 = vmatprep.subr.mxu0 0.0
  %1663 = vmatpush1.msra.mxu0 0.0
  %1664 = vmatprep.mubr.f32.mxu0 0.0
  %1665 = vmatmul.mubr.f32.gmra.mrb[0].mxu0 %v1596
  %v1666 = vpop.f32.mrb[0].mxu0
  %v1667 = vadd.f32 0.0, %v1666
  %v1668 = vpop.f32.mrb[0].mxu0
  %v1669 = vadd.f32 0.0, %v1668
  %1670 = vmatprep.mubr.f32.mxu0 0.0
  %1671 = vmatmul.mubr.f32.gmra.mrb[0].mxu0 %v1598
  %v1672 = vpop.f32.mrb[0].mxu0
  %v1673 = vadd.f32 0.0, %v1672
  %v1674 = vpop.f32.mrb[0].mxu0
  %v1675 = vadd.f32 0.0, %v1674
  %1676 = vdwg.mxu0
  %v1677 = vadd.f32 %v1573, %v1667
  %v1678 = vadd.f32 %v1574, %v1669
  %v1679 = vadd.f32 %v1575, %v1673
  %v1680 = vadd.f32 %v1576, %v1675
  %1681 = vrot.lane.b32.xlu0 %v11, 18
  %v1682 = vpop.permute.xlu0 %1681
  %1683 = vrot.lane.b32.xlu0 %v12, 18
  %v1684 = vpop.permute.xlu0 %1683
  %vm1685 = vcmp.lt.s32.totalorder %v14, 18
  %v1686 = vsel %vm1685, %v1682, %v1684
  %v1687 = vsel %vm1685, %v1684, %v1682
  %vm1688 = vmand %vm42, %vm88
  %vm1689 = vmand %vm43, %vm89
  %v1690 = vsel %vm1688, 1, 0
  %v1691 = vsel %vm1689, 1, 0
  %vm1692 = vcmp.eq.s32.totalorder %v1690, 1
  %vm1693 = vcmp.eq.s32.totalorder %v1691, 1
  %v1694 = vsel %vm1692, %v1687, 0.0
  %v1695 = vsel %vm1693, %v1686, 0.0
  %1696 = vrot.lane.b32.xlu0 %v143, 8
  %v1697 = vpop.permute.xlu0 %1696
  %1698 = vrot.lane.b32.xlu0 %v144, 8
  %v1699 = vpop.permute.xlu0 %1698
  %v1700 = vsel %vm166, %v1697, 0
  %v1702 = vsel %vm166, %v1699, 0
  %1704 = vmatprep.subr.mxu0 %v1695
  %1705 = vmatpush1.msra.mxu0 %v1694
  %1706 = vmatprep.subr.mxu0 0.0
  %1707 = vmatpush1.msra.mxu0 0.0
  %1708 = vmatprep.subr.mxu0 0.0
  %1709 = vmatpush1.msra.mxu0 0.0
  %1710 = vmatprep.subr.mxu0 0.0
  %1711 = vmatpush1.msra.mxu0 0.0
  %1712 = vmatprep.subr.mxu0 0.0
  %1713 = vmatpush1.msra.mxu0 0.0
  %1714 = vmatprep.subr.mxu0 0.0
  %1715 = vmatpush1.msra.mxu0 0.0
  %1716 = vmatprep.subr.mxu0 0.0
  %1717 = vmatpush1.msra.mxu0 0.0
  %1718 = vmatprep.subr.mxu0 0.0
  %1719 = vmatpush1.msra.mxu0 0.0
  %1720 = vmatprep.subr.mxu0 0.0
  %1721 = vmatpush1.msra.mxu0 0.0
  %1722 = vmatprep.subr.mxu0 0.0
  %1723 = vmatpush1.msra.mxu0 0.0
  %1724 = vmatprep.subr.mxu0 0.0
  %1725 = vmatpush1.msra.mxu0 0.0
  %1726 = vmatprep.subr.mxu0 0.0
  %1727 = vmatpush1.msra.mxu0 0.0
  %1728 = vmatprep.subr.mxu0 0.0
  %1729 = vmatpush1.msra.mxu0 0.0
  %1730 = vmatprep.subr.mxu0 0.0
  %1731 = vmatpush1.msra.mxu0 0.0
  %1732 = vmatprep.subr.mxu0 0.0
  %1733 = vmatpush1.msra.mxu0 0.0
  %1734 = vmatprep.subr.mxu0 0.0
  %1735 = vmatpush1.msra.mxu0 0.0
  %1736 = vmatprep.subr.mxu0 0.0
  %1737 = vmatpush1.msra.mxu0 0.0
  %1738 = vmatprep.subr.mxu0 0.0
  %1739 = vmatpush1.msra.mxu0 0.0
  %1740 = vmatprep.subr.mxu0 0.0
  %1741 = vmatpush1.msra.mxu0 0.0
  %1742 = vmatprep.subr.mxu0 0.0
  %1743 = vmatpush1.msra.mxu0 0.0
  %1744 = vmatprep.subr.mxu0 0.0
  %1745 = vmatpush1.msra.mxu0 0.0
  %1746 = vmatprep.subr.mxu0 0.0
  %1747 = vmatpush1.msra.mxu0 0.0
  %1748 = vmatprep.subr.mxu0 0.0
  %1749 = vmatpush1.msra.mxu0 0.0
  %1750 = vmatprep.subr.mxu0 0.0
  %1751 = vmatpush1.msra.mxu0 0.0
  %1752 = vmatprep.subr.mxu0 0.0
  %1753 = vmatpush1.msra.mxu0 0.0
  %1754 = vmatprep.subr.mxu0 0.0
  %1755 = vmatpush1.msra.mxu0 0.0
  %1756 = vmatprep.subr.mxu0 0.0
  %1757 = vmatpush1.msra.mxu0 0.0
  %1758 = vmatprep.subr.mxu0 0.0
  %1759 = vmatpush1.msra.mxu0 0.0
  %1760 = vmatprep.subr.mxu0 0.0
  %1761 = vmatpush1.msra.mxu0 0.0
  %1762 = vmatprep.subr.mxu0 0.0
  %1763 = vmatpush1.msra.mxu0 0.0
  %1764 = vmatprep.subr.mxu0 0.0
  %1765 = vmatpush1.msra.mxu0 0.0
  %1766 = vmatprep.subr.mxu0 0.0
  %1767 = vmatpush1.msra.mxu0 0.0
  %1768 = vmatprep.mubr.f32.mxu0 0.0
  %1769 = vmatmul.mubr.f32.gmra.mrb[0].mxu0 %v1700
  %v1770 = vpop.f32.mrb[0].mxu0
  %v1771 = vadd.f32 0.0, %v1770
  %v1772 = vpop.f32.mrb[0].mxu0
  %v1773 = vadd.f32 0.0, %v1772
  %1774 = vmatprep.mubr.f32.mxu0 0.0
  %1775 = vmatmul.mubr.f32.gmra.mrb[0].mxu0 %v1702
  %v1776 = vpop.f32.mrb[0].mxu0
  %v1777 = vadd.f32 0.0, %v1776
  %v1778 = vpop.f32.mrb[0].mxu0
  %v1779 = vadd.f32 0.0, %v1778
  %1780 = vdwg.mxu0
  %v1781 = vadd.f32 %v1677, %v1771
  %v1782 = vadd.f32 %v1678, %v1773
  %v1783 = vadd.f32 %v1679, %v1777
  %v1784 = vadd.f32 %v1680, %v1779
  %1785 = vrot.lane.b32.xlu0 %v11, 17
  %v1786 = vpop.permute.xlu0 %1785
  %1787 = vrot.lane.b32.xlu0 %v12, 17
  %v1788 = vpop.permute.xlu0 %1787
  %vm1789 = vcmp.lt.s32.totalorder %v14, 17
  %v1790 = vsel %vm1789, %v1786, %v1788
  %v1791 = vsel %vm1789, %v1788, %v1786
  %vm1792 = vmand %vm42, %vm96
  %vm1793 = vmand %vm43, %vm97
  %v1794 = vsel %vm1792, 1, 0
  %v1795 = vsel %vm1793, 1, 0
  %vm1796 = vcmp.eq.s32.totalorder %v1794, 1
  %vm1797 = vcmp.eq.s32.totalorder %v1795, 1
  %v1798 = vsel %vm1796, %v1791, 0.0
  %v1799 = vsel %vm1797, %v1790, 0.0
  %v1800 = vld [vmem:[%s1 + $0x8] sm:$0xff]
  %v1801 = vld [vmem:[%s1 + $0x28] sm:$0xff]
  %v1803 = vsel %vm166, %v1800, 0
  %v1806 = vsel %vm166, %v1801, 0
  %1808 = vmatprep.subr.mxu0 %v1799
  %1809 = vmatpush1.msra.mxu0 %v1798
  %1810 = vmatprep.subr.mxu0 0.0
  %1811 = vmatpush1.msra.mxu0 0.0
  %1812 = vmatprep.subr.mxu0 0.0
  %1813 = vmatpush1.msra.mxu0 0.0
  %1814 = vmatprep.subr.mxu0 0.0
  %1815 = vmatpush1.msra.mxu0 0.0
  %1816 = vmatprep.subr.mxu0 0.0
  %1817 = vmatpush1.msra.mxu0 0.0
  %1818 = vmatprep.subr.mxu0 0.0
  %1819 = vmatpush1.msra.mxu0 0.0
  %1820 = vmatprep.subr.mxu0 0.0
  %1821 = vmatpush1.msra.mxu0 0.0
  %1822 = vmatprep.subr.mxu0 0.0
  %1823 = vmatpush1.msra.mxu0 0.0
  %1824 = vmatprep.subr.mxu0 0.0
  %1825 = vmatpush1.msra.mxu0 0.0
  %1826 = vmatprep.subr.mxu0 0.0
  %1827 = vmatpush1.msra.mxu0 0.0
  %1828 = vmatprep.subr.mxu0 0.0
  %1829 = vmatpush1.msra.mxu0 0.0
  %1830 = vmatprep.subr.mxu0 0.0
  %1831 = vmatpush1.msra.mxu0 0.0
  %1832 = vmatprep.subr.mxu0 0.0
  %1833 = vmatpush1.msra.mxu0 0.0
  %1834 = vmatprep.subr.mxu0 0.0
  %1835 = vmatpush1.msra.mxu0 0.0
  %1836 = vmatprep.subr.mxu0 0.0
  %1837 = vmatpush1.msra.mxu0 0.0
  %1838 = vmatprep.subr.mxu0 0.0
  %1839 = vmatpush1.msra.mxu0 0.0
  %1840 = vmatprep.subr.mxu0 0.0
  %1841 = vmatpush1.msra.mxu0 0.0
  %1842 = vmatprep.subr.mxu0 0.0
  %1843 = vmatpush1.msra.mxu0 0.0
  %1844 = vmatprep.subr.mxu0 0.0
  %1845 = vmatpush1.msra.mxu0 0.0
  %1846 = vmatprep.subr.mxu0 0.0
  %1847 = vmatpush1.msra.mxu0 0.0
  %1848 = vmatprep.subr.mxu0 0.0
  %1849 = vmatpush1.msra.mxu0 0.0
  %1850 = vmatprep.subr.mxu0 0.0
  %1851 = vmatpush1.msra.mxu0 0.0
  %1852 = vmatprep.subr.mxu0 0.0
  %1853 = vmatpush1.msra.mxu0 0.0
  %1854 = vmatprep.subr.mxu0 0.0
  %1855 = vmatpush1.msra.mxu0 0.0
  %1856 = vmatprep.subr.mxu0 0.0
  %1857 = vmatpush1.msra.mxu0 0.0
  %1858 = vmatprep.subr.mxu0 0.0
  %1859 = vmatpush1.msra.mxu0 0.0
  %1860 = vmatprep.subr.mxu0 0.0
  %1861 = vmatpush1.msra.mxu0 0.0
  %1862 = vmatprep.subr.mxu0 0.0
  %1863 = vmatpush1.msra.mxu0 0.0
  %1864 = vmatprep.subr.mxu0 0.0
  %1865 = vmatpush1.msra.mxu0 0.0
  %1866 = vmatprep.subr.mxu0 0.0
  %1867 = vmatpush1.msra.mxu0 0.0
  %1868 = vmatprep.subr.mxu0 0.0
  %1869 = vmatpush1.msra.mxu0 0.0
  %1870 = vmatprep.subr.mxu0 0.0
  %1871 = vmatpush1.msra.mxu0 0.0
  %1872 = vmatprep.mubr.f32.mxu0 0.0
  %1873 = vmatmul.mubr.f32.gmra.mrb[0].mxu0 %v1803
  %v1874 = vpop.f32.mrb[0].mxu0
  %v1875 = vadd.f32 0.0, %v1874
  %v1876 = vpop.f32.mrb[0].mxu0
  %v1877 = vadd.f32 0.0, %v1876
  %1878 = vmatprep.mubr.f32.mxu0 0.0
  %1879 = vmatmul.mubr.f32.gmra.mrb[0].mxu0 %v1806
  %v1880 = vpop.f32.mrb[0].mxu0
  %v1881 = vadd.f32 0.0, %v1880
  %v1882 = vpop.f32.mrb[0].mxu0
  %v1883 = vadd.f32 0.0, %v1882
  %1884 = vdwg.mxu0
  %v1885 = vadd.f32 %v1781, %v1875
  %v1886 = vadd.f32 %v1782, %v1877
  %v1887 = vadd.f32 %v1783, %v1881
  %v1888 = vadd.f32 %v1784, %v1883
  %1889 = vrot.lane.b32.xlu0 %v11, 16
  %v1890 = vpop.permute.xlu0 %1889
  %1891 = vrot.lane.b32.xlu0 %v12, 16
  %v1892 = vpop.permute.xlu0 %1891
  %vm1893 = vcmp.lt.s32.totalorder %v14, 16
  %v1894 = vsel %vm1893, %v1890, %v1892
  %v1895 = vsel %vm1893, %v1892, %v1890
  %vm1896 = vmand %vm42, %vm102
  %vm1897 = vmand %vm43, %vm103
  %v1898 = vsel %vm1896, 1, 0
  %v1899 = vsel %vm1897, 1, 0
  %vm1900 = vcmp.eq.s32.totalorder %v1898, 1
  %vm1901 = vcmp.eq.s32.totalorder %v1899, 1
  %v1902 = vsel %vm1900, %v1895, 0.0
  %v1903 = vsel %vm1901, %v1894, 0.0
  %1904 = vrot.lane.b32.xlu0 %v1800, 120
  %v1905 = vpop.permute.xlu0 %1904
  %1906 = vrot.lane.b32.xlu0 %v1801, 120
  %v1907 = vpop.permute.xlu0 %1906
  %v1908 = vsel %vm166, %v1905, 0
  %v1910 = vsel %vm166, %v1907, 0
  %1912 = vmatprep.subr.mxu0 %v1903
  %1913 = vmatpush1.msra.mxu0 %v1902
  %1914 = vmatprep.subr.mxu0 0.0
  %1915 = vmatpush1.msra.mxu0 0.0
  %1916 = vmatprep.subr.mxu0 0.0
  %1917 = vmatpush1.msra.mxu0 0.0
  %1918 = vmatprep.subr.mxu0 0.0
  %1919 = vmatpush1.msra.mxu0 0.0
  %1920 = vmatprep.subr.mxu0 0.0
  %1921 = vmatpush1.msra.mxu0 0.0
  %1922 = vmatprep.subr.mxu0 0.0
  %1923 = vmatpush1.msra.mxu0 0.0
  %1924 = vmatprep.subr.mxu0 0.0
  %1925 = vmatpush1.msra.mxu0 0.0
  %1926 = vmatprep.subr.mxu0 0.0
  %1927 = vmatpush1.msra.mxu0 0.0
  %1928 = vmatprep.subr.mxu0 0.0
  %1929 = vmatpush1.msra.mxu0 0.0
  %1930 = vmatprep.subr.mxu0 0.0
  %1931 = vmatpush1.msra.mxu0 0.0
  %1932 = vmatprep.subr.mxu0 0.0
  %1933 = vmatpush1.msra.mxu0 0.0
  %1934 = vmatprep.subr.mxu0 0.0
  %1935 = vmatpush1.msra.mxu0 0.0
  %1936 = vmatprep.subr.mxu0 0.0
  %1937 = vmatpush1.msra.mxu0 0.0
  %1938 = vmatprep.subr.mxu0 0.0
  %1939 = vmatpush1.msra.mxu0 0.0
  %1940 = vmatprep.subr.mxu0 0.0
  %1941 = vmatpush1.msra.mxu0 0.0
  %1942 = vmatprep.subr.mxu0 0.0
  %1943 = vmatpush1.msra.mxu0 0.0
  %1944 = vmatprep.subr.mxu0 0.0
  %1945 = vmatpush1.msra.mxu0 0.0
  %1946 = vmatprep.subr.mxu0 0.0
  %1947 = vmatpush1.msra.mxu0 0.0
  %1948 = vmatprep.subr.mxu0 0.0
  %1949 = vmatpush1.msra.mxu0 0.0
  %1950 = vmatprep.subr.mxu0 0.0
  %1951 = vmatpush1.msra.mxu0 0.0
  %1952 = vmatprep.subr.mxu0 0.0
  %1953 = vmatpush1.msra.mxu0 0.0
  %1954 = vmatprep.subr.mxu0 0.0
  %1955 = vmatpush1.msra.mxu0 0.0
  %1956 = vmatprep.subr.mxu0 0.0
  %1957 = vmatpush1.msra.mxu0 0.0
  %1958 = vmatprep.subr.mxu0 0.0
  %1959 = vmatpush1.msra.mxu0 0.0
  %1960 = vmatprep.subr.mxu0 0.0
  %1961 = vmatpush1.msra.mxu0 0.0
  %1962 = vmatprep.subr.mxu0 0.0
  %1963 = vmatpush1.msra.mxu0 0.0
  %1964 = vmatprep.subr.mxu0 0.0
  %1965 = vmatpush1.msra.mxu0 0.0
  %1966 = vmatprep.subr.mxu0 0.0
  %1967 = vmatpush1.msra.mxu0 0.0
  %1968 = vmatprep.subr.mxu0 0.0
  %1969 = vmatpush1.msra.mxu0 0.0
  %1970 = vmatprep.subr.mxu0 0.0
  %1971 = vmatpush1.msra.mxu0 0.0
  %1972 = vmatprep.subr.mxu0 0.0
  %1973 = vmatpush1.msra.mxu0 0.0
  %1974 = vmatprep.subr.mxu0 0.0
  %1975 = vmatpush1.msra.mxu0 0.0
  %1976 = vmatprep.mubr.f32.mxu0 0.0
  %1977 = vmatmul.mubr.f32.gmra.mrb[0].mxu0 %v1908
  %v1978 = vpop.f32.mrb[0].mxu0
  %v1979 = vadd.f32 0.0, %v1978
  %v1980 = vpop.f32.mrb[0].mxu0
  %v1981 = vadd.f32 0.0, %v1980
  %1982 = vmatprep.mubr.f32.mxu0 0.0
  %1983 = vmatmul.mubr.f32.gmra.mrb[0].mxu0 %v1910
  %v1984 = vpop.f32.mrb[0].mxu0
  %v1985 = vadd.f32 0.0, %v1984
  %v1986 = vpop.f32.mrb[0].mxu0
  %v1987 = vadd.f32 0.0, %v1986
  %1988 = vdwg.mxu0
  %v1989 = vadd.f32 %v1885, %v1979
  %v1990 = vadd.f32 %v1886, %v1981
  %v1991 = vadd.f32 %v1887, %v1985
  %v1992 = vadd.f32 %v1888, %v1987
  %1993 = vrot.lane.b32.xlu0 %v11, 15
  %v1994 = vpop.permute.xlu0 %1993
  %1995 = vrot.lane.b32.xlu0 %v12, 15
  %v1996 = vpop.permute.xlu0 %1995
  %vm1997 = vcmp.lt.s32.totalorder %v14, 15
  %v1998 = vsel %vm1997, %v1994, %v1996
  %v1999 = vsel %vm1997, %v1996, %v1994
  %vm2000 = vmand %vm42, %vm110
  %vm2001 = vmand %vm43, %vm111
  %v2002 = vsel %vm2000, 1, 0
  %v2003 = vsel %vm2001, 1, 0
  %vm2004 = vcmp.eq.s32.totalorder %v2002, 1
  %vm2005 = vcmp.eq.s32.totalorder %v2003, 1
  %v2006 = vsel %vm2004, %v1999, 0.0
  %v2007 = vsel %vm2005, %v1998, 0.0
  %2008 = vrot.lane.b32.xlu0 %v1800, 112
  %v2009 = vpop.permute.xlu0 %2008
  %2010 = vrot.lane.b32.xlu0 %v1801, 112
  %v2011 = vpop.permute.xlu0 %2010
  %v2012 = vsel %vm166, %v2009, 0
  %v2014 = vsel %vm166, %v2011, 0
  %2016 = vmatprep.subr.mxu0 %v2007
  %2017 = vmatpush1.msra.mxu0 %v2006
  %2018 = vmatprep.subr.mxu0 0.0
  %2019 = vmatpush1.msra.mxu0 0.0
  %2020 = vmatprep.subr.mxu0 0.0
  %2021 = vmatpush1.msra.mxu0 0.0
  %2022 = vmatprep.subr.mxu0 0.0
  %2023 = vmatpush1.msra.mxu0 0.0
  %2024 = vmatprep.subr.mxu0 0.0
  %2025 = vmatpush1.msra.mxu0 0.0
  %2026 = vmatprep.subr.mxu0 0.0
  %2027 = vmatpush1.msra.mxu0 0.0
  %2028 = vmatprep.subr.mxu0 0.0
  %2029 = vmatpush1.msra.mxu0 0.0
  %2030 = vmatprep.subr.mxu0 0.0
  %2031 = vmatpush1.msra.mxu0 0.0
  %2032 = vmatprep.subr.mxu0 0.0
  %2033 = vmatpush1.msra.mxu0 0.0
  %2034 = vmatprep.subr.mxu0 0.0
  %2035 = vmatpush1.msra.mxu0 0.0
  %2036 = vmatprep.subr.mxu0 0.0
  %2037 = vmatpush1.msra.mxu0 0.0
  %2038 = vmatprep.subr.mxu0 0.0
  %2039 = vmatpush1.msra.mxu0 0.0
  %2040 = vmatprep.subr.mxu0 0.0
  %2041 = vmatpush1.msra.mxu0 0.0
  %2042 = vmatprep.subr.mxu0 0.0
  %2043 = vmatpush1.msra.mxu0 0.0
  %2044 = vmatprep.subr.mxu0 0.0
  %2045 = vmatpush1.msra.mxu0 0.0
  %2046 = vmatprep.subr.mxu0 0.0
  %2047 = vmatpush1.msra.mxu0 0.0
  %2048 = vmatprep.subr.mxu0 0.0
  %2049 = vmatpush1.msra.mxu0 0.0
  %2050 = vmatprep.subr.mxu0 0.0
  %2051 = vmatpush1.msra.mxu0 0.0
  %2052 = vmatprep.subr.mxu0 0.0
  %2053 = vmatpush1.msra.mxu0 0.0
  %2054 = vmatprep.subr.mxu0 0.0
  %2055 = vmatpush1.msra.mxu0 0.0
  %2056 = vmatprep.subr.mxu0 0.0
  %2057 = vmatpush1.msra.mxu0 0.0
  %2058 = vmatprep.subr.mxu0 0.0
  %2059 = vmatpush1.msra.mxu0 0.0
  %2060 = vmatprep.subr.mxu0 0.0
  %2061 = vmatpush1.msra.mxu0 0.0
  %2062 = vmatprep.subr.mxu0 0.0
  %2063 = vmatpush1.msra.mxu0 0.0
  %2064 = vmatprep.subr.mxu0 0.0
  %2065 = vmatpush1.msra.mxu0 0.0
  %2066 = vmatprep.subr.mxu0 0.0
  %2067 = vmatpush1.msra.mxu0 0.0
  %2068 = vmatprep.subr.mxu0 0.0
  %2069 = vmatpush1.msra.mxu0 0.0
  %2070 = vmatprep.subr.mxu0 0.0
  %2071 = vmatpush1.msra.mxu0 0.0
  %2072 = vmatprep.subr.mxu0 0.0
  %2073 = vmatpush1.msra.mxu0 0.0
  %2074 = vmatprep.subr.mxu0 0.0
  %2075 = vmatpush1.msra.mxu0 0.0
  %2076 = vmatprep.subr.mxu0 0.0
  %2077 = vmatpush1.msra.mxu0 0.0
  %2078 = vmatprep.subr.mxu0 0.0
  %2079 = vmatpush1.msra.mxu0 0.0
  %2080 = vmatprep.mubr.f32.mxu0 0.0
  %2081 = vmatmul.mubr.f32.gmra.mrb[0].mxu0 %v2012
  %v2082 = vpop.f32.mrb[0].mxu0
  %v2083 = vadd.f32 0.0, %v2082
  %v2084 = vpop.f32.mrb[0].mxu0
  %v2085 = vadd.f32 0.0, %v2084
  %2086 = vmatprep.mubr.f32.mxu0 0.0
  %2087 = vmatmul.mubr.f32.gmra.mrb[0].mxu0 %v2014
  %v2088 = vpop.f32.mrb[0].mxu0
  %v2089 = vadd.f32 0.0, %v2088
  %v2090 = vpop.f32.mrb[0].mxu0
  %v2091 = vadd.f32 0.0, %v2090
  %2092 = vdwg.mxu0
  %v2093 = vadd.f32 %v1989, %v2083
  %v2094 = vadd.f32 %v1990, %v2085
  %v2095 = vadd.f32 %v1991, %v2089
  %v2096 = vadd.f32 %v1992, %v2091
  %2097 = vrot.lane.b32.xlu0 %v11, 14
  %v2098 = vpop.permute.xlu0 %2097
  %2099 = vrot.lane.b32.xlu0 %v12, 14
  %v2100 = vpop.permute.xlu0 %2099
  %vm2101 = vcmp.lt.s32.totalorder %v14, 14
  %v2102 = vsel %vm2101, %v2098, %v2100
  %v2103 = vsel %vm2101, %v2100, %v2098
  %vm2104 = vmand %vm42, %vm118
  %vm2105 = vmand %vm43, %vm119
  %v2106 = vsel %vm2104, 1, 0
  %v2107 = vsel %vm2105, 1, 0
  %vm2108 = vcmp.eq.s32.totalorder %v2106, 1
  %vm2109 = vcmp.eq.s32.totalorder %v2107, 1
  %v2110 = vsel %vm2108, %v2103, 0.0
  %v2111 = vsel %vm2109, %v2102, 0.0
  %2112 = vrot.lane.b32.xlu0 %v1800, 104
  %v2113 = vpop.permute.xlu0 %2112
  %2114 = vrot.lane.b32.xlu0 %v1801, 104
  %v2115 = vpop.permute.xlu0 %2114
  %v2116 = vsel %vm166, %v2113, 0
  %v2118 = vsel %vm166, %v2115, 0
  %2120 = vmatprep.subr.mxu0 %v2111
  %2121 = vmatpush1.msra.mxu0 %v2110
  %2122 = vmatprep.subr.mxu0 0.0
  %2123 = vmatpush1.msra.mxu0 0.0
  %2124 = vmatprep.subr.mxu0 0.0
  %2125 = vmatpush1.msra.mxu0 0.0
  %2126 = vmatprep.subr.mxu0 0.0
  %2127 = vmatpush1.msra.mxu0 0.0
  %2128 = vmatprep.subr.mxu0 0.0
  %2129 = vmatpush1.msra.mxu0 0.0
  %2130 = vmatprep.subr.mxu0 0.0
  %2131 = vmatpush1.msra.mxu0 0.0
  %2132 = vmatprep.subr.mxu0 0.0
  %2133 = vmatpush1.msra.mxu0 0.0
  %2134 = vmatprep.subr.mxu0 0.0
  %2135 = vmatpush1.msra.mxu0 0.0
  %2136 = vmatprep.subr.mxu0 0.0
  %2137 = vmatpush1.msra.mxu0 0.0
  %2138 = vmatprep.subr.mxu0 0.0
  %2139 = vmatpush1.msra.mxu0 0.0
  %2140 = vmatprep.subr.mxu0 0.0
  %2141 = vmatpush1.msra.mxu0 0.0
  %2142 = vmatprep.subr.mxu0 0.0
  %2143 = vmatpush1.msra.mxu0 0.0
  %2144 = vmatprep.subr.mxu0 0.0
  %2145 = vmatpush1.msra.mxu0 0.0
  %2146 = vmatprep.subr.mxu0 0.0
  %2147 = vmatpush1.msra.mxu0 0.0
  %2148 = vmatprep.subr.mxu0 0.0
  %2149 = vmatpush1.msra.mxu0 0.0
  %2150 = vmatprep.subr.mxu0 0.0
  %2151 = vmatpush1.msra.mxu0 0.0
  %2152 = vmatprep.subr.mxu0 0.0
  %2153 = vmatpush1.msra.mxu0 0.0
  %2154 = vmatprep.subr.mxu0 0.0
  %2155 = vmatpush1.msra.mxu0 0.0
  %2156 = vmatprep.subr.mxu0 0.0
  %2157 = vmatpush1.msra.mxu0 0.0
  %2158 = vmatprep.subr.mxu0 0.0
  %2159 = vmatpush1.msra.mxu0 0.0
  %2160 = vmatprep.subr.mxu0 0.0
  %2161 = vmatpush1.msra.mxu0 0.0
  %2162 = vmatprep.subr.mxu0 0.0
  %2163 = vmatpush1.msra.mxu0 0.0
  %2164 = vmatprep.subr.mxu0 0.0
  %2165 = vmatpush1.msra.mxu0 0.0
  %2166 = vmatprep.subr.mxu0 0.0
  %2167 = vmatpush1.msra.mxu0 0.0
  %2168 = vmatprep.subr.mxu0 0.0
  %2169 = vmatpush1.msra.mxu0 0.0
  %2170 = vmatprep.subr.mxu0 0.0
  %2171 = vmatpush1.msra.mxu0 0.0
  %2172 = vmatprep.subr.mxu0 0.0
  %2173 = vmatpush1.msra.mxu0 0.0
  %2174 = vmatprep.subr.mxu0 0.0
  %2175 = vmatpush1.msra.mxu0 0.0
  %2176 = vmatprep.subr.mxu0 0.0
  %2177 = vmatpush1.msra.mxu0 0.0
  %2178 = vmatprep.subr.mxu0 0.0
  %2179 = vmatpush1.msra.mxu0 0.0
  %2180 = vmatprep.subr.mxu0 0.0
  %2181 = vmatpush1.msra.mxu0 0.0
  %2182 = vmatprep.subr.mxu0 0.0
  %2183 = vmatpush1.msra.mxu0 0.0
  %2184 = vmatprep.mubr.f32.mxu0 0.0
  %2185 = vmatmul.mubr.f32.gmra.mrb[0].mxu0 %v2116
  %v2186 = vpop.f32.mrb[0].mxu0
  %v2187 = vadd.f32 0.0, %v2186
  %v2188 = vpop.f32.mrb[0].mxu0
  %v2189 = vadd.f32 0.0, %v2188
  %2190 = vmatprep.mubr.f32.mxu0 0.0
  %2191 = vmatmul.mubr.f32.gmra.mrb[0].mxu0 %v2118
  %v2192 = vpop.f32.mrb[0].mxu0
  %v2193 = vadd.f32 0.0, %v2192
  %v2194 = vpop.f32.mrb[0].mxu0
  %v2195 = vadd.f32 0.0, %v2194
  %2196 = vdwg.mxu0
  %v2197 = vadd.f32 %v2093, %v2187
  %v2198 = vadd.f32 %v2094, %v2189
  %v2199 = vadd.f32 %v2095, %v2193
  %v2200 = vadd.f32 %v2096, %v2195
  %2201 = vrot.lane.b32.xlu0 %v11, 13
  %v2202 = vpop.permute.xlu0 %2201
  %2203 = vrot.lane.b32.xlu0 %v12, 13
  %v2204 = vpop.permute.xlu0 %2203
  %vm2205 = vcmp.lt.s32.totalorder %v14, 13
  %v2206 = vsel %vm2205, %v2202, %v2204
  %v2207 = vsel %vm2205, %v2204, %v2202
  %vm2208 = vmand %vm42, %vm126
  %vm2209 = vmand %vm43, %vm127
  %v2210 = vsel %vm2208, 1, 0
  %v2211 = vsel %vm2209, 1, 0
  %vm2212 = vcmp.eq.s32.totalorder %v2210, 1
  %vm2213 = vcmp.eq.s32.totalorder %v2211, 1
  %v2214 = vsel %vm2212, %v2207, 0.0
  %v2215 = vsel %vm2213, %v2206, 0.0
  %2216 = vrot.lane.b32.xlu0 %v1800, 96
  %v2217 = vpop.permute.xlu0 %2216
  %2218 = vrot.lane.b32.xlu0 %v1801, 96
  %v2219 = vpop.permute.xlu0 %2218
  %v2220 = vsel %vm166, %v2217, 0
  %v2222 = vsel %vm166, %v2219, 0
  %2224 = vmatprep.subr.mxu0 %v2215
  %2225 = vmatpush1.msra.mxu0 %v2214
  %2226 = vmatprep.subr.mxu0 0.0
  %2227 = vmatpush1.msra.mxu0 0.0
  %2228 = vmatprep.subr.mxu0 0.0
  %2229 = vmatpush1.msra.mxu0 0.0
  %2230 = vmatprep.subr.mxu0 0.0
  %2231 = vmatpush1.msra.mxu0 0.0
  %2232 = vmatprep.subr.mxu0 0.0
  %2233 = vmatpush1.msra.mxu0 0.0
  %2234 = vmatprep.subr.mxu0 0.0
  %2235 = vmatpush1.msra.mxu0 0.0
  %2236 = vmatprep.subr.mxu0 0.0
  %2237 = vmatpush1.msra.mxu0 0.0
  %2238 = vmatprep.subr.mxu0 0.0
  %2239 = vmatpush1.msra.mxu0 0.0
  %2240 = vmatprep.subr.mxu0 0.0
  %2241 = vmatpush1.msra.mxu0 0.0
  %2242 = vmatprep.subr.mxu0 0.0
  %2243 = vmatpush1.msra.mxu0 0.0
  %2244 = vmatprep.subr.mxu0 0.0
  %2245 = vmatpush1.msra.mxu0 0.0
  %2246 = vmatprep.subr.mxu0 0.0
  %2247 = vmatpush1.msra.mxu0 0.0
  %2248 = vmatprep.subr.mxu0 0.0
  %2249 = vmatpush1.msra.mxu0 0.0
  %2250 = vmatprep.subr.mxu0 0.0
  %2251 = vmatpush1.msra.mxu0 0.0
  %2252 = vmatprep.subr.mxu0 0.0
  %2253 = vmatpush1.msra.mxu0 0.0
  %2254 = vmatprep.subr.mxu0 0.0
  %2255 = vmatpush1.msra.mxu0 0.0
  %2256 = vmatprep.subr.mxu0 0.0
  %2257 = vmatpush1.msra.mxu0 0.0
  %2258 = vmatprep.subr.mxu0 0.0
  %2259 = vmatpush1.msra.mxu0 0.0
  %2260 = vmatprep.subr.mxu0 0.0
  %2261 = vmatpush1.msra.mxu0 0.0
  %2262 = vmatprep.subr.mxu0 0.0
  %2263 = vmatpush1.msra.mxu0 0.0
  %2264 = vmatprep.subr.mxu0 0.0
  %2265 = vmatpush1.msra.mxu0 0.0
  %2266 = vmatprep.subr.mxu0 0.0
  %2267 = vmatpush1.msra.mxu0 0.0
  %2268 = vmatprep.subr.mxu0 0.0
  %2269 = vmatpush1.msra.mxu0 0.0
  %2270 = vmatprep.subr.mxu0 0.0
  %2271 = vmatpush1.msra.mxu0 0.0
  %2272 = vmatprep.subr.mxu0 0.0
  %2273 = vmatpush1.msra.mxu0 0.0
  %2274 = vmatprep.subr.mxu0 0.0
  %2275 = vmatpush1.msra.mxu0 0.0
  %2276 = vmatprep.subr.mxu0 0.0
  %2277 = vmatpush1.msra.mxu0 0.0
  %2278 = vmatprep.subr.mxu0 0.0
  %2279 = vmatpush1.msra.mxu0 0.0
  %2280 = vmatprep.subr.mxu0 0.0
  %2281 = vmatpush1.msra.mxu0 0.0
  %2282 = vmatprep.subr.mxu0 0.0
  %2283 = vmatpush1.msra.mxu0 0.0
  %2284 = vmatprep.subr.mxu0 0.0
  %2285 = vmatpush1.msra.mxu0 0.0
  %2286 = vmatprep.subr.mxu0 0.0
  %2287 = vmatpush1.msra.mxu0 0.0
  %2288 = vmatprep.mubr.f32.mxu0 0.0
  %2289 = vmatmul.mubr.f32.gmra.mrb[0].mxu0 %v2220
  %v2290 = vpop.f32.mrb[0].mxu0
  %v2291 = vadd.f32 0.0, %v2290
  %v2292 = vpop.f32.mrb[0].mxu0
  %v2293 = vadd.f32 0.0, %v2292
  %2294 = vmatprep.mubr.f32.mxu0 0.0
  %2295 = vmatmul.mubr.f32.gmra.mrb[0].mxu0 %v2222
  %v2296 = vpop.f32.mrb[0].mxu0
  %v2297 = vadd.f32 0.0, %v2296
  %v2298 = vpop.f32.mrb[0].mxu0
  %v2299 = vadd.f32 0.0, %v2298
  %2300 = vdwg.mxu0
  %v2301 = vadd.f32 %v2197, %v2291
  %v2302 = vadd.f32 %v2198, %v2293
  %v2303 = vadd.f32 %v2199, %v2297
  %v2304 = vadd.f32 %v2200, %v2299
  %2305 = vrot.lane.b32.xlu0 %v11, 3
  %v2306 = vpop.permute.xlu0 %2305
  %2307 = vrot.lane.b32.xlu0 %v12, 3
  %v2308 = vpop.permute.xlu0 %2307
  %vm2309 = vcmp.lt.s32.totalorder %v14, 3
  %v2310 = vsel %vm2309, %v2306, %v2308
  %v2311 = vsel %vm2309, %v2308, %v2306
  %vm2312 = vmand %vm48, %vm80
  %vm2313 = vmand %vm49, %vm81
  %v2314 = vsel %vm2312, 1, 0
  %v2315 = vsel %vm2313, 1, 0
  %vm2316 = vcmp.eq.s32.totalorder %v2314, 1
  %vm2317 = vcmp.eq.s32.totalorder %v2315, 1
  %v2318 = vsel %vm2316, %v2311, 0.0
  %v2319 = vsel %vm2317, %v2310, 0.0
  %2320 = vrot.lane.b32.xlu0 %v1800, 88
  %v2321 = vpop.permute.xlu0 %2320
  %2322 = vrot.lane.b32.xlu0 %v1801, 88
  %v2323 = vpop.permute.xlu0 %2322
  %v2324 = vsel %vm166, %v2321, 0
  %v2326 = vsel %vm166, %v2323, 0
  %2328 = vmatprep.subr.mxu0 %v2319
  %2329 = vmatpush1.msra.mxu0 %v2318
  %2330 = vmatprep.subr.mxu0 0.0
  %2331 = vmatpush1.msra.mxu0 0.0
  %2332 = vmatprep.subr.mxu0 0.0
  %2333 = vmatpush1.msra.mxu0 0.0
  %2334 = vmatprep.subr.mxu0 0.0
  %2335 = vmatpush1.msra.mxu0 0.0
  %2336 = vmatprep.subr.mxu0 0.0
  %2337 = vmatpush1.msra.mxu0 0.0
  %2338 = vmatprep.subr.mxu0 0.0
  %2339 = vmatpush1.msra.mxu0 0.0
  %2340 = vmatprep.subr.mxu0 0.0
  %2341 = vmatpush1.msra.mxu0 0.0
  %2342 = vmatprep.subr.mxu0 0.0
  %2343 = vmatpush1.msra.mxu0 0.0
  %2344 = vmatprep.subr.mxu0 0.0
  %2345 = vmatpush1.msra.mxu0 0.0
  %2346 = vmatprep.subr.mxu0 0.0
  %2347 = vmatpush1.msra.mxu0 0.0
  %2348 = vmatprep.subr.mxu0 0.0
  %2349 = vmatpush1.msra.mxu0 0.0
  %2350 = vmatprep.subr.mxu0 0.0
  %2351 = vmatpush1.msra.mxu0 0.0
  %2352 = vmatprep.subr.mxu0 0.0
  %2353 = vmatpush1.msra.mxu0 0.0
  %2354 = vmatprep.subr.mxu0 0.0
  %2355 = vmatpush1.msra.mxu0 0.0
  %2356 = vmatprep.subr.mxu0 0.0
  %2357 = vmatpush1.msra.mxu0 0.0
  %2358 = vmatprep.subr.mxu0 0.0
  %2359 = vmatpush1.msra.mxu0 0.0
  %2360 = vmatprep.subr.mxu0 0.0
  %2361 = vmatpush1.msra.mxu0 0.0
  %2362 = vmatprep.subr.mxu0 0.0
  %2363 = vmatpush1.msra.mxu0 0.0
  %2364 = vmatprep.subr.mxu0 0.0
  %2365 = vmatpush1.msra.mxu0 0.0
  %2366 = vmatprep.subr.mxu0 0.0
  %2367 = vmatpush1.msra.mxu0 0.0
  %2368 = vmatprep.subr.mxu0 0.0
  %2369 = vmatpush1.msra.mxu0 0.0
  %2370 = vmatprep.subr.mxu0 0.0
  %2371 = vmatpush1.msra.mxu0 0.0
  %2372 = vmatprep.subr.mxu0 0.0
  %2373 = vmatpush1.msra.mxu0 0.0
  %2374 = vmatprep.subr.mxu0 0.0
  %2375 = vmatpush1.msra.mxu0 0.0
  %2376 = vmatprep.subr.mxu0 0.0
  %2377 = vmatpush1.msra.mxu0 0.0
  %2378 = vmatprep.subr.mxu0 0.0
  %2379 = vmatpush1.msra.mxu0 0.0
  %2380 = vmatprep.subr.mxu0 0.0
  %2381 = vmatpush1.msra.mxu0 0.0
  %2382 = vmatprep.subr.mxu0 0.0
  %2383 = vmatpush1.msra.mxu0 0.0
  %2384 = vmatprep.subr.mxu0 0.0
  %2385 = vmatpush1.msra.mxu0 0.0
  %2386 = vmatprep.subr.mxu0 0.0
  %2387 = vmatpush1.msra.mxu0 0.0
  %2388 = vmatprep.subr.mxu0 0.0
  %2389 = vmatpush1.msra.mxu0 0.0
  %2390 = vmatprep.subr.mxu0 0.0
  %2391 = vmatpush1.msra.mxu0 0.0
  %2392 = vmatprep.mubr.f32.mxu0 0.0
  %2393 = vmatmul.mubr.f32.gmra.mrb[0].mxu0 %v2324
  %v2394 = vpop.f32.mrb[0].mxu0
  %v2395 = vadd.f32 0.0, %v2394
  %v2396 = vpop.f32.mrb[0].mxu0
  %v2397 = vadd.f32 0.0, %v2396
  %2398 = vmatprep.mubr.f32.mxu0 0.0
  %2399 = vmatmul.mubr.f32.gmra.mrb[0].mxu0 %v2326
  %v2400 = vpop.f32.mrb[0].mxu0
  %v2401 = vadd.f32 0.0, %v2400
  %v2402 = vpop.f32.mrb[0].mxu0
  %v2403 = vadd.f32 0.0, %v2402
  %2404 = vdwg.mxu0
  %v2405 = vadd.f32 %v2301, %v2395
  %v2406 = vadd.f32 %v2302, %v2397
  %v2407 = vadd.f32 %v2303, %v2401
  %v2408 = vadd.f32 %v2304, %v2403
  %2409 = vrot.lane.b32.xlu0 %v11, 2
  %v2410 = vpop.permute.xlu0 %2409
  %2411 = vrot.lane.b32.xlu0 %v12, 2
  %v2412 = vpop.permute.xlu0 %2411
  %vm2413 = vcmp.lt.s32.totalorder %v14, 2
  %v2414 = vsel %vm2413, %v2410, %v2412
  %v2415 = vsel %vm2413, %v2412, %v2410
  %vm2416 = vmand %vm48, %vm88
  %vm2417 = vmand %vm49, %vm89
  %v2418 = vsel %vm2416, 1, 0
  %v2419 = vsel %vm2417, 1, 0
  %vm2420 = vcmp.eq.s32.totalorder %v2418, 1
  %vm2421 = vcmp.eq.s32.totalorder %v2419, 1
  %v2422 = vsel %vm2420, %v2415, 0.0
  %v2423 = vsel %vm2421, %v2414, 0.0
  %2424 = vrot.lane.b32.xlu0 %v1800, 80
  %v2425 = vpop.permute.xlu0 %2424
  %2426 = vrot.lane.b32.xlu0 %v1801, 80
  %v2427 = vpop.permute.xlu0 %2426
  %v2428 = vsel %vm166, %v2425, 0
  %v2430 = vsel %vm166, %v2427, 0
  %2432 = vmatprep.subr.mxu0 %v2423
  %2433 = vmatpush1.msra.mxu0 %v2422
  %2434 = vmatprep.subr.mxu0 0.0
  %2435 = vmatpush1.msra.mxu0 0.0
  %2436 = vmatprep.subr.mxu0 0.0
  %2437 = vmatpush1.msra.mxu0 0.0
  %2438 = vmatprep.subr.mxu0 0.0
  %2439 = vmatpush1.msra.mxu0 0.0
  %2440 = vmatprep.subr.mxu0 0.0
  %2441 = vmatpush1.msra.mxu0 0.0
  %2442 = vmatprep.subr.mxu0 0.0
  %2443 = vmatpush1.msra.mxu0 0.0
  %2444 = vmatprep.subr.mxu0 0.0
  %2445 = vmatpush1.msra.mxu0 0.0
  %2446 = vmatprep.subr.mxu0 0.0
  %2447 = vmatpush1.msra.mxu0 0.0
  %2448 = vmatprep.subr.mxu0 0.0
  %2449 = vmatpush1.msra.mxu0 0.0
  %2450 = vmatprep.subr.mxu0 0.0
  %2451 = vmatpush1.msra.mxu0 0.0
  %2452 = vmatprep.subr.mxu0 0.0
  %2453 = vmatpush1.msra.mxu0 0.0
  %2454 = vmatprep.subr.mxu0 0.0
  %2455 = vmatpush1.msra.mxu0 0.0
  %2456 = vmatprep.subr.mxu0 0.0
  %2457 = vmatpush1.msra.mxu0 0.0
  %2458 = vmatprep.subr.mxu0 0.0
  %2459 = vmatpush1.msra.mxu0 0.0
  %2460 = vmatprep.subr.mxu0 0.0
  %2461 = vmatpush1.msra.mxu0 0.0
  %2462 = vmatprep.subr.mxu0 0.0
  %2463 = vmatpush1.msra.mxu0 0.0
  %2464 = vmatprep.subr.mxu0 0.0
  %2465 = vmatpush1.msra.mxu0 0.0
  %2466 = vmatprep.subr.mxu0 0.0
  %2467 = vmatpush1.msra.mxu0 0.0
  %2468 = vmatprep.subr.mxu0 0.0
  %2469 = vmatpush1.msra.mxu0 0.0
  %2470 = vmatprep.subr.mxu0 0.0
  %2471 = vmatpush1.msra.mxu0 0.0
  %2472 = vmatprep.subr.mxu0 0.0
  %2473 = vmatpush1.msra.mxu0 0.0
  %2474 = vmatprep.subr.mxu0 0.0
  %2475 = vmatpush1.msra.mxu0 0.0
  %2476 = vmatprep.subr.mxu0 0.0
  %2477 = vmatpush1.msra.mxu0 0.0
  %2478 = vmatprep.subr.mxu0 0.0
  %2479 = vmatpush1.msra.mxu0 0.0
  %2480 = vmatprep.subr.mxu0 0.0
  %2481 = vmatpush1.msra.mxu0 0.0
  %2482 = vmatprep.subr.mxu0 0.0
  %2483 = vmatpush1.msra.mxu0 0.0
  %2484 = vmatprep.subr.mxu0 0.0
  %2485 = vmatpush1.msra.mxu0 0.0
  %2486 = vmatprep.subr.mxu0 0.0
  %2487 = vmatpush1.msra.mxu0 0.0
  %2488 = vmatprep.subr.mxu0 0.0
  %2489 = vmatpush1.msra.mxu0 0.0
  %2490 = vmatprep.subr.mxu0 0.0
  %2491 = vmatpush1.msra.mxu0 0.0
  %2492 = vmatprep.subr.mxu0 0.0
  %2493 = vmatpush1.msra.mxu0 0.0
  %2494 = vmatprep.subr.mxu0 0.0
  %2495 = vmatpush1.msra.mxu0 0.0
  %2496 = vmatprep.mubr.f32.mxu0 0.0
  %2497 = vmatmul.mubr.f32.gmra.mrb[0].mxu0 %v2428
  %v2498 = vpop.f32.mrb[0].mxu0
  %v2499 = vadd.f32 0.0, %v2498
  %v2500 = vpop.f32.mrb[0].mxu0
  %v2501 = vadd.f32 0.0, %v2500
  %2502 = vmatprep.mubr.f32.mxu0 0.0
  %2503 = vmatmul.mubr.f32.gmra.mrb[0].mxu0 %v2430
  %v2504 = vpop.f32.mrb[0].mxu0
  %v2505 = vadd.f32 0.0, %v2504
  %v2506 = vpop.f32.mrb[0].mxu0
  %v2507 = vadd.f32 0.0, %v2506
  %2508 = vdwg.mxu0
  %v2509 = vadd.f32 %v2405, %v2499
  %v2510 = vadd.f32 %v2406, %v2501
  %v2511 = vadd.f32 %v2407, %v2505
  %v2512 = vadd.f32 %v2408, %v2507
  %2513 = vrot.lane.b32.xlu0 %v11, 1
  %v2514 = vpop.permute.xlu0 %2513
  %2515 = vrot.lane.b32.xlu0 %v12, 1
  %v2516 = vpop.permute.xlu0 %2515
  %vm2517 = vcmp.lt.s32.totalorder %v14, 1
  %v2518 = vsel %vm2517, %v2514, %v2516
  %v2519 = vsel %vm2517, %v2516, %v2514
  %vm2520 = vmand %vm48, %vm96
  %vm2521 = vmand %vm49, %vm97
  %v2522 = vsel %vm2520, 1, 0
  %v2523 = vsel %vm2521, 1, 0
  %vm2524 = vcmp.eq.s32.totalorder %v2522, 1
  %vm2525 = vcmp.eq.s32.totalorder %v2523, 1
  %v2526 = vsel %vm2524, %v2519, 0.0
  %v2527 = vsel %vm2525, %v2518, 0.0
  %2528 = vrot.lane.b32.xlu0 %v1800, 72
  %v2529 = vpop.permute.xlu0 %2528
  %2530 = vrot.lane.b32.xlu0 %v1801, 72
  %v2531 = vpop.permute.xlu0 %2530
  %v2532 = vsel %vm166, %v2529, 0
  %v2534 = vsel %vm166, %v2531, 0
  %2536 = vmatprep.subr.mxu0 %v2527
  %2537 = vmatpush1.msra.mxu0 %v2526
  %2538 = vmatprep.subr.mxu0 0.0
  %2539 = vmatpush1.msra.mxu0 0.0
  %2540 = vmatprep.subr.mxu0 0.0
  %2541 = vmatpush1.msra.mxu0 0.0
  %2542 = vmatprep.subr.mxu0 0.0
  %2543 = vmatpush1.msra.mxu0 0.0
  %2544 = vmatprep.subr.mxu0 0.0
  %2545 = vmatpush1.msra.mxu0 0.0
  %2546 = vmatprep.subr.mxu0 0.0
  %2547 = vmatpush1.msra.mxu0 0.0
  %2548 = vmatprep.subr.mxu0 0.0
  %2549 = vmatpush1.msra.mxu0 0.0
  %2550 = vmatprep.subr.mxu0 0.0
  %2551 = vmatpush1.msra.mxu0 0.0
  %2552 = vmatprep.subr.mxu0 0.0
  %2553 = vmatpush1.msra.mxu0 0.0
  %2554 = vmatprep.subr.mxu0 0.0
  %2555 = vmatpush1.msra.mxu0 0.0
  %2556 = vmatprep.subr.mxu0 0.0
  %2557 = vmatpush1.msra.mxu0 0.0
  %2558 = vmatprep.subr.mxu0 0.0
  %2559 = vmatpush1.msra.mxu0 0.0
  %2560 = vmatprep.subr.mxu0 0.0
  %2561 = vmatpush1.msra.mxu0 0.0
  %2562 = vmatprep.subr.mxu0 0.0
  %2563 = vmatpush1.msra.mxu0 0.0
  %2564 = vmatprep.subr.mxu0 0.0
  %2565 = vmatpush1.msra.mxu0 0.0
  %2566 = vmatprep.subr.mxu0 0.0
  %2567 = vmatpush1.msra.mxu0 0.0
  %2568 = vmatprep.subr.mxu0 0.0
  %2569 = vmatpush1.msra.mxu0 0.0
  %2570 = vmatprep.subr.mxu0 0.0
  %2571 = vmatpush1.msra.mxu0 0.0
  %2572 = vmatprep.subr.mxu0 0.0
  %2573 = vmatpush1.msra.mxu0 0.0
  %2574 = vmatprep.subr.mxu0 0.0
  %2575 = vmatpush1.msra.mxu0 0.0
  %2576 = vmatprep.subr.mxu0 0.0
  %2577 = vmatpush1.msra.mxu0 0.0
  %2578 = vmatprep.subr.mxu0 0.0
  %2579 = vmatpush1.msra.mxu0 0.0
  %2580 = vmatprep.subr.mxu0 0.0
  %2581 = vmatpush1.msra.mxu0 0.0
  %2582 = vmatprep.subr.mxu0 0.0
  %2583 = vmatpush1.msra.mxu0 0.0
  %2584 = vmatprep.subr.mxu0 0.0
  %2585 = vmatpush1.msra.mxu0 0.0
  %2586 = vmatprep.subr.mxu0 0.0
  %2587 = vmatpush1.msra.mxu0 0.0
  %2588 = vmatprep.subr.mxu0 0.0
  %2589 = vmatpush1.msra.mxu0 0.0
  %2590 = vmatprep.subr.mxu0 0.0
  %2591 = vmatpush1.msra.mxu0 0.0
  %2592 = vmatprep.subr.mxu0 0.0
  %2593 = vmatpush1.msra.mxu0 0.0
  %2594 = vmatprep.subr.mxu0 0.0
  %2595 = vmatpush1.msra.mxu0 0.0
  %2596 = vmatprep.subr.mxu0 0.0
  %2597 = vmatpush1.msra.mxu0 0.0
  %2598 = vmatprep.subr.mxu0 0.0
  %2599 = vmatpush1.msra.mxu0 0.0
  %2600 = vmatprep.mubr.f32.mxu0 0.0
  %2601 = vmatmul.mubr.f32.gmra.mrb[0].mxu0 %v2532
  %v2602 = vpop.f32.mrb[0].mxu0
  %v2603 = vadd.f32 0.0, %v2602
  %v2604 = vpop.f32.mrb[0].mxu0
  %v2605 = vadd.f32 0.0, %v2604
  %2606 = vmatprep.mubr.f32.mxu0 0.0
  %2607 = vmatmul.mubr.f32.gmra.mrb[0].mxu0 %v2534
  %v2608 = vpop.f32.mrb[0].mxu0
  %v2609 = vadd.f32 0.0, %v2608
  %v2610 = vpop.f32.mrb[0].mxu0
  %v2611 = vadd.f32 0.0, %v2610
  %2612 = vdwg.mxu0
  %v2613 = vadd.f32 %v2509, %v2603
  %v2614 = vadd.f32 %v2510, %v2605
  %v2615 = vadd.f32 %v2511, %v2609
  %v2616 = vadd.f32 %v2512, %v2611
  %vm2617 = vmand %vm48, %vm102
  %vm2618 = vmand %vm49, %vm103
  %v2619 = vsel %vm2617, 1, 0
  %v2620 = vsel %vm2618, 1, 0
  %vm2621 = vcmp.eq.s32.totalorder %v2619, 1
  %vm2622 = vcmp.eq.s32.totalorder %v2620, 1
  %v2623 = vsel %vm2621, %v11, 0.0
  %v2624 = vsel %vm2622, %v12, 0.0
  %2625 = vrot.lane.b32.xlu0 %v1800, 64
  %v2626 = vpop.permute.xlu0 %2625
  %2627 = vrot.lane.b32.xlu0 %v1801, 64
  %v2628 = vpop.permute.xlu0 %2627
  %v2629 = vsel %vm166, %v2626, 0
  %v2631 = vsel %vm166, %v2628, 0
  %2633 = vmatprep.subr.mxu0 %v2624
  %2634 = vmatpush1.msra.mxu0 %v2623
  %2635 = vmatprep.subr.mxu0 0.0
  %2636 = vmatpush1.msra.mxu0 0.0
  %2637 = vmatprep.subr.mxu0 0.0
  %2638 = vmatpush1.msra.mxu0 0.0
  %2639 = vmatprep.subr.mxu0 0.0
  %2640 = vmatpush1.msra.mxu0 0.0
  %2641 = vmatprep.subr.mxu0 0.0
  %2642 = vmatpush1.msra.mxu0 0.0
  %2643 = vmatprep.subr.mxu0 0.0
  %2644 = vmatpush1.msra.mxu0 0.0
  %2645 = vmatprep.subr.mxu0 0.0
  %2646 = vmatpush1.msra.mxu0 0.0
  %2647 = vmatprep.subr.mxu0 0.0
  %2648 = vmatpush1.msra.mxu0 0.0
  %2649 = vmatprep.subr.mxu0 0.0
  %2650 = vmatpush1.msra.mxu0 0.0
  %2651 = vmatprep.subr.mxu0 0.0
  %2652 = vmatpush1.msra.mxu0 0.0
  %2653 = vmatprep.subr.mxu0 0.0
  %2654 = vmatpush1.msra.mxu0 0.0
  %2655 = vmatprep.subr.mxu0 0.0
  %2656 = vmatpush1.msra.mxu0 0.0
  %2657 = vmatprep.subr.mxu0 0.0
  %2658 = vmatpush1.msra.mxu0 0.0
  %2659 = vmatprep.subr.mxu0 0.0
  %2660 = vmatpush1.msra.mxu0 0.0
  %2661 = vmatprep.subr.mxu0 0.0
  %2662 = vmatpush1.msra.mxu0 0.0
  %2663 = vmatprep.subr.mxu0 0.0
  %2664 = vmatpush1.msra.mxu0 0.0
  %2665 = vmatprep.subr.mxu0 0.0
  %2666 = vmatpush1.msra.mxu0 0.0
  %2667 = vmatprep.subr.mxu0 0.0
  %2668 = vmatpush1.msra.mxu0 0.0
  %2669 = vmatprep.subr.mxu0 0.0
  %2670 = vmatpush1.msra.mxu0 0.0
  %2671 = vmatprep.subr.mxu0 0.0
  %2672 = vmatpush1.msra.mxu0 0.0
  %2673 = vmatprep.subr.mxu0 0.0
  %2674 = vmatpush1.msra.mxu0 0.0
  %2675 = vmatprep.subr.mxu0 0.0
  %2676 = vmatpush1.msra.mxu0 0.0
  %2677 = vmatprep.subr.mxu0 0.0
  %2678 = vmatpush1.msra.mxu0 0.0
  %2679 = vmatprep.subr.mxu0 0.0
  %2680 = vmatpush1.msra.mxu0 0.0
  %2681 = vmatprep.subr.mxu0 0.0
  %2682 = vmatpush1.msra.mxu0 0.0
  %2683 = vmatprep.subr.mxu0 0.0
  %2684 = vmatpush1.msra.mxu0 0.0
  %2685 = vmatprep.subr.mxu0 0.0
  %2686 = vmatpush1.msra.mxu0 0.0
  %2687 = vmatprep.subr.mxu0 0.0
  %2688 = vmatpush1.msra.mxu0 0.0
  %2689 = vmatprep.subr.mxu0 0.0
  %2690 = vmatpush1.msra.mxu0 0.0
  %2691 = vmatprep.subr.mxu0 0.0
  %2692 = vmatpush1.msra.mxu0 0.0
  %2693 = vmatprep.subr.mxu0 0.0
  %2694 = vmatpush1.msra.mxu0 0.0
  %2695 = vmatprep.subr.mxu0 0.0
  %2696 = vmatpush1.msra.mxu0 0.0
  %2697 = vmatprep.mubr.f32.mxu0 0.0
  %2698 = vmatmul.mubr.f32.gmra.mrb[0].mxu0 %v2629
  %v2699 = vpop.f32.mrb[0].mxu0
  %v2700 = vadd.f32 0.0, %v2699
  %v2701 = vpop.f32.mrb[0].mxu0
  %v2702 = vadd.f32 0.0, %v2701
  %2703 = vmatprep.mubr.f32.mxu0 0.0
  %2704 = vmatmul.mubr.f32.gmra.mrb[0].mxu0 %v2631
  %v2705 = vpop.f32.mrb[0].mxu0
  %v2706 = vadd.f32 0.0, %v2705
  %v2707 = vpop.f32.mrb[0].mxu0
  %v2708 = vadd.f32 0.0, %v2707
  %2709 = vdwg.mxu0
  %v2710 = vadd.f32 %v2613, %v2700
  %v2711 = vadd.f32 %v2614, %v2702
  %v2712 = vadd.f32 %v2615, %v2706
  %v2713 = vadd.f32 %v2616, %v2708
  %2714 = vrot.lane.b32.xlu0 %v11, 127
  %v2715 = vpop.permute.xlu0 %2714
  %2716 = vrot.lane.b32.xlu0 %v12, 127
  %v2717 = vpop.permute.xlu0 %2716
  %vm2718 = vcmp.lt.s32.totalorder %v14, 127
  %v2719 = vsel %vm2718, %v2715, %v2717
  %v2720 = vsel %vm2718, %v2717, %v2715
  %vm2721 = vmand %vm48, %vm110
  %vm2722 = vmand %vm49, %vm111
  %v2723 = vsel %vm2721, 1, 0
  %v2724 = vsel %vm2722, 1, 0
  %vm2725 = vcmp.eq.s32.totalorder %v2723, 1
  %vm2726 = vcmp.eq.s32.totalorder %v2724, 1
  %v2727 = vsel %vm2725, %v2719, 0.0
  %v2728 = vsel %vm2726, %v2720, 0.0
  %2729 = vrot.lane.b32.xlu0 %v1800, 56
  %v2730 = vpop.permute.xlu0 %2729
  %2731 = vrot.lane.b32.xlu0 %v1801, 56
  %v2732 = vpop.permute.xlu0 %2731
  %v2733 = vsel %vm166, %v2730, 0
  %v2735 = vsel %vm166, %v2732, 0
  %2737 = vmatprep.subr.mxu0 %v2728
  %2738 = vmatpush1.msra.mxu0 %v2727
  %2739 = vmatprep.subr.mxu0 0.0
  %2740 = vmatpush1.msra.mxu0 0.0
  %2741 = vmatprep.subr.mxu0 0.0
  %2742 = vmatpush1.msra.mxu0 0.0
  %2743 = vmatprep.subr.mxu0 0.0
  %2744 = vmatpush1.msra.mxu0 0.0
  %2745 = vmatprep.subr.mxu0 0.0
  %2746 = vmatpush1.msra.mxu0 0.0
  %2747 = vmatprep.subr.mxu0 0.0
  %2748 = vmatpush1.msra.mxu0 0.0
  %2749 = vmatprep.subr.mxu0 0.0
  %2750 = vmatpush1.msra.mxu0 0.0
  %2751 = vmatprep.subr.mxu0 0.0
  %2752 = vmatpush1.msra.mxu0 0.0
  %2753 = vmatprep.subr.mxu0 0.0
  %2754 = vmatpush1.msra.mxu0 0.0
  %2755 = vmatprep.subr.mxu0 0.0
  %2756 = vmatpush1.msra.mxu0 0.0
  %2757 = vmatprep.subr.mxu0 0.0
  %2758 = vmatpush1.msra.mxu0 0.0
  %2759 = vmatprep.subr.mxu0 0.0
  %2760 = vmatpush1.msra.mxu0 0.0
  %2761 = vmatprep.subr.mxu0 0.0
  %2762 = vmatpush1.msra.mxu0 0.0
  %2763 = vmatprep.subr.mxu0 0.0
  %2764 = vmatpush1.msra.mxu0 0.0
  %2765 = vmatprep.subr.mxu0 0.0
  %2766 = vmatpush1.msra.mxu0 0.0
  %2767 = vmatprep.subr.mxu0 0.0
  %2768 = vmatpush1.msra.mxu0 0.0
  %2769 = vmatprep.subr.mxu0 0.0
  %2770 = vmatpush1.msra.mxu0 0.0
  %2771 = vmatprep.subr.mxu0 0.0
  %2772 = vmatpush1.msra.mxu0 0.0
  %2773 = vmatprep.subr.mxu0 0.0
  %2774 = vmatpush1.msra.mxu0 0.0
  %2775 = vmatprep.subr.mxu0 0.0
  %2776 = vmatpush1.msra.mxu0 0.0
  %2777 = vmatprep.subr.mxu0 0.0
  %2778 = vmatpush1.msra.mxu0 0.0
  %2779 = vmatprep.subr.mxu0 0.0
  %2780 = vmatpush1.msra.mxu0 0.0
  %2781 = vmatprep.subr.mxu0 0.0
  %2782 = vmatpush1.msra.mxu0 0.0
  %2783 = vmatprep.subr.mxu0 0.0
  %2784 = vmatpush1.msra.mxu0 0.0
  %2785 = vmatprep.subr.mxu0 0.0
  %2786 = vmatpush1.msra.mxu0 0.0
  %2787 = vmatprep.subr.mxu0 0.0
  %2788 = vmatpush1.msra.mxu0 0.0
  %2789 = vmatprep.subr.mxu0 0.0
  %2790 = vmatpush1.msra.mxu0 0.0
  %2791 = vmatprep.subr.mxu0 0.0
  %2792 = vmatpush1.msra.mxu0 0.0
  %2793 = vmatprep.subr.mxu0 0.0
  %2794 = vmatpush1.msra.mxu0 0.0
  %2795 = vmatprep.subr.mxu0 0.0
  %2796 = vmatpush1.msra.mxu0 0.0
  %2797 = vmatprep.subr.mxu0 0.0
  %2798 = vmatpush1.msra.mxu0 0.0
  %2799 = vmatprep.subr.mxu0 0.0
  %2800 = vmatpush1.msra.mxu0 0.0
  %2801 = vmatprep.mubr.f32.mxu0 0.0
  %2802 = vmatmul.mubr.f32.gmra.mrb[0].mxu0 %v2733
  %v2803 = vpop.f32.mrb[0].mxu0
  %v2804 = vadd.f32 0.0, %v2803
  %v2805 = vpop.f32.mrb[0].mxu0
  %v2806 = vadd.f32 0.0, %v2805
  %2807 = vmatprep.mubr.f32.mxu0 0.0
  %2808 = vmatmul.mubr.f32.gmra.mrb[0].mxu0 %v2735
  %v2809 = vpop.f32.mrb[0].mxu0
  %v2810 = vadd.f32 0.0, %v2809
  %v2811 = vpop.f32.mrb[0].mxu0
  %v2812 = vadd.f32 0.0, %v2811
  %2813 = vdwg.mxu0
  %v2814 = vadd.f32 %v2710, %v2804
  %v2815 = vadd.f32 %v2711, %v2806
  %v2816 = vadd.f32 %v2712, %v2810
  %v2817 = vadd.f32 %v2713, %v2812
  %2818 = vrot.lane.b32.xlu0 %v11, 126
  %v2819 = vpop.permute.xlu0 %2818
  %2820 = vrot.lane.b32.xlu0 %v12, 126
  %v2821 = vpop.permute.xlu0 %2820
  %vm2822 = vcmp.lt.s32.totalorder %v14, 126
  %v2823 = vsel %vm2822, %v2819, %v2821
  %v2824 = vsel %vm2822, %v2821, %v2819
  %vm2825 = vmand %vm48, %vm118
  %vm2826 = vmand %vm49, %vm119
  %v2827 = vsel %vm2825, 1, 0
  %v2828 = vsel %vm2826, 1, 0
  %vm2829 = vcmp.eq.s32.totalorder %v2827, 1
  %vm2830 = vcmp.eq.s32.totalorder %v2828, 1
  %v2831 = vsel %vm2829, %v2823, 0.0
  %v2832 = vsel %vm2830, %v2824, 0.0
  %2833 = vrot.lane.b32.xlu0 %v1800, 48
  %v2834 = vpop.permute.xlu0 %2833
  %2835 = vrot.lane.b32.xlu0 %v1801, 48
  %v2836 = vpop.permute.xlu0 %2835
  %v2837 = vsel %vm166, %v2834, 0
  %v2839 = vsel %vm166, %v2836, 0
  %2841 = vmatprep.subr.mxu0 %v2832
  %2842 = vmatpush1.msra.mxu0 %v2831
  %2843 = vmatprep.subr.mxu0 0.0
  %2844 = vmatpush1.msra.mxu0 0.0
  %2845 = vmatprep.subr.mxu0 0.0
  %2846 = vmatpush1.msra.mxu0 0.0
  %2847 = vmatprep.subr.mxu0 0.0
  %2848 = vmatpush1.msra.mxu0 0.0
  %2849 = vmatprep.subr.mxu0 0.0
  %2850 = vmatpush1.msra.mxu0 0.0
  %2851 = vmatprep.subr.mxu0 0.0
  %2852 = vmatpush1.msra.mxu0 0.0
  %2853 = vmatprep.subr.mxu0 0.0
  %2854 = vmatpush1.msra.mxu0 0.0
  %2855 = vmatprep.subr.mxu0 0.0
  %2856 = vmatpush1.msra.mxu0 0.0
  %2857 = vmatprep.subr.mxu0 0.0
  %2858 = vmatpush1.msra.mxu0 0.0
  %2859 = vmatprep.subr.mxu0 0.0
  %2860 = vmatpush1.msra.mxu0 0.0
  %2861 = vmatprep.subr.mxu0 0.0
  %2862 = vmatpush1.msra.mxu0 0.0
  %2863 = vmatprep.subr.mxu0 0.0
  %2864 = vmatpush1.msra.mxu0 0.0
  %2865 = vmatprep.subr.mxu0 0.0
  %2866 = vmatpush1.msra.mxu0 0.0
  %2867 = vmatprep.subr.mxu0 0.0
  %2868 = vmatpush1.msra.mxu0 0.0
  %2869 = vmatprep.subr.mxu0 0.0
  %2870 = vmatpush1.msra.mxu0 0.0
  %2871 = vmatprep.subr.mxu0 0.0
  %2872 = vmatpush1.msra.mxu0 0.0
  %2873 = vmatprep.subr.mxu0 0.0
  %2874 = vmatpush1.msra.mxu0 0.0
  %2875 = vmatprep.subr.mxu0 0.0
  %2876 = vmatpush1.msra.mxu0 0.0
  %2877 = vmatprep.subr.mxu0 0.0
  %2878 = vmatpush1.msra.mxu0 0.0
  %2879 = vmatprep.subr.mxu0 0.0
  %2880 = vmatpush1.msra.mxu0 0.0
  %2881 = vmatprep.subr.mxu0 0.0
  %2882 = vmatpush1.msra.mxu0 0.0
  %2883 = vmatprep.subr.mxu0 0.0
  %2884 = vmatpush1.msra.mxu0 0.0
  %2885 = vmatprep.subr.mxu0 0.0
  %2886 = vmatpush1.msra.mxu0 0.0
  %2887 = vmatprep.subr.mxu0 0.0
  %2888 = vmatpush1.msra.mxu0 0.0
  %2889 = vmatprep.subr.mxu0 0.0
  %2890 = vmatpush1.msra.mxu0 0.0
  %2891 = vmatprep.subr.mxu0 0.0
  %2892 = vmatpush1.msra.mxu0 0.0
  %2893 = vmatprep.subr.mxu0 0.0
  %2894 = vmatpush1.msra.mxu0 0.0
  %2895 = vmatprep.subr.mxu0 0.0
  %2896 = vmatpush1.msra.mxu0 0.0
  %2897 = vmatprep.subr.mxu0 0.0
  %2898 = vmatpush1.msra.mxu0 0.0
  %2899 = vmatprep.subr.mxu0 0.0
  %2900 = vmatpush1.msra.mxu0 0.0
  %2901 = vmatprep.subr.mxu0 0.0
  %2902 = vmatpush1.msra.mxu0 0.0
  %2903 = vmatprep.subr.mxu0 0.0
  %2904 = vmatpush1.msra.mxu0 0.0
  %2905 = vmatprep.mubr.f32.mxu0 0.0
  %2906 = vmatmul.mubr.f32.gmra.mrb[0].mxu0 %v2837
  %v2907 = vpop.f32.mrb[0].mxu0
  %v2908 = vadd.f32 0.0, %v2907
  %v2909 = vpop.f32.mrb[0].mxu0
  %v2910 = vadd.f32 0.0, %v2909
  %2911 = vmatprep.mubr.f32.mxu0 0.0
  %2912 = vmatmul.mubr.f32.gmra.mrb[0].mxu0 %v2839
  %v2913 = vpop.f32.mrb[0].mxu0
  %v2914 = vadd.f32 0.0, %v2913
  %v2915 = vpop.f32.mrb[0].mxu0
  %v2916 = vadd.f32 0.0, %v2915
  %2917 = vdwg.mxu0
  %v2918 = vadd.f32 %v2814, %v2908
  %v2919 = vadd.f32 %v2815, %v2910
  %v2920 = vadd.f32 %v2816, %v2914
  %v2921 = vadd.f32 %v2817, %v2916
  %2922 = vrot.lane.b32.xlu0 %v11, 125
  %v2923 = vpop.permute.xlu0 %2922
  %2924 = vrot.lane.b32.xlu0 %v12, 125
  %v2925 = vpop.permute.xlu0 %2924
  %vm2926 = vcmp.lt.s32.totalorder %v14, 125
  %v2927 = vsel %vm2926, %v2923, %v2925
  %v2928 = vsel %vm2926, %v2925, %v2923
  %vm2929 = vmand %vm48, %vm126
  %vm2930 = vmand %vm49, %vm127
  %v2931 = vsel %vm2929, 1, 0
  %v2932 = vsel %vm2930, 1, 0
  %vm2933 = vcmp.eq.s32.totalorder %v2931, 1
  %vm2934 = vcmp.eq.s32.totalorder %v2932, 1
  %v2935 = vsel %vm2933, %v2927, 0.0
  %v2936 = vsel %vm2934, %v2928, 0.0
  %2937 = vrot.lane.b32.xlu0 %v1800, 40
  %v2938 = vpop.permute.xlu0 %2937
  %2939 = vrot.lane.b32.xlu0 %v1801, 40
  %v2940 = vpop.permute.xlu0 %2939
  %v2941 = vsel %vm166, %v2938, 0
  %v2943 = vsel %vm166, %v2940, 0
  %2945 = vmatprep.subr.mxu0 %v2936
  %2946 = vmatpush1.msra.mxu0 %v2935
  %2947 = vmatprep.subr.mxu0 0.0
  %2948 = vmatpush1.msra.mxu0 0.0
  %2949 = vmatprep.subr.mxu0 0.0
  %2950 = vmatpush1.msra.mxu0 0.0
  %2951 = vmatprep.subr.mxu0 0.0
  %2952 = vmatpush1.msra.mxu0 0.0
  %2953 = vmatprep.subr.mxu0 0.0
  %2954 = vmatpush1.msra.mxu0 0.0
  %2955 = vmatprep.subr.mxu0 0.0
  %2956 = vmatpush1.msra.mxu0 0.0
  %2957 = vmatprep.subr.mxu0 0.0
  %2958 = vmatpush1.msra.mxu0 0.0
  %2959 = vmatprep.subr.mxu0 0.0
  %2960 = vmatpush1.msra.mxu0 0.0
  %2961 = vmatprep.subr.mxu0 0.0
  %2962 = vmatpush1.msra.mxu0 0.0
  %2963 = vmatprep.subr.mxu0 0.0
  %2964 = vmatpush1.msra.mxu0 0.0
  %2965 = vmatprep.subr.mxu0 0.0
  %2966 = vmatpush1.msra.mxu0 0.0
  %2967 = vmatprep.subr.mxu0 0.0
  %2968 = vmatpush1.msra.mxu0 0.0
  %2969 = vmatprep.subr.mxu0 0.0
  %2970 = vmatpush1.msra.mxu0 0.0
  %2971 = vmatprep.subr.mxu0 0.0
  %2972 = vmatpush1.msra.mxu0 0.0
  %2973 = vmatprep.subr.mxu0 0.0
  %2974 = vmatpush1.msra.mxu0 0.0
  %2975 = vmatprep.subr.mxu0 0.0
  %2976 = vmatpush1.msra.mxu0 0.0
  %2977 = vmatprep.subr.mxu0 0.0
  %2978 = vmatpush1.msra.mxu0 0.0
  %2979 = vmatprep.subr.mxu0 0.0
  %2980 = vmatpush1.msra.mxu0 0.0
  %2981 = vmatprep.subr.mxu0 0.0
  %2982 = vmatpush1.msra.mxu0 0.0
  %2983 = vmatprep.subr.mxu0 0.0
  %2984 = vmatpush1.msra.mxu0 0.0
  %2985 = vmatprep.subr.mxu0 0.0
  %2986 = vmatpush1.msra.mxu0 0.0
  %2987 = vmatprep.subr.mxu0 0.0
  %2988 = vmatpush1.msra.mxu0 0.0
  %2989 = vmatprep.subr.mxu0 0.0
  %2990 = vmatpush1.msra.mxu0 0.0
  %2991 = vmatprep.subr.mxu0 0.0
  %2992 = vmatpush1.msra.mxu0 0.0
  %2993 = vmatprep.subr.mxu0 0.0
  %2994 = vmatpush1.msra.mxu0 0.0
  %2995 = vmatprep.subr.mxu0 0.0
  %2996 = vmatpush1.msra.mxu0 0.0
  %2997 = vmatprep.subr.mxu0 0.0
  %2998 = vmatpush1.msra.mxu0 0.0
  %2999 = vmatprep.subr.mxu0 0.0
  %3000 = vmatpush1.msra.mxu0 0.0
  %3001 = vmatprep.subr.mxu0 0.0
  %3002 = vmatpush1.msra.mxu0 0.0
  %3003 = vmatprep.subr.mxu0 0.0
  %3004 = vmatpush1.msra.mxu0 0.0
  %3005 = vmatprep.subr.mxu0 0.0
  %3006 = vmatpush1.msra.mxu0 0.0
  %3007 = vmatprep.subr.mxu0 0.0
  %3008 = vmatpush1.msra.mxu0 0.0
  %3009 = vmatprep.mubr.f32.mxu0 0.0
  %3010 = vmatmul.mubr.f32.gmra.mrb[0].mxu0 %v2941
  %v3011 = vpop.f32.mrb[0].mxu0
  %v3012 = vadd.f32 0.0, %v3011
  %v3013 = vpop.f32.mrb[0].mxu0
  %v3014 = vadd.f32 0.0, %v3013
  %3015 = vmatprep.mubr.f32.mxu0 0.0
  %3016 = vmatmul.mubr.f32.gmra.mrb[0].mxu0 %v2943
  %v3017 = vpop.f32.mrb[0].mxu0
  %v3018 = vadd.f32 0.0, %v3017
  %v3019 = vpop.f32.mrb[0].mxu0
  %v3020 = vadd.f32 0.0, %v3019
  %3021 = vdwg.mxu0
  %v3022 = vadd.f32 %v2918, %v3012
  %v3023 = vadd.f32 %v2919, %v3014
  %v3024 = vadd.f32 %v2920, %v3018
  %v3025 = vadd.f32 %v2921, %v3020
  %3026 = vrot.lane.b32.xlu0 %v11, 115
  %v3027 = vpop.permute.xlu0 %3026
  %3028 = vrot.lane.b32.xlu0 %v12, 115
  %v3029 = vpop.permute.xlu0 %3028
  %vm3030 = vcmp.lt.s32.totalorder %v14, 115
  %v3031 = vsel %vm3030, %v3027, %v3029
  %v3032 = vsel %vm3030, %v3029, %v3027
  %vm3033 = vmand %vm56, %vm80
  %vm3034 = vmand %vm57, %vm81
  %v3035 = vsel %vm3033, 1, 0
  %v3036 = vsel %vm3034, 1, 0
  %vm3037 = vcmp.eq.s32.totalorder %v3035, 1
  %vm3038 = vcmp.eq.s32.totalorder %v3036, 1
  %v3039 = vsel %vm3037, %v3031, 0.0
  %v3040 = vsel %vm3038, %v3032, 0.0
  %3041 = vrot.lane.b32.xlu0 %v1800, 32
  %v3042 = vpop.permute.xlu0 %3041
  %3043 = vrot.lane.b32.xlu0 %v1801, 32
  %v3044 = vpop.permute.xlu0 %3043
  %v3045 = vsel %vm166, %v3042, 0
  %v3047 = vsel %vm166, %v3044, 0
  %3049 = vmatprep.subr.mxu0 %v3040
  %3050 = vmatpush1.msra.mxu0 %v3039
  %3051 = vmatprep.subr.mxu0 0.0
  %3052 = vmatpush1.msra.mxu0 0.0
  %3053 = vmatprep.subr.mxu0 0.0
  %3054 = vmatpush1.msra.mxu0 0.0
  %3055 = vmatprep.subr.mxu0 0.0
  %3056 = vmatpush1.msra.mxu0 0.0
  %3057 = vmatprep.subr.mxu0 0.0
  %3058 = vmatpush1.msra.mxu0 0.0
  %3059 = vmatprep.subr.mxu0 0.0
  %3060 = vmatpush1.msra.mxu0 0.0
  %3061 = vmatprep.subr.mxu0 0.0
  %3062 = vmatpush1.msra.mxu0 0.0
  %3063 = vmatprep.subr.mxu0 0.0
  %3064 = vmatpush1.msra.mxu0 0.0
  %3065 = vmatprep.subr.mxu0 0.0
  %3066 = vmatpush1.msra.mxu0 0.0
  %3067 = vmatprep.subr.mxu0 0.0
  %3068 = vmatpush1.msra.mxu0 0.0
  %3069 = vmatprep.subr.mxu0 0.0
  %3070 = vmatpush1.msra.mxu0 0.0
  %3071 = vmatprep.subr.mxu0 0.0
  %3072 = vmatpush1.msra.mxu0 0.0
  %3073 = vmatprep.subr.mxu0 0.0
  %3074 = vmatpush1.msra.mxu0 0.0
  %3075 = vmatprep.subr.mxu0 0.0
  %3076 = vmatpush1.msra.mxu0 0.0
  %3077 = vmatprep.subr.mxu0 0.0
  %3078 = vmatpush1.msra.mxu0 0.0
  %3079 = vmatprep.subr.mxu0 0.0
  %3080 = vmatpush1.msra.mxu0 0.0
  %3081 = vmatprep.subr.mxu0 0.0
  %3082 = vmatpush1.msra.mxu0 0.0
  %3083 = vmatprep.subr.mxu0 0.0
  %3084 = vmatpush1.msra.mxu0 0.0
  %3085 = vmatprep.subr.mxu0 0.0
  %3086 = vmatpush1.msra.mxu0 0.0
  %3087 = vmatprep.subr.mxu0 0.0
  %3088 = vmatpush1.msra.mxu0 0.0
  %3089 = vmatprep.subr.mxu0 0.0
  %3090 = vmatpush1.msra.mxu0 0.0
  %3091 = vmatprep.subr.mxu0 0.0
  %3092 = vmatpush1.msra.mxu0 0.0
  %3093 = vmatprep.subr.mxu0 0.0
  %3094 = vmatpush1.msra.mxu0 0.0
  %3095 = vmatprep.subr.mxu0 0.0
  %3096 = vmatpush1.msra.mxu0 0.0
  %3097 = vmatprep.subr.mxu0 0.0
  %3098 = vmatpush1.msra.mxu0 0.0
  %3099 = vmatprep.subr.mxu0 0.0
  %3100 = vmatpush1.msra.mxu0 0.0
  %3101 = vmatprep.subr.mxu0 0.0
  %3102 = vmatpush1.msra.mxu0 0.0
  %3103 = vmatprep.subr.mxu0 0.0
  %3104 = vmatpush1.msra.mxu0 0.0
  %3105 = vmatprep.subr.mxu0 0.0
  %3106 = vmatpush1.msra.mxu0 0.0
  %3107 = vmatprep.subr.mxu0 0.0
  %3108 = vmatpush1.msra.mxu0 0.0
  %3109 = vmatprep.subr.mxu0 0.0
  %3110 = vmatpush1.msra.mxu0 0.0
  %3111 = vmatprep.subr.mxu0 0.0
  %3112 = vmatpush1.msra.mxu0 0.0
  %3113 = vmatprep.mubr.f32.mxu0 0.0
  %3114 = vmatmul.mubr.f32.gmra.mrb[0].mxu0 %v3045
  %v3115 = vpop.f32.mrb[0].mxu0
  %v3116 = vadd.f32 0.0, %v3115
  %v3117 = vpop.f32.mrb[0].mxu0
  %v3118 = vadd.f32 0.0, %v3117
  %3119 = vmatprep.mubr.f32.mxu0 0.0
  %3120 = vmatmul.mubr.f32.gmra.mrb[0].mxu0 %v3047
  %v3121 = vpop.f32.mrb[0].mxu0
  %v3122 = vadd.f32 0.0, %v3121
  %v3123 = vpop.f32.mrb[0].mxu0
  %v3124 = vadd.f32 0.0, %v3123
  %3125 = vdwg.mxu0
  %v3126 = vadd.f32 %v3022, %v3116
  %v3127 = vadd.f32 %v3023, %v3118
  %v3128 = vadd.f32 %v3024, %v3122
  %v3129 = vadd.f32 %v3025, %v3124
  %3130 = vrot.lane.b32.xlu0 %v11, 114
  %v3131 = vpop.permute.xlu0 %3130
  %3132 = vrot.lane.b32.xlu0 %v12, 114
  %v3133 = vpop.permute.xlu0 %3132
  %vm3134 = vcmp.lt.s32.totalorder %v14, 114
  %v3135 = vsel %vm3134, %v3131, %v3133
  %v3136 = vsel %vm3134, %v3133, %v3131
  %vm3137 = vmand %vm56, %vm88
  %vm3138 = vmand %vm57, %vm89
  %v3139 = vsel %vm3137, 1, 0
  %v3140 = vsel %vm3138, 1, 0
  %vm3141 = vcmp.eq.s32.totalorder %v3139, 1
  %vm3142 = vcmp.eq.s32.totalorder %v3140, 1
  %v3143 = vsel %vm3141, %v3135, 0.0
  %v3144 = vsel %vm3142, %v3136, 0.0
  %3145 = vrot.lane.b32.xlu0 %v1800, 24
  %v3146 = vpop.permute.xlu0 %3145
  %3147 = vrot.lane.b32.xlu0 %v1801, 24
  %v3148 = vpop.permute.xlu0 %3147
  %v3149 = vsel %vm166, %v3146, 0
  %v3151 = vsel %vm166, %v3148, 0
  %3153 = vmatprep.subr.mxu0 %v3144
  %3154 = vmatpush1.msra.mxu0 %v3143
  %3155 = vmatprep.subr.mxu0 0.0
  %3156 = vmatpush1.msra.mxu0 0.0
  %3157 = vmatprep.subr.mxu0 0.0
  %3158 = vmatpush1.msra.mxu0 0.0
  %3159 = vmatprep.subr.mxu0 0.0
  %3160 = vmatpush1.msra.mxu0 0.0
  %3161 = vmatprep.subr.mxu0 0.0
  %3162 = vmatpush1.msra.mxu0 0.0
  %3163 = vmatprep.subr.mxu0 0.0
  %3164 = vmatpush1.msra.mxu0 0.0
  %3165 = vmatprep.subr.mxu0 0.0
  %3166 = vmatpush1.msra.mxu0 0.0
  %3167 = vmatprep.subr.mxu0 0.0
  %3168 = vmatpush1.msra.mxu0 0.0
  %3169 = vmatprep.subr.mxu0 0.0
  %3170 = vmatpush1.msra.mxu0 0.0
  %3171 = vmatprep.subr.mxu0 0.0
  %3172 = vmatpush1.msra.mxu0 0.0
  %3173 = vmatprep.subr.mxu0 0.0
  %3174 = vmatpush1.msra.mxu0 0.0
  %3175 = vmatprep.subr.mxu0 0.0
  %3176 = vmatpush1.msra.mxu0 0.0
  %3177 = vmatprep.subr.mxu0 0.0
  %3178 = vmatpush1.msra.mxu0 0.0
  %3179 = vmatprep.subr.mxu0 0.0
  %3180 = vmatpush1.msra.mxu0 0.0
  %3181 = vmatprep.subr.mxu0 0.0
  %3182 = vmatpush1.msra.mxu0 0.0
  %3183 = vmatprep.subr.mxu0 0.0
  %3184 = vmatpush1.msra.mxu0 0.0
  %3185 = vmatprep.subr.mxu0 0.0
  %3186 = vmatpush1.msra.mxu0 0.0
  %3187 = vmatprep.subr.mxu0 0.0
  %3188 = vmatpush1.msra.mxu0 0.0
  %3189 = vmatprep.subr.mxu0 0.0
  %3190 = vmatpush1.msra.mxu0 0.0
  %3191 = vmatprep.subr.mxu0 0.0
  %3192 = vmatpush1.msra.mxu0 0.0
  %3193 = vmatprep.subr.mxu0 0.0
  %3194 = vmatpush1.msra.mxu0 0.0
  %3195 = vmatprep.subr.mxu0 0.0
  %3196 = vmatpush1.msra.mxu0 0.0
  %3197 = vmatprep.subr.mxu0 0.0
  %3198 = vmatpush1.msra.mxu0 0.0
  %3199 = vmatprep.subr.mxu0 0.0
  %3200 = vmatpush1.msra.mxu0 0.0
  %3201 = vmatprep.subr.mxu0 0.0
  %3202 = vmatpush1.msra.mxu0 0.0
  %3203 = vmatprep.subr.mxu0 0.0
  %3204 = vmatpush1.msra.mxu0 0.0
  %3205 = vmatprep.subr.mxu0 0.0
  %3206 = vmatpush1.msra.mxu0 0.0
  %3207 = vmatprep.subr.mxu0 0.0
  %3208 = vmatpush1.msra.mxu0 0.0
  %3209 = vmatprep.subr.mxu0 0.0
  %3210 = vmatpush1.msra.mxu0 0.0
  %3211 = vmatprep.subr.mxu0 0.0
  %3212 = vmatpush1.msra.mxu0 0.0
  %3213 = vmatprep.subr.mxu0 0.0
  %3214 = vmatpush1.msra.mxu0 0.0
  %3215 = vmatprep.subr.mxu0 0.0
  %3216 = vmatpush1.msra.mxu0 0.0
  %3217 = vmatprep.mubr.f32.mxu0 0.0
  %3218 = vmatmul.mubr.f32.gmra.mrb[0].mxu0 %v3149
  %v3219 = vpop.f32.mrb[0].mxu0
  %v3220 = vadd.f32 0.0, %v3219
  %v3221 = vpop.f32.mrb[0].mxu0
  %v3222 = vadd.f32 0.0, %v3221
  %3223 = vmatprep.mubr.f32.mxu0 0.0
  %3224 = vmatmul.mubr.f32.gmra.mrb[0].mxu0 %v3151
  %v3225 = vpop.f32.mrb[0].mxu0
  %v3226 = vadd.f32 0.0, %v3225
  %v3227 = vpop.f32.mrb[0].mxu0
  %v3228 = vadd.f32 0.0, %v3227
  %3229 = vdwg.mxu0
  %v3230 = vadd.f32 %v3126, %v3220
  %v3231 = vadd.f32 %v3127, %v3222
  %v3232 = vadd.f32 %v3128, %v3226
  %v3233 = vadd.f32 %v3129, %v3228
  %3234 = vrot.lane.b32.xlu0 %v11, 113
  %v3235 = vpop.permute.xlu0 %3234
  %3236 = vrot.lane.b32.xlu0 %v12, 113
  %v3237 = vpop.permute.xlu0 %3236
  %vm3238 = vcmp.lt.s32.totalorder %v14, 113
  %v3239 = vsel %vm3238, %v3235, %v3237
  %v3240 = vsel %vm3238, %v3237, %v3235
  %vm3241 = vmand %vm56, %vm96
  %vm3242 = vmand %vm57, %vm97
  %v3243 = vsel %vm3241, 1, 0
  %v3244 = vsel %vm3242, 1, 0
  %vm3245 = vcmp.eq.s32.totalorder %v3243, 1
  %vm3246 = vcmp.eq.s32.totalorder %v3244, 1
  %v3247 = vsel %vm3245, %v3239, 0.0
  %v3248 = vsel %vm3246, %v3240, 0.0
  %3249 = vrot.lane.b32.xlu0 %v1800, 16
  %v3250 = vpop.permute.xlu0 %3249
  %3251 = vrot.lane.b32.xlu0 %v1801, 16
  %v3252 = vpop.permute.xlu0 %3251
  %v3253 = vsel %vm166, %v3250, 0
  %v3255 = vsel %vm166, %v3252, 0
  %3257 = vmatprep.subr.mxu0 %v3248
  %3258 = vmatpush1.msra.mxu0 %v3247
  %3259 = vmatprep.subr.mxu0 0.0
  %3260 = vmatpush1.msra.mxu0 0.0
  %3261 = vmatprep.subr.mxu0 0.0
  %3262 = vmatpush1.msra.mxu0 0.0
  %3263 = vmatprep.subr.mxu0 0.0
  %3264 = vmatpush1.msra.mxu0 0.0
  %3265 = vmatprep.subr.mxu0 0.0
  %3266 = vmatpush1.msra.mxu0 0.0
  %3267 = vmatprep.subr.mxu0 0.0
  %3268 = vmatpush1.msra.mxu0 0.0
  %3269 = vmatprep.subr.mxu0 0.0
  %3270 = vmatpush1.msra.mxu0 0.0
  %3271 = vmatprep.subr.mxu0 0.0
  %3272 = vmatpush1.msra.mxu0 0.0
  %3273 = vmatprep.subr.mxu0 0.0
  %3274 = vmatpush1.msra.mxu0 0.0
  %3275 = vmatprep.subr.mxu0 0.0
  %3276 = vmatpush1.msra.mxu0 0.0
  %3277 = vmatprep.subr.mxu0 0.0
  %3278 = vmatpush1.msra.mxu0 0.0
  %3279 = vmatprep.subr.mxu0 0.0
  %3280 = vmatpush1.msra.mxu0 0.0
  %3281 = vmatprep.subr.mxu0 0.0
  %3282 = vmatpush1.msra.mxu0 0.0
  %3283 = vmatprep.subr.mxu0 0.0
  %3284 = vmatpush1.msra.mxu0 0.0
  %3285 = vmatprep.subr.mxu0 0.0
  %3286 = vmatpush1.msra.mxu0 0.0
  %3287 = vmatprep.subr.mxu0 0.0
  %3288 = vmatpush1.msra.mxu0 0.0
  %3289 = vmatprep.subr.mxu0 0.0
  %3290 = vmatpush1.msra.mxu0 0.0
  %3291 = vmatprep.subr.mxu0 0.0
  %3292 = vmatpush1.msra.mxu0 0.0
  %3293 = vmatprep.subr.mxu0 0.0
  %3294 = vmatpush1.msra.mxu0 0.0
  %3295 = vmatprep.subr.mxu0 0.0
  %3296 = vmatpush1.msra.mxu0 0.0
  %3297 = vmatprep.subr.mxu0 0.0
  %3298 = vmatpush1.msra.mxu0 0.0
  %3299 = vmatprep.subr.mxu0 0.0
  %3300 = vmatpush1.msra.mxu0 0.0
  %3301 = vmatprep.subr.mxu0 0.0
  %3302 = vmatpush1.msra.mxu0 0.0
  %3303 = vmatprep.subr.mxu0 0.0
  %3304 = vmatpush1.msra.mxu0 0.0
  %3305 = vmatprep.subr.mxu0 0.0
  %3306 = vmatpush1.msra.mxu0 0.0
  %3307 = vmatprep.subr.mxu0 0.0
  %3308 = vmatpush1.msra.mxu0 0.0
  %3309 = vmatprep.subr.mxu0 0.0
  %3310 = vmatpush1.msra.mxu0 0.0
  %3311 = vmatprep.subr.mxu0 0.0
  %3312 = vmatpush1.msra.mxu0 0.0
  %3313 = vmatprep.subr.mxu0 0.0
  %3314 = vmatpush1.msra.mxu0 0.0
  %3315 = vmatprep.subr.mxu0 0.0
  %3316 = vmatpush1.msra.mxu0 0.0
  %3317 = vmatprep.subr.mxu0 0.0
  %3318 = vmatpush1.msra.mxu0 0.0
  %3319 = vmatprep.subr.mxu0 0.0
  %3320 = vmatpush1.msra.mxu0 0.0
  %3321 = vmatprep.mubr.f32.mxu0 0.0
  %3322 = vmatmul.mubr.f32.gmra.mrb[0].mxu0 %v3253
  %v3323 = vpop.f32.mrb[0].mxu0
  %v3324 = vadd.f32 0.0, %v3323
  %v3325 = vpop.f32.mrb[0].mxu0
  %v3326 = vadd.f32 0.0, %v3325
  %3327 = vmatprep.mubr.f32.mxu0 0.0
  %3328 = vmatmul.mubr.f32.gmra.mrb[0].mxu0 %v3255
  %v3329 = vpop.f32.mrb[0].mxu0
  %v3330 = vadd.f32 0.0, %v3329
  %v3331 = vpop.f32.mrb[0].mxu0
  %v3332 = vadd.f32 0.0, %v3331
  %3333 = vdwg.mxu0
  %v3334 = vadd.f32 %v3230, %v3324
  %v3335 = vadd.f32 %v3231, %v3326
  %v3336 = vadd.f32 %v3232, %v3330
  %v3337 = vadd.f32 %v3233, %v3332
  %3338 = vrot.lane.b32.xlu0 %v11, 112
  %v3339 = vpop.permute.xlu0 %3338
  %3340 = vrot.lane.b32.xlu0 %v12, 112
  %v3341 = vpop.permute.xlu0 %3340
  %vm3342 = vcmp.lt.s32.totalorder %v14, 112
  %v3343 = vsel %vm3342, %v3339, %v3341
  %v3344 = vsel %vm3342, %v3341, %v3339
  %vm3345 = vmand %vm56, %vm102
  %vm3346 = vmand %vm57, %vm103
  %v3347 = vsel %vm3345, 1, 0
  %v3348 = vsel %vm3346, 1, 0
  %vm3349 = vcmp.eq.s32.totalorder %v3347, 1
  %vm3350 = vcmp.eq.s32.totalorder %v3348, 1
  %v3351 = vsel %vm3349, %v3343, 0.0
  %v3352 = vsel %vm3350, %v3344, 0.0
  %3353 = vrot.lane.b32.xlu0 %v1800, 8
  %v3354 = vpop.permute.xlu0 %3353
  %3355 = vrot.lane.b32.xlu0 %v1801, 8
  %v3356 = vpop.permute.xlu0 %3355
  %v3357 = vsel %vm166, %v3354, 0
  %v3359 = vsel %vm166, %v3356, 0
  %3361 = vmatprep.subr.mxu0 %v3352
  %3362 = vmatpush1.msra.mxu0 %v3351
  %3363 = vmatprep.subr.mxu0 0.0
  %3364 = vmatpush1.msra.mxu0 0.0
  %3365 = vmatprep.subr.mxu0 0.0
  %3366 = vmatpush1.msra.mxu0 0.0
  %3367 = vmatprep.subr.mxu0 0.0
  %3368 = vmatpush1.msra.mxu0 0.0
  %3369 = vmatprep.subr.mxu0 0.0
  %3370 = vmatpush1.msra.mxu0 0.0
  %3371 = vmatprep.subr.mxu0 0.0
  %3372 = vmatpush1.msra.mxu0 0.0
  %3373 = vmatprep.subr.mxu0 0.0
  %3374 = vmatpush1.msra.mxu0 0.0
  %3375 = vmatprep.subr.mxu0 0.0
  %3376 = vmatpush1.msra.mxu0 0.0
  %3377 = vmatprep.subr.mxu0 0.0
  %3378 = vmatpush1.msra.mxu0 0.0
  %3379 = vmatprep.subr.mxu0 0.0
  %3380 = vmatpush1.msra.mxu0 0.0
  %3381 = vmatprep.subr.mxu0 0.0
  %3382 = vmatpush1.msra.mxu0 0.0
  %3383 = vmatprep.subr.mxu0 0.0
  %3384 = vmatpush1.msra.mxu0 0.0
  %3385 = vmatprep.subr.mxu0 0.0
  %3386 = vmatpush1.msra.mxu0 0.0
  %3387 = vmatprep.subr.mxu0 0.0
  %3388 = vmatpush1.msra.mxu0 0.0
  %3389 = vmatprep.subr.mxu0 0.0
  %3390 = vmatpush1.msra.mxu0 0.0
  %3391 = vmatprep.subr.mxu0 0.0
  %3392 = vmatpush1.msra.mxu0 0.0
  %3393 = vmatprep.subr.mxu0 0.0
  %3394 = vmatpush1.msra.mxu0 0.0
  %3395 = vmatprep.subr.mxu0 0.0
  %3396 = vmatpush1.msra.mxu0 0.0
  %3397 = vmatprep.subr.mxu0 0.0
  %3398 = vmatpush1.msra.mxu0 0.0
  %3399 = vmatprep.subr.mxu0 0.0
  %3400 = vmatpush1.msra.mxu0 0.0
  %3401 = vmatprep.subr.mxu0 0.0
  %3402 = vmatpush1.msra.mxu0 0.0
  %3403 = vmatprep.subr.mxu0 0.0
  %3404 = vmatpush1.msra.mxu0 0.0
  %3405 = vmatprep.subr.mxu0 0.0
  %3406 = vmatpush1.msra.mxu0 0.0
  %3407 = vmatprep.subr.mxu0 0.0
  %3408 = vmatpush1.msra.mxu0 0.0
  %3409 = vmatprep.subr.mxu0 0.0
  %3410 = vmatpush1.msra.mxu0 0.0
  %3411 = vmatprep.subr.mxu0 0.0
  %3412 = vmatpush1.msra.mxu0 0.0
  %3413 = vmatprep.subr.mxu0 0.0
  %3414 = vmatpush1.msra.mxu0 0.0
  %3415 = vmatprep.subr.mxu0 0.0
  %3416 = vmatpush1.msra.mxu0 0.0
  %3417 = vmatprep.subr.mxu0 0.0
  %3418 = vmatpush1.msra.mxu0 0.0
  %3419 = vmatprep.subr.mxu0 0.0
  %3420 = vmatpush1.msra.mxu0 0.0
  %3421 = vmatprep.subr.mxu0 0.0
  %3422 = vmatpush1.msra.mxu0 0.0
  %3423 = vmatprep.subr.mxu0 0.0
  %3424 = vmatpush1.msra.mxu0 0.0
  %3425 = vmatprep.mubr.f32.mxu0 0.0
  %3426 = vmatmul.mubr.f32.gmra.mrb[0].mxu0 %v3357
  %v3427 = vpop.f32.mrb[0].mxu0
  %v3428 = vadd.f32 0.0, %v3427
  %v3429 = vpop.f32.mrb[0].mxu0
  %v3430 = vadd.f32 0.0, %v3429
  %3431 = vmatprep.mubr.f32.mxu0 0.0
  %3432 = vmatmul.mubr.f32.gmra.mrb[0].mxu0 %v3359
  %v3433 = vpop.f32.mrb[0].mxu0
  %v3434 = vadd.f32 0.0, %v3433
  %v3435 = vpop.f32.mrb[0].mxu0
  %v3436 = vadd.f32 0.0, %v3435
  %3437 = vdwg.mxu0
  %v3438 = vadd.f32 %v3334, %v3428
  %v3439 = vadd.f32 %v3335, %v3430
  %v3440 = vadd.f32 %v3336, %v3434
  %v3441 = vadd.f32 %v3337, %v3436
  %3442 = vrot.lane.b32.xlu0 %v11, 111
  %v3443 = vpop.permute.xlu0 %3442
  %3444 = vrot.lane.b32.xlu0 %v12, 111
  %v3445 = vpop.permute.xlu0 %3444
  %vm3446 = vcmp.lt.s32.totalorder %v14, 111
  %v3447 = vsel %vm3446, %v3443, %v3445
  %v3448 = vsel %vm3446, %v3445, %v3443
  %vm3449 = vmand %vm56, %vm110
  %vm3450 = vmand %vm57, %vm111
  %v3451 = vsel %vm3449, 1, 0
  %v3452 = vsel %vm3450, 1, 0
  %vm3453 = vcmp.eq.s32.totalorder %v3451, 1
  %vm3454 = vcmp.eq.s32.totalorder %v3452, 1
  %v3455 = vsel %vm3453, %v3447, 0.0
  %v3456 = vsel %vm3454, %v3448, 0.0
  %v3457 = vld [vmem:[%s1 + $0x10] sm:$0xff]
  %v3458 = vld [vmem:[%s1 + $0x30] sm:$0xff]
  %v3460 = vsel %vm166, %v3457, 0
  %v3463 = vsel %vm166, %v3458, 0
  %3465 = vmatprep.subr.mxu0 %v3456
  %3466 = vmatpush1.msra.mxu0 %v3455
  %3467 = vmatprep.subr.mxu0 0.0
  %3468 = vmatpush1.msra.mxu0 0.0
  %3469 = vmatprep.subr.mxu0 0.0
  %3470 = vmatpush1.msra.mxu0 0.0
  %3471 = vmatprep.subr.mxu0 0.0
  %3472 = vmatpush1.msra.mxu0 0.0
  %3473 = vmatprep.subr.mxu0 0.0
  %3474 = vmatpush1.msra.mxu0 0.0
  %3475 = vmatprep.subr.mxu0 0.0
  %3476 = vmatpush1.msra.mxu0 0.0
  %3477 = vmatprep.subr.mxu0 0.0
  %3478 = vmatpush1.msra.mxu0 0.0
  %3479 = vmatprep.subr.mxu0 0.0
  %3480 = vmatpush1.msra.mxu0 0.0
  %3481 = vmatprep.subr.mxu0 0.0
  %3482 = vmatpush1.msra.mxu0 0.0
  %3483 = vmatprep.subr.mxu0 0.0
  %3484 = vmatpush1.msra.mxu0 0.0
  %3485 = vmatprep.subr.mxu0 0.0
  %3486 = vmatpush1.msra.mxu0 0.0
  %3487 = vmatprep.subr.mxu0 0.0
  %3488 = vmatpush1.msra.mxu0 0.0
  %3489 = vmatprep.subr.mxu0 0.0
  %3490 = vmatpush1.msra.mxu0 0.0
  %3491 = vmatprep.subr.mxu0 0.0
  %3492 = vmatpush1.msra.mxu0 0.0
  %3493 = vmatprep.subr.mxu0 0.0
  %3494 = vmatpush1.msra.mxu0 0.0
  %3495 = vmatprep.subr.mxu0 0.0
  %3496 = vmatpush1.msra.mxu0 0.0
  %3497 = vmatprep.subr.mxu0 0.0
  %3498 = vmatpush1.msra.mxu0 0.0
  %3499 = vmatprep.subr.mxu0 0.0
  %3500 = vmatpush1.msra.mxu0 0.0
  %3501 = vmatprep.subr.mxu0 0.0
  %3502 = vmatpush1.msra.mxu0 0.0
  %3503 = vmatprep.subr.mxu0 0.0
  %3504 = vmatpush1.msra.mxu0 0.0
  %3505 = vmatprep.subr.mxu0 0.0
  %3506 = vmatpush1.msra.mxu0 0.0
  %3507 = vmatprep.subr.mxu0 0.0
  %3508 = vmatpush1.msra.mxu0 0.0
  %3509 = vmatprep.subr.mxu0 0.0
  %3510 = vmatpush1.msra.mxu0 0.0
  %3511 = vmatprep.subr.mxu0 0.0
  %3512 = vmatpush1.msra.mxu0 0.0
  %3513 = vmatprep.subr.mxu0 0.0
  %3514 = vmatpush1.msra.mxu0 0.0
  %3515 = vmatprep.subr.mxu0 0.0
  %3516 = vmatpush1.msra.mxu0 0.0
  %3517 = vmatprep.subr.mxu0 0.0
  %3518 = vmatpush1.msra.mxu0 0.0
  %3519 = vmatprep.subr.mxu0 0.0
  %3520 = vmatpush1.msra.mxu0 0.0
  %3521 = vmatprep.subr.mxu0 0.0
  %3522 = vmatpush1.msra.mxu0 0.0
  %3523 = vmatprep.subr.mxu0 0.0
  %3524 = vmatpush1.msra.mxu0 0.0
  %3525 = vmatprep.subr.mxu0 0.0
  %3526 = vmatpush1.msra.mxu0 0.0
  %3527 = vmatprep.subr.mxu0 0.0
  %3528 = vmatpush1.msra.mxu0 0.0
  %3529 = vmatprep.mubr.f32.mxu0 0.0
  %3530 = vmatmul.mubr.f32.gmra.mrb[0].mxu0 %v3460
  %v3531 = vpop.f32.mrb[0].mxu0
  %v3532 = vadd.f32 0.0, %v3531
  %v3533 = vpop.f32.mrb[0].mxu0
  %v3534 = vadd.f32 0.0, %v3533
  %3535 = vmatprep.mubr.f32.mxu0 0.0
  %3536 = vmatmul.mubr.f32.gmra.mrb[0].mxu0 %v3463
  %v3537 = vpop.f32.mrb[0].mxu0
  %v3538 = vadd.f32 0.0, %v3537
  %v3539 = vpop.f32.mrb[0].mxu0
  %v3540 = vadd.f32 0.0, %v3539
  %3541 = vdwg.mxu0
  %v3542 = vadd.f32 %v3438, %v3532
  %v3543 = vadd.f32 %v3439, %v3534
  %v3544 = vadd.f32 %v3440, %v3538
  %v3545 = vadd.f32 %v3441, %v3540
  %3546 = vrot.lane.b32.xlu0 %v11, 110
  %v3547 = vpop.permute.xlu0 %3546
  %3548 = vrot.lane.b32.xlu0 %v12, 110
  %v3549 = vpop.permute.xlu0 %3548
  %vm3550 = vcmp.lt.s32.totalorder %v14, 110
  %v3551 = vsel %vm3550, %v3547, %v3549
  %v3552 = vsel %vm3550, %v3549, %v3547
  %vm3553 = vmand %vm56, %vm118
  %vm3554 = vmand %vm57, %vm119
  %v3555 = vsel %vm3553, 1, 0
  %v3556 = vsel %vm3554, 1, 0
  %vm3557 = vcmp.eq.s32.totalorder %v3555, 1
  %vm3558 = vcmp.eq.s32.totalorder %v3556, 1
  %v3559 = vsel %vm3557, %v3551, 0.0
  %v3560 = vsel %vm3558, %v3552, 0.0
  %3561 = vrot.lane.b32.xlu0 %v3457, 120
  %v3562 = vpop.permute.xlu0 %3561
  %3563 = vrot.lane.b32.xlu0 %v3458, 120
  %v3564 = vpop.permute.xlu0 %3563
  %v3565 = vsel %vm166, %v3562, 0
  %v3567 = vsel %vm166, %v3564, 0
  %3569 = vmatprep.subr.mxu0 %v3560
  %3570 = vmatpush1.msra.mxu0 %v3559
  %3571 = vmatprep.subr.mxu0 0.0
  %3572 = vmatpush1.msra.mxu0 0.0
  %3573 = vmatprep.subr.mxu0 0.0
  %3574 = vmatpush1.msra.mxu0 0.0
  %3575 = vmatprep.subr.mxu0 0.0
  %3576 = vmatpush1.msra.mxu0 0.0
  %3577 = vmatprep.subr.mxu0 0.0
  %3578 = vmatpush1.msra.mxu0 0.0
  %3579 = vmatprep.subr.mxu0 0.0
  %3580 = vmatpush1.msra.mxu0 0.0
  %3581 = vmatprep.subr.mxu0 0.0
  %3582 = vmatpush1.msra.mxu0 0.0
  %3583 = vmatprep.subr.mxu0 0.0
  %3584 = vmatpush1.msra.mxu0 0.0
  %3585 = vmatprep.subr.mxu0 0.0
  %3586 = vmatpush1.msra.mxu0 0.0
  %3587 = vmatprep.subr.mxu0 0.0
  %3588 = vmatpush1.msra.mxu0 0.0
  %3589 = vmatprep.subr.mxu0 0.0
  %3590 = vmatpush1.msra.mxu0 0.0
  %3591 = vmatprep.subr.mxu0 0.0
  %3592 = vmatpush1.msra.mxu0 0.0
  %3593 = vmatprep.subr.mxu0 0.0
  %3594 = vmatpush1.msra.mxu0 0.0
  %3595 = vmatprep.subr.mxu0 0.0
  %3596 = vmatpush1.msra.mxu0 0.0
  %3597 = vmatprep.subr.mxu0 0.0
  %3598 = vmatpush1.msra.mxu0 0.0
  %3599 = vmatprep.subr.mxu0 0.0
  %3600 = vmatpush1.msra.mxu0 0.0
  %3601 = vmatprep.subr.mxu0 0.0
  %3602 = vmatpush1.msra.mxu0 0.0
  %3603 = vmatprep.subr.mxu0 0.0
  %3604 = vmatpush1.msra.mxu0 0.0
  %3605 = vmatprep.subr.mxu0 0.0
  %3606 = vmatpush1.msra.mxu0 0.0
  %3607 = vmatprep.subr.mxu0 0.0
  %3608 = vmatpush1.msra.mxu0 0.0
  %3609 = vmatprep.subr.mxu0 0.0
  %3610 = vmatpush1.msra.mxu0 0.0
  %3611 = vmatprep.subr.mxu0 0.0
  %3612 = vmatpush1.msra.mxu0 0.0
  %3613 = vmatprep.subr.mxu0 0.0
  %3614 = vmatpush1.msra.mxu0 0.0
  %3615 = vmatprep.subr.mxu0 0.0
  %3616 = vmatpush1.msra.mxu0 0.0
  %3617 = vmatprep.subr.mxu0 0.0
  %3618 = vmatpush1.msra.mxu0 0.0
  %3619 = vmatprep.subr.mxu0 0.0
  %3620 = vmatpush1.msra.mxu0 0.0
  %3621 = vmatprep.subr.mxu0 0.0
  %3622 = vmatpush1.msra.mxu0 0.0
  %3623 = vmatprep.subr.mxu0 0.0
  %3624 = vmatpush1.msra.mxu0 0.0
  %3625 = vmatprep.subr.mxu0 0.0
  %3626 = vmatpush1.msra.mxu0 0.0
  %3627 = vmatprep.subr.mxu0 0.0
  %3628 = vmatpush1.msra.mxu0 0.0
  %3629 = vmatprep.subr.mxu0 0.0
  %3630 = vmatpush1.msra.mxu0 0.0
  %3631 = vmatprep.subr.mxu0 0.0
  %3632 = vmatpush1.msra.mxu0 0.0
  %3633 = vmatprep.mubr.f32.mxu0 0.0
  %3634 = vmatmul.mubr.f32.gmra.mrb[0].mxu0 %v3565
  %v3635 = vpop.f32.mrb[0].mxu0
  %v3636 = vadd.f32 0.0, %v3635
  %v3637 = vpop.f32.mrb[0].mxu0
  %v3638 = vadd.f32 0.0, %v3637
  %3639 = vmatprep.mubr.f32.mxu0 0.0
  %3640 = vmatmul.mubr.f32.gmra.mrb[0].mxu0 %v3567
  %v3641 = vpop.f32.mrb[0].mxu0
  %v3642 = vadd.f32 0.0, %v3641
  %v3643 = vpop.f32.mrb[0].mxu0
  %v3644 = vadd.f32 0.0, %v3643
  %3645 = vdwg.mxu0
  %v3646 = vadd.f32 %v3542, %v3636
  %v3647 = vadd.f32 %v3543, %v3638
  %v3648 = vadd.f32 %v3544, %v3642
  %v3649 = vadd.f32 %v3545, %v3644
  %3650 = vrot.lane.b32.xlu0 %v11, 109
  %v3651 = vpop.permute.xlu0 %3650
  %3652 = vrot.lane.b32.xlu0 %v12, 109
  %v3653 = vpop.permute.xlu0 %3652
  %vm3654 = vcmp.lt.s32.totalorder %v14, 109
  %v3655 = vsel %vm3654, %v3651, %v3653
  %v3656 = vsel %vm3654, %v3653, %v3651
  %vm3657 = vmand %vm56, %vm126
  %vm3658 = vmand %vm57, %vm127
  %v3659 = vsel %vm3657, 1, 0
  %v3660 = vsel %vm3658, 1, 0
  %vm3661 = vcmp.eq.s32.totalorder %v3659, 1
  %vm3662 = vcmp.eq.s32.totalorder %v3660, 1
  %v3663 = vsel %vm3661, %v3655, 0.0
  %v3664 = vsel %vm3662, %v3656, 0.0
  %3665 = vrot.lane.b32.xlu0 %v3457, 112
  %v3666 = vpop.permute.xlu0 %3665
  %3667 = vrot.lane.b32.xlu0 %v3458, 112
  %v3668 = vpop.permute.xlu0 %3667
  %v3669 = vsel %vm166, %v3666, 0
  %v3671 = vsel %vm166, %v3668, 0
  %3673 = vmatprep.subr.mxu0 %v3664
  %3674 = vmatpush1.msra.mxu0 %v3663
  %3675 = vmatprep.subr.mxu0 0.0
  %3676 = vmatpush1.msra.mxu0 0.0
  %3677 = vmatprep.subr.mxu0 0.0
  %3678 = vmatpush1.msra.mxu0 0.0
  %3679 = vmatprep.subr.mxu0 0.0
  %3680 = vmatpush1.msra.mxu0 0.0
  %3681 = vmatprep.subr.mxu0 0.0
  %3682 = vmatpush1.msra.mxu0 0.0
  %3683 = vmatprep.subr.mxu0 0.0
  %3684 = vmatpush1.msra.mxu0 0.0
  %3685 = vmatprep.subr.mxu0 0.0
  %3686 = vmatpush1.msra.mxu0 0.0
  %3687 = vmatprep.subr.mxu0 0.0
  %3688 = vmatpush1.msra.mxu0 0.0
  %3689 = vmatprep.subr.mxu0 0.0
  %3690 = vmatpush1.msra.mxu0 0.0
  %3691 = vmatprep.subr.mxu0 0.0
  %3692 = vmatpush1.msra.mxu0 0.0
  %3693 = vmatprep.subr.mxu0 0.0
  %3694 = vmatpush1.msra.mxu0 0.0
  %3695 = vmatprep.subr.mxu0 0.0
  %3696 = vmatpush1.msra.mxu0 0.0
  %3697 = vmatprep.subr.mxu0 0.0
  %3698 = vmatpush1.msra.mxu0 0.0
  %3699 = vmatprep.subr.mxu0 0.0
  %3700 = vmatpush1.msra.mxu0 0.0
  %3701 = vmatprep.subr.mxu0 0.0
  %3702 = vmatpush1.msra.mxu0 0.0
  %3703 = vmatprep.subr.mxu0 0.0
  %3704 = vmatpush1.msra.mxu0 0.0
  %3705 = vmatprep.subr.mxu0 0.0
  %3706 = vmatpush1.msra.mxu0 0.0
  %3707 = vmatprep.subr.mxu0 0.0
  %3708 = vmatpush1.msra.mxu0 0.0
  %3709 = vmatprep.subr.mxu0 0.0
  %3710 = vmatpush1.msra.mxu0 0.0
  %3711 = vmatprep.subr.mxu0 0.0
  %3712 = vmatpush1.msra.mxu0 0.0
  %3713 = vmatprep.subr.mxu0 0.0
  %3714 = vmatpush1.msra.mxu0 0.0
  %3715 = vmatprep.subr.mxu0 0.0
  %3716 = vmatpush1.msra.mxu0 0.0
  %3717 = vmatprep.subr.mxu0 0.0
  %3718 = vmatpush1.msra.mxu0 0.0
  %3719 = vmatprep.subr.mxu0 0.0
  %3720 = vmatpush1.msra.mxu0 0.0
  %3721 = vmatprep.subr.mxu0 0.0
  %3722 = vmatpush1.msra.mxu0 0.0
  %3723 = vmatprep.subr.mxu0 0.0
  %3724 = vmatpush1.msra.mxu0 0.0
  %3725 = vmatprep.subr.mxu0 0.0
  %3726 = vmatpush1.msra.mxu0 0.0
  %3727 = vmatprep.subr.mxu0 0.0
  %3728 = vmatpush1.msra.mxu0 0.0
  %3729 = vmatprep.subr.mxu0 0.0
  %3730 = vmatpush1.msra.mxu0 0.0
  %3731 = vmatprep.subr.mxu0 0.0
  %3732 = vmatpush1.msra.mxu0 0.0
  %3733 = vmatprep.subr.mxu0 0.0
  %3734 = vmatpush1.msra.mxu0 0.0
  %3735 = vmatprep.subr.mxu0 0.0
  %3736 = vmatpush1.msra.mxu0 0.0
  %3737 = vmatprep.mubr.f32.mxu0 0.0
  %3738 = vmatmul.mubr.f32.gmra.mrb[0].mxu0 %v3669
  %v3739 = vpop.f32.mrb[0].mxu0
  %v3740 = vadd.f32 0.0, %v3739
  %v3741 = vpop.f32.mrb[0].mxu0
  %v3742 = vadd.f32 0.0, %v3741
  %3743 = vmatprep.mubr.f32.mxu0 0.0
  %3744 = vmatmul.mubr.f32.gmra.mrb[0].mxu0 %v3671
  %v3745 = vpop.f32.mrb[0].mxu0
  %v3746 = vadd.f32 0.0, %v3745
  %v3747 = vpop.f32.mrb[0].mxu0
  %v3748 = vadd.f32 0.0, %v3747
  %3749 = vdwg.mxu0
  %v3750 = vadd.f32 %v3646, %v3740
  %v3751 = vadd.f32 %v3647, %v3742
  %v3752 = vadd.f32 %v3648, %v3746
  %v3753 = vadd.f32 %v3649, %v3748
  %3754 = vrot.lane.b32.xlu0 %v11, 99
  %v3755 = vpop.permute.xlu0 %3754
  %3756 = vrot.lane.b32.xlu0 %v12, 99
  %v3757 = vpop.permute.xlu0 %3756
  %vm3758 = vcmp.lt.s32.totalorder %v14, 99
  %v3759 = vsel %vm3758, %v3755, %v3757
  %v3760 = vsel %vm3758, %v3757, %v3755
  %vm3761 = vmand %vm64, %vm80
  %vm3762 = vmand %vm65, %vm81
  %v3763 = vsel %vm3761, 1, 0
  %v3764 = vsel %vm3762, 1, 0
  %vm3765 = vcmp.eq.s32.totalorder %v3763, 1
  %vm3766 = vcmp.eq.s32.totalorder %v3764, 1
  %v3767 = vsel %vm3765, %v3759, 0.0
  %v3768 = vsel %vm3766, %v3760, 0.0
  %3769 = vrot.lane.b32.xlu0 %v3457, 104
  %v3770 = vpop.permute.xlu0 %3769
  %3771 = vrot.lane.b32.xlu0 %v3458, 104
  %v3772 = vpop.permute.xlu0 %3771
  %v3773 = vsel %vm166, %v3770, 0
  %v3775 = vsel %vm166, %v3772, 0
  %3777 = vmatprep.subr.mxu0 %v3768
  %3778 = vmatpush1.msra.mxu0 %v3767
  %3779 = vmatprep.subr.mxu0 0.0
  %3780 = vmatpush1.msra.mxu0 0.0
  %3781 = vmatprep.subr.mxu0 0.0
  %3782 = vmatpush1.msra.mxu0 0.0
  %3783 = vmatprep.subr.mxu0 0.0
  %3784 = vmatpush1.msra.mxu0 0.0
  %3785 = vmatprep.subr.mxu0 0.0
  %3786 = vmatpush1.msra.mxu0 0.0
  %3787 = vmatprep.subr.mxu0 0.0
  %3788 = vmatpush1.msra.mxu0 0.0
  %3789 = vmatprep.subr.mxu0 0.0
  %3790 = vmatpush1.msra.mxu0 0.0
  %3791 = vmatprep.subr.mxu0 0.0
  %3792 = vmatpush1.msra.mxu0 0.0
  %3793 = vmatprep.subr.mxu0 0.0
  %3794 = vmatpush1.msra.mxu0 0.0
  %3795 = vmatprep.subr.mxu0 0.0
  %3796 = vmatpush1.msra.mxu0 0.0
  %3797 = vmatprep.subr.mxu0 0.0
  %3798 = vmatpush1.msra.mxu0 0.0
  %3799 = vmatprep.subr.mxu0 0.0
  %3800 = vmatpush1.msra.mxu0 0.0
  %3801 = vmatprep.subr.mxu0 0.0
  %3802 = vmatpush1.msra.mxu0 0.0
  %3803 = vmatprep.subr.mxu0 0.0
  %3804 = vmatpush1.msra.mxu0 0.0
  %3805 = vmatprep.subr.mxu0 0.0
  %3806 = vmatpush1.msra.mxu0 0.0
  %3807 = vmatprep.subr.mxu0 0.0
  %3808 = vmatpush1.msra.mxu0 0.0
  %3809 = vmatprep.subr.mxu0 0.0
  %3810 = vmatpush1.msra.mxu0 0.0
  %3811 = vmatprep.subr.mxu0 0.0
  %3812 = vmatpush1.msra.mxu0 0.0
  %3813 = vmatprep.subr.mxu0 0.0
  %3814 = vmatpush1.msra.mxu0 0.0
  %3815 = vmatprep.subr.mxu0 0.0
  %3816 = vmatpush1.msra.mxu0 0.0
  %3817 = vmatprep.subr.mxu0 0.0
  %3818 = vmatpush1.msra.mxu0 0.0
  %3819 = vmatprep.subr.mxu0 0.0
  %3820 = vmatpush1.msra.mxu0 0.0
  %3821 = vmatprep.subr.mxu0 0.0
  %3822 = vmatpush1.msra.mxu0 0.0
  %3823 = vmatprep.subr.mxu0 0.0
  %3824 = vmatpush1.msra.mxu0 0.0
  %3825 = vmatprep.subr.mxu0 0.0
  %3826 = vmatpush1.msra.mxu0 0.0
  %3827 = vmatprep.subr.mxu0 0.0
  %3828 = vmatpush1.msra.mxu0 0.0
  %3829 = vmatprep.subr.mxu0 0.0
  %3830 = vmatpush1.msra.mxu0 0.0
  %3831 = vmatprep.subr.mxu0 0.0
  %3832 = vmatpush1.msra.mxu0 0.0
  %3833 = vmatprep.subr.mxu0 0.0
  %3834 = vmatpush1.msra.mxu0 0.0
  %3835 = vmatprep.subr.mxu0 0.0
  %3836 = vmatpush1.msra.mxu0 0.0
  %3837 = vmatprep.subr.mxu0 0.0
  %3838 = vmatpush1.msra.mxu0 0.0
  %3839 = vmatprep.subr.mxu0 0.0
  %3840 = vmatpush1.msra.mxu0 0.0
  %3841 = vmatprep.mubr.f32.mxu0 0.0
  %3842 = vmatmul.mubr.f32.gmra.mrb[0].mxu0 %v3773
  %v3843 = vpop.f32.mrb[0].mxu0
  %v3844 = vadd.f32 0.0, %v3843
  %v3845 = vpop.f32.mrb[0].mxu0
  %v3846 = vadd.f32 0.0, %v3845
  %3847 = vmatprep.mubr.f32.mxu0 0.0
  %3848 = vmatmul.mubr.f32.gmra.mrb[0].mxu0 %v3775
  %v3849 = vpop.f32.mrb[0].mxu0
  %v3850 = vadd.f32 0.0, %v3849
  %v3851 = vpop.f32.mrb[0].mxu0
  %v3852 = vadd.f32 0.0, %v3851
  %3853 = vdwg.mxu0
  %v3854 = vadd.f32 %v3750, %v3844
  %v3855 = vadd.f32 %v3751, %v3846
  %v3856 = vadd.f32 %v3752, %v3850
  %v3857 = vadd.f32 %v3753, %v3852
  %3858 = vrot.lane.b32.xlu0 %v11, 98
  %v3859 = vpop.permute.xlu0 %3858
  %3860 = vrot.lane.b32.xlu0 %v12, 98
  %v3861 = vpop.permute.xlu0 %3860
  %vm3862 = vcmp.lt.s32.totalorder %v14, 98
  %v3863 = vsel %vm3862, %v3859, %v3861
  %v3864 = vsel %vm3862, %v3861, %v3859
  %vm3865 = vmand %vm64, %vm88
  %vm3866 = vmand %vm65, %vm89
  %v3867 = vsel %vm3865, 1, 0
  %v3868 = vsel %vm3866, 1, 0
  %vm3869 = vcmp.eq.s32.totalorder %v3867, 1
  %vm3870 = vcmp.eq.s32.totalorder %v3868, 1
  %v3871 = vsel %vm3869, %v3863, 0.0
  %v3872 = vsel %vm3870, %v3864, 0.0
  %3873 = vrot.lane.b32.xlu0 %v3457, 96
  %v3874 = vpop.permute.xlu0 %3873
  %3875 = vrot.lane.b32.xlu0 %v3458, 96
  %v3876 = vpop.permute.xlu0 %3875
  %v3877 = vsel %vm166, %v3874, 0
  %v3879 = vsel %vm166, %v3876, 0
  %3881 = vmatprep.subr.mxu0 %v3872
  %3882 = vmatpush1.msra.mxu0 %v3871
  %3883 = vmatprep.subr.mxu0 0.0
  %3884 = vmatpush1.msra.mxu0 0.0
  %3885 = vmatprep.subr.mxu0 0.0
  %3886 = vmatpush1.msra.mxu0 0.0
  %3887 = vmatprep.subr.mxu0 0.0
  %3888 = vmatpush1.msra.mxu0 0.0
  %3889 = vmatprep.subr.mxu0 0.0
  %3890 = vmatpush1.msra.mxu0 0.0
  %3891 = vmatprep.subr.mxu0 0.0
  %3892 = vmatpush1.msra.mxu0 0.0
  %3893 = vmatprep.subr.mxu0 0.0
  %3894 = vmatpush1.msra.mxu0 0.0
  %3895 = vmatprep.subr.mxu0 0.0
  %3896 = vmatpush1.msra.mxu0 0.0
  %3897 = vmatprep.subr.mxu0 0.0
  %3898 = vmatpush1.msra.mxu0 0.0
  %3899 = vmatprep.subr.mxu0 0.0
  %3900 = vmatpush1.msra.mxu0 0.0
  %3901 = vmatprep.subr.mxu0 0.0
  %3902 = vmatpush1.msra.mxu0 0.0
  %3903 = vmatprep.subr.mxu0 0.0
  %3904 = vmatpush1.msra.mxu0 0.0
  %3905 = vmatprep.subr.mxu0 0.0
  %3906 = vmatpush1.msra.mxu0 0.0
  %3907 = vmatprep.subr.mxu0 0.0
  %3908 = vmatpush1.msra.mxu0 0.0
  %3909 = vmatprep.subr.mxu0 0.0
  %3910 = vmatpush1.msra.mxu0 0.0
  %3911 = vmatprep.subr.mxu0 0.0
  %3912 = vmatpush1.msra.mxu0 0.0
  %3913 = vmatprep.subr.mxu0 0.0
  %3914 = vmatpush1.msra.mxu0 0.0
  %3915 = vmatprep.subr.mxu0 0.0
  %3916 = vmatpush1.msra.mxu0 0.0
  %3917 = vmatprep.subr.mxu0 0.0
  %3918 = vmatpush1.msra.mxu0 0.0
  %3919 = vmatprep.subr.mxu0 0.0
  %3920 = vmatpush1.msra.mxu0 0.0
  %3921 = vmatprep.subr.mxu0 0.0
  %3922 = vmatpush1.msra.mxu0 0.0
  %3923 = vmatprep.subr.mxu0 0.0
  %3924 = vmatpush1.msra.mxu0 0.0
  %3925 = vmatprep.subr.mxu0 0.0
  %3926 = vmatpush1.msra.mxu0 0.0
  %3927 = vmatprep.subr.mxu0 0.0
  %3928 = vmatpush1.msra.mxu0 0.0
  %3929 = vmatprep.subr.mxu0 0.0
  %3930 = vmatpush1.msra.mxu0 0.0
  %3931 = vmatprep.subr.mxu0 0.0
  %3932 = vmatpush1.msra.mxu0 0.0
  %3933 = vmatprep.subr.mxu0 0.0
  %3934 = vmatpush1.msra.mxu0 0.0
  %3935 = vmatprep.subr.mxu0 0.0
  %3936 = vmatpush1.msra.mxu0 0.0
  %3937 = vmatprep.subr.mxu0 0.0
  %3938 = vmatpush1.msra.mxu0 0.0
  %3939 = vmatprep.subr.mxu0 0.0
  %3940 = vmatpush1.msra.mxu0 0.0
  %3941 = vmatprep.subr.mxu0 0.0
  %3942 = vmatpush1.msra.mxu0 0.0
  %3943 = vmatprep.subr.mxu0 0.0
  %3944 = vmatpush1.msra.mxu0 0.0
  %3945 = vmatprep.mubr.f32.mxu0 0.0
  %3946 = vmatmul.mubr.f32.gmra.mrb[0].mxu0 %v3877
  %v3947 = vpop.f32.mrb[0].mxu0
  %v3948 = vadd.f32 0.0, %v3947
  %v3949 = vpop.f32.mrb[0].mxu0
  %v3950 = vadd.f32 0.0, %v3949
  %3951 = vmatprep.mubr.f32.mxu0 0.0
  %3952 = vmatmul.mubr.f32.gmra.mrb[0].mxu0 %v3879
  %v3953 = vpop.f32.mrb[0].mxu0
  %v3954 = vadd.f32 0.0, %v3953
  %v3955 = vpop.f32.mrb[0].mxu0
  %v3956 = vadd.f32 0.0, %v3955
  %3957 = vdwg.mxu0
  %v3958 = vadd.f32 %v3854, %v3948
  %v3959 = vadd.f32 %v3855, %v3950
  %v3960 = vadd.f32 %v3856, %v3954
  %v3961 = vadd.f32 %v3857, %v3956
  %3962 = vrot.lane.b32.xlu0 %v11, 97
  %v3963 = vpop.permute.xlu0 %3962
  %3964 = vrot.lane.b32.xlu0 %v12, 97
  %v3965 = vpop.permute.xlu0 %3964
  %vm3966 = vcmp.lt.s32.totalorder %v14, 97
  %v3967 = vsel %vm3966, %v3963, %v3965
  %v3968 = vsel %vm3966, %v3965, %v3963
  %vm3969 = vmand %vm64, %vm96
  %vm3970 = vmand %vm65, %vm97
  %v3971 = vsel %vm3969, 1, 0
  %v3972 = vsel %vm3970, 1, 0
  %vm3973 = vcmp.eq.s32.totalorder %v3971, 1
  %vm3974 = vcmp.eq.s32.totalorder %v3972, 1
  %v3975 = vsel %vm3973, %v3967, 0.0
  %v3976 = vsel %vm3974, %v3968, 0.0
  %3977 = vrot.lane.b32.xlu0 %v3457, 88
  %v3978 = vpop.permute.xlu0 %3977
  %3979 = vrot.lane.b32.xlu0 %v3458, 88
  %v3980 = vpop.permute.xlu0 %3979
  %v3981 = vsel %vm166, %v3978, 0
  %v3983 = vsel %vm166, %v3980, 0
  %3985 = vmatprep.subr.mxu0 %v3976
  %3986 = vmatpush1.msra.mxu0 %v3975
  %3987 = vmatprep.subr.mxu0 0.0
  %3988 = vmatpush1.msra.mxu0 0.0
  %3989 = vmatprep.subr.mxu0 0.0
  %3990 = vmatpush1.msra.mxu0 0.0
  %3991 = vmatprep.subr.mxu0 0.0
  %3992 = vmatpush1.msra.mxu0 0.0
  %3993 = vmatprep.subr.mxu0 0.0
  %3994 = vmatpush1.msra.mxu0 0.0
  %3995 = vmatprep.subr.mxu0 0.0
  %3996 = vmatpush1.msra.mxu0 0.0
  %3997 = vmatprep.subr.mxu0 0.0
  %3998 = vmatpush1.msra.mxu0 0.0
  %3999 = vmatprep.subr.mxu0 0.0
  %4000 = vmatpush1.msra.mxu0 0.0
  %4001 = vmatprep.subr.mxu0 0.0
  %4002 = vmatpush1.msra.mxu0 0.0
  %4003 = vmatprep.subr.mxu0 0.0
  %4004 = vmatpush1.msra.mxu0 0.0
  %4005 = vmatprep.subr.mxu0 0.0
  %4006 = vmatpush1.msra.mxu0 0.0
  %4007 = vmatprep.subr.mxu0 0.0
  %4008 = vmatpush1.msra.mxu0 0.0
  %4009 = vmatprep.subr.mxu0 0.0
  %4010 = vmatpush1.msra.mxu0 0.0
  %4011 = vmatprep.subr.mxu0 0.0
  %4012 = vmatpush1.msra.mxu0 0.0
  %4013 = vmatprep.subr.mxu0 0.0
  %4014 = vmatpush1.msra.mxu0 0.0
  %4015 = vmatprep.subr.mxu0 0.0
  %4016 = vmatpush1.msra.mxu0 0.0
  %4017 = vmatprep.subr.mxu0 0.0
  %4018 = vmatpush1.msra.mxu0 0.0
  %4019 = vmatprep.subr.mxu0 0.0
  %4020 = vmatpush1.msra.mxu0 0.0
  %4021 = vmatprep.subr.mxu0 0.0
  %4022 = vmatpush1.msra.mxu0 0.0
  %4023 = vmatprep.subr.mxu0 0.0
  %4024 = vmatpush1.msra.mxu0 0.0
  %4025 = vmatprep.subr.mxu0 0.0
  %4026 = vmatpush1.msra.mxu0 0.0
  %4027 = vmatprep.subr.mxu0 0.0
  %4028 = vmatpush1.msra.mxu0 0.0
  %4029 = vmatprep.subr.mxu0 0.0
  %4030 = vmatpush1.msra.mxu0 0.0
  %4031 = vmatprep.subr.mxu0 0.0
  %4032 = vmatpush1.msra.mxu0 0.0
  %4033 = vmatprep.subr.mxu0 0.0
  %4034 = vmatpush1.msra.mxu0 0.0
  %4035 = vmatprep.subr.mxu0 0.0
  %4036 = vmatpush1.msra.mxu0 0.0
  %4037 = vmatprep.subr.mxu0 0.0
  %4038 = vmatpush1.msra.mxu0 0.0
  %4039 = vmatprep.subr.mxu0 0.0
  %4040 = vmatpush1.msra.mxu0 0.0
  %4041 = vmatprep.subr.mxu0 0.0
  %4042 = vmatpush1.msra.mxu0 0.0
  %4043 = vmatprep.subr.mxu0 0.0
  %4044 = vmatpush1.msra.mxu0 0.0
  %4045 = vmatprep.subr.mxu0 0.0
  %4046 = vmatpush1.msra.mxu0 0.0
  %4047 = vmatprep.subr.mxu0 0.0
  %4048 = vmatpush1.msra.mxu0 0.0
  %4049 = vmatprep.mubr.f32.mxu0 0.0
  %4050 = vmatmul.mubr.f32.gmra.mrb[0].mxu0 %v3981
  %v4051 = vpop.f32.mrb[0].mxu0
  %v4052 = vadd.f32 0.0, %v4051
  %v4053 = vpop.f32.mrb[0].mxu0
  %v4054 = vadd.f32 0.0, %v4053
  %4055 = vmatprep.mubr.f32.mxu0 0.0
  %4056 = vmatmul.mubr.f32.gmra.mrb[0].mxu0 %v3983
  %v4057 = vpop.f32.mrb[0].mxu0
  %v4058 = vadd.f32 0.0, %v4057
  %v4059 = vpop.f32.mrb[0].mxu0
  %v4060 = vadd.f32 0.0, %v4059
  %4061 = vdwg.mxu0
  %v4062 = vadd.f32 %v3958, %v4052
  %v4063 = vadd.f32 %v3959, %v4054
  %v4064 = vadd.f32 %v3960, %v4058
  %v4065 = vadd.f32 %v3961, %v4060
  %4066 = vrot.lane.b32.xlu0 %v11, 96
  %v4067 = vpop.permute.xlu0 %4066
  %4068 = vrot.lane.b32.xlu0 %v12, 96
  %v4069 = vpop.permute.xlu0 %4068
  %vm4070 = vcmp.lt.s32.totalorder %v14, 96
  %v4071 = vsel %vm4070, %v4067, %v4069
  %v4072 = vsel %vm4070, %v4069, %v4067
  %vm4073 = vmand %vm64, %vm102
  %vm4074 = vmand %vm65, %vm103
  %v4075 = vsel %vm4073, 1, 0
  %v4076 = vsel %vm4074, 1, 0
  %vm4077 = vcmp.eq.s32.totalorder %v4075, 1
  %vm4078 = vcmp.eq.s32.totalorder %v4076, 1
  %v4079 = vsel %vm4077, %v4071, 0.0
  %v4080 = vsel %vm4078, %v4072, 0.0
  %4081 = vrot.lane.b32.xlu0 %v3457, 80
  %v4082 = vpop.permute.xlu0 %4081
  %4083 = vrot.lane.b32.xlu0 %v3458, 80
  %v4084 = vpop.permute.xlu0 %4083
  %v4085 = vsel %vm166, %v4082, 0
  %v4087 = vsel %vm166, %v4084, 0
  %4089 = vmatprep.subr.mxu0 %v4080
  %4090 = vmatpush1.msra.mxu0 %v4079
  %4091 = vmatprep.subr.mxu0 0.0
  %4092 = vmatpush1.msra.mxu0 0.0
  %4093 = vmatprep.subr.mxu0 0.0
  %4094 = vmatpush1.msra.mxu0 0.0
  %4095 = vmatprep.subr.mxu0 0.0
  %4096 = vmatpush1.msra.mxu0 0.0
  %4097 = vmatprep.subr.mxu0 0.0
  %4098 = vmatpush1.msra.mxu0 0.0
  %4099 = vmatprep.subr.mxu0 0.0
  %4100 = vmatpush1.msra.mxu0 0.0
  %4101 = vmatprep.subr.mxu0 0.0
  %4102 = vmatpush1.msra.mxu0 0.0
  %4103 = vmatprep.subr.mxu0 0.0
  %4104 = vmatpush1.msra.mxu0 0.0
  %4105 = vmatprep.subr.mxu0 0.0
  %4106 = vmatpush1.msra.mxu0 0.0
  %4107 = vmatprep.subr.mxu0 0.0
  %4108 = vmatpush1.msra.mxu0 0.0
  %4109 = vmatprep.subr.mxu0 0.0
  %4110 = vmatpush1.msra.mxu0 0.0
  %4111 = vmatprep.subr.mxu0 0.0
  %4112 = vmatpush1.msra.mxu0 0.0
  %4113 = vmatprep.subr.mxu0 0.0
  %4114 = vmatpush1.msra.mxu0 0.0
  %4115 = vmatprep.subr.mxu0 0.0
  %4116 = vmatpush1.msra.mxu0 0.0
  %4117 = vmatprep.subr.mxu0 0.0
  %4118 = vmatpush1.msra.mxu0 0.0
  %4119 = vmatprep.subr.mxu0 0.0
  %4120 = vmatpush1.msra.mxu0 0.0
  %4121 = vmatprep.subr.mxu0 0.0
  %4122 = vmatpush1.msra.mxu0 0.0
  %4123 = vmatprep.subr.mxu0 0.0
  %4124 = vmatpush1.msra.mxu0 0.0
  %4125 = vmatprep.subr.mxu0 0.0
  %4126 = vmatpush1.msra.mxu0 0.0
  %4127 = vmatprep.subr.mxu0 0.0
  %4128 = vmatpush1.msra.mxu0 0.0
  %4129 = vmatprep.subr.mxu0 0.0
  %4130 = vmatpush1.msra.mxu0 0.0
  %4131 = vmatprep.subr.mxu0 0.0
  %4132 = vmatpush1.msra.mxu0 0.0
  %4133 = vmatprep.subr.mxu0 0.0
  %4134 = vmatpush1.msra.mxu0 0.0
  %4135 = vmatprep.subr.mxu0 0.0
  %4136 = vmatpush1.msra.mxu0 0.0
  %4137 = vmatprep.subr.mxu0 0.0
  %4138 = vmatpush1.msra.mxu0 0.0
  %4139 = vmatprep.subr.mxu0 0.0
  %4140 = vmatpush1.msra.mxu0 0.0
  %4141 = vmatprep.subr.mxu0 0.0
  %4142 = vmatpush1.msra.mxu0 0.0
  %4143 = vmatprep.subr.mxu0 0.0
  %4144 = vmatpush1.msra.mxu0 0.0
  %4145 = vmatprep.subr.mxu0 0.0
  %4146 = vmatpush1.msra.mxu0 0.0
  %4147 = vmatprep.subr.mxu0 0.0
  %4148 = vmatpush1.msra.mxu0 0.0
  %4149 = vmatprep.subr.mxu0 0.0
  %4150 = vmatpush1.msra.mxu0 0.0
  %4151 = vmatprep.subr.mxu0 0.0
  %4152 = vmatpush1.msra.mxu0 0.0
  %4153 = vmatprep.mubr.f32.mxu0 0.0
  %4154 = vmatmul.mubr.f32.gmra.mrb[0].mxu0 %v4085
  %v4155 = vpop.f32.mrb[0].mxu0
  %v4156 = vadd.f32 0.0, %v4155
  %v4157 = vpop.f32.mrb[0].mxu0
  %v4158 = vadd.f32 0.0, %v4157
  %4159 = vmatprep.mubr.f32.mxu0 0.0
  %4160 = vmatmul.mubr.f32.gmra.mrb[0].mxu0 %v4087
  %v4161 = vpop.f32.mrb[0].mxu0
  %v4162 = vadd.f32 0.0, %v4161
  %v4163 = vpop.f32.mrb[0].mxu0
  %v4164 = vadd.f32 0.0, %v4163
  %4165 = vdwg.mxu0
  %v4166 = vadd.f32 %v4062, %v4156
  %v4167 = vadd.f32 %v4063, %v4158
  %v4168 = vadd.f32 %v4064, %v4162
  %v4169 = vadd.f32 %v4065, %v4164
  %4170 = vrot.lane.b32.xlu0 %v11, 95
  %v4171 = vpop.permute.xlu0 %4170
  %4172 = vrot.lane.b32.xlu0 %v12, 95
  %v4173 = vpop.permute.xlu0 %4172
  %vm4174 = vcmp.lt.s32.totalorder %v14, 95
  %v4175 = vsel %vm4174, %v4171, %v4173
  %v4176 = vsel %vm4174, %v4173, %v4171
  %vm4177 = vmand %vm64, %vm110
  %vm4178 = vmand %vm65, %vm111
  %v4179 = vsel %vm4177, 1, 0
  %v4180 = vsel %vm4178, 1, 0
  %vm4181 = vcmp.eq.s32.totalorder %v4179, 1
  %vm4182 = vcmp.eq.s32.totalorder %v4180, 1
  %v4183 = vsel %vm4181, %v4175, 0.0
  %v4184 = vsel %vm4182, %v4176, 0.0
  %4185 = vrot.lane.b32.xlu0 %v3457, 72
  %v4186 = vpop.permute.xlu0 %4185
  %4187 = vrot.lane.b32.xlu0 %v3458, 72
  %v4188 = vpop.permute.xlu0 %4187
  %v4189 = vsel %vm166, %v4186, 0
  %v4191 = vsel %vm166, %v4188, 0
  %4193 = vmatprep.subr.mxu0 %v4184
  %4194 = vmatpush1.msra.mxu0 %v4183
  %4195 = vmatprep.subr.mxu0 0.0
  %4196 = vmatpush1.msra.mxu0 0.0
  %4197 = vmatprep.subr.mxu0 0.0
  %4198 = vmatpush1.msra.mxu0 0.0
  %4199 = vmatprep.subr.mxu0 0.0
  %4200 = vmatpush1.msra.mxu0 0.0
  %4201 = vmatprep.subr.mxu0 0.0
  %4202 = vmatpush1.msra.mxu0 0.0
  %4203 = vmatprep.subr.mxu0 0.0
  %4204 = vmatpush1.msra.mxu0 0.0
  %4205 = vmatprep.subr.mxu0 0.0
  %4206 = vmatpush1.msra.mxu0 0.0
  %4207 = vmatprep.subr.mxu0 0.0
  %4208 = vmatpush1.msra.mxu0 0.0
  %4209 = vmatprep.subr.mxu0 0.0
  %4210 = vmatpush1.msra.mxu0 0.0
  %4211 = vmatprep.subr.mxu0 0.0
  %4212 = vmatpush1.msra.mxu0 0.0
  %4213 = vmatprep.subr.mxu0 0.0
  %4214 = vmatpush1.msra.mxu0 0.0
  %4215 = vmatprep.subr.mxu0 0.0
  %4216 = vmatpush1.msra.mxu0 0.0
  %4217 = vmatprep.subr.mxu0 0.0
  %4218 = vmatpush1.msra.mxu0 0.0
  %4219 = vmatprep.subr.mxu0 0.0
  %4220 = vmatpush1.msra.mxu0 0.0
  %4221 = vmatprep.subr.mxu0 0.0
  %4222 = vmatpush1.msra.mxu0 0.0
  %4223 = vmatprep.subr.mxu0 0.0
  %4224 = vmatpush1.msra.mxu0 0.0
  %4225 = vmatprep.subr.mxu0 0.0
  %4226 = vmatpush1.msra.mxu0 0.0
  %4227 = vmatprep.subr.mxu0 0.0
  %4228 = vmatpush1.msra.mxu0 0.0
  %4229 = vmatprep.subr.mxu0 0.0
  %4230 = vmatpush1.msra.mxu0 0.0
  %4231 = vmatprep.subr.mxu0 0.0
  %4232 = vmatpush1.msra.mxu0 0.0
  %4233 = vmatprep.subr.mxu0 0.0
  %4234 = vmatpush1.msra.mxu0 0.0
  %4235 = vmatprep.subr.mxu0 0.0
  %4236 = vmatpush1.msra.mxu0 0.0
  %4237 = vmatprep.subr.mxu0 0.0
  %4238 = vmatpush1.msra.mxu0 0.0
  %4239 = vmatprep.subr.mxu0 0.0
  %4240 = vmatpush1.msra.mxu0 0.0
  %4241 = vmatprep.subr.mxu0 0.0
  %4242 = vmatpush1.msra.mxu0 0.0
  %4243 = vmatprep.subr.mxu0 0.0
  %4244 = vmatpush1.msra.mxu0 0.0
  %4245 = vmatprep.subr.mxu0 0.0
  %4246 = vmatpush1.msra.mxu0 0.0
  %4247 = vmatprep.subr.mxu0 0.0
  %4248 = vmatpush1.msra.mxu0 0.0
  %4249 = vmatprep.subr.mxu0 0.0
  %4250 = vmatpush1.msra.mxu0 0.0
  %4251 = vmatprep.subr.mxu0 0.0
  %4252 = vmatpush1.msra.mxu0 0.0
  %4253 = vmatprep.subr.mxu0 0.0
  %4254 = vmatpush1.msra.mxu0 0.0
  %4255 = vmatprep.subr.mxu0 0.0
  %4256 = vmatpush1.msra.mxu0 0.0
  %4257 = vmatprep.mubr.f32.mxu0 0.0
  %4258 = vmatmul.mubr.f32.gmra.mrb[0].mxu0 %v4189
  %v4259 = vpop.f32.mrb[0].mxu0
  %v4260 = vadd.f32 0.0, %v4259
  %v4261 = vpop.f32.mrb[0].mxu0
  %v4262 = vadd.f32 0.0, %v4261
  %4263 = vmatprep.mubr.f32.mxu0 0.0
  %4264 = vmatmul.mubr.f32.gmra.mrb[0].mxu0 %v4191
  %v4265 = vpop.f32.mrb[0].mxu0
  %v4266 = vadd.f32 0.0, %v4265
  %v4267 = vpop.f32.mrb[0].mxu0
  %v4268 = vadd.f32 0.0, %v4267
  %4269 = vdwg.mxu0
  %v4270 = vadd.f32 %v4166, %v4260
  %v4271 = vadd.f32 %v4167, %v4262
  %v4272 = vadd.f32 %v4168, %v4266
  %v4273 = vadd.f32 %v4169, %v4268
  %4274 = vrot.lane.b32.xlu0 %v11, 94
  %v4275 = vpop.permute.xlu0 %4274
  %4276 = vrot.lane.b32.xlu0 %v12, 94
  %v4277 = vpop.permute.xlu0 %4276
  %vm4278 = vcmp.lt.s32.totalorder %v14, 94
  %v4279 = vsel %vm4278, %v4275, %v4277
  %v4280 = vsel %vm4278, %v4277, %v4275
  %vm4281 = vmand %vm64, %vm118
  %vm4282 = vmand %vm65, %vm119
  %v4283 = vsel %vm4281, 1, 0
  %v4284 = vsel %vm4282, 1, 0
  %vm4285 = vcmp.eq.s32.totalorder %v4283, 1
  %vm4286 = vcmp.eq.s32.totalorder %v4284, 1
  %v4287 = vsel %vm4285, %v4279, 0.0
  %v4288 = vsel %vm4286, %v4280, 0.0
  %4289 = vrot.lane.b32.xlu0 %v3457, 64
  %v4290 = vpop.permute.xlu0 %4289
  %4291 = vrot.lane.b32.xlu0 %v3458, 64
  %v4292 = vpop.permute.xlu0 %4291
  %v4293 = vsel %vm166, %v4290, 0
  %v4295 = vsel %vm166, %v4292, 0
  %4297 = vmatprep.subr.mxu0 %v4288
  %4298 = vmatpush1.msra.mxu0 %v4287
  %4299 = vmatprep.subr.mxu0 0.0
  %4300 = vmatpush1.msra.mxu0 0.0
  %4301 = vmatprep.subr.mxu0 0.0
  %4302 = vmatpush1.msra.mxu0 0.0
  %4303 = vmatprep.subr.mxu0 0.0
  %4304 = vmatpush1.msra.mxu0 0.0
  %4305 = vmatprep.subr.mxu0 0.0
  %4306 = vmatpush1.msra.mxu0 0.0
  %4307 = vmatprep.subr.mxu0 0.0
  %4308 = vmatpush1.msra.mxu0 0.0
  %4309 = vmatprep.subr.mxu0 0.0
  %4310 = vmatpush1.msra.mxu0 0.0
  %4311 = vmatprep.subr.mxu0 0.0
  %4312 = vmatpush1.msra.mxu0 0.0
  %4313 = vmatprep.subr.mxu0 0.0
  %4314 = vmatpush1.msra.mxu0 0.0
  %4315 = vmatprep.subr.mxu0 0.0
  %4316 = vmatpush1.msra.mxu0 0.0
  %4317 = vmatprep.subr.mxu0 0.0
  %4318 = vmatpush1.msra.mxu0 0.0
  %4319 = vmatprep.subr.mxu0 0.0
  %4320 = vmatpush1.msra.mxu0 0.0
  %4321 = vmatprep.subr.mxu0 0.0
  %4322 = vmatpush1.msra.mxu0 0.0
  %4323 = vmatprep.subr.mxu0 0.0
  %4324 = vmatpush1.msra.mxu0 0.0
  %4325 = vmatprep.subr.mxu0 0.0
  %4326 = vmatpush1.msra.mxu0 0.0
  %4327 = vmatprep.subr.mxu0 0.0
  %4328 = vmatpush1.msra.mxu0 0.0
  %4329 = vmatprep.subr.mxu0 0.0
  %4330 = vmatpush1.msra.mxu0 0.0
  %4331 = vmatprep.subr.mxu0 0.0
  %4332 = vmatpush1.msra.mxu0 0.0
  %4333 = vmatprep.subr.mxu0 0.0
  %4334 = vmatpush1.msra.mxu0 0.0
  %4335 = vmatprep.subr.mxu0 0.0
  %4336 = vmatpush1.msra.mxu0 0.0
  %4337 = vmatprep.subr.mxu0 0.0
  %4338 = vmatpush1.msra.mxu0 0.0
  %4339 = vmatprep.subr.mxu0 0.0
  %4340 = vmatpush1.msra.mxu0 0.0
  %4341 = vmatprep.subr.mxu0 0.0
  %4342 = vmatpush1.msra.mxu0 0.0
  %4343 = vmatprep.subr.mxu0 0.0
  %4344 = vmatpush1.msra.mxu0 0.0
  %4345 = vmatprep.subr.mxu0 0.0
  %4346 = vmatpush1.msra.mxu0 0.0
  %4347 = vmatprep.subr.mxu0 0.0
  %4348 = vmatpush1.msra.mxu0 0.0
  %4349 = vmatprep.subr.mxu0 0.0
  %4350 = vmatpush1.msra.mxu0 0.0
  %4351 = vmatprep.subr.mxu0 0.0
  %4352 = vmatpush1.msra.mxu0 0.0
  %4353 = vmatprep.subr.mxu0 0.0
  %4354 = vmatpush1.msra.mxu0 0.0
  %4355 = vmatprep.subr.mxu0 0.0
  %4356 = vmatpush1.msra.mxu0 0.0
  %4357 = vmatprep.subr.mxu0 0.0
  %4358 = vmatpush1.msra.mxu0 0.0
  %4359 = vmatprep.subr.mxu0 0.0
  %4360 = vmatpush1.msra.mxu0 0.0
  %4361 = vmatprep.mubr.f32.mxu0 0.0
  %4362 = vmatmul.mubr.f32.gmra.mrb[0].mxu0 %v4293
  %v4363 = vpop.f32.mrb[0].mxu0
  %v4364 = vadd.f32 0.0, %v4363
  %v4365 = vpop.f32.mrb[0].mxu0
  %v4366 = vadd.f32 0.0, %v4365
  %4367 = vmatprep.mubr.f32.mxu0 0.0
  %4368 = vmatmul.mubr.f32.gmra.mrb[0].mxu0 %v4295
  %v4369 = vpop.f32.mrb[0].mxu0
  %v4370 = vadd.f32 0.0, %v4369
  %v4371 = vpop.f32.mrb[0].mxu0
  %v4372 = vadd.f32 0.0, %v4371
  %4373 = vdwg.mxu0
  %v4374 = vadd.f32 %v4270, %v4364
  %v4375 = vadd.f32 %v4271, %v4366
  %v4376 = vadd.f32 %v4272, %v4370
  %v4377 = vadd.f32 %v4273, %v4372
  %4378 = vrot.lane.b32.xlu0 %v11, 93
  %v4379 = vpop.permute.xlu0 %4378
  %4380 = vrot.lane.b32.xlu0 %v12, 93
  %v4381 = vpop.permute.xlu0 %4380
  %vm4382 = vcmp.lt.s32.totalorder %v14, 93
  %v4383 = vsel %vm4382, %v4379, %v4381
  %v4384 = vsel %vm4382, %v4381, %v4379
  %vm4385 = vmand %vm64, %vm126
  %vm4386 = vmand %vm65, %vm127
  %v4387 = vsel %vm4385, 1, 0
  %v4388 = vsel %vm4386, 1, 0
  %vm4389 = vcmp.eq.s32.totalorder %v4387, 1
  %vm4390 = vcmp.eq.s32.totalorder %v4388, 1
  %v4391 = vsel %vm4389, %v4383, 0.0
  %v4392 = vsel %vm4390, %v4384, 0.0
  %4393 = vrot.lane.b32.xlu0 %v3457, 56
  %v4394 = vpop.permute.xlu0 %4393
  %4395 = vrot.lane.b32.xlu0 %v3458, 56
  %v4396 = vpop.permute.xlu0 %4395
  %v4397 = vsel %vm166, %v4394, 0
  %v4399 = vsel %vm166, %v4396, 0
  %4401 = vmatprep.subr.mxu0 %v4392
  %4402 = vmatpush1.msra.mxu0 %v4391
  %4403 = vmatprep.subr.mxu0 0.0
  %4404 = vmatpush1.msra.mxu0 0.0
  %4405 = vmatprep.subr.mxu0 0.0
  %4406 = vmatpush1.msra.mxu0 0.0
  %4407 = vmatprep.subr.mxu0 0.0
  %4408 = vmatpush1.msra.mxu0 0.0
  %4409 = vmatprep.subr.mxu0 0.0
  %4410 = vmatpush1.msra.mxu0 0.0
  %4411 = vmatprep.subr.mxu0 0.0
  %4412 = vmatpush1.msra.mxu0 0.0
  %4413 = vmatprep.subr.mxu0 0.0
  %4414 = vmatpush1.msra.mxu0 0.0
  %4415 = vmatprep.subr.mxu0 0.0
  %4416 = vmatpush1.msra.mxu0 0.0
  %4417 = vmatprep.subr.mxu0 0.0
  %4418 = vmatpush1.msra.mxu0 0.0
  %4419 = vmatprep.subr.mxu0 0.0
  %4420 = vmatpush1.msra.mxu0 0.0
  %4421 = vmatprep.subr.mxu0 0.0
  %4422 = vmatpush1.msra.mxu0 0.0
  %4423 = vmatprep.subr.mxu0 0.0
  %4424 = vmatpush1.msra.mxu0 0.0
  %4425 = vmatprep.subr.mxu0 0.0
  %4426 = vmatpush1.msra.mxu0 0.0
  %4427 = vmatprep.subr.mxu0 0.0
  %4428 = vmatpush1.msra.mxu0 0.0
  %4429 = vmatprep.subr.mxu0 0.0
  %4430 = vmatpush1.msra.mxu0 0.0
  %4431 = vmatprep.subr.mxu0 0.0
  %4432 = vmatpush1.msra.mxu0 0.0
  %4433 = vmatprep.subr.mxu0 0.0
  %4434 = vmatpush1.msra.mxu0 0.0
  %4435 = vmatprep.subr.mxu0 0.0
  %4436 = vmatpush1.msra.mxu0 0.0
  %4437 = vmatprep.subr.mxu0 0.0
  %4438 = vmatpush1.msra.mxu0 0.0
  %4439 = vmatprep.subr.mxu0 0.0
  %4440 = vmatpush1.msra.mxu0 0.0
  %4441 = vmatprep.subr.mxu0 0.0
  %4442 = vmatpush1.msra.mxu0 0.0
  %4443 = vmatprep.subr.mxu0 0.0
  %4444 = vmatpush1.msra.mxu0 0.0
  %4445 = vmatprep.subr.mxu0 0.0
  %4446 = vmatpush1.msra.mxu0 0.0
  %4447 = vmatprep.subr.mxu0 0.0
  %4448 = vmatpush1.msra.mxu0 0.0
  %4449 = vmatprep.subr.mxu0 0.0
  %4450 = vmatpush1.msra.mxu0 0.0
  %4451 = vmatprep.subr.mxu0 0.0
  %4452 = vmatpush1.msra.mxu0 0.0
  %4453 = vmatprep.subr.mxu0 0.0
  %4454 = vmatpush1.msra.mxu0 0.0
  %4455 = vmatprep.subr.mxu0 0.0
  %4456 = vmatpush1.msra.mxu0 0.0
  %4457 = vmatprep.subr.mxu0 0.0
  %4458 = vmatpush1.msra.mxu0 0.0
  %4459 = vmatprep.subr.mxu0 0.0
  %4460 = vmatpush1.msra.mxu0 0.0
  %4461 = vmatprep.subr.mxu0 0.0
  %4462 = vmatpush1.msra.mxu0 0.0
  %4463 = vmatprep.subr.mxu0 0.0
  %4464 = vmatpush1.msra.mxu0 0.0
  %4465 = vmatprep.mubr.f32.mxu0 0.0
  %4466 = vmatmul.mubr.f32.gmra.mrb[0].mxu0 %v4397
  %v4467 = vpop.f32.mrb[0].mxu0
  %v4468 = vadd.f32 0.0, %v4467
  %v4469 = vpop.f32.mrb[0].mxu0
  %v4470 = vadd.f32 0.0, %v4469
  %4471 = vmatprep.mubr.f32.mxu0 0.0
  %4472 = vmatmul.mubr.f32.gmra.mrb[0].mxu0 %v4399
  %v4473 = vpop.f32.mrb[0].mxu0
  %v4474 = vadd.f32 0.0, %v4473
  %v4475 = vpop.f32.mrb[0].mxu0
  %v4476 = vadd.f32 0.0, %v4475
  %4477 = vdwg.mxu0
  %v4478 = vadd.f32 %v4374, %v4468
  %v4479 = vadd.f32 %v4375, %v4470
  %v4480 = vadd.f32 %v4376, %v4474
  %v4481 = vadd.f32 %v4377, %v4476
  %4482 = vrot.lane.b32.xlu0 %v11, 83
  %v4483 = vpop.permute.xlu0 %4482
  %4484 = vrot.lane.b32.xlu0 %v12, 83
  %v4485 = vpop.permute.xlu0 %4484
  %vm4486 = vcmp.lt.s32.totalorder %v14, 83
  %v4487 = vsel %vm4486, %v4483, %v4485
  %v4488 = vsel %vm4486, %v4485, %v4483
  %vm4489 = vmand %vm72, %vm80
  %vm4490 = vmand %vm73, %vm81
  %v4491 = vsel %vm4489, 1, 0
  %v4492 = vsel %vm4490, 1, 0
  %vm4493 = vcmp.eq.s32.totalorder %v4491, 1
  %vm4494 = vcmp.eq.s32.totalorder %v4492, 1
  %v4495 = vsel %vm4493, %v4487, 0.0
  %v4496 = vsel %vm4494, %v4488, 0.0
  %4497 = vrot.lane.b32.xlu0 %v3457, 48
  %v4498 = vpop.permute.xlu0 %4497
  %4499 = vrot.lane.b32.xlu0 %v3458, 48
  %v4500 = vpop.permute.xlu0 %4499
  %v4501 = vsel %vm166, %v4498, 0
  %v4503 = vsel %vm166, %v4500, 0
  %4505 = vmatprep.subr.mxu0 %v4496
  %4506 = vmatpush1.msra.mxu0 %v4495
  %4507 = vmatprep.subr.mxu0 0.0
  %4508 = vmatpush1.msra.mxu0 0.0
  %4509 = vmatprep.subr.mxu0 0.0
  %4510 = vmatpush1.msra.mxu0 0.0
  %4511 = vmatprep.subr.mxu0 0.0
  %4512 = vmatpush1.msra.mxu0 0.0
  %4513 = vmatprep.subr.mxu0 0.0
  %4514 = vmatpush1.msra.mxu0 0.0
  %4515 = vmatprep.subr.mxu0 0.0
  %4516 = vmatpush1.msra.mxu0 0.0
  %4517 = vmatprep.subr.mxu0 0.0
  %4518 = vmatpush1.msra.mxu0 0.0
  %4519 = vmatprep.subr.mxu0 0.0
  %4520 = vmatpush1.msra.mxu0 0.0
  %4521 = vmatprep.subr.mxu0 0.0
  %4522 = vmatpush1.msra.mxu0 0.0
  %4523 = vmatprep.subr.mxu0 0.0
  %4524 = vmatpush1.msra.mxu0 0.0
  %4525 = vmatprep.subr.mxu0 0.0
  %4526 = vmatpush1.msra.mxu0 0.0
  %4527 = vmatprep.subr.mxu0 0.0
  %4528 = vmatpush1.msra.mxu0 0.0
  %4529 = vmatprep.subr.mxu0 0.0
  %4530 = vmatpush1.msra.mxu0 0.0
  %4531 = vmatprep.subr.mxu0 0.0
  %4532 = vmatpush1.msra.mxu0 0.0
  %4533 = vmatprep.subr.mxu0 0.0
  %4534 = vmatpush1.msra.mxu0 0.0
  %4535 = vmatprep.subr.mxu0 0.0
  %4536 = vmatpush1.msra.mxu0 0.0
  %4537 = vmatprep.subr.mxu0 0.0
  %4538 = vmatpush1.msra.mxu0 0.0
  %4539 = vmatprep.subr.mxu0 0.0
  %4540 = vmatpush1.msra.mxu0 0.0
  %4541 = vmatprep.subr.mxu0 0.0
  %4542 = vmatpush1.msra.mxu0 0.0
  %4543 = vmatprep.subr.mxu0 0.0
  %4544 = vmatpush1.msra.mxu0 0.0
  %4545 = vmatprep.subr.mxu0 0.0
  %4546 = vmatpush1.msra.mxu0 0.0
  %4547 = vmatprep.subr.mxu0 0.0
  %4548 = vmatpush1.msra.mxu0 0.0
  %4549 = vmatprep.subr.mxu0 0.0
  %4550 = vmatpush1.msra.mxu0 0.0
  %4551 = vmatprep.subr.mxu0 0.0
  %4552 = vmatpush1.msra.mxu0 0.0
  %4553 = vmatprep.subr.mxu0 0.0
  %4554 = vmatpush1.msra.mxu0 0.0
  %4555 = vmatprep.subr.mxu0 0.0
  %4556 = vmatpush1.msra.mxu0 0.0
  %4557 = vmatprep.subr.mxu0 0.0
  %4558 = vmatpush1.msra.mxu0 0.0
  %4559 = vmatprep.subr.mxu0 0.0
  %4560 = vmatpush1.msra.mxu0 0.0
  %4561 = vmatprep.subr.mxu0 0.0
  %4562 = vmatpush1.msra.mxu0 0.0
  %4563 = vmatprep.subr.mxu0 0.0
  %4564 = vmatpush1.msra.mxu0 0.0
  %4565 = vmatprep.subr.mxu0 0.0
  %4566 = vmatpush1.msra.mxu0 0.0
  %4567 = vmatprep.subr.mxu0 0.0
  %4568 = vmatpush1.msra.mxu0 0.0
  %4569 = vmatprep.mubr.f32.mxu0 0.0
  %4570 = vmatmul.mubr.f32.gmra.mrb[0].mxu0 %v4501
  %v4571 = vpop.f32.mrb[0].mxu0
  %v4572 = vadd.f32 0.0, %v4571
  %v4573 = vpop.f32.mrb[0].mxu0
  %v4574 = vadd.f32 0.0, %v4573
  %4575 = vmatprep.mubr.f32.mxu0 0.0
  %4576 = vmatmul.mubr.f32.gmra.mrb[0].mxu0 %v4503
  %v4577 = vpop.f32.mrb[0].mxu0
  %v4578 = vadd.f32 0.0, %v4577
  %v4579 = vpop.f32.mrb[0].mxu0
  %v4580 = vadd.f32 0.0, %v4579
  %4581 = vdwg.mxu0
  %v4582 = vadd.f32 %v4478, %v4572
  %v4583 = vadd.f32 %v4479, %v4574
  %v4584 = vadd.f32 %v4480, %v4578
  %v4585 = vadd.f32 %v4481, %v4580
  %4586 = vrot.lane.b32.xlu0 %v11, 82
  %v4587 = vpop.permute.xlu0 %4586
  %4588 = vrot.lane.b32.xlu0 %v12, 82
  %v4589 = vpop.permute.xlu0 %4588
  %vm4590 = vcmp.lt.s32.totalorder %v14, 82
  %v4591 = vsel %vm4590, %v4587, %v4589
  %v4592 = vsel %vm4590, %v4589, %v4587
  %vm4593 = vmand %vm72, %vm88
  %vm4594 = vmand %vm73, %vm89
  %v4595 = vsel %vm4593, 1, 0
  %v4596 = vsel %vm4594, 1, 0
  %vm4597 = vcmp.eq.s32.totalorder %v4595, 1
  %vm4598 = vcmp.eq.s32.totalorder %v4596, 1
  %v4599 = vsel %vm4597, %v4591, 0.0
  %v4600 = vsel %vm4598, %v4592, 0.0
  %4601 = vrot.lane.b32.xlu0 %v3457, 40
  %v4602 = vpop.permute.xlu0 %4601
  %4603 = vrot.lane.b32.xlu0 %v3458, 40
  %v4604 = vpop.permute.xlu0 %4603
  %v4605 = vsel %vm166, %v4602, 0
  %v4607 = vsel %vm166, %v4604, 0
  %4609 = vmatprep.subr.mxu0 %v4600
  %4610 = vmatpush1.msra.mxu0 %v4599
  %4611 = vmatprep.subr.mxu0 0.0
  %4612 = vmatpush1.msra.mxu0 0.0
  %4613 = vmatprep.subr.mxu0 0.0
  %4614 = vmatpush1.msra.mxu0 0.0
  %4615 = vmatprep.subr.mxu0 0.0
  %4616 = vmatpush1.msra.mxu0 0.0
  %4617 = vmatprep.subr.mxu0 0.0
  %4618 = vmatpush1.msra.mxu0 0.0
  %4619 = vmatprep.subr.mxu0 0.0
  %4620 = vmatpush1.msra.mxu0 0.0
  %4621 = vmatprep.subr.mxu0 0.0
  %4622 = vmatpush1.msra.mxu0 0.0
  %4623 = vmatprep.subr.mxu0 0.0
  %4624 = vmatpush1.msra.mxu0 0.0
  %4625 = vmatprep.subr.mxu0 0.0
  %4626 = vmatpush1.msra.mxu0 0.0
  %4627 = vmatprep.subr.mxu0 0.0
  %4628 = vmatpush1.msra.mxu0 0.0
  %4629 = vmatprep.subr.mxu0 0.0
  %4630 = vmatpush1.msra.mxu0 0.0
  %4631 = vmatprep.subr.mxu0 0.0
  %4632 = vmatpush1.msra.mxu0 0.0
  %4633 = vmatprep.subr.mxu0 0.0
  %4634 = vmatpush1.msra.mxu0 0.0
  %4635 = vmatprep.subr.mxu0 0.0
  %4636 = vmatpush1.msra.mxu0 0.0
  %4637 = vmatprep.subr.mxu0 0.0
  %4638 = vmatpush1.msra.mxu0 0.0
  %4639 = vmatprep.subr.mxu0 0.0
  %4640 = vmatpush1.msra.mxu0 0.0
  %4641 = vmatprep.subr.mxu0 0.0
  %4642 = vmatpush1.msra.mxu0 0.0
  %4643 = vmatprep.subr.mxu0 0.0
  %4644 = vmatpush1.msra.mxu0 0.0
  %4645 = vmatprep.subr.mxu0 0.0
  %4646 = vmatpush1.msra.mxu0 0.0
  %4647 = vmatprep.subr.mxu0 0.0
  %4648 = vmatpush1.msra.mxu0 0.0
  %4649 = vmatprep.subr.mxu0 0.0
  %4650 = vmatpush1.msra.mxu0 0.0
  %4651 = vmatprep.subr.mxu0 0.0
  %4652 = vmatpush1.msra.mxu0 0.0
  %4653 = vmatprep.subr.mxu0 0.0
  %4654 = vmatpush1.msra.mxu0 0.0
  %4655 = vmatprep.subr.mxu0 0.0
  %4656 = vmatpush1.msra.mxu0 0.0
  %4657 = vmatprep.subr.mxu0 0.0
  %4658 = vmatpush1.msra.mxu0 0.0
  %4659 = vmatprep.subr.mxu0 0.0
  %4660 = vmatpush1.msra.mxu0 0.0
  %4661 = vmatprep.subr.mxu0 0.0
  %4662 = vmatpush1.msra.mxu0 0.0
  %4663 = vmatprep.subr.mxu0 0.0
  %4664 = vmatpush1.msra.mxu0 0.0
  %4665 = vmatprep.subr.mxu0 0.0
  %4666 = vmatpush1.msra.mxu0 0.0
  %4667 = vmatprep.subr.mxu0 0.0
  %4668 = vmatpush1.msra.mxu0 0.0
  %4669 = vmatprep.subr.mxu0 0.0
  %4670 = vmatpush1.msra.mxu0 0.0
  %4671 = vmatprep.subr.mxu0 0.0
  %4672 = vmatpush1.msra.mxu0 0.0
  %4673 = vmatprep.mubr.f32.mxu0 0.0
  %4674 = vmatmul.mubr.f32.gmra.mrb[0].mxu0 %v4605
  %v4675 = vpop.f32.mrb[0].mxu0
  %v4676 = vadd.f32 0.0, %v4675
  %v4677 = vpop.f32.mrb[0].mxu0
  %v4678 = vadd.f32 0.0, %v4677
  %4679 = vmatprep.mubr.f32.mxu0 0.0
  %4680 = vmatmul.mubr.f32.gmra.mrb[0].mxu0 %v4607
  %v4681 = vpop.f32.mrb[0].mxu0
  %v4682 = vadd.f32 0.0, %v4681
  %v4683 = vpop.f32.mrb[0].mxu0
  %v4684 = vadd.f32 0.0, %v4683
  %4685 = vdwg.mxu0
  %v4686 = vadd.f32 %v4582, %v4676
  %v4687 = vadd.f32 %v4583, %v4678
  %v4688 = vadd.f32 %v4584, %v4682
  %v4689 = vadd.f32 %v4585, %v4684
  %4690 = vrot.lane.b32.xlu0 %v11, 81
  %v4691 = vpop.permute.xlu0 %4690
  %4692 = vrot.lane.b32.xlu0 %v12, 81
  %v4693 = vpop.permute.xlu0 %4692
  %vm4694 = vcmp.lt.s32.totalorder %v14, 81
  %v4695 = vsel %vm4694, %v4691, %v4693
  %v4696 = vsel %vm4694, %v4693, %v4691
  %vm4697 = vmand %vm72, %vm96
  %vm4698 = vmand %vm73, %vm97
  %v4699 = vsel %vm4697, 1, 0
  %v4700 = vsel %vm4698, 1, 0
  %vm4701 = vcmp.eq.s32.totalorder %v4699, 1
  %vm4702 = vcmp.eq.s32.totalorder %v4700, 1
  %v4703 = vsel %vm4701, %v4695, 0.0
  %v4704 = vsel %vm4702, %v4696, 0.0
  %4705 = vrot.lane.b32.xlu0 %v3457, 32
  %v4706 = vpop.permute.xlu0 %4705
  %4707 = vrot.lane.b32.xlu0 %v3458, 32
  %v4708 = vpop.permute.xlu0 %4707
  %v4709 = vsel %vm166, %v4706, 0
  %v4711 = vsel %vm166, %v4708, 0
  %4713 = vmatprep.subr.mxu0 %v4704
  %4714 = vmatpush1.msra.mxu0 %v4703
  %4715 = vmatprep.subr.mxu0 0.0
  %4716 = vmatpush1.msra.mxu0 0.0
  %4717 = vmatprep.subr.mxu0 0.0
  %4718 = vmatpush1.msra.mxu0 0.0
  %4719 = vmatprep.subr.mxu0 0.0
  %4720 = vmatpush1.msra.mxu0 0.0
  %4721 = vmatprep.subr.mxu0 0.0
  %4722 = vmatpush1.msra.mxu0 0.0
  %4723 = vmatprep.subr.mxu0 0.0
  %4724 = vmatpush1.msra.mxu0 0.0
  %4725 = vmatprep.subr.mxu0 0.0
  %4726 = vmatpush1.msra.mxu0 0.0
  %4727 = vmatprep.subr.mxu0 0.0
  %4728 = vmatpush1.msra.mxu0 0.0
  %4729 = vmatprep.subr.mxu0 0.0
  %4730 = vmatpush1.msra.mxu0 0.0
  %4731 = vmatprep.subr.mxu0 0.0
  %4732 = vmatpush1.msra.mxu0 0.0
  %4733 = vmatprep.subr.mxu0 0.0
  %4734 = vmatpush1.msra.mxu0 0.0
  %4735 = vmatprep.subr.mxu0 0.0
  %4736 = vmatpush1.msra.mxu0 0.0
  %4737 = vmatprep.subr.mxu0 0.0
  %4738 = vmatpush1.msra.mxu0 0.0
  %4739 = vmatprep.subr.mxu0 0.0
  %4740 = vmatpush1.msra.mxu0 0.0
  %4741 = vmatprep.subr.mxu0 0.0
  %4742 = vmatpush1.msra.mxu0 0.0
  %4743 = vmatprep.subr.mxu0 0.0
  %4744 = vmatpush1.msra.mxu0 0.0
  %4745 = vmatprep.subr.mxu0 0.0
  %4746 = vmatpush1.msra.mxu0 0.0
  %4747 = vmatprep.subr.mxu0 0.0
  %4748 = vmatpush1.msra.mxu0 0.0
  %4749 = vmatprep.subr.mxu0 0.0
  %4750 = vmatpush1.msra.mxu0 0.0
  %4751 = vmatprep.subr.mxu0 0.0
  %4752 = vmatpush1.msra.mxu0 0.0
  %4753 = vmatprep.subr.mxu0 0.0
  %4754 = vmatpush1.msra.mxu0 0.0
  %4755 = vmatprep.subr.mxu0 0.0
  %4756 = vmatpush1.msra.mxu0 0.0
  %4757 = vmatprep.subr.mxu0 0.0
  %4758 = vmatpush1.msra.mxu0 0.0
  %4759 = vmatprep.subr.mxu0 0.0
  %4760 = vmatpush1.msra.mxu0 0.0
  %4761 = vmatprep.subr.mxu0 0.0
  %4762 = vmatpush1.msra.mxu0 0.0
  %4763 = vmatprep.subr.mxu0 0.0
  %4764 = vmatpush1.msra.mxu0 0.0
  %4765 = vmatprep.subr.mxu0 0.0
  %4766 = vmatpush1.msra.mxu0 0.0
  %4767 = vmatprep.subr.mxu0 0.0
  %4768 = vmatpush1.msra.mxu0 0.0
  %4769 = vmatprep.subr.mxu0 0.0
  %4770 = vmatpush1.msra.mxu0 0.0
  %4771 = vmatprep.subr.mxu0 0.0
  %4772 = vmatpush1.msra.mxu0 0.0
  %4773 = vmatprep.subr.mxu0 0.0
  %4774 = vmatpush1.msra.mxu0 0.0
  %4775 = vmatprep.subr.mxu0 0.0
  %4776 = vmatpush1.msra.mxu0 0.0
  %4777 = vmatprep.mubr.f32.mxu0 0.0
  %4778 = vmatmul.mubr.f32.gmra.mrb[0].mxu0 %v4709
  %v4779 = vpop.f32.mrb[0].mxu0
  %v4780 = vadd.f32 0.0, %v4779
  %v4781 = vpop.f32.mrb[0].mxu0
  %v4782 = vadd.f32 0.0, %v4781
  %4783 = vmatprep.mubr.f32.mxu0 0.0
  %4784 = vmatmul.mubr.f32.gmra.mrb[0].mxu0 %v4711
  %v4785 = vpop.f32.mrb[0].mxu0
  %v4786 = vadd.f32 0.0, %v4785
  %v4787 = vpop.f32.mrb[0].mxu0
  %v4788 = vadd.f32 0.0, %v4787
  %4789 = vdwg.mxu0
  %v4790 = vadd.f32 %v4686, %v4780
  %v4791 = vadd.f32 %v4687, %v4782
  %v4792 = vadd.f32 %v4688, %v4786
  %v4793 = vadd.f32 %v4689, %v4788
  %4794 = vrot.lane.b32.xlu0 %v11, 80
  %v4795 = vpop.permute.xlu0 %4794
  %4796 = vrot.lane.b32.xlu0 %v12, 80
  %v4797 = vpop.permute.xlu0 %4796
  %vm4798 = vcmp.lt.s32.totalorder %v14, 80
  %v4799 = vsel %vm4798, %v4795, %v4797
  %v4800 = vsel %vm4798, %v4797, %v4795
  %vm4801 = vmand %vm72, %vm102
  %vm4802 = vmand %vm73, %vm103
  %v4803 = vsel %vm4801, 1, 0
  %v4804 = vsel %vm4802, 1, 0
  %vm4805 = vcmp.eq.s32.totalorder %v4803, 1
  %vm4806 = vcmp.eq.s32.totalorder %v4804, 1
  %v4807 = vsel %vm4805, %v4799, 0.0
  %v4808 = vsel %vm4806, %v4800, 0.0
  %4809 = vrot.lane.b32.xlu0 %v3457, 24
  %v4810 = vpop.permute.xlu0 %4809
  %4811 = vrot.lane.b32.xlu0 %v3458, 24
  %v4812 = vpop.permute.xlu0 %4811
  %v4813 = vsel %vm166, %v4810, 0
  %v4815 = vsel %vm166, %v4812, 0
  %4817 = vmatprep.subr.mxu0 %v4808
  %4818 = vmatpush1.msra.mxu0 %v4807
  %4819 = vmatprep.subr.mxu0 0.0
  %4820 = vmatpush1.msra.mxu0 0.0
  %4821 = vmatprep.subr.mxu0 0.0
  %4822 = vmatpush1.msra.mxu0 0.0
  %4823 = vmatprep.subr.mxu0 0.0
  %4824 = vmatpush1.msra.mxu0 0.0
  %4825 = vmatprep.subr.mxu0 0.0
  %4826 = vmatpush1.msra.mxu0 0.0
  %4827 = vmatprep.subr.mxu0 0.0
  %4828 = vmatpush1.msra.mxu0 0.0
  %4829 = vmatprep.subr.mxu0 0.0
  %4830 = vmatpush1.msra.mxu0 0.0
  %4831 = vmatprep.subr.mxu0 0.0
  %4832 = vmatpush1.msra.mxu0 0.0
  %4833 = vmatprep.subr.mxu0 0.0
  %4834 = vmatpush1.msra.mxu0 0.0
  %4835 = vmatprep.subr.mxu0 0.0
  %4836 = vmatpush1.msra.mxu0 0.0
  %4837 = vmatprep.subr.mxu0 0.0
  %4838 = vmatpush1.msra.mxu0 0.0
  %4839 = vmatprep.subr.mxu0 0.0
  %4840 = vmatpush1.msra.mxu0 0.0
  %4841 = vmatprep.subr.mxu0 0.0
  %4842 = vmatpush1.msra.mxu0 0.0
  %4843 = vmatprep.subr.mxu0 0.0
  %4844 = vmatpush1.msra.mxu0 0.0
  %4845 = vmatprep.subr.mxu0 0.0
  %4846 = vmatpush1.msra.mxu0 0.0
  %4847 = vmatprep.subr.mxu0 0.0
  %4848 = vmatpush1.msra.mxu0 0.0
  %4849 = vmatprep.subr.mxu0 0.0
  %4850 = vmatpush1.msra.mxu0 0.0
  %4851 = vmatprep.subr.mxu0 0.0
  %4852 = vmatpush1.msra.mxu0 0.0
  %4853 = vmatprep.subr.mxu0 0.0
  %4854 = vmatpush1.msra.mxu0 0.0
  %4855 = vmatprep.subr.mxu0 0.0
  %4856 = vmatpush1.msra.mxu0 0.0
  %4857 = vmatprep.subr.mxu0 0.0
  %4858 = vmatpush1.msra.mxu0 0.0
  %4859 = vmatprep.subr.mxu0 0.0
  %4860 = vmatpush1.msra.mxu0 0.0
  %4861 = vmatprep.subr.mxu0 0.0
  %4862 = vmatpush1.msra.mxu0 0.0
  %4863 = vmatprep.subr.mxu0 0.0
  %4864 = vmatpush1.msra.mxu0 0.0
  %4865 = vmatprep.subr.mxu0 0.0
  %4866 = vmatpush1.msra.mxu0 0.0
  %4867 = vmatprep.subr.mxu0 0.0
  %4868 = vmatpush1.msra.mxu0 0.0
  %4869 = vmatprep.subr.mxu0 0.0
  %4870 = vmatpush1.msra.mxu0 0.0
  %4871 = vmatprep.subr.mxu0 0.0
  %4872 = vmatpush1.msra.mxu0 0.0
  %4873 = vmatprep.subr.mxu0 0.0
  %4874 = vmatpush1.msra.mxu0 0.0
  %4875 = vmatprep.subr.mxu0 0.0
  %4876 = vmatpush1.msra.mxu0 0.0
  %4877 = vmatprep.subr.mxu0 0.0
  %4878 = vmatpush1.msra.mxu0 0.0
  %4879 = vmatprep.subr.mxu0 0.0
  %4880 = vmatpush1.msra.mxu0 0.0
  %4881 = vmatprep.mubr.f32.mxu0 0.0
  %4882 = vmatmul.mubr.f32.gmra.mrb[0].mxu0 %v4813
  %v4883 = vpop.f32.mrb[0].mxu0
  %v4884 = vadd.f32 0.0, %v4883
  %v4885 = vpop.f32.mrb[0].mxu0
  %v4886 = vadd.f32 0.0, %v4885
  %4887 = vmatprep.mubr.f32.mxu0 0.0
  %4888 = vmatmul.mubr.f32.gmra.mrb[0].mxu0 %v4815
  %v4889 = vpop.f32.mrb[0].mxu0
  %v4890 = vadd.f32 0.0, %v4889
  %v4891 = vpop.f32.mrb[0].mxu0
  %v4892 = vadd.f32 0.0, %v4891
  %4893 = vdwg.mxu0
  %v4894 = vadd.f32 %v4790, %v4884
  %v4895 = vadd.f32 %v4791, %v4886
  %v4896 = vadd.f32 %v4792, %v4890
  %v4897 = vadd.f32 %v4793, %v4892
  %4898 = vrot.lane.b32.xlu0 %v11, 79
  %v4899 = vpop.permute.xlu0 %4898
  %4900 = vrot.lane.b32.xlu0 %v12, 79
  %v4901 = vpop.permute.xlu0 %4900
  %vm4902 = vcmp.lt.s32.totalorder %v14, 79
  %v4903 = vsel %vm4902, %v4899, %v4901
  %v4904 = vsel %vm4902, %v4901, %v4899
  %vm4905 = vmand %vm72, %vm110
  %vm4906 = vmand %vm73, %vm111
  %v4907 = vsel %vm4905, 1, 0
  %v4908 = vsel %vm4906, 1, 0
  %vm4909 = vcmp.eq.s32.totalorder %v4907, 1
  %vm4910 = vcmp.eq.s32.totalorder %v4908, 1
  %v4911 = vsel %vm4909, %v4903, 0.0
  %v4912 = vsel %vm4910, %v4904, 0.0
  %4913 = vrot.lane.b32.xlu0 %v3457, 16
  %v4914 = vpop.permute.xlu0 %4913
  %4915 = vrot.lane.b32.xlu0 %v3458, 16
  %v4916 = vpop.permute.xlu0 %4915
  %v4917 = vsel %vm166, %v4914, 0
  %v4919 = vsel %vm166, %v4916, 0
  %4921 = vmatprep.subr.mxu0 %v4912
  %4922 = vmatpush1.msra.mxu0 %v4911
  %4923 = vmatprep.subr.mxu0 0.0
  %4924 = vmatpush1.msra.mxu0 0.0
  %4925 = vmatprep.subr.mxu0 0.0
  %4926 = vmatpush1.msra.mxu0 0.0
  %4927 = vmatprep.subr.mxu0 0.0
  %4928 = vmatpush1.msra.mxu0 0.0
  %4929 = vmatprep.subr.mxu0 0.0
  %4930 = vmatpush1.msra.mxu0 0.0
  %4931 = vmatprep.subr.mxu0 0.0
  %4932 = vmatpush1.msra.mxu0 0.0
  %4933 = vmatprep.subr.mxu0 0.0
  %4934 = vmatpush1.msra.mxu0 0.0
  %4935 = vmatprep.subr.mxu0 0.0
  %4936 = vmatpush1.msra.mxu0 0.0
  %4937 = vmatprep.subr.mxu0 0.0
  %4938 = vmatpush1.msra.mxu0 0.0
  %4939 = vmatprep.subr.mxu0 0.0
  %4940 = vmatpush1.msra.mxu0 0.0
  %4941 = vmatprep.subr.mxu0 0.0
  %4942 = vmatpush1.msra.mxu0 0.0
  %4943 = vmatprep.subr.mxu0 0.0
  %4944 = vmatpush1.msra.mxu0 0.0
  %4945 = vmatprep.subr.mxu0 0.0
  %4946 = vmatpush1.msra.mxu0 0.0
  %4947 = vmatprep.subr.mxu0 0.0
  %4948 = vmatpush1.msra.mxu0 0.0
  %4949 = vmatprep.subr.mxu0 0.0
  %4950 = vmatpush1.msra.mxu0 0.0
  %4951 = vmatprep.subr.mxu0 0.0
  %4952 = vmatpush1.msra.mxu0 0.0
  %4953 = vmatprep.subr.mxu0 0.0
  %4954 = vmatpush1.msra.mxu0 0.0
  %4955 = vmatprep.subr.mxu0 0.0
  %4956 = vmatpush1.msra.mxu0 0.0
  %4957 = vmatprep.subr.mxu0 0.0
  %4958 = vmatpush1.msra.mxu0 0.0
  %4959 = vmatprep.subr.mxu0 0.0
  %4960 = vmatpush1.msra.mxu0 0.0
  %4961 = vmatprep.subr.mxu0 0.0
  %4962 = vmatpush1.msra.mxu0 0.0
  %4963 = vmatprep.subr.mxu0 0.0
  %4964 = vmatpush1.msra.mxu0 0.0
  %4965 = vmatprep.subr.mxu0 0.0
  %4966 = vmatpush1.msra.mxu0 0.0
  %4967 = vmatprep.subr.mxu0 0.0
  %4968 = vmatpush1.msra.mxu0 0.0
  %4969 = vmatprep.subr.mxu0 0.0
  %4970 = vmatpush1.msra.mxu0 0.0
  %4971 = vmatprep.subr.mxu0 0.0
  %4972 = vmatpush1.msra.mxu0 0.0
  %4973 = vmatprep.subr.mxu0 0.0
  %4974 = vmatpush1.msra.mxu0 0.0
  %4975 = vmatprep.subr.mxu0 0.0
  %4976 = vmatpush1.msra.mxu0 0.0
  %4977 = vmatprep.subr.mxu0 0.0
  %4978 = vmatpush1.msra.mxu0 0.0
  %4979 = vmatprep.subr.mxu0 0.0
  %4980 = vmatpush1.msra.mxu0 0.0
  %4981 = vmatprep.subr.mxu0 0.0
  %4982 = vmatpush1.msra.mxu0 0.0
  %4983 = vmatprep.subr.mxu0 0.0
  %4984 = vmatpush1.msra.mxu0 0.0
  %4985 = vmatprep.mubr.f32.mxu0 0.0
  %4986 = vmatmul.mubr.f32.gmra.mrb[0].mxu0 %v4917
  %v4987 = vpop.f32.mrb[0].mxu0
  %v4988 = vadd.f32 0.0, %v4987
  %v4989 = vpop.f32.mrb[0].mxu0
  %v4990 = vadd.f32 0.0, %v4989
  %4991 = vmatprep.mubr.f32.mxu0 0.0
  %4992 = vmatmul.mubr.f32.gmra.mrb[0].mxu0 %v4919
  %v4993 = vpop.f32.mrb[0].mxu0
  %v4994 = vadd.f32 0.0, %v4993
  %v4995 = vpop.f32.mrb[0].mxu0
  %v4996 = vadd.f32 0.0, %v4995
  %4997 = vdwg.mxu0
  %v4998 = vadd.f32 %v4894, %v4988
  %v4999 = vadd.f32 %v4895, %v4990
  %v5000 = vadd.f32 %v4896, %v4994
  %v5001 = vadd.f32 %v4897, %v4996
  %5002 = vrot.lane.b32.xlu0 %v11, 78
  %v5003 = vpop.permute.xlu0 %5002
  %5004 = vrot.lane.b32.xlu0 %v12, 78
  %v5005 = vpop.permute.xlu0 %5004
  %vm5006 = vcmp.lt.s32.totalorder %v14, 78
  %v5007 = vsel %vm5006, %v5003, %v5005
  %v5008 = vsel %vm5006, %v5005, %v5003
  %vm5009 = vmand %vm72, %vm118
  %vm5010 = vmand %vm73, %vm119
  %v5011 = vsel %vm5009, 1, 0
  %v5012 = vsel %vm5010, 1, 0
  %vm5013 = vcmp.eq.s32.totalorder %v5011, 1
  %vm5014 = vcmp.eq.s32.totalorder %v5012, 1
  %v5015 = vsel %vm5013, %v5007, 0.0
  %v5016 = vsel %vm5014, %v5008, 0.0
  %5017 = vrot.lane.b32.xlu0 %v3457, 8
  %v5018 = vpop.permute.xlu0 %5017
  %5019 = vrot.lane.b32.xlu0 %v3458, 8
  %v5020 = vpop.permute.xlu0 %5019
  %v5021 = vsel %vm166, %v5018, 0
  %v5023 = vsel %vm166, %v5020, 0
  %5025 = vmatprep.subr.mxu0 %v5016
  %5026 = vmatpush1.msra.mxu0 %v5015
  %5027 = vmatprep.subr.mxu0 0.0
  %5028 = vmatpush1.msra.mxu0 0.0
  %5029 = vmatprep.subr.mxu0 0.0
  %5030 = vmatpush1.msra.mxu0 0.0
  %5031 = vmatprep.subr.mxu0 0.0
  %5032 = vmatpush1.msra.mxu0 0.0
  %5033 = vmatprep.subr.mxu0 0.0
  %5034 = vmatpush1.msra.mxu0 0.0
  %5035 = vmatprep.subr.mxu0 0.0
  %5036 = vmatpush1.msra.mxu0 0.0
  %5037 = vmatprep.subr.mxu0 0.0
  %5038 = vmatpush1.msra.mxu0 0.0
  %5039 = vmatprep.subr.mxu0 0.0
  %5040 = vmatpush1.msra.mxu0 0.0
  %5041 = vmatprep.subr.mxu0 0.0
  %5042 = vmatpush1.msra.mxu0 0.0
  %5043 = vmatprep.subr.mxu0 0.0
  %5044 = vmatpush1.msra.mxu0 0.0
  %5045 = vmatprep.subr.mxu0 0.0
  %5046 = vmatpush1.msra.mxu0 0.0
  %5047 = vmatprep.subr.mxu0 0.0
  %5048 = vmatpush1.msra.mxu0 0.0
  %5049 = vmatprep.subr.mxu0 0.0
  %5050 = vmatpush1.msra.mxu0 0.0
  %5051 = vmatprep.subr.mxu0 0.0
  %5052 = vmatpush1.msra.mxu0 0.0
  %5053 = vmatprep.subr.mxu0 0.0
  %5054 = vmatpush1.msra.mxu0 0.0
  %5055 = vmatprep.subr.mxu0 0.0
  %5056 = vmatpush1.msra.mxu0 0.0
  %5057 = vmatprep.subr.mxu0 0.0
  %5058 = vmatpush1.msra.mxu0 0.0
  %5059 = vmatprep.subr.mxu0 0.0
  %5060 = vmatpush1.msra.mxu0 0.0
  %5061 = vmatprep.subr.mxu0 0.0
  %5062 = vmatpush1.msra.mxu0 0.0
  %5063 = vmatprep.subr.mxu0 0.0
  %5064 = vmatpush1.msra.mxu0 0.0
  %5065 = vmatprep.subr.mxu0 0.0
  %5066 = vmatpush1.msra.mxu0 0.0
  %5067 = vmatprep.subr.mxu0 0.0
  %5068 = vmatpush1.msra.mxu0 0.0
  %5069 = vmatprep.subr.mxu0 0.0
  %5070 = vmatpush1.msra.mxu0 0.0
  %5071 = vmatprep.subr.mxu0 0.0
  %5072 = vmatpush1.msra.mxu0 0.0
  %5073 = vmatprep.subr.mxu0 0.0
  %5074 = vmatpush1.msra.mxu0 0.0
  %5075 = vmatprep.subr.mxu0 0.0
  %5076 = vmatpush1.msra.mxu0 0.0
  %5077 = vmatprep.subr.mxu0 0.0
  %5078 = vmatpush1.msra.mxu0 0.0
  %5079 = vmatprep.subr.mxu0 0.0
  %5080 = vmatpush1.msra.mxu0 0.0
  %5081 = vmatprep.subr.mxu0 0.0
  %5082 = vmatpush1.msra.mxu0 0.0
  %5083 = vmatprep.subr.mxu0 0.0
  %5084 = vmatpush1.msra.mxu0 0.0
  %5085 = vmatprep.subr.mxu0 0.0
  %5086 = vmatpush1.msra.mxu0 0.0
  %5087 = vmatprep.subr.mxu0 0.0
  %5088 = vmatpush1.msra.mxu0 0.0
  %5089 = vmatprep.mubr.f32.mxu0 0.0
  %5090 = vmatmul.mubr.f32.gmra.mrb[0].mxu0 %v5021
  %v5091 = vpop.f32.mrb[0].mxu0
  %v5092 = vadd.f32 0.0, %v5091
  %v5093 = vpop.f32.mrb[0].mxu0
  %v5094 = vadd.f32 0.0, %v5093
  %5095 = vmatprep.mubr.f32.mxu0 0.0
  %5096 = vmatmul.mubr.f32.gmra.mrb[0].mxu0 %v5023
  %v5097 = vpop.f32.mrb[0].mxu0
  %v5098 = vadd.f32 0.0, %v5097
  %v5099 = vpop.f32.mrb[0].mxu0
  %v5100 = vadd.f32 0.0, %v5099
  %5101 = vdwg.mxu0
  %v5102 = vadd.f32 %v4998, %v5092
  %v5103 = vadd.f32 %v4999, %v5094
  %v5104 = vadd.f32 %v5000, %v5098
  %v5105 = vadd.f32 %v5001, %v5100
  %5106 = vrot.lane.b32.xlu0 %v11, 77
  %v5107 = vpop.permute.xlu0 %5106
  %5108 = vrot.lane.b32.xlu0 %v12, 77
  %v5109 = vpop.permute.xlu0 %5108
  %vm5110 = vcmp.lt.s32.totalorder %v14, 77
  %v5111 = vsel %vm5110, %v5107, %v5109
  %v5112 = vsel %vm5110, %v5109, %v5107
  %vm5113 = vmand %vm72, %vm126
  %vm5114 = vmand %vm73, %vm127
  %v5115 = vsel %vm5113, 1, 0
  %v5116 = vsel %vm5114, 1, 0
  %vm5117 = vcmp.eq.s32.totalorder %v5115, 1
  %vm5118 = vcmp.eq.s32.totalorder %v5116, 1
  %v5119 = vsel %vm5117, %v5111, 0.0
  %v5120 = vsel %vm5118, %v5112, 0.0
  %v5121 = vld [vmem:[%s1 + $0x18] sm:$0xff]
  %v5122 = vld [vmem:[%s1 + $0x38] sm:$0xff]
  %v5124 = vsel %vm166, %v5121, 0
  %v5127 = vsel %vm166, %v5122, 0
  %5129 = vmatprep.subr.mxu0 %v5120
  %5130 = vmatpush1.msra.mxu0 %v5119
  %5131 = vmatprep.subr.mxu0 0.0
  %5132 = vmatpush1.msra.mxu0 0.0
  %5133 = vmatprep.subr.mxu0 0.0
  %5134 = vmatpush1.msra.mxu0 0.0
  %5135 = vmatprep.subr.mxu0 0.0
  %5136 = vmatpush1.msra.mxu0 0.0
  %5137 = vmatprep.subr.mxu0 0.0
  %5138 = vmatpush1.msra.mxu0 0.0
  %5139 = vmatprep.subr.mxu0 0.0
  %5140 = vmatpush1.msra.mxu0 0.0
  %5141 = vmatprep.subr.mxu0 0.0
  %5142 = vmatpush1.msra.mxu0 0.0
  %5143 = vmatprep.subr.mxu0 0.0
  %5144 = vmatpush1.msra.mxu0 0.0
  %5145 = vmatprep.subr.mxu0 0.0
  %5146 = vmatpush1.msra.mxu0 0.0
  %5147 = vmatprep.subr.mxu0 0.0
  %5148 = vmatpush1.msra.mxu0 0.0
  %5149 = vmatprep.subr.mxu0 0.0
  %5150 = vmatpush1.msra.mxu0 0.0
  %5151 = vmatprep.subr.mxu0 0.0
  %5152 = vmatpush1.msra.mxu0 0.0
  %5153 = vmatprep.subr.mxu0 0.0
  %5154 = vmatpush1.msra.mxu0 0.0
  %5155 = vmatprep.subr.mxu0 0.0
  %5156 = vmatpush1.msra.mxu0 0.0
  %5157 = vmatprep.subr.mxu0 0.0
  %5158 = vmatpush1.msra.mxu0 0.0
  %5159 = vmatprep.subr.mxu0 0.0
  %5160 = vmatpush1.msra.mxu0 0.0
  %5161 = vmatprep.subr.mxu0 0.0
  %5162 = vmatpush1.msra.mxu0 0.0
  %5163 = vmatprep.subr.mxu0 0.0
  %5164 = vmatpush1.msra.mxu0 0.0
  %5165 = vmatprep.subr.mxu0 0.0
  %5166 = vmatpush1.msra.mxu0 0.0
  %5167 = vmatprep.subr.mxu0 0.0
  %5168 = vmatpush1.msra.mxu0 0.0
  %5169 = vmatprep.subr.mxu0 0.0
  %5170 = vmatpush1.msra.mxu0 0.0
  %5171 = vmatprep.subr.mxu0 0.0
  %5172 = vmatpush1.msra.mxu0 0.0
  %5173 = vmatprep.subr.mxu0 0.0
  %5174 = vmatpush1.msra.mxu0 0.0
  %5175 = vmatprep.subr.mxu0 0.0
  %5176 = vmatpush1.msra.mxu0 0.0
  %5177 = vmatprep.subr.mxu0 0.0
  %5178 = vmatpush1.msra.mxu0 0.0
  %5179 = vmatprep.subr.mxu0 0.0
  %5180 = vmatpush1.msra.mxu0 0.0
  %5181 = vmatprep.subr.mxu0 0.0
  %5182 = vmatpush1.msra.mxu0 0.0
  %5183 = vmatprep.subr.mxu0 0.0
  %5184 = vmatpush1.msra.mxu0 0.0
  %5185 = vmatprep.subr.mxu0 0.0
  %5186 = vmatpush1.msra.mxu0 0.0
  %5187 = vmatprep.subr.mxu0 0.0
  %5188 = vmatpush1.msra.mxu0 0.0
  %5189 = vmatprep.subr.mxu0 0.0
  %5190 = vmatpush1.msra.mxu0 0.0
  %5191 = vmatprep.subr.mxu0 0.0
  %5192 = vmatpush1.msra.mxu0 0.0
  %5193 = vmatprep.mubr.f32.mxu0 0.0
  %5194 = vmatmul.mubr.f32.gmra.mrb[0].mxu0 %v5124
  %v5195 = vpop.f32.mrb[0].mxu0
  %v5196 = vadd.f32 0.0, %v5195
  %v5197 = vpop.f32.mrb[0].mxu0
  %v5198 = vadd.f32 0.0, %v5197
  %5199 = vmatprep.mubr.f32.mxu0 0.0
  %5200 = vmatmul.mubr.f32.gmra.mrb[0].mxu0 %v5127
  %v5201 = vpop.f32.mrb[0].mxu0
  %v5202 = vadd.f32 0.0, %v5201
  %v5203 = vpop.f32.mrb[0].mxu0
  %v5204 = vadd.f32 0.0, %v5203
  %5205 = vdwg.mxu0
  %v5206 = vadd.f32 %v5102, %v5196
  %v5207 = vadd.f32 %v5103, %v5198
  %v5208 = vadd.f32 %v5104, %v5202
  %v5209 = vadd.f32 %v5105, %v5204
  %v5210 = vand.u32 %v16, 1
  %v5211 = vand.u32 %v17, 1
  %vm5212 = vcmp.eq.s32.totalorder %v5210, 0
  %vm5213 = vcmp.eq.s32.totalorder %v5211, 0
  %v5214 = vand.u32 %v18, 1
  %v5215 = vand.u32 %v19, 1
  %vm5216 = vcmp.eq.s32.totalorder %v5214, 0
  %vm5217 = vcmp.eq.s32.totalorder %v5215, 0
  %vm5218 = vmand %vm5212, %vm5216
  %vm5219 = vmand %vm5213, %vm5217
  %v5220 = vsel %vm5218, 1.0, 0.0
  %v5221 = vsel %vm5219, 1.0, 0.0
  %v5222 = vmul.f32 %v5206, %v5220
  %v5223 = vmul.f32 %v5207, %v5221
  %v5224 = vmul.f32 %v5208, %v5220
  %v5225 = vmul.f32 %v5209, %v5221
  %v5226 = vadd.f32 %v5222, %v5223
  %5227 = vadd.xlane.f32.xlu0 %v5226
  %v5228 = vpop.xlane.xlu0 %5227
  %v5229 = vadd.f32 %v5224, %v5225
  %5230 = vadd.xlane.f32.xlu0 %v5229
  %v5231 = vpop.xlane.xlu0 %5230
  %v5232 = vadd.f32 %v5228, %v5231
  %v5233 = vmul.f32 %v5232, 0.0078125
  %5235 = vset.pattern.permute.xlu0 0
  %5236 = vperm.xlu0 %5235, %v5233
  %v5237 = vpop.permute.xlu0 %5236
  %v5239 = vsub.f32 %v5206, %v5237
  %v5240 = vsub.f32 %v5207, %v5237
  %v5241 = vsub.f32 %v5208, %v5237
  %v5242 = vsub.f32 %v5209, %v5237
  %v5243 = vmul.f32 %v5239, %v5220
  %v5244 = vmul.f32 %v5240, %v5221
  %v5245 = vmul.f32 %v5241, %v5220
  %v5246 = vmul.f32 %v5242, %v5221
  %v5247 = vmul.f32 %v5243, %v5243
  %v5248 = vmul.f32 %v5244, %v5244
  %v5249 = vmul.f32 %v5245, %v5245
  %v5250 = vmul.f32 %v5246, %v5246
  %v5251 = vadd.f32 %v5247, %v5248
  %5252 = vadd.xlane.f32.xlu0 %v5251
  %v5253 = vpop.xlane.xlu0 %5252
  %v5254 = vadd.f32 %v5249, %v5250
  %5255 = vadd.xlane.f32.xlu0 %v5254
  %v5256 = vpop.xlane.xlu0 %5255
  %v5257 = vadd.f32 %v5253, %v5256
  %v5258 = vmul.f32 %v5257, 0.0078125
  %v5259 = vld [vmem:[%s1 + $0x18] sm:$0xff]
  %v5260 = vadd.f32 %v5258, 1e-05
  %v5261 = vrsqrt.pop %v5260
  %v5262 = vmul.f32 %v5259, %v5261
  %v5263 = vmul.f32 %v5233, %v5262
  %5265 = vrot.lane.b32.xlu0 %v5263, 1
  %v5266 = vpop.permute.xlu0 %5265
  %v5268 = vsub.f32 %v5259, %v5266
  %5270 = vset.pattern.permute.xlu0 8
  %5271 = vperm.xlu0 %5270, %v5262
  %v5272 = vpop.permute.xlu0 %5271
  %v5274 = vmul.f32 %v5206, %v5272
  %v5275 = vmul.f32 %v5207, %v5272
  %v5276 = vmul.f32 %v5208, %v5272
  %v5277 = vmul.f32 %v5209, %v5272
  %5279 = vset.pattern.permute.xlu0 9
  %5280 = vperm.xlu0 %5279, %v5268
  %v5281 = vpop.permute.xlu0 %5280
  %v5283 = vadd.f32 %v5274, %v5281
  %v5284 = vadd.f32 %v5275, %v5281
  %v5285 = vadd.f32 %v5276, %v5281
  %v5286 = vadd.f32 %v5277, %v5281
  %vm5287 = vcmp.ge.f32.partialorder %v5283, 0.0
  %vm5288 = vcmp.ge.f32.partialorder %v5284, 0.0
  %vm5289 = vcmp.ge.f32.partialorder %v5285, 0.0
  %vm5290 = vcmp.ge.f32.partialorder %v5286, 0.0
  %v5291 = vmul.f32 %v5283, 0.01
  %v5292 = vmul.f32 %v5284, 0.01
  %v5293 = vmul.f32 %v5285, 0.01
  %v5294 = vmul.f32 %v5286, 0.01
  %v5295 = vsel %vm5287, %v5283, %v5291
  %v5296 = vsel %vm5288, %v5284, %v5292
  %v5297 = vsel %vm5289, %v5285, %v5293
  %v5298 = vsel %vm5290, %v5286, %v5294
  %v5299 = vshra.s32 %v14, 5
  %v5300 = vshra.s32 %v15, 5
  %v5301 = vshra.s32 %v14, 1
  %v5302 = vshra.s32 %v15, 1
  %v5303 = vand.u32 %v5301, 15
  %v5304 = vand.u32 %v5302, 15
  %vm5305 = vcmp.eq.s32.totalorder %v5303, 0
  %vm5306 = vcmp.eq.s32.totalorder %v5304, 0
  %5307 = vrot.lane.b32.xlu0 %v5295, 2
  %v5308 = vpop.permute.xlu0 %5307
  %5309 = vrot.lane.b32.xlu0 %v5297, 2
  %v5310 = vpop.permute.xlu0 %5309
  %5311 = vrot.lane.b32.xlu0 %v5296, 2
  %v5312 = vpop.permute.xlu0 %5311
  %5313 = vrot.lane.b32.xlu0 %v5298, 2
  %v5314 = vpop.permute.xlu0 %5313
  %v5315 = vsel %vm2413, %v5308, %v5312
  %v5316 = vsel %vm2413, %v5310, %v5314
  %v5317 = vsel %vm2413, %v5312, %v5308
  %v5318 = vsel %vm2413, %v5314, %v5310
  %v5319 = vsel %vm5305, 1, 0
  %v5320 = vsel %vm5306, 1, 0
  %vm5321 = vcmp.eq.s32.totalorder %v5319, 1
  %vm5322 = vcmp.eq.s32.totalorder %v5320, 1
  %v5323 = vsel %vm5321, -3e+38, %v5317
  %v5324 = vsel %vm5322, -3e+38, %v5315
  %v5325 = vsel %vm5321, -3e+38, %v5318
  %v5326 = vsel %vm5322, -3e+38, %v5316
  %vm5327 = vcmp.eq.s32.totalorder %v5303, 7
  %vm5328 = vcmp.eq.s32.totalorder %v5304, 7
  %5329 = vrot.lane.b32.xlu0 %v5295, 126
  %v5330 = vpop.permute.xlu0 %5329
  %5331 = vrot.lane.b32.xlu0 %v5297, 126
  %v5332 = vpop.permute.xlu0 %5331
  %5333 = vrot.lane.b32.xlu0 %v5296, 126
  %v5334 = vpop.permute.xlu0 %5333
  %5335 = vrot.lane.b32.xlu0 %v5298, 126
  %v5336 = vpop.permute.xlu0 %5335
  %v5337 = vsel %vm2822, %v5330, %v5334
  %v5338 = vsel %vm2822, %v5332, %v5336
  %v5339 = vsel %vm2822, %v5334, %v5330
  %v5340 = vsel %vm2822, %v5336, %v5332
  %v5341 = vsel %vm5327, 1, 0
  %v5342 = vsel %vm5328, 1, 0
  %vm5343 = vcmp.eq.s32.totalorder %v5341, 1
  %vm5344 = vcmp.eq.s32.totalorder %v5342, 1
  %v5345 = vsel %vm5343, -3e+38, %v5337
  %v5346 = vsel %vm5344, -3e+38, %v5339
  %v5347 = vsel %vm5343, -3e+38, %v5338
  %v5348 = vsel %vm5344, -3e+38, %v5340
  %v5349 = vmax.f32 %v5323, %v5295
  %v5350 = vmax.f32 %v5324, %v5296
  %v5351 = vmax.f32 %v5325, %v5297
  %v5352 = vmax.f32 %v5326, %v5298
  %v5353 = vmax.f32 %v5349, %v5345
  %v5354 = vmax.f32 %v5350, %v5346
  %v5355 = vmax.f32 %v5351, %v5347
  %v5356 = vmax.f32 %v5352, %v5348
  %vm5357 = vcmp.eq.s32.totalorder %v5299, 0
  %vm5358 = vcmp.eq.s32.totalorder %v5300, 0
  %5359 = vrot.lane.b32.xlu0 %v5353, 32
  %v5360 = vpop.permute.xlu0 %5359
  %5361 = vrot.lane.b32.xlu0 %v5355, 32
  %v5362 = vpop.permute.xlu0 %5361
  %5363 = vrot.lane.b32.xlu0 %v5354, 32
  %v5364 = vpop.permute.xlu0 %5363
  %5365 = vrot.lane.b32.xlu0 %v5356, 32
  %v5366 = vpop.permute.xlu0 %5365
  %v5367 = vsel %vm1165, %v5360, %v5364
  %v5368 = vsel %vm1165, %v5362, %v5366
  %v5369 = vsel %vm1165, %v5364, %v5360
  %v5370 = vsel %vm1165, %v5366, %v5362
  %v5371 = vsel %vm5357, 1, 0
  %v5372 = vsel %vm5358, 1, 0
  %vm5373 = vcmp.eq.s32.totalorder %v5371, 1
  %vm5374 = vcmp.eq.s32.totalorder %v5372, 1
  %v5375 = vsel %vm5373, -3e+38, %v5369
  %v5376 = vsel %vm5374, -3e+38, %v5367
  %v5377 = vsel %vm5373, -3e+38, %v5370
  %v5378 = vsel %vm5374, -3e+38, %v5368
  %vm5379 = vcmp.eq.s32.totalorder %v5299, 7
  %vm5380 = vcmp.eq.s32.totalorder %v5300, 7
  %5381 = vrot.lane.b32.xlu0 %v5353, 96
  %v5382 = vpop.permute.xlu0 %5381
  %5383 = vrot.lane.b32.xlu0 %v5355, 96
  %v5384 = vpop.permute.xlu0 %5383
  %5385 = vrot.lane.b32.xlu0 %v5354, 96
  %v5386 = vpop.permute.xlu0 %5385
  %5387 = vrot.lane.b32.xlu0 %v5356, 96
  %v5388 = vpop.permute.xlu0 %5387
  %v5389 = vsel %vm4070, %v5382, %v5386
  %v5390 = vsel %vm4070, %v5384, %v5388
  %v5391 = vsel %vm4070, %v5386, %v5382
  %v5392 = vsel %vm4070, %v5388, %v5384
  %v5393 = vsel %vm5379, 1, 0
  %v5394 = vsel %vm5380, 1, 0
  %vm5395 = vcmp.eq.s32.totalorder %v5393, 1
  %vm5396 = vcmp.eq.s32.totalorder %v5394, 1
  %v5397 = vsel %vm5395, -3e+38, %v5389
  %v5398 = vsel %vm5396, -3e+38, %v5391
  %v5399 = vsel %vm5395, -3e+38, %v5390
  %v5400 = vsel %vm5396, -3e+38, %v5392
  %v5401 = vmax.f32 %v5375, %v5353
  %v5402 = vmax.f32 %v5376, %v5354
  %v5403 = vmax.f32 %v5377, %v5355
  %v5404 = vmax.f32 %v5378, %v5356
  %v5405 = vmax.f32 %v5401, %v5397
  %v5406 = vmax.f32 %v5402, %v5398
  %v5407 = vmax.f32 %v5403, %v5399
  %v5408 = vmax.f32 %v5404, %v5400
  %v5409 = vlaneseq
  %v5410 = vshrl.u32 %v5409, 7
  %v5411 = vadd.s32 %v5410, 8
  %v5412 = vadd.s32 %v5410, 16
  %v5413 = vadd.s32 %v5410, 24
  %v5414 = vadd.s32 %v5410, 32
  %v5415 = vadd.s32 %v5410, 40
  %v5416 = vadd.s32 %v5410, 48
  %v5417 = vadd.s32 %v5410, 56
  %v5418 = vadd.s32 %v5410, 64
  %v5419 = vadd.s32 %v5410, 72
  %v5420 = vadd.s32 %v5410, 80
  %v5421 = vadd.s32 %v5410, 88
  %v5422 = vadd.s32 %v5410, 96
  %v5423 = vadd.s32 %v5410, 104
  %v5424 = vadd.s32 %v5410, 112
  %v5425 = vadd.s32 %v5410, 120
  %v5426 = vadd.s32 %v5410, 128
  %v5427 = vadd.s32 %v5410, 136
  %v5428 = vadd.s32 %v5410, 144
  %v5429 = vadd.s32 %v5410, 152
  %v5430 = vadd.s32 %v5410, 160
  %v5431 = vadd.s32 %v5410, 168
  %v5432 = vadd.s32 %v5410, 176
  %v5433 = vadd.s32 %v5410, 184
  %v5434 = vadd.s32 %v5410, 192
  %v5435 = vadd.s32 %v5410, 200
  %v5436 = vadd.s32 %v5410, 208
  %v5437 = vadd.s32 %v5410, 216
  %v5438 = vadd.s32 %v5410, 224
  %v5439 = vadd.s32 %v5410, 232
  %v5440 = vadd.s32 %v5410, 240
  %v5441 = vadd.s32 %v5410, 248
  %v5442 = vshra.s32 %v14, 2
  %v5443 = vmul.u32 %v5442, 64
  %v5444 = vand.u32 %v14, 3
  %v5445 = vmul.u32 %v5444, 4
  %v5446 = vadd.s32 %v5443, %v5445
  %vm5447 = vcmp.eq.s32.totalorder %v5410, %v5446
  %vm5448 = vcmp.eq.s32.totalorder %v5411, %v5446
  %vm5449 = vcmp.eq.s32.totalorder %v5412, %v5446
  %vm5450 = vcmp.eq.s32.totalorder %v5413, %v5446
  %vm5451 = vcmp.eq.s32.totalorder %v5414, %v5446
  %vm5452 = vcmp.eq.s32.totalorder %v5415, %v5446
  %vm5453 = vcmp.eq.s32.totalorder %v5416, %v5446
  %vm5454 = vcmp.eq.s32.totalorder %v5417, %v5446
  %vm5455 = vcmp.eq.s32.totalorder %v5418, %v5446
  %vm5456 = vcmp.eq.s32.totalorder %v5419, %v5446
  %vm5457 = vcmp.eq.s32.totalorder %v5420, %v5446
  %vm5458 = vcmp.eq.s32.totalorder %v5421, %v5446
  %vm5459 = vcmp.eq.s32.totalorder %v5422, %v5446
  %vm5460 = vcmp.eq.s32.totalorder %v5423, %v5446
  %vm5461 = vcmp.eq.s32.totalorder %v5424, %v5446
  %vm5462 = vcmp.eq.s32.totalorder %v5425, %v5446
  %vm5463 = vcmp.eq.s32.totalorder %v5426, %v5446
  %vm5464 = vcmp.eq.s32.totalorder %v5427, %v5446
  %vm5465 = vcmp.eq.s32.totalorder %v5428, %v5446
  %vm5466 = vcmp.eq.s32.totalorder %v5429, %v5446
  %vm5467 = vcmp.eq.s32.totalorder %v5430, %v5446
  %vm5468 = vcmp.eq.s32.totalorder %v5431, %v5446
  %vm5469 = vcmp.eq.s32.totalorder %v5432, %v5446
  %vm5470 = vcmp.eq.s32.totalorder %v5433, %v5446
  %vm5471 = vcmp.eq.s32.totalorder %v5434, %v5446
  %vm5472 = vcmp.eq.s32.totalorder %v5435, %v5446
  %vm5473 = vcmp.eq.s32.totalorder %v5436, %v5446
  %vm5474 = vcmp.eq.s32.totalorder %v5437, %v5446
  %vm5475 = vcmp.eq.s32.totalorder %v5438, %v5446
  %vm5476 = vcmp.eq.s32.totalorder %v5439, %v5446
  %vm5477 = vcmp.eq.s32.totalorder %v5440, %v5446
  %vm5478 = vcmp.eq.s32.totalorder %v5441, %v5446
  %v5479 = vsel %vm5447, 1, 0
  %v5480 = vsel %vm5448, 1, 0
  %v5481 = vsel %vm5449, 1, 0
  %v5482 = vsel %vm5450, 1, 0
  %v5483 = vsel %vm5451, 1, 0
  %v5484 = vsel %vm5452, 1, 0
  %v5485 = vsel %vm5453, 1, 0
  %v5486 = vsel %vm5454, 1, 0
  %v5487 = vsel %vm5455, 1, 0
  %v5488 = vsel %vm5456, 1, 0
  %v5489 = vsel %vm5457, 1, 0
  %v5490 = vsel %vm5458, 1, 0
  %v5491 = vsel %vm5459, 1, 0
  %v5492 = vsel %vm5460, 1, 0
  %v5493 = vsel %vm5461, 1, 0
  %v5494 = vsel %vm5462, 1, 0
  %v5495 = vsel %vm5463, 1, 0
  %v5496 = vsel %vm5464, 1, 0
  %v5497 = vsel %vm5465, 1, 0
  %v5498 = vsel %vm5466, 1, 0
  %v5499 = vsel %vm5467, 1, 0
  %v5500 = vsel %vm5468, 1, 0
  %v5501 = vsel %vm5469, 1, 0
  %v5502 = vsel %vm5470, 1, 0
  %v5503 = vsel %vm5471, 1, 0
  %v5504 = vsel %vm5472, 1, 0
  %v5505 = vsel %vm5473, 1, 0
  %v5506 = vsel %vm5474, 1, 0
  %v5507 = vsel %vm5475, 1, 0
  %v5508 = vsel %vm5476, 1, 0
  %v5509 = vsel %vm5477, 1, 0
  %v5510 = vsel %vm5478, 1, 0
  %v5511 = vcvt.s32.f32 %v5479
  %v5512 = vcvt.s32.f32 %v5480
  %v5513 = vcvt.s32.f32 %v5481
  %v5514 = vcvt.s32.f32 %v5482
  %v5515 = vcvt.s32.f32 %v5483
  %v5516 = vcvt.s32.f32 %v5484
  %v5517 = vcvt.s32.f32 %v5485
  %v5518 = vcvt.s32.f32 %v5486
  %v5519 = vcvt.s32.f32 %v5487
  %v5520 = vcvt.s32.f32 %v5488
  %v5521 = vcvt.s32.f32 %v5489
  %v5522 = vcvt.s32.f32 %v5490
  %v5523 = vcvt.s32.f32 %v5491
  %v5524 = vcvt.s32.f32 %v5492
  %v5525 = vcvt.s32.f32 %v5493
  %v5526 = vcvt.s32.f32 %v5494
  %v5527 = vcvt.s32.f32 %v5495
  %v5528 = vcvt.s32.f32 %v5496
  %v5529 = vcvt.s32.f32 %v5497
  %v5530 = vcvt.s32.f32 %v5498
  %v5531 = vcvt.s32.f32 %v5499
  %v5532 = vcvt.s32.f32 %v5500
  %v5533 = vcvt.s32.f32 %v5501
  %v5534 = vcvt.s32.f32 %v5502
  %v5535 = vcvt.s32.f32 %v5503
  %v5536 = vcvt.s32.f32 %v5504
  %v5537 = vcvt.s32.f32 %v5505
  %v5538 = vcvt.s32.f32 %v5506
  %v5539 = vcvt.s32.f32 %v5507
  %v5540 = vcvt.s32.f32 %v5508
  %v5541 = vcvt.s32.f32 %v5509
  %v5542 = vcvt.s32.f32 %v5510
  %5543 = vmatprep.subr.mxu0 0.0
  %5544 = vmatpush1.msra.mxu0 %v5511
  %5545 = vmatprep.subr.mxu0 0.0
  %5546 = vmatpush1.msra.mxu0 %v5512
  %5547 = vmatprep.subr.mxu0 0.0
  %5548 = vmatpush1.msra.mxu0 %v5513
  %5549 = vmatprep.subr.mxu0 0.0
  %5550 = vmatpush1.msra.mxu0 %v5514
  %5551 = vmatprep.subr.mxu0 0.0
  %5552 = vmatpush1.msra.mxu0 %v5515
  %5553 = vmatprep.subr.mxu0 0.0
  %5554 = vmatpush1.msra.mxu0 %v5516
  %5555 = vmatprep.subr.mxu0 0.0
  %5556 = vmatpush1.msra.mxu0 %v5517
  %5557 = vmatprep.subr.mxu0 0.0
  %5558 = vmatpush1.msra.mxu0 %v5518
  %5559 = vmatprep.subr.mxu0 0.0
  %5560 = vmatpush1.msra.mxu0 %v5519
  %5561 = vmatprep.subr.mxu0 0.0
  %5562 = vmatpush1.msra.mxu0 %v5520
  %5563 = vmatprep.subr.mxu0 0.0
  %5564 = vmatpush1.msra.mxu0 %v5521
  %5565 = vmatprep.subr.mxu0 0.0
  %5566 = vmatpush1.msra.mxu0 %v5522
  %5567 = vmatprep.subr.mxu0 0.0
  %5568 = vmatpush1.msra.mxu0 %v5523
  %5569 = vmatprep.subr.mxu0 0.0
  %5570 = vmatpush1.msra.mxu0 %v5524
  %5571 = vmatprep.subr.mxu0 0.0
  %5572 = vmatpush1.msra.mxu0 %v5525
  %5573 = vmatprep.subr.mxu0 0.0
  %5574 = vmatpush1.msra.mxu0 %v5526
  %5575 = vmatprep.subr.mxu0 0.0
  %5576 = vmatpush1.msra.mxu0 %v5527
  %5577 = vmatprep.subr.mxu0 0.0
  %5578 = vmatpush1.msra.mxu0 %v5528
  %5579 = vmatprep.subr.mxu0 0.0
  %5580 = vmatpush1.msra.mxu0 %v5529
  %5581 = vmatprep.subr.mxu0 0.0
  %5582 = vmatpush1.msra.mxu0 %v5530
  %5583 = vmatprep.subr.mxu0 0.0
  %5584 = vmatpush1.msra.mxu0 %v5531
  %5585 = vmatprep.subr.mxu0 0.0
  %5586 = vmatpush1.msra.mxu0 %v5532
  %5587 = vmatprep.subr.mxu0 0.0
  %5588 = vmatpush1.msra.mxu0 %v5533
  %5589 = vmatprep.subr.mxu0 0.0
  %5590 = vmatpush1.msra.mxu0 %v5534
  %5591 = vmatprep.subr.mxu0 0.0
  %5592 = vmatpush1.msra.mxu0 %v5535
  %5593 = vmatprep.subr.mxu0 0.0
  %5594 = vmatpush1.msra.mxu0 %v5536
  %5595 = vmatprep.subr.mxu0 0.0
  %5596 = vmatpush1.msra.mxu0 %v5537
  %5597 = vmatprep.subr.mxu0 0.0
  %5598 = vmatpush1.msra.mxu0 %v5538
  %5599 = vmatprep.subr.mxu0 0.0
  %5600 = vmatpush1.msra.mxu0 %v5539
  %5601 = vmatprep.subr.mxu0 0.0
  %5602 = vmatpush1.msra.mxu0 %v5540
  %5603 = vmatprep.subr.mxu0 0.0
  %5604 = vmatpush1.msra.mxu0 %v5541
  %5605 = vmatprep.subr.mxu0 0.0
  %5606 = vmatpush1.msra.mxu0 %v5542
  %5607 = vmatprep.mubr.f32.mxu0 %v5406
  %5608 = vmatmul.mubr.f32.gmra.mrb[0].mxu0 %v5405
  %v5609 = vpop.f32.mrb[0].mxu0
  %v5610 = vadd.f32 0.0, %v5609
  %v5611 = vpop.f32.mrb[0].mxu0
  %5612 = vmatprep.mubr.f32.mxu0 %v5408
  %5613 = vmatmul.mubr.f32.gmra.mrb[0].mxu0 %v5407
  %v5614 = vpop.f32.mrb[0].mxu0
  %v5615 = vadd.f32 0.0, %v5614
  %v5616 = vpop.f32.mrb[0].mxu0
  %5617 = vdwg.mxu0
  %vm5618 = vcmask 130048
  %5619 = vst.msk [vmem:[%s2] sm:$0xff] %vm5618, %v5610
  %5620 = vst.msk [vmem:[%s2 + $0x8] sm:$0xff] %vm5618, %v5615
  // Predicated region
  $region10: #{spectral_conv_start.1} parent=0 // pred_check
    _
  $region11: #{spectral_conv_start.1} parent=0 // pred_check_branch
    %5622 = sbr.rel (0) target = $region13
  $region12: #{spectral_conv_start.1} parent=0 // pred_region
    _
  $region13: #{spectral_conv_start.1} parent=0 // pred_fallthru
    _
  // Predicated region
  $region14: #{spectral_conv_start.1} parent=0 // pred_check
    _
  $region15: #{spectral_conv_start.1} parent=0 // pred_check_branch
    %5624 = sbr.rel (0) target = $region17
  $region16: #{spectral_conv_start.1} parent=0 // pred_region
    _
  $region17: #{spectral_conv_start.1} parent=0 // pred_fallthru
    _

</llo_original>
